<compile_context>
chip_gen: v7x
topology: tpu7x:2x2x1
jax: 0.10.0
libtpu: 0.0.40
codegen_flags: <defaults>
</compile_context>

<pallas_src>
import math
import jax
import jax.numpy as jnp
from jax.experimental import pallas as pl
from jax.experimental.pallas import tpu as pltpu

HIDDEN = 128
NUM_LAYERS = 2          # kernel hard-codes the 2-layer wavefront
NUM_HEADS = 8
HEAD_DIM = HIDDEN // NUM_HEADS
OUTPUT_SIZE = 1         # final linear lowered as multiply + lane-reduce
BATCH_TILE = 64         # batch tile per grid step (parallel axis for v7x megacore)


# ----------------------------------------------------------------------------
# Fused kernel: 2-layer wavefront LSTM -> last-query MHA -> Linear
# ----------------------------------------------------------------------------
def fused_forward_kernel(
        x_ref,                          # (T, bt, Din) f32
        wih0_ref, b0_ref,               # (Din,4H) bf16, (1,4H) f32
        wcomb_ref, b1_ref,              # (2H,8H) bf16 [[Whh1,Wih2],[0,Whh2]], (1,4H) f32
        wq_ref, bq_ref,                 # (H,H) bf16, (1,H) f32
        wkv_ref, bkv_ref,               # (H,2H) bf16, (1,2H) f32
        wo_ref, bo_ref,                 # (H,H) bf16, (1,H) f32
        wl_ref, bl_ref,                 # (1,H) f32, (1,1) f32
        seg_ref, segt_ref,              # (H,NH) f32, (NH,H) f32 head-select
        out_ref,                        # (bt, 1) f32
        seq_scr, g0_scr):               # (T,bt,H) f32, (T,bt,4H) f32
    T, bt, Din = x_ref.shape
    H = HIDDEN

    # ---- hoisted layer-1 input projection: one big bf16 matmul ------------
    # TODO(synk): at production T*B, store g0_scr in bf16 or chunk this
    # projection over time to fit v7x's 64 MiB VMEM.
    x2d = x_ref[...].reshape(T * bt, Din).astype(jnp.bfloat16)
    g0_scr[...] = (jnp.dot(x2d, wih0_ref[...],
                           preferred_element_type=jnp.float32)
                   + b0_ref[...]).reshape(T, bt, 4 * H)

    def lstm_cell(gates, c):
        # PyTorch gate order i, f, g, o (128-lane-aligned slices)
        i = jax.nn.sigmoid(gates[:, 0 * H:1 * H])
        f = jax.nn.sigmoid(gates[:, 1 * H:2 * H])
        g = jnp.tanh(gates[:, 2 * H:3 * H])
        o = jax.nn.sigmoid(gates[:, 3 * H:4 * H])
        c_new = f * c + i * g
        h_new = o * jnp.tanh(c_new)
        return h_new, c_new

    b1 = b1_ref[...]
    zeros = jnp.zeros((bt, H), jnp.float32)

    # ---- wavefront recurrence ---------------------------------------------
    # peeled head: layer-1 step 0 (h1_{-1} = 0 -> recurrence term vanishes)
    a, c1 = lstm_cell(g0_scr[0], zeros)      # a = h1_0
    b, c2 = zeros, zeros                     # b = h2_{-1}

    def wave_step(k, carry):
        # carry entering iteration k: a=h1_{k-1}, b=h2_{k-2}
        a, c1, b, c2 = carry
        hh = jnp.concatenate([a, b], axis=-1).astype(jnp.bfloat16)        # (bt,2H)
        z = jnp.dot(hh, wcomb_ref[...],
                    preferred_element_type=jnp.float32)                   # (bt,8H)
        gates1 = z[:, :4 * H] + g0_scr[k]        # layer-1 step k
        gates2 = z[:, 4 * H:] + b1               # layer-2 step k-1
        a_new, c1_new = lstm_cell(gates1, c1)
        b_new, c2_new = lstm_cell(gates2, c2)
        seq_scr[k - 1] = b_new                   # only layer-2 output is stored
        return a_new, c1_new, b_new, c2_new

    a, c1, b, c2 = jax.lax.fori_loop(
        1, T, wave_step, (a, c1, b, c2),
        unroll=(True if T <= 16 else 8))

    # peeled tail: layer-2 step T-1 (uses h1_{T-1}=a, h2_{T-2}=b)
    hh = jnp.concatenate([a, b], axis=-1).astype(jnp.bfloat16)
    z = jnp.dot(hh, wcomb_ref[...], preferred_element_type=jnp.float32)
    b, c2 = lstm_cell(z[:, 4 * H:] + b1, c2)
    seq_scr[T - 1] = b                           # b == lstm_out[:, -1, :]

    # ---- multi-head attention (last query only) ---------------------------
    lstm_bf = seq_scr[...].reshape(T * bt, H).astype(jnp.bfloat16)
    kv = (jnp.dot(lstm_bf, wkv_ref[...], preferred_element_type=jnp.float32)
          + bkv_ref[...]).reshape(T, bt, 2 * H)
    k_t = kv[:, :, :H]
    v_t = kv[:, :, H:]
    q_last = (jnp.dot(b.astype(jnp.bfloat16), wq_ref[...],
                      preferred_element_type=jnp.float32) + bq_ref[...])   # (bt,H)

    scale = 1.0 / math.sqrt(HEAD_DIM)
    # scores[t,b,h] = scale * sum_{d in head h} q_last[b,d] * k[t,b,d]
    prod2d = (q_last[None, :, :] * k_t).reshape(T * bt, H)
    scores = (jnp.dot(prod2d, seg_ref[...],
                      preferred_element_type=jnp.float32) * scale
              ).reshape(T, bt, NUM_HEADS)

    # softmax over time
    m = jnp.max(scores, axis=0, keepdims=True)
    e = jnp.exp(scores - m)
    denom = jnp.sum(e, axis=0, keepdims=True)
    p = e * pl.reciprocal(denom, approx=True)                              # (T,bt,NH)

    # expand head weights back to H lanes and take weighted sum over time
    p_full = jnp.dot(p.reshape(T * bt, NUM_HEADS), segt_ref[...],
                     preferred_element_type=jnp.float32).reshape(T, bt, H)
    ctx = jnp.sum(p_full * v_t, axis=0)                                    # (bt,H)

    attn = jnp.dot(ctx.astype(jnp.bfloat16), wo_ref[...],
                   preferred_element_type=jnp.float32) + bo_ref[...]       # (bt,H)

    # dropout is identity in eval mode
    # final Linear(H, 1) as VPU multiply + lane reduce
    out_ref[...] = jnp.sum(attn * wl_ref[...], axis=-1, keepdims=True) + bl_ref[...]


# ----------------------------------------------------------------------------
# Wrapper: pad / tile batch, run the fused kernel, slice back
# ----------------------------------------------------------------------------
@jax.jit
def lstm_price_predictor_forward(x, params):
    # x: (B, T, input_size), batch_first like the PyTorch module
    B, T, Din = x.shape
    if B > BATCH_TILE:
        bt = BATCH_TILE
        Bp = ((B + BATCH_TILE - 1) // BATCH_TILE) * BATCH_TILE
    else:
        Bp = max(8, ((B + 7) // 8) * 8)      # pad to f32 sublane multiple
        bt = Bp
    n_tiles = Bp // bt

    x_tm = jnp.transpose(x, (1, 0, 2))       # time-major (T, B, Din)
    if Bp != B:
        x_tm = jnp.pad(x_tm, ((0, 0), (0, Bp - B), (0, 0)))

    weight_args = (
        params['wih0_bf'], params['b0'],
        params['wcomb_bf'], params['b1'],
        params['wq_bf'], params['bq'],
        params['wkv_bf'], params['bkv'],
        params['wo_bf'], params['bo'],
        params['wl_row'], params['bl'],
        params['seg'], params['seg_t'],
    )

    def _full2d(a):  # whole 2-D weight every grid step (block == array)
        return pl.BlockSpec(a.shape, lambda i: (0, 0))

    out = pl.pallas_call(
        fused_forward_kernel,
        out_shape=jax.ShapeDtypeStruct((Bp, OUTPUT_SIZE), jnp.float32),
        grid=(n_tiles,),
        in_specs=[pl.BlockSpec((T, bt, Din), lambda i: (0, i, 0))]
                 + [_full2d(a) for a in weight_args],
        out_specs=pl.BlockSpec((bt, OUTPUT_SIZE), lambda i: (i, 0)),
        scratch_shapes=[
            pltpu.VMEM((T, bt, HIDDEN), jnp.float32),        # layer-2 output seq
            pltpu.VMEM((T, bt, 4 * HIDDEN), jnp.float32),    # hoisted layer-1 gates
        ],
        compiler_params=pltpu.CompilerParams(
            dimension_semantics=("parallel",),
            vmem_limit_bytes=64 * 1024 * 1024,
        ),
    )(x_tm, *weight_args)
    return out[:B]                                            # (B, 1)


# ----------------------------------------------------------------------------
# Parameter construction (deterministic, PyTorch-style uniform init)
# ----------------------------------------------------------------------------
def init_params(key, input_size, hidden_size):
    H = hidden_size

    def u(k, shape, bound):
        return jax.random.uniform(k, shape, jnp.float32, -bound, bound)

    params = {}
    bound = 1.0 / math.sqrt(H)
    keys = jax.random.split(key, 4 * NUM_LAYERS + 10)
    ki = 0
    for layer in range(NUM_LAYERS):
        din = input_size if layer == 0 else H
        w_ih = u(keys[ki], (4 * H, din), bound); ki += 1
        w_hh = u(keys[ki], (4 * H, H), bound); ki += 1
        b_ih = u(keys[ki], (4 * H,), bound); ki += 1
        b_hh = u(keys[ki], (4 * H,), bound); ki += 1
        params[f'wih{layer}_t'] = w_ih.T                      # (din, 4H) f32 (reference)
        params[f'whh{layer}_t'] = w_hh.T                      # (H, 4H)  f32 (reference)
        params[f'b{layer}'] = (b_ih + b_hh)[None, :]          # (1, 4H)

    # kernel LSTM weights: bf16 operands, layers fused for the wavefront matmul
    params['wih0_bf'] = params['wih0_t'].astype(jnp.bfloat16)
    wcomb = jnp.concatenate(
        [jnp.concatenate([params['whh0_t'], params['wih1_t']], axis=1),
         jnp.concatenate([jnp.zeros((H, 4 * H), jnp.float32),
                          params['whh1_t']], axis=1)],
        axis=0)                                               # (2H, 8H)
    params['wcomb_bf'] = wcomb.astype(jnp.bfloat16)

    ab = 1.0 / math.sqrt(H)
    for name in ('wq', 'wk', 'wv', 'wo'):
        w = u(keys[ki], (H, H), ab); ki += 1
        params[name + '_t'] = w.T                             # (H, H) f32 (reference)
    for name in ('bq', 'bk', 'bv', 'bo'):
        params[name] = u(keys[ki], (1, H), ab); ki += 1

    params['wq_bf'] = params['wq_t'].astype(jnp.bfloat16)
    params['wo_bf'] = params['wo_t'].astype(jnp.bfloat16)
    params['wkv_bf'] = jnp.concatenate(
        [params['wk_t'], params['wv_t']], axis=1).astype(jnp.bfloat16)   # (H, 2H)
    params['bkv'] = jnp.concatenate([params['bk'], params['bv']], axis=1)  # (1, 2H)

    w_lin = u(keys[ki], (OUTPUT_SIZE, H), bound); ki += 1     # PyTorch layout (1, H)
    b_lin = u(keys[ki], (OUTPUT_SIZE,), bound); ki += 1
    params['wl_row'] = w_lin                                  # (1, H)
    params['bl'] = b_lin[None, :]                             # (1, 1)

    # Head-segment selection matrices: seg[d, h] = 1 if d // HEAD_DIM == h
    d_idx = jnp.arange(H) // HEAD_DIM
    h_idx = jnp.arange(NUM_HEADS)
    seg = (d_idx[:, None] == h_idx[None, :]).astype(jnp.float32)   # (H, NH)
    params['seg'] = seg
    params['seg_t'] = seg.T                                        # (NH, H)
    return params


# ----------------------------------------------------------------------------
# Pure-JAX f32 reference (full attention over all queries, take last token)
# ----------------------------------------------------------------------------
def reference_forward(x, params):
    B, T, _ = x.shape
    H = HIDDEN
    out = x
    for layer in range(NUM_LAYERS):
        wih_t = params[f'wih{layer}_t']
        whh_t = params[f'whh{layer}_t']
        b = params[f'b{layer}']
        h = jnp.zeros((B, H), jnp.float32)
        c = jnp.zeros((B, H), jnp.float32)
        hs = []
        for t in range(T):
            gates = out[:, t, :] @ wih_t + h @ whh_t + b
            i = jax.nn.sigmoid(gates[:, 0:H])
            f = jax.nn.sigmoid(gates[:, H:2 * H])
            g = jnp.tanh(gates[:, 2 * H:3 * H])
            o = jax.nn.sigmoid(gates[:, 3 * H:4 * H])
            c = f * c + i * g
            h = o * jnp.tanh(c)
            hs.append(h)
        out = jnp.stack(hs, axis=1)
    q = out @ params['wq_t'] + params['bq']
    k = out @ params['wk_t'] + params['bk']
    v = out @ params['wv_t'] + params['bv']
    heads = []
    for hi in range(NUM_HEADS):
        lo, up = hi * HEAD_DIM, (hi + 1) * HEAD_DIM
        s = jnp.einsum('btd,bsd->bts',
                       q[:, :, lo:up] / math.sqrt(HEAD_DIM), k[:, :, lo:up])
        p = jax.nn.softmax(s, axis=-1)
        heads.append(jnp.einsum('bts,bsd->btd', p, v[:, :, lo:up]))
    attn = jnp.concatenate(heads, axis=-1) @ params['wo_t'] + params['bo']
    last = attn[:, -1, :]
    return last @ params['wl_row'].T + params['bl']


if __name__ == "__main__":
    key = jax.random.PRNGKey(0)
    k_x, k_p = jax.random.split(key)

    batch, seq, input_size = 2, 8, 16
    x = jax.random.normal(k_x, (batch, seq, input_size), jnp.float32)
    params = init_params(k_p, input_size, HIDDEN)

    pred = jax.block_until_ready(lstm_price_predictor_forward(x, params))
    ref = jax.block_until_ready(reference_forward(x, params))

    assert pred.shape == (batch, OUTPUT_SIZE), pred.shape
    assert bool(jnp.all(jnp.isfinite(pred)))
    # bf16 matmul operands + approx reciprocal -> slightly looser tolerance
    assert bool(jnp.allclose(pred, ref, rtol=2e-2, atol=2e-2)), (pred, ref)
    print("KERNEL_OK")
</pallas_src>

<mosaic_0001>
module attributes {stable_mosaic.version = 11 : i64} {
  func.func @fused_forward_kernel(%arg0: i32, %arg1: memref<8x8x16xf32, #tpu.memory_space<vmem>>, %arg2: memref<16x512xbf16, #tpu.memory_space<vmem>>, %arg3: memref<1x512xf32, #tpu.memory_space<vmem>>, %arg4: memref<256x1024xbf16, #tpu.memory_space<vmem>>, %arg5: memref<1x512xf32, #tpu.memory_space<vmem>>, %arg6: memref<128x128xbf16, #tpu.memory_space<vmem>>, %arg7: memref<1x128xf32, #tpu.memory_space<vmem>>, %arg8: memref<128x256xbf16, #tpu.memory_space<vmem>>, %arg9: memref<1x256xf32, #tpu.memory_space<vmem>>, %arg10: memref<128x128xbf16, #tpu.memory_space<vmem>>, %arg11: memref<1x128xf32, #tpu.memory_space<vmem>>, %arg12: memref<1x128xf32, #tpu.memory_space<vmem>>, %arg13: memref<1x1xf32, #tpu.memory_space<vmem>>, %arg14: memref<128x8xf32, #tpu.memory_space<vmem>>, %arg15: memref<8x128xf32, #tpu.memory_space<vmem>>, %arg16: memref<8x1xf32, #tpu.memory_space<vmem>>, %arg17: memref<8x8x128xf32, #tpu.memory_space<vmem>>, %arg18: memref<8x8x512xf32, #tpu.memory_space<vmem>>) attributes {dimension_semantics = [#tpu.dimension_semantics<parallel>], iteration_bounds = array<i64: 1>, scalar_prefetch = 0 : i64, scratch_operands = 2 : i64, tpu.core_type = #tpu.core_type<tc>, window_params = [{transform_indices = @transform_0, window_bounds = array<i64: 8, 8, 16>}, {pipeline_mode = #tpu.pipeline_mode<synchronous>, transform_indices = @transform_1, window_bounds = array<i64: 16, 512>}, {pipeline_mode = #tpu.pipeline_mode<synchronous>, transform_indices = @transform_2, window_bounds = array<i64: 1, 512>}, {pipeline_mode = #tpu.pipeline_mode<synchronous>, transform_indices = @transform_3, window_bounds = array<i64: 256, 1024>}, {pipeline_mode = #tpu.pipeline_mode<synchronous>, transform_indices = @transform_4, window_bounds = array<i64: 1, 512>}, {pipeline_mode = #tpu.pipeline_mode<synchronous>, transform_indices = @transform_5, window_bounds = array<i64: 128, 128>}, {pipeline_mode = #tpu.pipeline_mode<synchronous>, transform_indices = @transform_6, window_bounds = array<i64: 1, 128>}, {pipeline_mode = #tpu.pipeline_mode<synchronous>, transform_indices = @transform_7, window_bounds = array<i64: 128, 256>}, {pipeline_mode = #tpu.pipeline_mode<synchronous>, transform_indices = @transform_8, window_bounds = array<i64: 1, 256>}, {pipeline_mode = #tpu.pipeline_mode<synchronous>, transform_indices = @transform_9, window_bounds = array<i64: 128, 128>}, {pipeline_mode = #tpu.pipeline_mode<synchronous>, transform_indices = @transform_10, window_bounds = array<i64: 1, 128>}, {pipeline_mode = #tpu.pipeline_mode<synchronous>, transform_indices = @transform_11, window_bounds = array<i64: 1, 128>}, {pipeline_mode = #tpu.pipeline_mode<synchronous>, transform_indices = @transform_12, window_bounds = array<i64: 1, 1>}, {pipeline_mode = #tpu.pipeline_mode<synchronous>, transform_indices = @transform_13, window_bounds = array<i64: 128, 8>}, {pipeline_mode = #tpu.pipeline_mode<synchronous>, transform_indices = @transform_14, window_bounds = array<i64: 8, 128>}, {transform_indices = @transform_15, window_bounds = array<i64: 8, 1>}]} {
    %c0 = arith.constant 0 : index
    %c0_0 = arith.constant 0 : index
    %c0_1 = arith.constant 0 : index
    %0 = vector.load %arg1[%c0, %c0_0, %c0_1] : memref<8x8x16xf32, #tpu.memory_space<vmem>>, vector<8x8x16xf32>
    %1 = vector.shape_cast %0 : vector<8x8x16xf32> to vector<64x16xf32>
    %2 = arith.truncf %1 : vector<64x16xf32> to vector<64x16xbf16>
    %c0_2 = arith.constant 0 : index
    %c0_3 = arith.constant 0 : index
    %3 = vector.load %arg2[%c0_2, %c0_3] : memref<16x512xbf16, #tpu.memory_space<vmem>>, vector<16x512xbf16>
    %cst = arith.constant dense<0.000000e+00> : vector<64x512xf32>
    %4 = tpu.matmul %2, %3, %cst {dimension_numbers = #tpu.dot_dimension_numbers<[1], [0], [0], [1], [0, 0, 1, 1], [], []>} : vector<64x16xbf16>, vector<16x512xbf16>, vector<64x512xf32> -> vector<64x512xf32>
    %c0_4 = arith.constant 0 : index
    %c0_5 = arith.constant 0 : index
    %5 = vector.load %arg3[%c0_4, %c0_5] : memref<1x512xf32, #tpu.memory_space<vmem>>, vector<1x512xf32>
    %6 = vector.broadcast %5 : vector<1x512xf32> to vector<64x512xf32>
    %7 = arith.addf %4, %6 : vector<64x512xf32>
    %8 = vector.shape_cast %7 : vector<64x512xf32> to vector<8x8x512xf32>
    %c0_6 = arith.constant 0 : index
    %c0_7 = arith.constant 0 : index
    %c0_8 = arith.constant 0 : index
    %9 = vector.load %arg18[%c0_6, %c0_7, %c0_8] : memref<8x8x512xf32, #tpu.memory_space<vmem>>, vector<8x8x512xf32>
    tpu.vector_store %arg18[%c0_6, %c0_7, %c0_8], %8 {strides = array<i32>} : memref<8x8x512xf32, #tpu.memory_space<vmem>>, vector<8x8x512xf32>,
    %c0_9 = arith.constant 0 : index
    %c0_10 = arith.constant 0 : index
    %10 = vector.load %arg5[%c0_9, %c0_10] : memref<1x512xf32, #tpu.memory_space<vmem>>, vector<1x512xf32>
    %cst_11 = arith.constant 0.000000e+00 : f32
    %11 = vector.broadcast %cst_11 : f32 to vector<8x128xf32>
    %c0_12 = arith.constant 0 : index
    %c0_13 = arith.constant 0 : index
    %c0_14 = arith.constant 0 : index
    %12 = vector.load %arg18[%c0_12, %c0_13, %c0_14] : memref<8x8x512xf32, #tpu.memory_space<vmem>>, vector<1x8x512xf32>
    %13 = vector.shape_cast %12 : vector<1x8x512xf32> to vector<8x512xf32>
    %14 = vector.extract_strided_slice %13 {offsets = [0, 0], sizes = [8, 128], strides = [1, 1]} : vector<8x512xf32> to vector<8x128xf32>
    %15 = arith.negf %14 : vector<8x128xf32>
    %16 = math.exp %15 : vector<8x128xf32>
    %cst_15 = arith.constant 1.000000e+00 : f32
    %17 = vector.broadcast %cst_15 : f32 to vector<8x128xf32>
    %18 = arith.addf %17, %16 : vector<8x128xf32>
    %19 = arith.divf %17, %18 : vector<8x128xf32>
    %20 = vector.extract_strided_slice %13 {offsets = [0, 128], sizes = [8, 128], strides = [1, 1]} : vector<8x512xf32> to vector<8x128xf32>
    %21 = arith.negf %20 : vector<8x128xf32>
    %22 = math.exp %21 : vector<8x128xf32>
    %cst_16 = arith.constant 1.000000e+00 : f32
    %23 = vector.broadcast %cst_16 : f32 to vector<8x128xf32>
    %24 = arith.addf %23, %22 : vector<8x128xf32>
    %25 = arith.divf %23, %24 : vector<8x128xf32>
    %26 = vector.extract_strided_slice %13 {offsets = [0, 256], sizes = [8, 128], strides = [1, 1]} : vector<8x512xf32> to vector<8x128xf32>
    %27 = math.tanh %26 : vector<8x128xf32>
    %28 = vector.extract_strided_slice %13 {offsets = [0, 384], sizes = [8, 128], strides = [1, 1]} : vector<8x512xf32> to vector<8x128xf32>
    %29 = arith.negf %28 : vector<8x128xf32>
    %30 = math.exp %29 : vector<8x128xf32>
    %cst_17 = arith.constant 1.000000e+00 : f32
    %31 = vector.broadcast %cst_17 : f32 to vector<8x128xf32>
    %32 = arith.addf %31, %30 : vector<8x128xf32>
    %33 = arith.divf %31, %32 : vector<8x128xf32>
    %34 = arith.mulf %25, %11 : vector<8x128xf32>
    %35 = arith.mulf %19, %27 : vector<8x128xf32>
    %36 = arith.addf %34, %35 : vector<8x128xf32>
    %37 = math.tanh %36 : vector<8x128xf32>
    %38 = arith.mulf %33, %37 : vector<8x128xf32>
    %c1_i32 = arith.constant 1 : i32
    %39 = tpu.concatenate %38, %11 in 1 : vector<8x128xf32>, vector<8x128xf32> -> vector<8x256xf32>
    %40 = arith.truncf %39 : vector<8x256xf32> to vector<8x256xbf16>
    %c0_18 = arith.constant 0 : index
    %c0_19 = arith.constant 0 : index
    %41 = vector.load %arg4[%c0_18, %c0_19] : memref<256x1024xbf16, #tpu.memory_space<vmem>>, vector<256x1024xbf16>
    %cst_20 = arith.constant dense<0.000000e+00> : vector<8x1024xf32>
    %42 = tpu.matmul %40, %41, %cst_20 {dimension_numbers = #tpu.dot_dimension_numbers<[1], [0], [0], [1], [0, 0, 1, 1], [], []>} : vector<8x256xbf16>, vector<256x1024xbf16>, vector<8x1024xf32> -> vector<8x1024xf32>
    %43 = vector.extract_strided_slice %42 {offsets = [0, 0], sizes = [8, 512], strides = [1, 1]} : vector<8x1024xf32> to vector<8x512xf32>
    %44 = arith.index_cast %c1_i32 : i32 to index
    %c0_21 = arith.constant 0 : index
    %c0_22 = arith.constant 0 : index
    %45 = vector.load %arg18[%44, %c0_21, %c0_22] : memref<8x8x512xf32, #tpu.memory_space<vmem>>, vector<1x8x512xf32>
    %46 = vector.shape_cast %45 : vector<1x8x512xf32> to vector<8x512xf32>
    %47 = arith.addf %43, %46 : vector<8x512xf32>
    %48 = vector.extract_strided_slice %42 {offsets = [0, 512], sizes = [8, 512], strides = [1, 1]} : vector<8x1024xf32> to vector<8x512xf32>
    %49 = vector.broadcast %10 : vector<1x512xf32> to vector<8x512xf32>
    %50 = arith.addf %48, %49 : vector<8x512xf32>
    %51 = vector.extract_strided_slice %47 {offsets = [0, 0], sizes = [8, 128], strides = [1, 1]} : vector<8x512xf32> to vector<8x128xf32>
    %52 = arith.negf %51 : vector<8x128xf32>
    %53 = math.exp %52 : vector<8x128xf32>
    %cst_23 = arith.constant 1.000000e+00 : f32
    %54 = vector.broadcast %cst_23 : f32 to vector<8x128xf32>
    %55 = arith.addf %54, %53 : vector<8x128xf32>
    %56 = arith.divf %54, %55 : vector<8x128xf32>
    %57 = vector.extract_strided_slice %47 {offsets = [0, 128], sizes = [8, 128], strides = [1, 1]} : vector<8x512xf32> to vector<8x128xf32>
    %58 = arith.negf %57 : vector<8x128xf32>
    %59 = math.exp %58 : vector<8x128xf32>
    %cst_24 = arith.constant 1.000000e+00 : f32
    %60 = vector.broadcast %cst_24 : f32 to vector<8x128xf32>
    %61 = arith.addf %60, %59 : vector<8x128xf32>
    %62 = arith.divf %60, %61 : vector<8x128xf32>
    %63 = vector.extract_strided_slice %47 {offsets = [0, 256], sizes = [8, 128], strides = [1, 1]} : vector<8x512xf32> to vector<8x128xf32>
    %64 = math.tanh %63 : vector<8x128xf32>
    %65 = vector.extract_strided_slice %47 {offsets = [0, 384], sizes = [8, 128], strides = [1, 1]} : vector<8x512xf32> to vector<8x128xf32>
    %66 = arith.negf %65 : vector<8x128xf32>
    %67 = math.exp %66 : vector<8x128xf32>
    %cst_25 = arith.constant 1.000000e+00 : f32
    %68 = vector.broadcast %cst_25 : f32 to vector<8x128xf32>
    %69 = arith.addf %68, %67 : vector<8x128xf32>
    %70 = arith.divf %68, %69 : vector<8x128xf32>
    %71 = arith.mulf %62, %36 : vector<8x128xf32>
    %72 = arith.mulf %56, %64 : vector<8x128xf32>
    %73 = arith.addf %71, %72 : vector<8x128xf32>
    %74 = math.tanh %73 : vector<8x128xf32>
    %75 = arith.mulf %70, %74 : vector<8x128xf32>
    %76 = vector.extract_strided_slice %50 {offsets = [0, 0], sizes = [8, 128], strides = [1, 1]} : vector<8x512xf32> to vector<8x128xf32>
    %77 = arith.negf %76 : vector<8x128xf32>
    %78 = math.exp %77 : vector<8x128xf32>
    %cst_26 = arith.constant 1.000000e+00 : f32
    %79 = vector.broadcast %cst_26 : f32 to vector<8x128xf32>
    %80 = arith.addf %79, %78 : vector<8x128xf32>
    %81 = arith.divf %79, %80 : vector<8x128xf32>
    %82 = vector.extract_strided_slice %50 {offsets = [0, 128], sizes = [8, 128], strides = [1, 1]} : vector<8x512xf32> to vector<8x128xf32>
    %83 = arith.negf %82 : vector<8x128xf32>
    %84 = math.exp %83 : vector<8x128xf32>
    %cst_27 = arith.constant 1.000000e+00 : f32
    %85 = vector.broadcast %cst_27 : f32 to vector<8x128xf32>
    %86 = arith.addf %85, %84 : vector<8x128xf32>
    %87 = arith.divf %85, %86 : vector<8x128xf32>
    %88 = vector.extract_strided_slice %50 {offsets = [0, 256], sizes = [8, 128], strides = [1, 1]} : vector<8x512xf32> to vector<8x128xf32>
    %89 = math.tanh %88 : vector<8x128xf32>
    %90 = vector.extract_strided_slice %50 {offsets = [0, 384], sizes = [8, 128], strides = [1, 1]} : vector<8x512xf32> to vector<8x128xf32>
    %91 = arith.negf %90 : vector<8x128xf32>
    %92 = math.exp %91 : vector<8x128xf32>
    %cst_28 = arith.constant 1.000000e+00 : f32
    %93 = vector.broadcast %cst_28 : f32 to vector<8x128xf32>
    %94 = arith.addf %93, %92 : vector<8x128xf32>
    %95 = arith.divf %93, %94 : vector<8x128xf32>
    %96 = arith.mulf %87, %11 : vector<8x128xf32>
    %97 = arith.mulf %81, %89 : vector<8x128xf32>
    %98 = arith.addf %96, %97 : vector<8x128xf32>
    %99 = math.tanh %98 : vector<8x128xf32>
    %100 = arith.mulf %95, %99 : vector<8x128xf32>
    %c1_i32_29 = arith.constant 1 : i32
    %101 = arith.subi %c1_i32, %c1_i32_29 : i32
    %102 = arith.index_cast %101 : i32 to index
    %c0_30 = arith.constant 0 : index
    %c0_31 = arith.constant 0 : index
    %103 = vector.load %arg17[%102, %c0_30, %c0_31] : memref<8x8x128xf32, #tpu.memory_space<vmem>>, vector<1x8x128xf32>
    %104 = vector.shape_cast %103 : vector<1x8x128xf32> to vector<8x128xf32>
    %105 = vector.shape_cast %100 : vector<8x128xf32> to vector<1x8x128xf32>
    tpu.vector_store %arg17[%102, %c0_30, %c0_31], %105 {strides = array<i32>} : memref<8x8x128xf32, #tpu.memory_space<vmem>>, vector<1x8x128xf32>,
    %c2_i32 = arith.constant 2 : i32
    %106 = tpu.concatenate %75, %100 in 1 : vector<8x128xf32>, vector<8x128xf32> -> vector<8x256xf32>
    %107 = arith.truncf %106 : vector<8x256xf32> to vector<8x256xbf16>
    %c0_32 = arith.constant 0 : index
    %c0_33 = arith.constant 0 : index
    %108 = vector.load %arg4[%c0_32, %c0_33] : memref<256x1024xbf16, #tpu.memory_space<vmem>>, vector<256x1024xbf16>
    %cst_34 = arith.constant dense<0.000000e+00> : vector<8x1024xf32>
    %109 = tpu.matmul %107, %108, %cst_34 {dimension_numbers = #tpu.dot_dimension_numbers<[1], [0], [0], [1], [0, 0, 1, 1], [], []>} : vector<8x256xbf16>, vector<256x1024xbf16>, vector<8x1024xf32> -> vector<8x1024xf32>
    %110 = vector.extract_strided_slice %109 {offsets = [0, 0], sizes = [8, 512], strides = [1, 1]} : vector<8x1024xf32> to vector<8x512xf32>
    %111 = arith.index_cast %c2_i32 : i32 to index
    %c0_35 = arith.constant 0 : index
    %c0_36 = arith.constant 0 : index
    %112 = vector.load %arg18[%111, %c0_35, %c0_36] : memref<8x8x512xf32, #tpu.memory_space<vmem>>, vector<1x8x512xf32>
    %113 = vector.shape_cast %112 : vector<1x8x512xf32> to vector<8x512xf32>
    %114 = arith.addf %110, %113 : vector<8x512xf32>
    %115 = vector.extract_strided_slice %109 {offsets = [0, 512], sizes = [8, 512], strides = [1, 1]} : vector<8x1024xf32> to vector<8x512xf32>
    %116 = vector.broadcast %10 : vector<1x512xf32> to vector<8x512xf32>
    %117 = arith.addf %115, %116 : vector<8x512xf32>
    %118 = vector.extract_strided_slice %114 {offsets = [0, 0], sizes = [8, 128], strides = [1, 1]} : vector<8x512xf32> to vector<8x128xf32>
    %119 = arith.negf %118 : vector<8x128xf32>
    %120 = math.exp %119 : vector<8x128xf32>
    %cst_37 = arith.constant 1.000000e+00 : f32
    %121 = vector.broadcast %cst_37 : f32 to vector<8x128xf32>
    %122 = arith.addf %121, %120 : vector<8x128xf32>
    %123 = arith.divf %121, %122 : vector<8x128xf32>
    %124 = vector.extract_strided_slice %114 {offsets = [0, 128], sizes = [8, 128], strides = [1, 1]} : vector<8x512xf32> to vector<8x128xf32>
    %125 = arith.negf %124 : vector<8x128xf32>
    %126 = math.exp %125 : vector<8x128xf32>
    %cst_38 = arith.constant 1.000000e+00 : f32
    %127 = vector.broadcast %cst_38 : f32 to vector<8x128xf32>
    %128 = arith.addf %127, %126 : vector<8x128xf32>
    %129 = arith.divf %127, %128 : vector<8x128xf32>
    %130 = vector.extract_strided_slice %114 {offsets = [0, 256], sizes = [8, 128], strides = [1, 1]} : vector<8x512xf32> to vector<8x128xf32>
    %131 = math.tanh %130 : vector<8x128xf32>
    %132 = vector.extract_strided_slice %114 {offsets = [0, 384], sizes = [8, 128], strides = [1, 1]} : vector<8x512xf32> to vector<8x128xf32>
    %133 = arith.negf %132 : vector<8x128xf32>
    %134 = math.exp %133 : vector<8x128xf32>
    %cst_39 = arith.constant 1.000000e+00 : f32
    %135 = vector.broadcast %cst_39 : f32 to vector<8x128xf32>
    %136 = arith.addf %135, %134 : vector<8x128xf32>
    %137 = arith.divf %135, %136 : vector<8x128xf32>
    %138 = arith.mulf %129, %73 : vector<8x128xf32>
    %139 = arith.mulf %123, %131 : vector<8x128xf32>
    %140 = arith.addf %138, %139 : vector<8x128xf32>
    %141 = math.tanh %140 : vector<8x128xf32>
    %142 = arith.mulf %137, %141 : vector<8x128xf32>
    %143 = vector.extract_strided_slice %117 {offsets = [0, 0], sizes = [8, 128], strides = [1, 1]} : vector<8x512xf32> to vector<8x128xf32>
    %144 = arith.negf %143 : vector<8x128xf32>
    %145 = math.exp %144 : vector<8x128xf32>
    %cst_40 = arith.constant 1.000000e+00 : f32
    %146 = vector.broadcast %cst_40 : f32 to vector<8x128xf32>
    %147 = arith.addf %146, %145 : vector<8x128xf32>
    %148 = arith.divf %146, %147 : vector<8x128xf32>
    %149 = vector.extract_strided_slice %117 {offsets = [0, 128], sizes = [8, 128], strides = [1, 1]} : vector<8x512xf32> to vector<8x128xf32>
    %150 = arith.negf %149 : vector<8x128xf32>
    %151 = math.exp %150 : vector<8x128xf32>
    %cst_41 = arith.constant 1.000000e+00 : f32
    %152 = vector.broadcast %cst_41 : f32 to vector<8x128xf32>
    %153 = arith.addf %152, %151 : vector<8x128xf32>
    %154 = arith.divf %152, %153 : vector<8x128xf32>
    %155 = vector.extract_strided_slice %117 {offsets = [0, 256], sizes = [8, 128], strides = [1, 1]} : vector<8x512xf32> to vector<8x128xf32>
    %156 = math.tanh %155 : vector<8x128xf32>
    %157 = vector.extract_strided_slice %117 {offsets = [0, 384], sizes = [8, 128], strides = [1, 1]} : vector<8x512xf32> to vector<8x128xf32>
    %158 = arith.negf %157 : vector<8x128xf32>
    %159 = math.exp %158 : vector<8x128xf32>
    %cst_42 = arith.constant 1.000000e+00 : f32
    %160 = vector.broadcast %cst_42 : f32 to vector<8x128xf32>
    %161 = arith.addf %160, %159 : vector<8x128xf32>
    %162 = arith.divf %160, %161 : vector<8x128xf32>
    %163 = arith.mulf %154, %98 : vector<8x128xf32>
    %164 = arith.mulf %148, %156 : vector<8x128xf32>
    %165 = arith.addf %163, %164 : vector<8x128xf32>
    %166 = math.tanh %165 : vector<8x128xf32>
    %167 = arith.mulf %162, %166 : vector<8x128xf32>
    %c1_i32_43 = arith.constant 1 : i32
    %168 = arith.subi %c2_i32, %c1_i32_43 : i32
    %169 = arith.index_cast %168 : i32 to index
    %c0_44 = arith.constant 0 : index
    %c0_45 = arith.constant 0 : index
    %170 = vector.load %arg17[%169, %c0_44, %c0_45] : memref<8x8x128xf32, #tpu.memory_space<vmem>>, vector<1x8x128xf32>
    %171 = vector.shape_cast %170 : vector<1x8x128xf32> to vector<8x128xf32>
    %172 = vector.shape_cast %167 : vector<8x128xf32> to vector<1x8x128xf32>
    tpu.vector_store %arg17[%169, %c0_44, %c0_45], %172 {strides = array<i32>} : memref<8x8x128xf32, #tpu.memory_space<vmem>>, vector<1x8x128xf32>,
    %c3_i32 = arith.constant 3 : i32
    %173 = tpu.concatenate %142, %167 in 1 : vector<8x128xf32>, vector<8x128xf32> -> vector<8x256xf32>
    %174 = arith.truncf %173 : vector<8x256xf32> to vector<8x256xbf16>
    %c0_46 = arith.constant 0 : index
    %c0_47 = arith.constant 0 : index
    %175 = vector.load %arg4[%c0_46, %c0_47] : memref<256x1024xbf16, #tpu.memory_space<vmem>>, vector<256x1024xbf16>
    %cst_48 = arith.constant dense<0.000000e+00> : vector<8x1024xf32>
    %176 = tpu.matmul %174, %175, %cst_48 {dimension_numbers = #tpu.dot_dimension_numbers<[1], [0], [0], [1], [0, 0, 1, 1], [], []>} : vector<8x256xbf16>, vector<256x1024xbf16>, vector<8x1024xf32> -> vector<8x1024xf32>
    %177 = vector.extract_strided_slice %176 {offsets = [0, 0], sizes = [8, 512], strides = [1, 1]} : vector<8x1024xf32> to vector<8x512xf32>
    %178 = arith.index_cast %c3_i32 : i32 to index
    %c0_49 = arith.constant 0 : index
    %c0_50 = arith.constant 0 : index
    %179 = vector.load %arg18[%178, %c0_49, %c0_50] : memref<8x8x512xf32, #tpu.memory_space<vmem>>, vector<1x8x512xf32>
    %180 = vector.shape_cast %179 : vector<1x8x512xf32> to vector<8x512xf32>
    %181 = arith.addf %177, %180 : vector<8x512xf32>
    %182 = vector.extract_strided_slice %176 {offsets = [0, 512], sizes = [8, 512], strides = [1, 1]} : vector<8x1024xf32> to vector<8x512xf32>
    %183 = vector.broadcast %10 : vector<1x512xf32> to vector<8x512xf32>
    %184 = arith.addf %182, %183 : vector<8x512xf32>
    %185 = vector.extract_strided_slice %181 {offsets = [0, 0], sizes = [8, 128], strides = [1, 1]} : vector<8x512xf32> to vector<8x128xf32>
    %186 = arith.negf %185 : vector<8x128xf32>
    %187 = math.exp %186 : vector<8x128xf32>
    %cst_51 = arith.constant 1.000000e+00 : f32
    %188 = vector.broadcast %cst_51 : f32 to vector<8x128xf32>
    %189 = arith.addf %188, %187 : vector<8x128xf32>
    %190 = arith.divf %188, %189 : vector<8x128xf32>
    %191 = vector.extract_strided_slice %181 {offsets = [0, 128], sizes = [8, 128], strides = [1, 1]} : vector<8x512xf32> to vector<8x128xf32>
    %192 = arith.negf %191 : vector<8x128xf32>
    %193 = math.exp %192 : vector<8x128xf32>
    %cst_52 = arith.constant 1.000000e+00 : f32
    %194 = vector.broadcast %cst_52 : f32 to vector<8x128xf32>
    %195 = arith.addf %194, %193 : vector<8x128xf32>
    %196 = arith.divf %194, %195 : vector<8x128xf32>
    %197 = vector.extract_strided_slice %181 {offsets = [0, 256], sizes = [8, 128], strides = [1, 1]} : vector<8x512xf32> to vector<8x128xf32>
    %198 = math.tanh %197 : vector<8x128xf32>
    %199 = vector.extract_strided_slice %181 {offsets = [0, 384], sizes = [8, 128], strides = [1, 1]} : vector<8x512xf32> to vector<8x128xf32>
    %200 = arith.negf %199 : vector<8x128xf32>
    %201 = math.exp %200 : vector<8x128xf32>
    %cst_53 = arith.constant 1.000000e+00 : f32
    %202 = vector.broadcast %cst_53 : f32 to vector<8x128xf32>
    %203 = arith.addf %202, %201 : vector<8x128xf32>
    %204 = arith.divf %202, %203 : vector<8x128xf32>
    %205 = arith.mulf %196, %140 : vector<8x128xf32>
    %206 = arith.mulf %190, %198 : vector<8x128xf32>
    %207 = arith.addf %205, %206 : vector<8x128xf32>
    %208 = math.tanh %207 : vector<8x128xf32>
    %209 = arith.mulf %204, %208 : vector<8x128xf32>
    %210 = vector.extract_strided_slice %184 {offsets = [0, 0], sizes = [8, 128], strides = [1, 1]} : vector<8x512xf32> to vector<8x128xf32>
    %211 = arith.negf %210 : vector<8x128xf32>
    %212 = math.exp %211 : vector<8x128xf32>
    %cst_54 = arith.constant 1.000000e+00 : f32
    %213 = vector.broadcast %cst_54 : f32 to vector<8x128xf32>
    %214 = arith.addf %213, %212 : vector<8x128xf32>
    %215 = arith.divf %213, %214 : vector<8x128xf32>
    %216 = vector.extract_strided_slice %184 {offsets = [0, 128], sizes = [8, 128], strides = [1, 1]} : vector<8x512xf32> to vector<8x128xf32>
    %217 = arith.negf %216 : vector<8x128xf32>
    %218 = math.exp %217 : vector<8x128xf32>
    %cst_55 = arith.constant 1.000000e+00 : f32
    %219 = vector.broadcast %cst_55 : f32 to vector<8x128xf32>
    %220 = arith.addf %219, %218 : vector<8x128xf32>
    %221 = arith.divf %219, %220 : vector<8x128xf32>
    %222 = vector.extract_strided_slice %184 {offsets = [0, 256], sizes = [8, 128], strides = [1, 1]} : vector<8x512xf32> to vector<8x128xf32>
    %223 = math.tanh %222 : vector<8x128xf32>
    %224 = vector.extract_strided_slice %184 {offsets = [0, 384], sizes = [8, 128], strides = [1, 1]} : vector<8x512xf32> to vector<8x128xf32>
    %225 = arith.negf %224 : vector<8x128xf32>
    %226 = math.exp %225 : vector<8x128xf32>
    %cst_56 = arith.constant 1.000000e+00 : f32
    %227 = vector.broadcast %cst_56 : f32 to vector<8x128xf32>
    %228 = arith.addf %227, %226 : vector<8x128xf32>
    %229 = arith.divf %227, %228 : vector<8x128xf32>
    %230 = arith.mulf %221, %165 : vector<8x128xf32>
    %231 = arith.mulf %215, %223 : vector<8x128xf32>
    %232 = arith.addf %230, %231 : vector<8x128xf32>
    %233 = math.tanh %232 : vector<8x128xf32>
    %234 = arith.mulf %229, %233 : vector<8x128xf32>
    %c1_i32_57 = arith.constant 1 : i32
    %235 = arith.subi %c3_i32, %c1_i32_57 : i32
    %236 = arith.index_cast %235 : i32 to index
    %c0_58 = arith.constant 0 : index
    %c0_59 = arith.constant 0 : index
    %237 = vector.load %arg17[%236, %c0_58, %c0_59] : memref<8x8x128xf32, #tpu.memory_space<vmem>>, vector<1x8x128xf32>
    %238 = vector.shape_cast %237 : vector<1x8x128xf32> to vector<8x128xf32>
    %239 = vector.shape_cast %234 : vector<8x128xf32> to vector<1x8x128xf32>
    tpu.vector_store %arg17[%236, %c0_58, %c0_59], %239 {strides = array<i32>} : memref<8x8x128xf32, #tpu.memory_space<vmem>>, vector<1x8x128xf32>,
    %c4_i32 = arith.constant 4 : i32
    %240 = tpu.concatenate %209, %234 in 1 : vector<8x128xf32>, vector<8x128xf32> -> vector<8x256xf32>
    %241 = arith.truncf %240 : vector<8x256xf32> to vector<8x256xbf16>
    %c0_60 = arith.constant 0 : index
    %c0_61 = arith.constant 0 : index
    %242 = vector.load %arg4[%c0_60, %c0_61] : memref<256x1024xbf16, #tpu.memory_space<vmem>>, vector<256x1024xbf16>
    %cst_62 = arith.constant dense<0.000000e+00> : vector<8x1024xf32>
    %243 = tpu.matmul %241, %242, %cst_62 {dimension_numbers = #tpu.dot_dimension_numbers<[1], [0], [0], [1], [0, 0, 1, 1], [], []>} : vector<8x256xbf16>, vector<256x1024xbf16>, vector<8x1024xf32> -> vector<8x1024xf32>
    %244 = vector.extract_strided_slice %243 {offsets = [0, 0], sizes = [8, 512], strides = [1, 1]} : vector<8x1024xf32> to vector<8x512xf32>
    %245 = arith.index_cast %c4_i32 : i32 to index
    %c0_63 = arith.constant 0 : index
    %c0_64 = arith.constant 0 : index
    %246 = vector.load %arg18[%245, %c0_63, %c0_64] : memref<8x8x512xf32, #tpu.memory_space<vmem>>, vector<1x8x512xf32>
    %247 = vector.shape_cast %246 : vector<1x8x512xf32> to vector<8x512xf32>
    %248 = arith.addf %244, %247 : vector<8x512xf32>
    %249 = vector.extract_strided_slice %243 {offsets = [0, 512], sizes = [8, 512], strides = [1, 1]} : vector<8x1024xf32> to vector<8x512xf32>
    %250 = vector.broadcast %10 : vector<1x512xf32> to vector<8x512xf32>
    %251 = arith.addf %249, %250 : vector<8x512xf32>
    %252 = vector.extract_strided_slice %248 {offsets = [0, 0], sizes = [8, 128], strides = [1, 1]} : vector<8x512xf32> to vector<8x128xf32>
    %253 = arith.negf %252 : vector<8x128xf32>
    %254 = math.exp %253 : vector<8x128xf32>
    %cst_65 = arith.constant 1.000000e+00 : f32
    %255 = vector.broadcast %cst_65 : f32 to vector<8x128xf32>
    %256 = arith.addf %255, %254 : vector<8x128xf32>
    %257 = arith.divf %255, %256 : vector<8x128xf32>
    %258 = vector.extract_strided_slice %248 {offsets = [0, 128], sizes = [8, 128], strides = [1, 1]} : vector<8x512xf32> to vector<8x128xf32>
    %259 = arith.negf %258 : vector<8x128xf32>
    %260 = math.exp %259 : vector<8x128xf32>
    %cst_66 = arith.constant 1.000000e+00 : f32
    %261 = vector.broadcast %cst_66 : f32 to vector<8x128xf32>
    %262 = arith.addf %261, %260 : vector<8x128xf32>
    %263 = arith.divf %261, %262 : vector<8x128xf32>
    %264 = vector.extract_strided_slice %248 {offsets = [0, 256], sizes = [8, 128], strides = [1, 1]} : vector<8x512xf32> to vector<8x128xf32>
    %265 = math.tanh %264 : vector<8x128xf32>
    %266 = vector.extract_strided_slice %248 {offsets = [0, 384], sizes = [8, 128], strides = [1, 1]} : vector<8x512xf32> to vector<8x128xf32>
    %267 = arith.negf %266 : vector<8x128xf32>
    %268 = math.exp %267 : vector<8x128xf32>
    %cst_67 = arith.constant 1.000000e+00 : f32
    %269 = vector.broadcast %cst_67 : f32 to vector<8x128xf32>
    %270 = arith.addf %269, %268 : vector<8x128xf32>
    %271 = arith.divf %269, %270 : vector<8x128xf32>
    %272 = arith.mulf %263, %207 : vector<8x128xf32>
    %273 = arith.mulf %257, %265 : vector<8x128xf32>
    %274 = arith.addf %272, %273 : vector<8x128xf32>
    %275 = math.tanh %274 : vector<8x128xf32>
    %276 = arith.mulf %271, %275 : vector<8x128xf32>
    %277 = vector.extract_strided_slice %251 {offsets = [0, 0], sizes = [8, 128], strides = [1, 1]} : vector<8x512xf32> to vector<8x128xf32>
    %278 = arith.negf %277 : vector<8x128xf32>
    %279 = math.exp %278 : vector<8x128xf32>
    %cst_68 = arith.constant 1.000000e+00 : f32
    %280 = vector.broadcast %cst_68 : f32 to vector<8x128xf32>
    %281 = arith.addf %280, %279 : vector<8x128xf32>
    %282 = arith.divf %280, %281 : vector<8x128xf32>
    %283 = vector.extract_strided_slice %251 {offsets = [0, 128], sizes = [8, 128], strides = [1, 1]} : vector<8x512xf32> to vector<8x128xf32>
    %284 = arith.negf %283 : vector<8x128xf32>
    %285 = math.exp %284 : vector<8x128xf32>
    %cst_69 = arith.constant 1.000000e+00 : f32
    %286 = vector.broadcast %cst_69 : f32 to vector<8x128xf32>
    %287 = arith.addf %286, %285 : vector<8x128xf32>
    %288 = arith.divf %286, %287 : vector<8x128xf32>
    %289 = vector.extract_strided_slice %251 {offsets = [0, 256], sizes = [8, 128], strides = [1, 1]} : vector<8x512xf32> to vector<8x128xf32>
    %290 = math.tanh %289 : vector<8x128xf32>
    %291 = vector.extract_strided_slice %251 {offsets = [0, 384], sizes = [8, 128], strides = [1, 1]} : vector<8x512xf32> to vector<8x128xf32>
    %292 = arith.negf %291 : vector<8x128xf32>
    %293 = math.exp %292 : vector<8x128xf32>
    %cst_70 = arith.constant 1.000000e+00 : f32
    %294 = vector.broadcast %cst_70 : f32 to vector<8x128xf32>
    %295 = arith.addf %294, %293 : vector<8x128xf32>
    %296 = arith.divf %294, %295 : vector<8x128xf32>
    %297 = arith.mulf %288, %232 : vector<8x128xf32>
    %298 = arith.mulf %282, %290 : vector<8x128xf32>
    %299 = arith.addf %297, %298 : vector<8x128xf32>
    %300 = math.tanh %299 : vector<8x128xf32>
    %301 = arith.mulf %296, %300 : vector<8x128xf32>
    %c1_i32_71 = arith.constant 1 : i32
    %302 = arith.subi %c4_i32, %c1_i32_71 : i32
    %303 = arith.index_cast %302 : i32 to index
    %c0_72 = arith.constant 0 : index
    %c0_73 = arith.constant 0 : index
    %304 = vector.load %arg17[%303, %c0_72, %c0_73] : memref<8x8x128xf32, #tpu.memory_space<vmem>>, vector<1x8x128xf32>
    %305 = vector.shape_cast %304 : vector<1x8x128xf32> to vector<8x128xf32>
    %306 = vector.shape_cast %301 : vector<8x128xf32> to vector<1x8x128xf32>
    tpu.vector_store %arg17[%303, %c0_72, %c0_73], %306 {strides = array<i32>} : memref<8x8x128xf32, #tpu.memory_space<vmem>>, vector<1x8x128xf32>,
    %c5_i32 = arith.constant 5 : i32
    %307 = tpu.concatenate %276, %301 in 1 : vector<8x128xf32>, vector<8x128xf32> -> vector<8x256xf32>
    %308 = arith.truncf %307 : vector<8x256xf32> to vector<8x256xbf16>
    %c0_74 = arith.constant 0 : index
    %c0_75 = arith.constant 0 : index
    %309 = vector.load %arg4[%c0_74, %c0_75] : memref<256x1024xbf16, #tpu.memory_space<vmem>>, vector<256x1024xbf16>
    %cst_76 = arith.constant dense<0.000000e+00> : vector<8x1024xf32>
    %310 = tpu.matmul %308, %309, %cst_76 {dimension_numbers = #tpu.dot_dimension_numbers<[1], [0], [0], [1], [0, 0, 1, 1], [], []>} : vector<8x256xbf16>, vector<256x1024xbf16>, vector<8x1024xf32> -> vector<8x1024xf32>
    %311 = vector.extract_strided_slice %310 {offsets = [0, 0], sizes = [8, 512], strides = [1, 1]} : vector<8x1024xf32> to vector<8x512xf32>
    %312 = arith.index_cast %c5_i32 : i32 to index
    %c0_77 = arith.constant 0 : index
    %c0_78 = arith.constant 0 : index
    %313 = vector.load %arg18[%312, %c0_77, %c0_78] : memref<8x8x512xf32, #tpu.memory_space<vmem>>, vector<1x8x512xf32>
    %314 = vector.shape_cast %313 : vector<1x8x512xf32> to vector<8x512xf32>
    %315 = arith.addf %311, %314 : vector<8x512xf32>
    %316 = vector.extract_strided_slice %310 {offsets = [0, 512], sizes = [8, 512], strides = [1, 1]} : vector<8x1024xf32> to vector<8x512xf32>
    %317 = vector.broadcast %10 : vector<1x512xf32> to vector<8x512xf32>
    %318 = arith.addf %316, %317 : vector<8x512xf32>
    %319 = vector.extract_strided_slice %315 {offsets = [0, 0], sizes = [8, 128], strides = [1, 1]} : vector<8x512xf32> to vector<8x128xf32>
    %320 = arith.negf %319 : vector<8x128xf32>
    %321 = math.exp %320 : vector<8x128xf32>
    %cst_79 = arith.constant 1.000000e+00 : f32
    %322 = vector.broadcast %cst_79 : f32 to vector<8x128xf32>
    %323 = arith.addf %322, %321 : vector<8x128xf32>
    %324 = arith.divf %322, %323 : vector<8x128xf32>
    %325 = vector.extract_strided_slice %315 {offsets = [0, 128], sizes = [8, 128], strides = [1, 1]} : vector<8x512xf32> to vector<8x128xf32>
    %326 = arith.negf %325 : vector<8x128xf32>
    %327 = math.exp %326 : vector<8x128xf32>
    %cst_80 = arith.constant 1.000000e+00 : f32
    %328 = vector.broadcast %cst_80 : f32 to vector<8x128xf32>
    %329 = arith.addf %328, %327 : vector<8x128xf32>
    %330 = arith.divf %328, %329 : vector<8x128xf32>
    %331 = vector.extract_strided_slice %315 {offsets = [0, 256], sizes = [8, 128], strides = [1, 1]} : vector<8x512xf32> to vector<8x128xf32>
    %332 = math.tanh %331 : vector<8x128xf32>
    %333 = vector.extract_strided_slice %315 {offsets = [0, 384], sizes = [8, 128], strides = [1, 1]} : vector<8x512xf32> to vector<8x128xf32>
    %334 = arith.negf %333 : vector<8x128xf32>
    %335 = math.exp %334 : vector<8x128xf32>
    %cst_81 = arith.constant 1.000000e+00 : f32
    %336 = vector.broadcast %cst_81 : f32 to vector<8x128xf32>
    %337 = arith.addf %336, %335 : vector<8x128xf32>
    %338 = arith.divf %336, %337 : vector<8x128xf32>
    %339 = arith.mulf %330, %274 : vector<8x128xf32>
    %340 = arith.mulf %324, %332 : vector<8x128xf32>
    %341 = arith.addf %339, %340 : vector<8x128xf32>
    %342 = math.tanh %341 : vector<8x128xf32>
    %343 = arith.mulf %338, %342 : vector<8x128xf32>
    %344 = vector.extract_strided_slice %318 {offsets = [0, 0], sizes = [8, 128], strides = [1, 1]} : vector<8x512xf32> to vector<8x128xf32>
    %345 = arith.negf %344 : vector<8x128xf32>
    %346 = math.exp %345 : vector<8x128xf32>
    %cst_82 = arith.constant 1.000000e+00 : f32
    %347 = vector.broadcast %cst_82 : f32 to vector<8x128xf32>
    %348 = arith.addf %347, %346 : vector<8x128xf32>
    %349 = arith.divf %347, %348 : vector<8x128xf32>
    %350 = vector.extract_strided_slice %318 {offsets = [0, 128], sizes = [8, 128], strides = [1, 1]} : vector<8x512xf32> to vector<8x128xf32>
    %351 = arith.negf %350 : vector<8x128xf32>
    %352 = math.exp %351 : vector<8x128xf32>
    %cst_83 = arith.constant 1.000000e+00 : f32
    %353 = vector.broadcast %cst_83 : f32 to vector<8x128xf32>
    %354 = arith.addf %353, %352 : vector<8x128xf32>
    %355 = arith.divf %353, %354 : vector<8x128xf32>
    %356 = vector.extract_strided_slice %318 {offsets = [0, 256], sizes = [8, 128], strides = [1, 1]} : vector<8x512xf32> to vector<8x128xf32>
    %357 = math.tanh %356 : vector<8x128xf32>
    %358 = vector.extract_strided_slice %318 {offsets = [0, 384], sizes = [8, 128], strides = [1, 1]} : vector<8x512xf32> to vector<8x128xf32>
    %359 = arith.negf %358 : vector<8x128xf32>
    %360 = math.exp %359 : vector<8x128xf32>
    %cst_84 = arith.constant 1.000000e+00 : f32
    %361 = vector.broadcast %cst_84 : f32 to vector<8x128xf32>
    %362 = arith.addf %361, %360 : vector<8x128xf32>
    %363 = arith.divf %361, %362 : vector<8x128xf32>
    %364 = arith.mulf %355, %299 : vector<8x128xf32>
    %365 = arith.mulf %349, %357 : vector<8x128xf32>
    %366 = arith.addf %364, %365 : vector<8x128xf32>
    %367 = math.tanh %366 : vector<8x128xf32>
    %368 = arith.mulf %363, %367 : vector<8x128xf32>
    %c1_i32_85 = arith.constant 1 : i32
    %369 = arith.subi %c5_i32, %c1_i32_85 : i32
    %370 = arith.index_cast %369 : i32 to index
    %c0_86 = arith.constant 0 : index
    %c0_87 = arith.constant 0 : index
    %371 = vector.load %arg17[%370, %c0_86, %c0_87] : memref<8x8x128xf32, #tpu.memory_space<vmem>>, vector<1x8x128xf32>
    %372 = vector.shape_cast %371 : vector<1x8x128xf32> to vector<8x128xf32>
    %373 = vector.shape_cast %368 : vector<8x128xf32> to vector<1x8x128xf32>
    tpu.vector_store %arg17[%370, %c0_86, %c0_87], %373 {strides = array<i32>} : memref<8x8x128xf32, #tpu.memory_space<vmem>>, vector<1x8x128xf32>,
    %c6_i32 = arith.constant 6 : i32
    %374 = tpu.concatenate %343, %368 in 1 : vector<8x128xf32>, vector<8x128xf32> -> vector<8x256xf32>
    %375 = arith.truncf %374 : vector<8x256xf32> to vector<8x256xbf16>
    %c0_88 = arith.constant 0 : index
    %c0_89 = arith.constant 0 : index
    %376 = vector.load %arg4[%c0_88, %c0_89] : memref<256x1024xbf16, #tpu.memory_space<vmem>>, vector<256x1024xbf16>
    %cst_90 = arith.constant dense<0.000000e+00> : vector<8x1024xf32>
    %377 = tpu.matmul %375, %376, %cst_90 {dimension_numbers = #tpu.dot_dimension_numbers<[1], [0], [0], [1], [0, 0, 1, 1], [], []>} : vector<8x256xbf16>, vector<256x1024xbf16>, vector<8x1024xf32> -> vector<8x1024xf32>
    %378 = vector.extract_strided_slice %377 {offsets = [0, 0], sizes = [8, 512], strides = [1, 1]} : vector<8x1024xf32> to vector<8x512xf32>
    %379 = arith.index_cast %c6_i32 : i32 to index
    %c0_91 = arith.constant 0 : index
    %c0_92 = arith.constant 0 : index
    %380 = vector.load %arg18[%379, %c0_91, %c0_92] : memref<8x8x512xf32, #tpu.memory_space<vmem>>, vector<1x8x512xf32>
    %381 = vector.shape_cast %380 : vector<1x8x512xf32> to vector<8x512xf32>
    %382 = arith.addf %378, %381 : vector<8x512xf32>
    %383 = vector.extract_strided_slice %377 {offsets = [0, 512], sizes = [8, 512], strides = [1, 1]} : vector<8x1024xf32> to vector<8x512xf32>
    %384 = vector.broadcast %10 : vector<1x512xf32> to vector<8x512xf32>
    %385 = arith.addf %383, %384 : vector<8x512xf32>
    %386 = vector.extract_strided_slice %382 {offsets = [0, 0], sizes = [8, 128], strides = [1, 1]} : vector<8x512xf32> to vector<8x128xf32>
    %387 = arith.negf %386 : vector<8x128xf32>
    %388 = math.exp %387 : vector<8x128xf32>
    %cst_93 = arith.constant 1.000000e+00 : f32
    %389 = vector.broadcast %cst_93 : f32 to vector<8x128xf32>
    %390 = arith.addf %389, %388 : vector<8x128xf32>
    %391 = arith.divf %389, %390 : vector<8x128xf32>
    %392 = vector.extract_strided_slice %382 {offsets = [0, 128], sizes = [8, 128], strides = [1, 1]} : vector<8x512xf32> to vector<8x128xf32>
    %393 = arith.negf %392 : vector<8x128xf32>
    %394 = math.exp %393 : vector<8x128xf32>
    %cst_94 = arith.constant 1.000000e+00 : f32
    %395 = vector.broadcast %cst_94 : f32 to vector<8x128xf32>
    %396 = arith.addf %395, %394 : vector<8x128xf32>
    %397 = arith.divf %395, %396 : vector<8x128xf32>
    %398 = vector.extract_strided_slice %382 {offsets = [0, 256], sizes = [8, 128], strides = [1, 1]} : vector<8x512xf32> to vector<8x128xf32>
    %399 = math.tanh %398 : vector<8x128xf32>
    %400 = vector.extract_strided_slice %382 {offsets = [0, 384], sizes = [8, 128], strides = [1, 1]} : vector<8x512xf32> to vector<8x128xf32>
    %401 = arith.negf %400 : vector<8x128xf32>
    %402 = math.exp %401 : vector<8x128xf32>
    %cst_95 = arith.constant 1.000000e+00 : f32
    %403 = vector.broadcast %cst_95 : f32 to vector<8x128xf32>
    %404 = arith.addf %403, %402 : vector<8x128xf32>
    %405 = arith.divf %403, %404 : vector<8x128xf32>
    %406 = arith.mulf %397, %341 : vector<8x128xf32>
    %407 = arith.mulf %391, %399 : vector<8x128xf32>
    %408 = arith.addf %406, %407 : vector<8x128xf32>
    %409 = math.tanh %408 : vector<8x128xf32>
    %410 = arith.mulf %405, %409 : vector<8x128xf32>
    %411 = vector.extract_strided_slice %385 {offsets = [0, 0], sizes = [8, 128], strides = [1, 1]} : vector<8x512xf32> to vector<8x128xf32>
    %412 = arith.negf %411 : vector<8x128xf32>
    %413 = math.exp %412 : vector<8x128xf32>
    %cst_96 = arith.constant 1.000000e+00 : f32
    %414 = vector.broadcast %cst_96 : f32 to vector<8x128xf32>
    %415 = arith.addf %414, %413 : vector<8x128xf32>
    %416 = arith.divf %414, %415 : vector<8x128xf32>
    %417 = vector.extract_strided_slice %385 {offsets = [0, 128], sizes = [8, 128], strides = [1, 1]} : vector<8x512xf32> to vector<8x128xf32>
    %418 = arith.negf %417 : vector<8x128xf32>
    %419 = math.exp %418 : vector<8x128xf32>
    %cst_97 = arith.constant 1.000000e+00 : f32
    %420 = vector.broadcast %cst_97 : f32 to vector<8x128xf32>
    %421 = arith.addf %420, %419 : vector<8x128xf32>
    %422 = arith.divf %420, %421 : vector<8x128xf32>
    %423 = vector.extract_strided_slice %385 {offsets = [0, 256], sizes = [8, 128], strides = [1, 1]} : vector<8x512xf32> to vector<8x128xf32>
    %424 = math.tanh %423 : vector<8x128xf32>
    %425 = vector.extract_strided_slice %385 {offsets = [0, 384], sizes = [8, 128], strides = [1, 1]} : vector<8x512xf32> to vector<8x128xf32>
    %426 = arith.negf %425 : vector<8x128xf32>
    %427 = math.exp %426 : vector<8x128xf32>
    %cst_98 = arith.constant 1.000000e+00 : f32
    %428 = vector.broadcast %cst_98 : f32 to vector<8x128xf32>
    %429 = arith.addf %428, %427 : vector<8x128xf32>
    %430 = arith.divf %428, %429 : vector<8x128xf32>
    %431 = arith.mulf %422, %366 : vector<8x128xf32>
    %432 = arith.mulf %416, %424 : vector<8x128xf32>
    %433 = arith.addf %431, %432 : vector<8x128xf32>
    %434 = math.tanh %433 : vector<8x128xf32>
    %435 = arith.mulf %430, %434 : vector<8x128xf32>
    %c1_i32_99 = arith.constant 1 : i32
    %436 = arith.subi %c6_i32, %c1_i32_99 : i32
    %437 = arith.index_cast %436 : i32 to index
    %c0_100 = arith.constant 0 : index
    %c0_101 = arith.constant 0 : index
    %438 = vector.load %arg17[%437, %c0_100, %c0_101] : memref<8x8x128xf32, #tpu.memory_space<vmem>>, vector<1x8x128xf32>
    %439 = vector.shape_cast %438 : vector<1x8x128xf32> to vector<8x128xf32>
    %440 = vector.shape_cast %435 : vector<8x128xf32> to vector<1x8x128xf32>
    tpu.vector_store %arg17[%437, %c0_100, %c0_101], %440 {strides = array<i32>} : memref<8x8x128xf32, #tpu.memory_space<vmem>>, vector<1x8x128xf32>,
    %c7_i32 = arith.constant 7 : i32
    %441 = tpu.concatenate %410, %435 in 1 : vector<8x128xf32>, vector<8x128xf32> -> vector<8x256xf32>
    %442 = arith.truncf %441 : vector<8x256xf32> to vector<8x256xbf16>
    %c0_102 = arith.constant 0 : index
    %c0_103 = arith.constant 0 : index
    %443 = vector.load %arg4[%c0_102, %c0_103] : memref<256x1024xbf16, #tpu.memory_space<vmem>>, vector<256x1024xbf16>
    %cst_104 = arith.constant dense<0.000000e+00> : vector<8x1024xf32>
    %444 = tpu.matmul %442, %443, %cst_104 {dimension_numbers = #tpu.dot_dimension_numbers<[1], [0], [0], [1], [0, 0, 1, 1], [], []>} : vector<8x256xbf16>, vector<256x1024xbf16>, vector<8x1024xf32> -> vector<8x1024xf32>
    %445 = vector.extract_strided_slice %444 {offsets = [0, 0], sizes = [8, 512], strides = [1, 1]} : vector<8x1024xf32> to vector<8x512xf32>
    %446 = arith.index_cast %c7_i32 : i32 to index
    %c0_105 = arith.constant 0 : index
    %c0_106 = arith.constant 0 : index
    %447 = vector.load %arg18[%446, %c0_105, %c0_106] : memref<8x8x512xf32, #tpu.memory_space<vmem>>, vector<1x8x512xf32>
    %448 = vector.shape_cast %447 : vector<1x8x512xf32> to vector<8x512xf32>
    %449 = arith.addf %445, %448 : vector<8x512xf32>
    %450 = vector.extract_strided_slice %444 {offsets = [0, 512], sizes = [8, 512], strides = [1, 1]} : vector<8x1024xf32> to vector<8x512xf32>
    %451 = vector.broadcast %10 : vector<1x512xf32> to vector<8x512xf32>
    %452 = arith.addf %450, %451 : vector<8x512xf32>
    %453 = vector.extract_strided_slice %449 {offsets = [0, 0], sizes = [8, 128], strides = [1, 1]} : vector<8x512xf32> to vector<8x128xf32>
    %454 = arith.negf %453 : vector<8x128xf32>
    %455 = math.exp %454 : vector<8x128xf32>
    %cst_107 = arith.constant 1.000000e+00 : f32
    %456 = vector.broadcast %cst_107 : f32 to vector<8x128xf32>
    %457 = arith.addf %456, %455 : vector<8x128xf32>
    %458 = arith.divf %456, %457 : vector<8x128xf32>
    %459 = vector.extract_strided_slice %449 {offsets = [0, 128], sizes = [8, 128], strides = [1, 1]} : vector<8x512xf32> to vector<8x128xf32>
    %460 = arith.negf %459 : vector<8x128xf32>
    %461 = math.exp %460 : vector<8x128xf32>
    %cst_108 = arith.constant 1.000000e+00 : f32
    %462 = vector.broadcast %cst_108 : f32 to vector<8x128xf32>
    %463 = arith.addf %462, %461 : vector<8x128xf32>
    %464 = arith.divf %462, %463 : vector<8x128xf32>
    %465 = vector.extract_strided_slice %449 {offsets = [0, 256], sizes = [8, 128], strides = [1, 1]} : vector<8x512xf32> to vector<8x128xf32>
    %466 = math.tanh %465 : vector<8x128xf32>
    %467 = vector.extract_strided_slice %449 {offsets = [0, 384], sizes = [8, 128], strides = [1, 1]} : vector<8x512xf32> to vector<8x128xf32>
    %468 = arith.negf %467 : vector<8x128xf32>
    %469 = math.exp %468 : vector<8x128xf32>
    %cst_109 = arith.constant 1.000000e+00 : f32
    %470 = vector.broadcast %cst_109 : f32 to vector<8x128xf32>
    %471 = arith.addf %470, %469 : vector<8x128xf32>
    %472 = arith.divf %470, %471 : vector<8x128xf32>
    %473 = arith.mulf %464, %408 : vector<8x128xf32>
    %474 = arith.mulf %458, %466 : vector<8x128xf32>
    %475 = arith.addf %473, %474 : vector<8x128xf32>
    %476 = math.tanh %475 : vector<8x128xf32>
    %477 = arith.mulf %472, %476 : vector<8x128xf32>
    %478 = vector.extract_strided_slice %452 {offsets = [0, 0], sizes = [8, 128], strides = [1, 1]} : vector<8x512xf32> to vector<8x128xf32>
    %479 = arith.negf %478 : vector<8x128xf32>
    %480 = math.exp %479 : vector<8x128xf32>
    %cst_110 = arith.constant 1.000000e+00 : f32
    %481 = vector.broadcast %cst_110 : f32 to vector<8x128xf32>
    %482 = arith.addf %481, %480 : vector<8x128xf32>
    %483 = arith.divf %481, %482 : vector<8x128xf32>
    %484 = vector.extract_strided_slice %452 {offsets = [0, 128], sizes = [8, 128], strides = [1, 1]} : vector<8x512xf32> to vector<8x128xf32>
    %485 = arith.negf %484 : vector<8x128xf32>
    %486 = math.exp %485 : vector<8x128xf32>
    %cst_111 = arith.constant 1.000000e+00 : f32
    %487 = vector.broadcast %cst_111 : f32 to vector<8x128xf32>
    %488 = arith.addf %487, %486 : vector<8x128xf32>
    %489 = arith.divf %487, %488 : vector<8x128xf32>
    %490 = vector.extract_strided_slice %452 {offsets = [0, 256], sizes = [8, 128], strides = [1, 1]} : vector<8x512xf32> to vector<8x128xf32>
    %491 = math.tanh %490 : vector<8x128xf32>
    %492 = vector.extract_strided_slice %452 {offsets = [0, 384], sizes = [8, 128], strides = [1, 1]} : vector<8x512xf32> to vector<8x128xf32>
    %493 = arith.negf %492 : vector<8x128xf32>
    %494 = math.exp %493 : vector<8x128xf32>
    %cst_112 = arith.constant 1.000000e+00 : f32
    %495 = vector.broadcast %cst_112 : f32 to vector<8x128xf32>
    %496 = arith.addf %495, %494 : vector<8x128xf32>
    %497 = arith.divf %495, %496 : vector<8x128xf32>
    %498 = arith.mulf %489, %433 : vector<8x128xf32>
    %499 = arith.mulf %483, %491 : vector<8x128xf32>
    %500 = arith.addf %498, %499 : vector<8x128xf32>
    %501 = math.tanh %500 : vector<8x128xf32>
    %502 = arith.mulf %497, %501 : vector<8x128xf32>
    %c1_i32_113 = arith.constant 1 : i32
    %503 = arith.subi %c7_i32, %c1_i32_113 : i32
    %504 = arith.index_cast %503 : i32 to index
    %c0_114 = arith.constant 0 : index
    %c0_115 = arith.constant 0 : index
    %505 = vector.load %arg17[%504, %c0_114, %c0_115] : memref<8x8x128xf32, #tpu.memory_space<vmem>>, vector<1x8x128xf32>
    %506 = vector.shape_cast %505 : vector<1x8x128xf32> to vector<8x128xf32>
    %507 = vector.shape_cast %502 : vector<8x128xf32> to vector<1x8x128xf32>
    tpu.vector_store %arg17[%504, %c0_114, %c0_115], %507 {strides = array<i32>} : memref<8x8x128xf32, #tpu.memory_space<vmem>>, vector<1x8x128xf32>,
    %c7_i32_116 = arith.constant 7 : i32
    %508 = tpu.concatenate %477, %502 in 1 : vector<8x128xf32>, vector<8x128xf32> -> vector<8x256xf32>
    %509 = arith.truncf %508 : vector<8x256xf32> to vector<8x256xbf16>
    %c0_117 = arith.constant 0 : index
    %c0_118 = arith.constant 0 : index
    %510 = vector.load %arg4[%c0_117, %c0_118] : memref<256x1024xbf16, #tpu.memory_space<vmem>>, vector<256x1024xbf16>
    %cst_119 = arith.constant dense<0.000000e+00> : vector<8x1024xf32>
    %511 = tpu.matmul %509, %510, %cst_119 {dimension_numbers = #tpu.dot_dimension_numbers<[1], [0], [0], [1], [0, 0, 1, 1], [], []>} : vector<8x256xbf16>, vector<256x1024xbf16>, vector<8x1024xf32> -> vector<8x1024xf32>
    %512 = vector.extract_strided_slice %511 {offsets = [0, 512], sizes = [8, 512], strides = [1, 1]} : vector<8x1024xf32> to vector<8x512xf32>
    %513 = vector.broadcast %10 : vector<1x512xf32> to vector<8x512xf32>
    %514 = arith.addf %512, %513 : vector<8x512xf32>
    %515 = vector.extract_strided_slice %514 {offsets = [0, 0], sizes = [8, 128], strides = [1, 1]} : vector<8x512xf32> to vector<8x128xf32>
    %516 = arith.negf %515 : vector<8x128xf32>
    %517 = math.exp %516 : vector<8x128xf32>
    %cst_120 = arith.constant 1.000000e+00 : f32
    %518 = vector.broadcast %cst_120 : f32 to vector<8x128xf32>
    %519 = arith.addf %518, %517 : vector<8x128xf32>
    %520 = arith.divf %518, %519 : vector<8x128xf32>
    %521 = vector.extract_strided_slice %514 {offsets = [0, 128], sizes = [8, 128], strides = [1, 1]} : vector<8x512xf32> to vector<8x128xf32>
    %522 = arith.negf %521 : vector<8x128xf32>
    %523 = math.exp %522 : vector<8x128xf32>
    %cst_121 = arith.constant 1.000000e+00 : f32
    %524 = vector.broadcast %cst_121 : f32 to vector<8x128xf32>
    %525 = arith.addf %524, %523 : vector<8x128xf32>
    %526 = arith.divf %524, %525 : vector<8x128xf32>
    %527 = vector.extract_strided_slice %514 {offsets = [0, 256], sizes = [8, 128], strides = [1, 1]} : vector<8x512xf32> to vector<8x128xf32>
    %528 = math.tanh %527 : vector<8x128xf32>
    %529 = vector.extract_strided_slice %514 {offsets = [0, 384], sizes = [8, 128], strides = [1, 1]} : vector<8x512xf32> to vector<8x128xf32>
    %530 = arith.negf %529 : vector<8x128xf32>
    %531 = math.exp %530 : vector<8x128xf32>
    %cst_122 = arith.constant 1.000000e+00 : f32
    %532 = vector.broadcast %cst_122 : f32 to vector<8x128xf32>
    %533 = arith.addf %532, %531 : vector<8x128xf32>
    %534 = arith.divf %532, %533 : vector<8x128xf32>
    %535 = arith.mulf %526, %500 : vector<8x128xf32>
    %536 = arith.mulf %520, %528 : vector<8x128xf32>
    %537 = arith.addf %535, %536 : vector<8x128xf32>
    %538 = math.tanh %537 : vector<8x128xf32>
    %539 = arith.mulf %534, %538 : vector<8x128xf32>
    %c7 = arith.constant 7 : index
    %c0_123 = arith.constant 0 : index
    %c0_124 = arith.constant 0 : index
    %540 = vector.load %arg17[%c7, %c0_123, %c0_124] : memref<8x8x128xf32, #tpu.memory_space<vmem>>, vector<1x8x128xf32>
    %541 = vector.shape_cast %540 : vector<1x8x128xf32> to vector<8x128xf32>
    %542 = vector.shape_cast %539 : vector<8x128xf32> to vector<1x8x128xf32>
    tpu.vector_store %arg17[%c7, %c0_123, %c0_124], %542 {strides = array<i32>} : memref<8x8x128xf32, #tpu.memory_space<vmem>>, vector<1x8x128xf32>,
    %c0_125 = arith.constant 0 : index
    %c0_126 = arith.constant 0 : index
    %c0_127 = arith.constant 0 : index
    %543 = vector.load %arg17[%c0_125, %c0_126, %c0_127] : memref<8x8x128xf32, #tpu.memory_space<vmem>>, vector<8x8x128xf32>
    %544 = vector.shape_cast %543 : vector<8x8x128xf32> to vector<64x128xf32>
    %545 = arith.truncf %544 : vector<64x128xf32> to vector<64x128xbf16>
    %c0_128 = arith.constant 0 : index
    %c0_129 = arith.constant 0 : index
    %546 = vector.load %arg8[%c0_128, %c0_129] : memref<128x256xbf16, #tpu.memory_space<vmem>>, vector<128x256xbf16>
    %cst_130 = arith.constant dense<0.000000e+00> : vector<64x256xf32>
    %547 = tpu.matmul %545, %546, %cst_130 {dimension_numbers = #tpu.dot_dimension_numbers<[1], [0], [0], [1], [0, 0, 1, 1], [], []>} : vector<64x128xbf16>, vector<128x256xbf16>, vector<64x256xf32> -> vector<64x256xf32>
    %c0_131 = arith.constant 0 : index
    %c0_132 = arith.constant 0 : index
    %548 = vector.load %arg9[%c0_131, %c0_132] : memref<1x256xf32, #tpu.memory_space<vmem>>, vector<1x256xf32>
    %549 = vector.broadcast %548 : vector<1x256xf32> to vector<64x256xf32>
    %550 = arith.addf %547, %549 : vector<64x256xf32>
    %551 = vector.shape_cast %550 : vector<64x256xf32> to vector<8x8x256xf32>
    %552 = vector.extract_strided_slice %551 {offsets = [0, 0, 0], sizes = [8, 8, 128], strides = [1, 1, 1]} : vector<8x8x256xf32> to vector<8x8x128xf32>
    %553 = vector.extract_strided_slice %551 {offsets = [0, 0, 128], sizes = [8, 8, 128], strides = [1, 1, 1]} : vector<8x8x256xf32> to vector<8x8x128xf32>
    %554 = arith.truncf %539 : vector<8x128xf32> to vector<8x128xbf16>
    %c0_133 = arith.constant 0 : index
    %c0_134 = arith.constant 0 : index
    %555 = vector.load %arg6[%c0_133, %c0_134] : memref<128x128xbf16, #tpu.memory_space<vmem>>, vector<128x128xbf16>
    %cst_135 = arith.constant dense<0.000000e+00> : vector<8x128xf32>
    %556 = tpu.matmul %554, %555, %cst_135 {dimension_numbers = #tpu.dot_dimension_numbers<[1], [0], [0], [1], [0, 0, 1, 1], [], []>} : vector<8x128xbf16>, vector<128x128xbf16>, vector<8x128xf32> -> vector<8x128xf32>
    %c0_136 = arith.constant 0 : index
    %c0_137 = arith.constant 0 : index
    %557 = vector.load %arg7[%c0_136, %c0_137] : memref<1x128xf32, #tpu.memory_space<vmem>>, vector<1x128xf32>
    %558 = vector.broadcast %557 : vector<1x128xf32> to vector<8x128xf32>
    %559 = arith.addf %556, %558 : vector<8x128xf32>
    %560 = vector.shape_cast %559 : vector<8x128xf32> to vector<1x8x128xf32>
    %561 = vector.broadcast %560 : vector<1x8x128xf32> to vector<8x8x128xf32>
    %562 = arith.mulf %561, %552 : vector<8x8x128xf32>
    %563 = vector.shape_cast %562 : vector<8x8x128xf32> to vector<64x128xf32>
    %c0_138 = arith.constant 0 : index
    %c0_139 = arith.constant 0 : index
    %564 = vector.load %arg14[%c0_138, %c0_139] : memref<128x8xf32, #tpu.memory_space<vmem>>, vector<128x8xf32>
    %cst_140 = arith.constant dense<0.000000e+00> : vector<64x8xf32>
    %565 = tpu.matmul %563, %564, %cst_140 {dimension_numbers = #tpu.dot_dimension_numbers<[1], [0], [0], [1], [0, 0, 1, 1], [], []>} : vector<64x128xf32>, vector<128x8xf32>, vector<64x8xf32> -> vector<64x8xf32>
    %cst_141 = arith.constant 2.500000e-01 : f32
    %566 = vector.broadcast %cst_141 : f32 to vector<64x8xf32>
    %567 = arith.mulf %565, %566 : vector<64x8xf32>
    %568 = vector.shape_cast %567 : vector<64x8xf32> to vector<8x8x8xf32>
    %cst_142 = arith.constant dense<0xFF800000> : vector<8x8xf32>
    %569 = vector.multi_reduction <maximumf>, %568, %cst_142 [0] : vector<8x8x8xf32> to vector<8x8xf32>
    %570 = vector.shape_cast %569 : vector<8x8xf32> to vector<1x8x8xf32>
    %571 = vector.broadcast %570 : vector<1x8x8xf32> to vector<8x8x8xf32>
    %572 = arith.subf %568, %571 : vector<8x8x8xf32>
    %573 = math.exp %572 : vector<8x8x8xf32>
    %cst_143 = arith.constant dense<0.000000e+00> : vector<8x8xf32>
    %574 = vector.multi_reduction <add>, %573, %cst_143 [0] : vector<8x8x8xf32> to vector<8x8xf32>
    %575 = vector.shape_cast %574 : vector<8x8xf32> to vector<1x8x8xf32>
    %576 = tpu.reciprocal %575 {approx = true} : vector<1x8x8xf32> -> vector<1x8x8xf32>
    %577 = vector.broadcast %576 : vector<1x8x8xf32> to vector<8x8x8xf32>
    %578 = arith.mulf %573, %577 : vector<8x8x8xf32>
    %579 = vector.shape_cast %578 : vector<8x8x8xf32> to vector<64x8xf32>
    %c0_144 = arith.constant 0 : index
    %c0_145 = arith.constant 0 : index
    %580 = vector.load %arg15[%c0_144, %c0_145] : memref<8x128xf32, #tpu.memory_space<vmem>>, vector<8x128xf32>
    %cst_146 = arith.constant dense<0.000000e+00> : vector<64x128xf32>
    %581 = tpu.matmul %579, %580, %cst_146 {dimension_numbers = #tpu.dot_dimension_numbers<[1], [0], [0], [1], [0, 0, 1, 1], [], []>} : vector<64x8xf32>, vector<8x128xf32>, vector<64x128xf32> -> vector<64x128xf32>
    %582 = vector.shape_cast %581 : vector<64x128xf32> to vector<8x8x128xf32>
    %583 = arith.mulf %582, %553 : vector<8x8x128xf32>
    %cst_147 = arith.constant dense<0.000000e+00> : vector<8x128xf32>
    %584 = vector.multi_reduction <add>, %583, %cst_147 [0] : vector<8x8x128xf32> to vector<8x128xf32>
    %585 = arith.truncf %584 : vector<8x128xf32> to vector<8x128xbf16>
    %c0_148 = arith.constant 0 : index
    %c0_149 = arith.constant 0 : index
    %586 = vector.load %arg10[%c0_148, %c0_149] : memref<128x128xbf16, #tpu.memory_space<vmem>>, vector<128x128xbf16>
    %cst_150 = arith.constant dense<0.000000e+00> : vector<8x128xf32>
    %587 = tpu.matmul %585, %586, %cst_150 {dimension_numbers = #tpu.dot_dimension_numbers<[1], [0], [0], [1], [0, 0, 1, 1], [], []>} : vector<8x128xbf16>, vector<128x128xbf16>, vector<8x128xf32> -> vector<8x128xf32>
    %c0_151 = arith.constant 0 : index
    %c0_152 = arith.constant 0 : index
    %588 = vector.load %arg11[%c0_151, %c0_152] : memref<1x128xf32, #tpu.memory_space<vmem>>, vector<1x128xf32>
    %589 = vector.broadcast %588 : vector<1x128xf32> to vector<8x128xf32>
    %590 = arith.addf %587, %589 : vector<8x128xf32>
    %c0_153 = arith.constant 0 : index
    %c0_154 = arith.constant 0 : index
    %591 = vector.load %arg12[%c0_153, %c0_154] : memref<1x128xf32, #tpu.memory_space<vmem>>, vector<1x128xf32>
    %592 = vector.broadcast %591 : vector<1x128xf32> to vector<8x128xf32>
    %593 = arith.mulf %590, %592 : vector<8x128xf32>
    %cst_155 = arith.constant dense<0.000000e+00> : vector<8xf32>
    %594 = vector.multi_reduction <add>, %593, %cst_155 [1] : vector<8x128xf32> to vector<8xf32>
    %595 = vector.shape_cast %594 : vector<8xf32> to vector<8x1xf32>
    %c0_156 = arith.constant 0 : index
    %c0_157 = arith.constant 0 : index
    %596 = vector.load %arg13[%c0_156, %c0_157] : memref<1x1xf32, #tpu.memory_space<vmem>>, vector<1x1xf32>
    %597 = vector.broadcast %596 : vector<1x1xf32> to vector<8x1xf32>
    %598 = arith.addf %595, %597 : vector<8x1xf32>
    %c0_158 = arith.constant 0 : index
    %c0_159 = arith.constant 0 : index
    %599 = vector.load %arg16[%c0_158, %c0_159] : memref<8x1xf32, #tpu.memory_space<vmem>>, vector<8x1xf32>
    tpu.vector_store %arg16[%c0_158, %c0_159], %598 {strides = array<i32>} : memref<8x1xf32, #tpu.memory_space<vmem>>, vector<8x1xf32>,
    return
  }
  func.func @transform_0(%arg0: i32) -> (i32, i32, i32) {
    %c0_i32 = arith.constant 0 : i32
    %c0_i32_0 = arith.constant 0 : i32
    %c0_i32_1 = arith.constant 0 : i32
    return %c0_i32, %arg0, %c0_i32_0 : i32, i32, i32
  }
  func.func @transform_1(%arg0: i32) -> (i32, i32) {
    %c0_i32 = arith.constant 0 : i32
    %c0_i32_0 = arith.constant 0 : i32
    %c0_i32_1 = arith.constant 0 : i32
    return %c0_i32, %c0_i32_0 : i32, i32
  }
  func.func @transform_2(%arg0: i32) -> (i32, i32) {
    %c0_i32 = arith.constant 0 : i32
    %c0_i32_0 = arith.constant 0 : i32
    %c0_i32_1 = arith.constant 0 : i32
    return %c0_i32, %c0_i32_0 : i32, i32
  }
  func.func @transform_3(%arg0: i32) -> (i32, i32) {
    %c0_i32 = arith.constant 0 : i32
    %c0_i32_0 = arith.constant 0 : i32
    %c0_i32_1 = arith.constant 0 : i32
    return %c0_i32, %c0_i32_0 : i32, i32
  }
  func.func @transform_4(%arg0: i32) -> (i32, i32) {
    %c0_i32 = arith.constant 0 : i32
    %c0_i32_0 = arith.constant 0 : i32
    %c0_i32_1 = arith.constant 0 : i32
    return %c0_i32, %c0_i32_0 : i32, i32
  }
  func.func @transform_5(%arg0: i32) -> (i32, i32) {
    %c0_i32 = arith.constant 0 : i32
    %c0_i32_0 = arith.constant 0 : i32
    %c0_i32_1 = arith.constant 0 : i32
    return %c0_i32, %c0_i32_0 : i32, i32
  }
  func.func @transform_6(%arg0: i32) -> (i32, i32) {
    %c0_i32 = arith.constant 0 : i32
    %c0_i32_0 = arith.constant 0 : i32
    %c0_i32_1 = arith.constant 0 : i32
    return %c0_i32, %c0_i32_0 : i32, i32
  }
  func.func @transform_7(%arg0: i32) -> (i32, i32) {
    %c0_i32 = arith.constant 0 : i32
    %c0_i32_0 = arith.constant 0 : i32
    %c0_i32_1 = arith.constant 0 : i32
    return %c0_i32, %c0_i32_0 : i32, i32
  }
  func.func @transform_8(%arg0: i32) -> (i32, i32) {
    %c0_i32 = arith.constant 0 : i32
    %c0_i32_0 = arith.constant 0 : i32
    %c0_i32_1 = arith.constant 0 : i32
    return %c0_i32, %c0_i32_0 : i32, i32
  }
  func.func @transform_9(%arg0: i32) -> (i32, i32) {
    %c0_i32 = arith.constant 0 : i32
    %c0_i32_0 = arith.constant 0 : i32
    %c0_i32_1 = arith.constant 0 : i32
    return %c0_i32, %c0_i32_0 : i32, i32
  }
  func.func @transform_10(%arg0: i32) -> (i32, i32) {
    %c0_i32 = arith.constant 0 : i32
    %c0_i32_0 = arith.constant 0 : i32
    %c0_i32_1 = arith.constant 0 : i32
    return %c0_i32, %c0_i32_0 : i32, i32
  }
  func.func @transform_11(%arg0: i32) -> (i32, i32) {
    %c0_i32 = arith.constant 0 : i32
    %c0_i32_0 = arith.constant 0 : i32
    %c0_i32_1 = arith.constant 0 : i32
    return %c0_i32, %c0_i32_0 : i32, i32
  }
  func.func @transform_12(%arg0: i32) -> (i32, i32) {
    %c0_i32 = arith.constant 0 : i32
    %c0_i32_0 = arith.constant 0 : i32
    %c0_i32_1 = arith.constant 0 : i32
    return %c0_i32, %c0_i32_0 : i32, i32
  }
  func.func @transform_13(%arg0: i32) -> (i32, i32) {
    %c0_i32 = arith.constant 0 : i32
    %c0_i32_0 = arith.constant 0 : i32
    %c0_i32_1 = arith.constant 0 : i32
    return %c0_i32, %c0_i32_0 : i32, i32
  }
  func.func @transform_14(%arg0: i32) -> (i32, i32) {
    %c0_i32 = arith.constant 0 : i32
    %c0_i32_0 = arith.constant 0 : i32
    %c0_i32_1 = arith.constant 0 : i32
    return %c0_i32, %c0_i32_0 : i32, i32
  }
  func.func @transform_15(%arg0: i32) -> (i32, i32) {
    %c0_i32 = arith.constant 0 : i32
    %c0_i32_0 = arith.constant 0 : i32
    return %arg0, %c0_i32 : i32, i32
  }
}

</mosaic_0001>

<llo_original>
// kernel: lstm_price_predictor_forward.1
$region0: #{lstm_price_predictor_forward.1}
  #allocation0 [shape = 'u32[]', space=smem, size = 0x4, offset = 0x4, fixed_abs, tag = 'smem constant byte address 0x4 - core index']
  #allocation1 [shape = 'u32[144,128]{1,0:T(1,128)}', space=vmem, size = 0x12000, scoped, tag = 'internal scratch']
  #allocation2 [shape = 'f32[8,8,128]{2,1,0:T(8,128)}', space=vmem, size = 0x8000, scoped, tag = 'scratch operand']
  #allocation3 [shape = 'f32[8,8,512]{2,1,0:T(8,128)}', space=vmem, size = 0x20000, scoped, tag = 'scratch operand']
  #allocation4 [shape = 'f32[1,1]{1,0:T(1,128)S(1)}', space=vmem, size = 0x200, scoped, tag = 'scoped memory for lstm_price_predictor_forward.1']
  %s0 = inlined_call_operand.hbm [shape: f32[8,8,16], index: 0, kind: input, shape index: {}]
  %s1 = inlined_call_operand.hbm [shape: bf16[16,512], index: 1, kind: input, shape index: {}]
  %s2 = inlined_call_operand.hbm [shape: f32[1,512], index: 2, kind: input, shape index: {}]
  %s3 = inlined_call_operand.hbm [shape: bf16[256,1024], index: 3, kind: input, shape index: {}]
  %s4 = inlined_call_operand.hbm [shape: f32[1,512], index: 4, kind: input, shape index: {}]
  %s5 = inlined_call_operand.hbm [shape: bf16[128,128], index: 5, kind: input, shape index: {}]
  %s6 = inlined_call_operand.hbm [shape: f32[1,128], index: 6, kind: input, shape index: {}]
  %s7 = inlined_call_operand.hbm [shape: bf16[128,256], index: 7, kind: input, shape index: {}]
  %s8 = inlined_call_operand.hbm [shape: f32[1,256], index: 8, kind: input, shape index: {}]
  %s9 = inlined_call_operand.hbm [shape: bf16[128,128], index: 9, kind: input, shape index: {}]
  %s10 = inlined_call_operand.hbm [shape: f32[1,128], index: 10, kind: input, shape index: {}]
  %s11 = inlined_call_operand.hbm [shape: f32[1,128], index: 11, kind: input, shape index: {}]
  %s12 = inlined_call_operand.<no memory space> [shape: f32[1,1], index: 12, kind: input, shape index: {}]
  %s13 = inlined_call_operand.hbm [shape: f32[128,8], index: 13, kind: input, shape index: {}]
  %s14 = inlined_call_operand.hbm [shape: f32[8,128], index: 14, kind: input, shape index: {}]
  %s15 = inlined_call_operand.hbm [shape: f32[8,1], index: 15, kind: output, shape index: {}]
  %s16 = sld [smem:[#allocation0]]
  $region126: #{lstm_price_predictor_forward.1} parent=0
    _
  %s18 = ssub.s32 1, %s16
  %s19 = scalar_select 0, %s18, %s16
  %v20 = vstv %s12
  %21 = vst [vmem:[#allocation4] sm:$0x1] %v20
  $region1: #{lstm_price_predictor_forward.1} parent=0
    #allocation5 [shape = 'u8[32768]{0}', space=vmem, size = 0x8000, scoped, tag = 'input window, operand 0, single buffered']
    #allocation6 [shape = 's32[1]{0}', space=sflag, size = 0x4, scoped, tag = 'scoped memory for lstm_price_predictor_forward.1']
    #allocation7 [shape = 's32[1]{0}', space=sflag, size = 0x4, scoped, tag = 'scoped memory for lstm_price_predictor_forward.1']
    #allocation8 [shape = 'u8[16384]{0}', space=vmem, size = 0x4000, scoped, tag = 'input window, operand 1, single buffered']
    #allocation9 [shape = 's32[1]{0}', space=sflag, size = 0x4, scoped, tag = 'scoped memory for lstm_price_predictor_forward.1']
    #allocation10 [shape = 'u8[2048]{0}', space=vmem, size = 0x800, scoped, tag = 'input window, operand 2, single buffered']
    #allocation11 [shape = 'u8[524288]{0}', space=vmem, size = 0x80000, scoped, tag = 'input window, operand 3, single buffered']
    #allocation12 [shape = 's32[1]{0}', space=sflag, size = 0x4, scoped, tag = 'scoped memory for lstm_price_predictor_forward.1']
    #allocation13 [shape = 'u8[2048]{0}', space=vmem, size = 0x800, scoped, tag = 'input window, operand 4, single buffered']
    #allocation14 [shape = 'u8[32768]{0}', space=vmem, size = 0x8000, scoped, tag = 'input window, operand 5, single buffered']
    #allocation15 [shape = 's32[1]{0}', space=sflag, size = 0x4, scoped, tag = 'scoped memory for lstm_price_predictor_forward.1']
    #allocation16 [shape = 'u8[512]{0}', space=vmem, size = 0x400, scoped, tag = 'input window, operand 6, single buffered']
    #allocation17 [shape = 'u8[65536]{0}', space=vmem, size = 0x10000, scoped, tag = 'input window, operand 7, single buffered']
    #allocation18 [shape = 's32[1]{0}', space=sflag, size = 0x4, scoped, tag = 'scoped memory for lstm_price_predictor_forward.1']
    #allocation19 [shape = 'u8[1024]{0}', space=vmem, size = 0x400, scoped, tag = 'input window, operand 8, single buffered']
    #allocation20 [shape = 'u8[32768]{0}', space=vmem, size = 0x8000, scoped, tag = 'input window, operand 9, single buffered']
    #allocation21 [shape = 's32[1]{0}', space=sflag, size = 0x4, scoped, tag = 'scoped memory for lstm_price_predictor_forward.1']
    #allocation22 [shape = 'u8[512]{0}', space=vmem, size = 0x400, scoped, tag = 'input window, operand 10, single buffered']
    #allocation23 [shape = 'u8[512]{0}', space=vmem, size = 0x400, scoped, tag = 'input window, operand 11, single buffered']
    #allocation24 [shape = 's32[1]{0}', space=sflag, size = 0x4, scoped, tag = 'scoped memory for lstm_price_predictor_forward.1']
    #allocation25 [shape = 'u8[65536]{0}', space=vmem, size = 0x10000, scoped, tag = 'input window, operand 13, single buffered']
    #allocation26 [shape = 'u8[4096]{0}', space=vmem, size = 0x1000, scoped, tag = 'input window, operand 14, single buffered']
    #allocation27 [shape = 's32[1]{0}', space=sflag, size = 0x4, scoped, tag = 'scoped memory for lstm_price_predictor_forward.1']
    #allocation28 [shape = 'u8[4096]{0}', space=vmem, size = 0x1000, scoped, tag = 'output window, operand 0, single buffered']
    %22 = vsyncpa [#allocation6], 0
    %23 = vsyncpa [#allocation9], 0
    %24 = vsyncpa [#allocation12], 0
    %25 = vsyncpa [#allocation15], 0
    %26 = vsyncpa [#allocation18], 0
    %27 = vsyncpa [#allocation21], 0
    %28 = vsyncpa [#allocation24], 0
    %29 = vsyncpa [#allocation27], 0
    %30 = vsyncpa [#allocation7], 0
    // Predicated region
    $region2: #{lstm_price_predictor_forward.1} parent=1 // pred_check
      _
    $region3: #{lstm_price_predictor_forward.1} parent=1 // pred_check_branch
      %32 = sbr.rel (0) target = $region5
    $region4: #{lstm_price_predictor_forward.1} parent=1 // pred_region
      %s34 = ssub.s32 1024, 1024
      %35 = vsyncadd [#allocation6], %s34
      %s36 = sshll.u32 [#allocation5], 4
      %s37 = int_to_ptr.vmem [resolvable:$true] %s36
      %42 = dma.hbm_to_vmem [thread:$0]  %s0, 1024, %s37, [#allocation6], 128, 128, 8
    $region5: #{lstm_price_predictor_forward.1} parent=1 // pred_fallthru
      _
    // Predicated region
    $region6: #{lstm_price_predictor_forward.1} parent=1 // pred_check
      _
    $region7: #{lstm_price_predictor_forward.1} parent=1 // pred_check_branch
      %44 = sbr.rel (0) target = $region9
    $region8: #{lstm_price_predictor_forward.1} parent=1 // pred_region
      %s46 = ssub.s32 512, 512
      %47 = vsyncadd [#allocation9], %s46
      %s48 = sshll.u32 [#allocation8], 4
      %s49 = int_to_ptr.vmem [resolvable:$true] %s48
      %54 = dma.hbm_to_vmem [thread:$0]  %s1, 512, %s49, [#allocation9], 256, 256, 16
    $region9: #{lstm_price_predictor_forward.1} parent=1 // pred_fallthru
      _
    // Predicated region
    $region10: #{lstm_price_predictor_forward.1} parent=1 // pred_check
      _
    $region11: #{lstm_price_predictor_forward.1} parent=1 // pred_check_branch
      %56 = sbr.rel (0) target = $region13
    $region12: #{lstm_price_predictor_forward.1} parent=1 // pred_region
      %s58 = ssub.s32 64, 64
      %59 = vsyncadd [#allocation9], %s58
      %s61 = sshll.u32 [#allocation10], 4
      %s62 = int_to_ptr.vmem [resolvable:$true] %s61
      %64 = dma.hbm_to_vmem [thread:$0]  %s2, 64, %s62, [#allocation9]
    $region13: #{lstm_price_predictor_forward.1} parent=1 // pred_fallthru
      _
    // Predicated region
    $region14: #{lstm_price_predictor_forward.1} parent=1 // pred_check
      _
    $region15: #{lstm_price_predictor_forward.1} parent=1 // pred_check_branch
      %66 = sbr.rel (0) target = $region17
    $region16: #{lstm_price_predictor_forward.1} parent=1 // pred_region
      %s68 = ssub.s32 16384, 16384
      %69 = vsyncadd [#allocation12], %s68
      %s70 = sshll.u32 [#allocation11], 4
      %s71 = int_to_ptr.vmem [resolvable:$true] %s70
      %76 = dma.hbm_to_vmem [thread:$0]  %s3, 16384, %s71, [#allocation12], 512, 512, 32
    $region17: #{lstm_price_predictor_forward.1} parent=1 // pred_fallthru
      _
    // Predicated region
    $region18: #{lstm_price_predictor_forward.1} parent=1 // pred_check
      _
    $region19: #{lstm_price_predictor_forward.1} parent=1 // pred_check_branch
      %78 = sbr.rel (0) target = $region21
    $region20: #{lstm_price_predictor_forward.1} parent=1 // pred_region
      %s80 = ssub.s32 64, 64
      %81 = vsyncadd [#allocation12], %s80
      %s83 = sshll.u32 [#allocation13], 4
      %s84 = int_to_ptr.vmem [resolvable:$true] %s83
      %86 = dma.hbm_to_vmem [thread:$0]  %s4, 64, %s84, [#allocation12]
    $region21: #{lstm_price_predictor_forward.1} parent=1 // pred_fallthru
      _
    // Predicated region
    $region22: #{lstm_price_predictor_forward.1} parent=1 // pred_check
      _
    $region23: #{lstm_price_predictor_forward.1} parent=1 // pred_check_branch
      %88 = sbr.rel (0) target = $region25
    $region24: #{lstm_price_predictor_forward.1} parent=1 // pred_region
      %s90 = ssub.s32 1024, 1024
      %91 = vsyncadd [#allocation15], %s90
      %s92 = sshll.u32 [#allocation14], 4
      %s93 = int_to_ptr.vmem [resolvable:$true] %s92
      %98 = dma.hbm_to_vmem [thread:$0]  %s5, 1024, %s93, [#allocation15], 64, 64, 4
    $region25: #{lstm_price_predictor_forward.1} parent=1 // pred_fallthru
      _
    // Predicated region
    $region26: #{lstm_price_predictor_forward.1} parent=1 // pred_check
      _
    $region27: #{lstm_price_predictor_forward.1} parent=1 // pred_check_branch
      %100 = sbr.rel (0) target = $region29
    $region28: #{lstm_price_predictor_forward.1} parent=1 // pred_region
      %s102 = ssub.s32 16, 16
      %103 = vsyncadd [#allocation15], %s102
      %s105 = sshll.u32 [#allocation16], 4
      %s106 = int_to_ptr.vmem [resolvable:$true] %s105
      %108 = dma.hbm_to_vmem [thread:$0]  %s6, 16, %s106, [#allocation15]
    $region29: #{lstm_price_predictor_forward.1} parent=1 // pred_fallthru
      _
    // Predicated region
    $region30: #{lstm_price_predictor_forward.1} parent=1 // pred_check
      _
    $region31: #{lstm_price_predictor_forward.1} parent=1 // pred_check_branch
      %110 = sbr.rel (0) target = $region33
    $region32: #{lstm_price_predictor_forward.1} parent=1 // pred_region
      %s112 = ssub.s32 2048, 2048
      %113 = vsyncadd [#allocation18], %s112
      %s114 = sshll.u32 [#allocation17], 4
      %s115 = int_to_ptr.vmem [resolvable:$true] %s114
      %120 = dma.hbm_to_vmem [thread:$0]  %s7, 2048, %s115, [#allocation18], 128, 128, 8
    $region33: #{lstm_price_predictor_forward.1} parent=1 // pred_fallthru
      _
    // Predicated region
    $region34: #{lstm_price_predictor_forward.1} parent=1 // pred_check
      _
    $region35: #{lstm_price_predictor_forward.1} parent=1 // pred_check_branch
      %122 = sbr.rel (0) target = $region37
    $region36: #{lstm_price_predictor_forward.1} parent=1 // pred_region
      %s124 = ssub.s32 32, 32
      %125 = vsyncadd [#allocation18], %s124
      %s127 = sshll.u32 [#allocation19], 4
      %s128 = int_to_ptr.vmem [resolvable:$true] %s127
      %130 = dma.hbm_to_vmem [thread:$0]  %s8, 32, %s128, [#allocation18]
    $region37: #{lstm_price_predictor_forward.1} parent=1 // pred_fallthru
      _
    // Predicated region
    $region38: #{lstm_price_predictor_forward.1} parent=1 // pred_check
      _
    $region39: #{lstm_price_predictor_forward.1} parent=1 // pred_check_branch
      %132 = sbr.rel (0) target = $region41
    $region40: #{lstm_price_predictor_forward.1} parent=1 // pred_region
      %s134 = ssub.s32 1024, 1024
      %135 = vsyncadd [#allocation21], %s134
      %s136 = sshll.u32 [#allocation20], 4
      %s137 = int_to_ptr.vmem [resolvable:$true] %s136
      %142 = dma.hbm_to_vmem [thread:$0]  %s9, 1024, %s137, [#allocation21], 64, 64, 4
    $region41: #{lstm_price_predictor_forward.1} parent=1 // pred_fallthru
      _
    // Predicated region
    $region42: #{lstm_price_predictor_forward.1} parent=1 // pred_check
      _
    $region43: #{lstm_price_predictor_forward.1} parent=1 // pred_check_branch
      %144 = sbr.rel (0) target = $region45
    $region44: #{lstm_price_predictor_forward.1} parent=1 // pred_region
      %s146 = ssub.s32 16, 16
      %147 = vsyncadd [#allocation21], %s146
      %s149 = sshll.u32 [#allocation22], 4
      %s150 = int_to_ptr.vmem [resolvable:$true] %s149
      %152 = dma.hbm_to_vmem [thread:$0]  %s10, 16, %s150, [#allocation21]
    $region45: #{lstm_price_predictor_forward.1} parent=1 // pred_fallthru
      _
    // Predicated region
    $region46: #{lstm_price_predictor_forward.1} parent=1 // pred_check
      _
    $region47: #{lstm_price_predictor_forward.1} parent=1 // pred_check_branch
      %154 = sbr.rel (0) target = $region49
    $region48: #{lstm_price_predictor_forward.1} parent=1 // pred_region
      %s156 = ssub.s32 16, 16
      %157 = vsyncadd [#allocation24], %s156
      %s159 = sshll.u32 [#allocation23], 4
      %s160 = int_to_ptr.vmem [resolvable:$true] %s159
      %162 = dma.hbm_to_vmem [thread:$0]  %s11, 16, %s160, [#allocation24]
    $region49: #{lstm_price_predictor_forward.1} parent=1 // pred_fallthru
      _
    // Predicated region
    $region50: #{lstm_price_predictor_forward.1} parent=1 // pred_check
      _
    $region51: #{lstm_price_predictor_forward.1} parent=1 // pred_check_branch
      %164 = sbr.rel (0) target = $region53
    $region52: #{lstm_price_predictor_forward.1} parent=1 // pred_region
      _
    $region53: #{lstm_price_predictor_forward.1} parent=1 // pred_fallthru
      _
    // Predicated region
    $region54: #{lstm_price_predictor_forward.1} parent=1 // pred_check
      _
    $region55: #{lstm_price_predictor_forward.1} parent=1 // pred_check_branch
      %166 = sbr.rel (0) target = $region57
    $region56: #{lstm_price_predictor_forward.1} parent=1 // pred_region
      %s168 = ssub.s32 2048, 2048
      %169 = vsyncadd [#allocation24], %s168
      %s170 = sshll.u32 [#allocation25], 4
      %s171 = int_to_ptr.vmem [resolvable:$true] %s170
      %176 = dma.hbm_to_vmem [thread:$0]  %s13, 2048, %s171, [#allocation24], 128, 128, 8
    $region57: #{lstm_price_predictor_forward.1} parent=1 // pred_fallthru
      _
    // Predicated region
    $region58: #{lstm_price_predictor_forward.1} parent=1 // pred_check
      _
    $region59: #{lstm_price_predictor_forward.1} parent=1 // pred_check_branch
      %178 = sbr.rel (0) target = $region61
    $region60: #{lstm_price_predictor_forward.1} parent=1 // pred_region
      %s180 = ssub.s32 128, 128
      %181 = vsyncadd [#allocation27], %s180
      %s183 = sshll.u32 [#allocation26], 4
      %s184 = int_to_ptr.vmem [resolvable:$true] %s183
      %186 = dma.hbm_to_vmem [thread:$0]  %s14, 128, %s184, [#allocation27]
    $region61: #{lstm_price_predictor_forward.1} parent=1 // pred_fallthru
      _
    // Predicated region
    $region62: #{lstm_price_predictor_forward.1} parent=1 // pred_check
      _
    $region63: #{lstm_price_predictor_forward.1} parent=1 // pred_check_branch
      %188 = sbr.rel (0) target = $region65
    $region64: #{lstm_price_predictor_forward.1} parent=1 // pred_region
      %189 = dma.done [#allocation6], 1024
    $region65: #{lstm_price_predictor_forward.1} parent=1 // pred_fallthru
      _
    // Predicated region
    $region66: #{lstm_price_predictor_forward.1} parent=1 // pred_check
      _
    $region67: #{lstm_price_predictor_forward.1} parent=1 // pred_check_branch
      %191 = sbr.rel (0) target = $region69
    $region68: #{lstm_price_predictor_forward.1} parent=1 // pred_region
      %192 = dma.done [#allocation9], 512
    $region69: #{lstm_price_predictor_forward.1} parent=1 // pred_fallthru
      _
    // Predicated region
    $region70: #{lstm_price_predictor_forward.1} parent=1 // pred_check
      _
    $region71: #{lstm_price_predictor_forward.1} parent=1 // pred_check_branch
      %194 = sbr.rel (0) target = $region73
    $region72: #{lstm_price_predictor_forward.1} parent=1 // pred_region
      %195 = dma.done [#allocation9], 64
    $region73: #{lstm_price_predictor_forward.1} parent=1 // pred_fallthru
      _
    // Predicated region
    $region74: #{lstm_price_predictor_forward.1} parent=1 // pred_check
      _
    $region75: #{lstm_price_predictor_forward.1} parent=1 // pred_check_branch
      %197 = sbr.rel (0) target = $region77
    $region76: #{lstm_price_predictor_forward.1} parent=1 // pred_region
      %198 = dma.done [#allocation12], 16384
    $region77: #{lstm_price_predictor_forward.1} parent=1 // pred_fallthru
      _
    // Predicated region
    $region78: #{lstm_price_predictor_forward.1} parent=1 // pred_check
      _
    $region79: #{lstm_price_predictor_forward.1} parent=1 // pred_check_branch
      %200 = sbr.rel (0) target = $region81
    $region80: #{lstm_price_predictor_forward.1} parent=1 // pred_region
      %201 = dma.done [#allocation12], 64
    $region81: #{lstm_price_predictor_forward.1} parent=1 // pred_fallthru
      _
    // Predicated region
    $region82: #{lstm_price_predictor_forward.1} parent=1 // pred_check
      _
    $region83: #{lstm_price_predictor_forward.1} parent=1 // pred_check_branch
      %203 = sbr.rel (0) target = $region85
    $region84: #{lstm_price_predictor_forward.1} parent=1 // pred_region
      %204 = dma.done [#allocation15], 1024
    $region85: #{lstm_price_predictor_forward.1} parent=1 // pred_fallthru
      _
    // Predicated region
    $region86: #{lstm_price_predictor_forward.1} parent=1 // pred_check
      _
    $region87: #{lstm_price_predictor_forward.1} parent=1 // pred_check_branch
      %206 = sbr.rel (0) target = $region89
    $region88: #{lstm_price_predictor_forward.1} parent=1 // pred_region
      %207 = dma.done [#allocation15], 16
    $region89: #{lstm_price_predictor_forward.1} parent=1 // pred_fallthru
      _
    // Predicated region
    $region90: #{lstm_price_predictor_forward.1} parent=1 // pred_check
      _
    $region91: #{lstm_price_predictor_forward.1} parent=1 // pred_check_branch
      %209 = sbr.rel (0) target = $region93
    $region92: #{lstm_price_predictor_forward.1} parent=1 // pred_region
      %210 = dma.done [#allocation18], 2048
    $region93: #{lstm_price_predictor_forward.1} parent=1 // pred_fallthru
      _
    // Predicated region
    $region94: #{lstm_price_predictor_forward.1} parent=1 // pred_check
      _
    $region95: #{lstm_price_predictor_forward.1} parent=1 // pred_check_branch
      %212 = sbr.rel (0) target = $region97
    $region96: #{lstm_price_predictor_forward.1} parent=1 // pred_region
      %213 = dma.done [#allocation18], 32
    $region97: #{lstm_price_predictor_forward.1} parent=1 // pred_fallthru
      _
    // Predicated region
    $region98: #{lstm_price_predictor_forward.1} parent=1 // pred_check
      _
    $region99: #{lstm_price_predictor_forward.1} parent=1 // pred_check_branch
      %215 = sbr.rel (0) target = $region101
    $region100: #{lstm_price_predictor_forward.1} parent=1 // pred_region
      %216 = dma.done [#allocation21], 1024
    $region101: #{lstm_price_predictor_forward.1} parent=1 // pred_fallthru
      _
    // Predicated region
    $region102: #{lstm_price_predictor_forward.1} parent=1 // pred_check
      _
    $region103: #{lstm_price_predictor_forward.1} parent=1 // pred_check_branch
      %218 = sbr.rel (0) target = $region105
    $region104: #{lstm_price_predictor_forward.1} parent=1 // pred_region
      %219 = dma.done [#allocation21], 16
    $region105: #{lstm_price_predictor_forward.1} parent=1 // pred_fallthru
      _
    // Predicated region
    $region106: #{lstm_price_predictor_forward.1} parent=1 // pred_check
      _
    $region107: #{lstm_price_predictor_forward.1} parent=1 // pred_check_branch
      %221 = sbr.rel (0) target = $region109
    $region108: #{lstm_price_predictor_forward.1} parent=1 // pred_region
      %222 = dma.done [#allocation24], 16
    $region109: #{lstm_price_predictor_forward.1} parent=1 // pred_fallthru
      _
    // Predicated region
    $region110: #{lstm_price_predictor_forward.1} parent=1 // pred_check
      _
    $region111: #{lstm_price_predictor_forward.1} parent=1 // pred_check_branch
      %224 = sbr.rel (0) target = $region113
    $region112: #{lstm_price_predictor_forward.1} parent=1 // pred_region
      %225 = dma.done [#allocation24], 2048
    $region113: #{lstm_price_predictor_forward.1} parent=1 // pred_fallthru
      _
    // Predicated region
    $region114: #{lstm_price_predictor_forward.1} parent=1 // pred_check
      _
    $region115: #{lstm_price_predictor_forward.1} parent=1 // pred_check_branch
      %227 = sbr.rel (0) target = $region117
    $region116: #{lstm_price_predictor_forward.1} parent=1 // pred_region
      %228 = dma.done [#allocation27], 128
    $region117: #{lstm_price_predictor_forward.1} parent=1 // pred_fallthru
      _
    %v230 = vld [vmem:[#allocation5] sm:$0xff]
    %v231 = vld [vmem:[#allocation5 + $0x8] sm:$0xff]
    %v232 = vld [vmem:[#allocation5 + $0x10] sm:$0xff]
    %v233 = vld [vmem:[#allocation5 + $0x18] sm:$0xff]
    %v234 = vld [vmem:[#allocation5 + $0x20] sm:$0xff]
    %v235 = vld [vmem:[#allocation5 + $0x28] sm:$0xff]
    %v236 = vld [vmem:[#allocation5 + $0x30] sm:$0xff]
    %v237 = vld [vmem:[#allocation5 + $0x38] sm:$0xff]
    %v238 = vpack.c.bf16 %v231, %v230
    %v239 = vpack.c.bf16 %v233, %v232
    %v240 = vpack.c.bf16 %v235, %v234
    %v241 = vpack.c.bf16 %v237, %v236
    %v242 = vld [vmem:[#allocation8] sm:$0xff]
    %v243 = vld [vmem:[#allocation8 + $0x8] sm:$0xff]
    %v244 = vld [vmem:[#allocation8 + $0x10] sm:$0xff]
    %v245 = vld [vmem:[#allocation8 + $0x18] sm:$0xff]
    %v246 = vld [vmem:[#allocation10] sm:$0xf]
    %v248 = vlaneseq
    %v249 = vshrl.u32 %v248, 7
    %v250 = vsub.s32 0, %v249
    %v251 = vrot.slane %v246, %v250
    %v252 = vlaneseq
    %v253 = vshrl.u32 %v252, 7
    %v254 = vsub.s32 1, %v253
    %v255 = vrot.slane %v246, %v254
    %v256 = vlaneseq
    %v257 = vshrl.u32 %v256, 7
    %v258 = vsub.s32 2, %v257
    %v259 = vrot.slane %v246, %v258
    %v260 = vlaneseq
    %v261 = vshrl.u32 %v260, 7
    %v262 = vsub.s32 3, %v261
    %v263 = vrot.slane %v246, %v262
    %v272 = vunpack.c.l.b16 %v242
    %v273 = vunpack.c.h.b16 %v242
    %v274 = vunpack.c.l.b16 %v243
    %v275 = vunpack.c.h.b16 %v243
    %v276 = vunpack.c.l.b16 %v244
    %v277 = vunpack.c.h.b16 %v244
    %v278 = vunpack.c.l.b16 %v245
    %v279 = vunpack.c.h.b16 %v245
    %v280 = vpack.c.b16 %v276, %v272
    %v281 = vpack.c.b16 %v277, %v273
    %v282 = vpack.c.b16 %v278, %v274
    %v283 = vpack.c.b16 %v279, %v275
    %vm288 = vcmask 130048
    %v290 = vsel %vm288, %v238, 0
    %v293 = vsel %vm288, %v239, 0
    %v296 = vsel %vm288, %v240, 0
    %v299 = vsel %vm288, %v241, 0
    %301 = vmatprep.subr.bf16.mxu0 %v281
    %302 = vmatpush1.bf16.msra.mxu0 %v280
    %303 = vmatprep.subr.bf16.mxu0 0
    %304 = vmatpush1.bf16.msra.mxu0 0
    %305 = vmatprep.subr.bf16.mxu0 0
    %306 = vmatpush1.bf16.msra.mxu0 0
    %307 = vmatprep.subr.bf16.mxu0 0
    %308 = vmatpush1.bf16.msra.mxu0 0
    %309 = vmatprep.subr.bf16.mxu0 0
    %310 = vmatpush1.bf16.msra.mxu0 0
    %311 = vmatprep.subr.bf16.mxu0 0
    %312 = vmatpush1.bf16.msra.mxu0 0
    %313 = vmatprep.subr.bf16.mxu0 0
    %314 = vmatpush1.bf16.msra.mxu0 0
    %315 = vmatprep.subr.bf16.mxu0 0
    %316 = vmatpush1.bf16.msra.mxu0 0
    %317 = vmatprep.subr.bf16.mxu0 0
    %318 = vmatpush1.bf16.msra.mxu0 0
    %319 = vmatprep.subr.bf16.mxu0 0
    %320 = vmatpush1.bf16.msra.mxu0 0
    %321 = vmatprep.subr.bf16.mxu0 0
    %322 = vmatpush1.bf16.msra.mxu0 0
    %323 = vmatprep.subr.bf16.mxu0 0
    %324 = vmatpush1.bf16.msra.mxu0 0
    %325 = vmatprep.subr.bf16.mxu0 0
    %326 = vmatpush1.bf16.msra.mxu0 0
    %327 = vmatprep.subr.bf16.mxu0 0
    %328 = vmatpush1.bf16.msra.mxu0 0
    %329 = vmatprep.subr.bf16.mxu0 0
    %330 = vmatpush1.bf16.msra.mxu0 0
    %331 = vmatprep.subr.bf16.mxu0 0
    %332 = vmatpush1.bf16.msra.mxu0 0
    %333 = vmatprep.mubr.bf16.mxu0 0
    %334 = vmatmul.mubr.bf16.gmra.mrb[0].mxu0 %v290
    %v335 = vpop.f32.mrb[0].mxu0
    %v336 = vadd.f32 %v251, %v335
    %v337 = vpop.f32.mrb[0].mxu0
    %v338 = vadd.f32 %v255, %v337
    %v339 = vpop.f32.mrb[0].mxu0
    %v340 = vadd.f32 %v251, %v339
    %v341 = vpop.f32.mrb[0].mxu0
    %v342 = vadd.f32 %v255, %v341
    %343 = vmatprep.mubr.bf16.mxu0 0
    %344 = vmatmul.mubr.bf16.gmra.mrb[0].mxu0 %v293
    %v345 = vpop.f32.mrb[0].mxu0
    %v346 = vadd.f32 %v251, %v345
    %v347 = vpop.f32.mrb[0].mxu0
    %v348 = vadd.f32 %v255, %v347
    %v349 = vpop.f32.mrb[0].mxu0
    %v350 = vadd.f32 %v251, %v349
    %v351 = vpop.f32.mrb[0].mxu0
    %v352 = vadd.f32 %v255, %v351
    %353 = vmatprep.mubr.bf16.mxu0 0
    %354 = vmatmul.mubr.bf16.gmra.mrb[0].mxu0 %v296
    %v355 = vpop.f32.mrb[0].mxu0
    %v356 = vadd.f32 %v251, %v355
    %v357 = vpop.f32.mrb[0].mxu0
    %v358 = vadd.f32 %v255, %v357
    %v359 = vpop.f32.mrb[0].mxu0
    %v360 = vadd.f32 %v251, %v359
    %v361 = vpop.f32.mrb[0].mxu0
    %v362 = vadd.f32 %v255, %v361
    %363 = vmatprep.mubr.bf16.mxu0 0
    %364 = vmatmul.mubr.bf16.gmra.mrb[0].mxu0 %v299
    %v365 = vpop.f32.mrb[0].mxu0
    %v366 = vadd.f32 %v251, %v365
    %v367 = vpop.f32.mrb[0].mxu0
    %v368 = vadd.f32 %v255, %v367
    %v369 = vpop.f32.mrb[0].mxu0
    %v370 = vadd.f32 %v251, %v369
    %v371 = vpop.f32.mrb[0].mxu0
    %v372 = vadd.f32 %v255, %v371
    %373 = vdwg.mxu0
    %374 = vmatprep.subr.bf16.mxu0 %v283
    %375 = vmatpush1.bf16.msra.mxu0 %v282
    %376 = vmatprep.subr.bf16.mxu0 0
    %377 = vmatpush1.bf16.msra.mxu0 0
    %378 = vmatprep.subr.bf16.mxu0 0
    %379 = vmatpush1.bf16.msra.mxu0 0
    %380 = vmatprep.subr.bf16.mxu0 0
    %381 = vmatpush1.bf16.msra.mxu0 0
    %382 = vmatprep.subr.bf16.mxu0 0
    %383 = vmatpush1.bf16.msra.mxu0 0
    %384 = vmatprep.subr.bf16.mxu0 0
    %385 = vmatpush1.bf16.msra.mxu0 0
    %386 = vmatprep.subr.bf16.mxu0 0
    %387 = vmatpush1.bf16.msra.mxu0 0
    %388 = vmatprep.subr.bf16.mxu0 0
    %389 = vmatpush1.bf16.msra.mxu0 0
    %390 = vmatprep.subr.bf16.mxu0 0
    %391 = vmatpush1.bf16.msra.mxu0 0
    %392 = vmatprep.subr.bf16.mxu0 0
    %393 = vmatpush1.bf16.msra.mxu0 0
    %394 = vmatprep.subr.bf16.mxu0 0
    %395 = vmatpush1.bf16.msra.mxu0 0
    %396 = vmatprep.subr.bf16.mxu0 0
    %397 = vmatpush1.bf16.msra.mxu0 0
    %398 = vmatprep.subr.bf16.mxu0 0
    %399 = vmatpush1.bf16.msra.mxu0 0
    %400 = vmatprep.subr.bf16.mxu0 0
    %401 = vmatpush1.bf16.msra.mxu0 0
    %402 = vmatprep.subr.bf16.mxu0 0
    %403 = vmatpush1.bf16.msra.mxu0 0
    %404 = vmatprep.subr.bf16.mxu0 0
    %405 = vmatpush1.bf16.msra.mxu0 0
    %406 = vmatprep.mubr.bf16.mxu0 0
    %407 = vmatmul.mubr.bf16.gmra.mrb[0].mxu0 %v290
    %v408 = vpop.f32.mrb[0].mxu0
    %v409 = vadd.f32 %v259, %v408
    %v410 = vpop.f32.mrb[0].mxu0
    %v411 = vadd.f32 %v263, %v410
    %v412 = vpop.f32.mrb[0].mxu0
    %v413 = vadd.f32 %v259, %v412
    %v414 = vpop.f32.mrb[0].mxu0
    %v415 = vadd.f32 %v263, %v414
    %416 = vmatprep.mubr.bf16.mxu0 0
    %417 = vmatmul.mubr.bf16.gmra.mrb[0].mxu0 %v293
    %v418 = vpop.f32.mrb[0].mxu0
    %v419 = vadd.f32 %v259, %v418
    %v420 = vpop.f32.mrb[0].mxu0
    %v421 = vadd.f32 %v263, %v420
    %v422 = vpop.f32.mrb[0].mxu0
    %v423 = vadd.f32 %v259, %v422
    %v424 = vpop.f32.mrb[0].mxu0
    %v425 = vadd.f32 %v263, %v424
    %426 = vmatprep.mubr.bf16.mxu0 0
    %427 = vmatmul.mubr.bf16.gmra.mrb[0].mxu0 %v296
    %v428 = vpop.f32.mrb[0].mxu0
    %v429 = vadd.f32 %v259, %v428
    %v430 = vpop.f32.mrb[0].mxu0
    %v431 = vadd.f32 %v263, %v430
    %v432 = vpop.f32.mrb[0].mxu0
    %v433 = vadd.f32 %v259, %v432
    %v434 = vpop.f32.mrb[0].mxu0
    %v435 = vadd.f32 %v263, %v434
    %436 = vmatprep.mubr.bf16.mxu0 0
    %437 = vmatmul.mubr.bf16.gmra.mrb[0].mxu0 %v299
    %v438 = vpop.f32.mrb[0].mxu0
    %v439 = vadd.f32 %v259, %v438
    %v440 = vpop.f32.mrb[0].mxu0
    %v441 = vadd.f32 %v263, %v440
    %v442 = vpop.f32.mrb[0].mxu0
    %v443 = vadd.f32 %v259, %v442
    %v444 = vpop.f32.mrb[0].mxu0
    %v445 = vadd.f32 %v263, %v444
    %446 = vdwg.mxu0
    %447 = vst [vmem:[#allocation3] sm:$0xff] %v336
    %448 = vst [vmem:[#allocation3 + $0x8] sm:$0xff] %v338
    %449 = vst [vmem:[#allocation3 + $0x10] sm:$0xff] %v409
    %450 = vst [vmem:[#allocation3 + $0x18] sm:$0xff] %v411
    %451 = vst [vmem:[#allocation3 + $0x20] sm:$0xff] %v340
    %452 = vst [vmem:[#allocation3 + $0x28] sm:$0xff] %v342
    %453 = vst [vmem:[#allocation3 + $0x30] sm:$0xff] %v413
    %454 = vst [vmem:[#allocation3 + $0x38] sm:$0xff] %v415
    %455 = vst [vmem:[#allocation3 + $0x40] sm:$0xff] %v346
    %456 = vst [vmem:[#allocation3 + $0x48] sm:$0xff] %v348
    %457 = vst [vmem:[#allocation3 + $0x50] sm:$0xff] %v419
    %458 = vst [vmem:[#allocation3 + $0x58] sm:$0xff] %v421
    %459 = vst [vmem:[#allocation3 + $0x60] sm:$0xff] %v350
    %460 = vst [vmem:[#allocation3 + $0x68] sm:$0xff] %v352
    %461 = vst [vmem:[#allocation3 + $0x70] sm:$0xff] %v423
    %462 = vst [vmem:[#allocation3 + $0x78] sm:$0xff] %v425
    %463 = vst [vmem:[#allocation3 + $0x80] sm:$0xff] %v356
    %464 = vst [vmem:[#allocation3 + $0x88] sm:$0xff] %v358
    %465 = vst [vmem:[#allocation3 + $0x90] sm:$0xff] %v429
    %466 = vst [vmem:[#allocation3 + $0x98] sm:$0xff] %v431
    %467 = vst [vmem:[#allocation3 + $0xa0] sm:$0xff] %v360
    %468 = vst [vmem:[#allocation3 + $0xa8] sm:$0xff] %v362
    %469 = vst [vmem:[#allocation3 + $0xb0] sm:$0xff] %v433
    %470 = vst [vmem:[#allocation3 + $0xb8] sm:$0xff] %v435
    %471 = vst [vmem:[#allocation3 + $0xc0] sm:$0xff] %v366
    %472 = vst [vmem:[#allocation3 + $0xc8] sm:$0xff] %v368
    %473 = vst [vmem:[#allocation3 + $0xd0] sm:$0xff] %v439
    %474 = vst [vmem:[#allocation3 + $0xd8] sm:$0xff] %v441
    %475 = vst [vmem:[#allocation3 + $0xe0] sm:$0xff] %v370
    %476 = vst [vmem:[#allocation3 + $0xe8] sm:$0xff] %v372
    %477 = vst [vmem:[#allocation3 + $0xf0] sm:$0xff] %v443
    %478 = vst [vmem:[#allocation3 + $0xf8] sm:$0xff] %v445
    %v479 = vld [vmem:[#allocation13] sm:$0xf]
    %v480 = vld [vmem:[#allocation3] sm:$0xff]
    %v481 = vld [vmem:[#allocation3 + $0x8] sm:$0xff]
    %v482 = vld [vmem:[#allocation3 + $0x10] sm:$0xff]
    %v483 = vld [vmem:[#allocation3 + $0x18] sm:$0xff]
    %v484 = vxor.u32 %v480, 2147483648
    %v485 = vmul.f32 %v484, 1.442695
    %v486 = vpow.pop %v485
    %v487 = vadd.f32 %v486, 1.0
    %v488 = vrcp.pop %v487
    %v489 = vmul.f32 1.0, %v488
    %v490 = vxor.u32 %v481, 2147483648
    %v491 = vmul.f32 %v490, 1.442695
    %v492 = vpow.pop %v491
    %v493 = vadd.f32 %v492, 1.0
    %v494 = vrcp.pop %v493
    %v495 = vmul.f32 1.0, %v494
    %v496 = vtanh.pop %v482
    %v497 = vxor.u32 %v483, 2147483648
    %v498 = vmul.f32 %v497, 1.442695
    %v499 = vpow.pop %v498
    %v500 = vadd.f32 %v499, 1.0
    %v501 = vrcp.pop %v500
    %v502 = vmul.f32 1.0, %v501
    %v503 = vmul.f32 %v495, 0.0
    %v504 = vmul.f32 %v489, %v496
    %v505 = vadd.f32 %v503, %v504
    %v506 = vtanh.pop %v505
    %v507 = vmul.f32 %v502, %v506
    %v508 = vpack.c.bf16 %v507, %v507
    %v509 = vpack.c.bf16 0.0, 0.0
    %v510 = vld [vmem:[#allocation11] sm:$0xff]
    %v511 = vld [vmem:[#allocation11 + $0x8] sm:$0xff]
    %v512 = vld [vmem:[#allocation11 + $0x10] sm:$0xff]
    %v513 = vld [vmem:[#allocation11 + $0x18] sm:$0xff]
    %v514 = vld [vmem:[#allocation11 + $0x20] sm:$0xff]
    %v515 = vld [vmem:[#allocation11 + $0x28] sm:$0xff]
    %v516 = vld [vmem:[#allocation11 + $0x30] sm:$0xff]
    %v517 = vld [vmem:[#allocation11 + $0x38] sm:$0xff]
    %v518 = vld [vmem:[#allocation11 + $0x40] sm:$0xff]
    %v519 = vld [vmem:[#allocation11 + $0x48] sm:$0xff]
    %v520 = vld [vmem:[#allocation11 + $0x50] sm:$0xff]
    %v521 = vld [vmem:[#allocation11 + $0x58] sm:$0xff]
    %v522 = vld [vmem:[#allocation11 + $0x60] sm:$0xff]
    %v523 = vld [vmem:[#allocation11 + $0x68] sm:$0xff]
    %v524 = vld [vmem:[#allocation11 + $0x70] sm:$0xff]
    %v525 = vld [vmem:[#allocation11 + $0x78] sm:$0xff]
    %v526 = vld [vmem:[#allocation11 + $0x80] sm:$0xff]
    %v527 = vld [vmem:[#allocation11 + $0x88] sm:$0xff]
    %v528 = vld [vmem:[#allocation11 + $0x90] sm:$0xff]
    %v529 = vld [vmem:[#allocation11 + $0x98] sm:$0xff]
    %v530 = vld [vmem:[#allocation11 + $0xa0] sm:$0xff]
    %v531 = vld [vmem:[#allocation11 + $0xa8] sm:$0xff]
    %v532 = vld [vmem:[#allocation11 + $0xb0] sm:$0xff]
    %v533 = vld [vmem:[#allocation11 + $0xb8] sm:$0xff]
    %v534 = vld [vmem:[#allocation11 + $0xc0] sm:$0xff]
    %v535 = vld [vmem:[#allocation11 + $0xc8] sm:$0xff]
    %v536 = vld [vmem:[#allocation11 + $0xd0] sm:$0xff]
    %v537 = vld [vmem:[#allocation11 + $0xd8] sm:$0xff]
    %v538 = vld [vmem:[#allocation11 + $0xe0] sm:$0xff]
    %v539 = vld [vmem:[#allocation11 + $0xe8] sm:$0xff]
    %v540 = vld [vmem:[#allocation11 + $0xf0] sm:$0xff]
    %v541 = vld [vmem:[#allocation11 + $0xf8] sm:$0xff]
    %v542 = vld [vmem:[#allocation11 + $0x100] sm:$0xff]
    %v543 = vld [vmem:[#allocation11 + $0x108] sm:$0xff]
    %v544 = vld [vmem:[#allocation11 + $0x110] sm:$0xff]
    %v545 = vld [vmem:[#allocation11 + $0x118] sm:$0xff]
    %v546 = vld [vmem:[#allocation11 + $0x120] sm:$0xff]
    %v547 = vld [vmem:[#allocation11 + $0x128] sm:$0xff]
    %v548 = vld [vmem:[#allocation11 + $0x130] sm:$0xff]
    %v549 = vld [vmem:[#allocation11 + $0x138] sm:$0xff]
    %v550 = vld [vmem:[#allocation11 + $0x140] sm:$0xff]
    %v551 = vld [vmem:[#allocation11 + $0x148] sm:$0xff]
    %v552 = vld [vmem:[#allocation11 + $0x150] sm:$0xff]
    %v553 = vld [vmem:[#allocation11 + $0x158] sm:$0xff]
    %v554 = vld [vmem:[#allocation11 + $0x160] sm:$0xff]
    %v555 = vld [vmem:[#allocation11 + $0x168] sm:$0xff]
    %v556 = vld [vmem:[#allocation11 + $0x170] sm:$0xff]
    %v557 = vld [vmem:[#allocation11 + $0x178] sm:$0xff]
    %v558 = vld [vmem:[#allocation11 + $0x180] sm:$0xff]
    %v559 = vld [vmem:[#allocation11 + $0x188] sm:$0xff]
    %v560 = vld [vmem:[#allocation11 + $0x190] sm:$0xff]
    %v561 = vld [vmem:[#allocation11 + $0x198] sm:$0xff]
    %v562 = vld [vmem:[#allocation11 + $0x1a0] sm:$0xff]
    %v563 = vld [vmem:[#allocation11 + $0x1a8] sm:$0xff]
    %v564 = vld [vmem:[#allocation11 + $0x1b0] sm:$0xff]
    %v565 = vld [vmem:[#allocation11 + $0x1b8] sm:$0xff]
    %v566 = vld [vmem:[#allocation11 + $0x1c0] sm:$0xff]
    %v567 = vld [vmem:[#allocation11 + $0x1c8] sm:$0xff]
    %v568 = vld [vmem:[#allocation11 + $0x1d0] sm:$0xff]
    %v569 = vld [vmem:[#allocation11 + $0x1d8] sm:$0xff]
    %v570 = vld [vmem:[#allocation11 + $0x1e0] sm:$0xff]
    %v571 = vld [vmem:[#allocation11 + $0x1e8] sm:$0xff]
    %v572 = vld [vmem:[#allocation11 + $0x1f0] sm:$0xff]
    %v573 = vld [vmem:[#allocation11 + $0x1f8] sm:$0xff]
    %v574 = vld [vmem:[#allocation11 + $0x200] sm:$0xff]
    %v575 = vld [vmem:[#allocation11 + $0x208] sm:$0xff]
    %v576 = vld [vmem:[#allocation11 + $0x210] sm:$0xff]
    %v577 = vld [vmem:[#allocation11 + $0x218] sm:$0xff]
    %v578 = vld [vmem:[#allocation11 + $0x220] sm:$0xff]
    %v579 = vld [vmem:[#allocation11 + $0x228] sm:$0xff]
    %v580 = vld [vmem:[#allocation11 + $0x230] sm:$0xff]
    %v581 = vld [vmem:[#allocation11 + $0x238] sm:$0xff]
    %v582 = vld [vmem:[#allocation11 + $0x240] sm:$0xff]
    %v583 = vld [vmem:[#allocation11 + $0x248] sm:$0xff]
    %v584 = vld [vmem:[#allocation11 + $0x250] sm:$0xff]
    %v585 = vld [vmem:[#allocation11 + $0x258] sm:$0xff]
    %v586 = vld [vmem:[#allocation11 + $0x260] sm:$0xff]
    %v587 = vld [vmem:[#allocation11 + $0x268] sm:$0xff]
    %v588 = vld [vmem:[#allocation11 + $0x270] sm:$0xff]
    %v589 = vld [vmem:[#allocation11 + $0x278] sm:$0xff]
    %v590 = vld [vmem:[#allocation11 + $0x280] sm:$0xff]
    %v591 = vld [vmem:[#allocation11 + $0x288] sm:$0xff]
    %v592 = vld [vmem:[#allocation11 + $0x290] sm:$0xff]
    %v593 = vld [vmem:[#allocation11 + $0x298] sm:$0xff]
    %v594 = vld [vmem:[#allocation11 + $0x2a0] sm:$0xff]
    %v595 = vld [vmem:[#allocation11 + $0x2a8] sm:$0xff]
    %v596 = vld [vmem:[#allocation11 + $0x2b0] sm:$0xff]
    %v597 = vld [vmem:[#allocation11 + $0x2b8] sm:$0xff]
    %v598 = vld [vmem:[#allocation11 + $0x2c0] sm:$0xff]
    %v599 = vld [vmem:[#allocation11 + $0x2c8] sm:$0xff]
    %v600 = vld [vmem:[#allocation11 + $0x2d0] sm:$0xff]
    %v601 = vld [vmem:[#allocation11 + $0x2d8] sm:$0xff]
    %v602 = vld [vmem:[#allocation11 + $0x2e0] sm:$0xff]
    %v603 = vld [vmem:[#allocation11 + $0x2e8] sm:$0xff]
    %v604 = vld [vmem:[#allocation11 + $0x2f0] sm:$0xff]
    %v605 = vld [vmem:[#allocation11 + $0x2f8] sm:$0xff]
    %v606 = vld [vmem:[#allocation11 + $0x300] sm:$0xff]
    %v607 = vld [vmem:[#allocation11 + $0x308] sm:$0xff]
    %v608 = vld [vmem:[#allocation11 + $0x310] sm:$0xff]
    %v609 = vld [vmem:[#allocation11 + $0x318] sm:$0xff]
    %v610 = vld [vmem:[#allocation11 + $0x320] sm:$0xff]
    %v611 = vld [vmem:[#allocation11 + $0x328] sm:$0xff]
    %v612 = vld [vmem:[#allocation11 + $0x330] sm:$0xff]
    %v613 = vld [vmem:[#allocation11 + $0x338] sm:$0xff]
    %v614 = vld [vmem:[#allocation11 + $0x340] sm:$0xff]
    %v615 = vld [vmem:[#allocation11 + $0x348] sm:$0xff]
    %v616 = vld [vmem:[#allocation11 + $0x350] sm:$0xff]
    %v617 = vld [vmem:[#allocation11 + $0x358] sm:$0xff]
    %v618 = vld [vmem:[#allocation11 + $0x360] sm:$0xff]
    %v619 = vld [vmem:[#allocation11 + $0x368] sm:$0xff]
    %v620 = vld [vmem:[#allocation11 + $0x370] sm:$0xff]
    %v621 = vld [vmem:[#allocation11 + $0x378] sm:$0xff]
    %v622 = vld [vmem:[#allocation11 + $0x380] sm:$0xff]
    %v623 = vld [vmem:[#allocation11 + $0x388] sm:$0xff]
    %v624 = vld [vmem:[#allocation11 + $0x390] sm:$0xff]
    %v625 = vld [vmem:[#allocation11 + $0x398] sm:$0xff]
    %v626 = vld [vmem:[#allocation11 + $0x3a0] sm:$0xff]
    %v627 = vld [vmem:[#allocation11 + $0x3a8] sm:$0xff]
    %v628 = vld [vmem:[#allocation11 + $0x3b0] sm:$0xff]
    %v629 = vld [vmem:[#allocation11 + $0x3b8] sm:$0xff]
    %v630 = vld [vmem:[#allocation11 + $0x3c0] sm:$0xff]
    %v631 = vld [vmem:[#allocation11 + $0x3c8] sm:$0xff]
    %v632 = vld [vmem:[#allocation11 + $0x3d0] sm:$0xff]
    %v633 = vld [vmem:[#allocation11 + $0x3d8] sm:$0xff]
    %v634 = vld [vmem:[#allocation11 + $0x3e0] sm:$0xff]
    %v635 = vld [vmem:[#allocation11 + $0x3e8] sm:$0xff]
    %v636 = vld [vmem:[#allocation11 + $0x3f0] sm:$0xff]
    %v637 = vld [vmem:[#allocation11 + $0x3f8] sm:$0xff]
    %v766 = vunpack.c.l.b16 %v510
    %v767 = vunpack.c.h.b16 %v510
    %v768 = vunpack.c.l.b16 %v511
    %v769 = vunpack.c.h.b16 %v511
    %v770 = vunpack.c.l.b16 %v512
    %v771 = vunpack.c.h.b16 %v512
    %v772 = vunpack.c.l.b16 %v513
    %v773 = vunpack.c.h.b16 %v513
    %v774 = vunpack.c.l.b16 %v514
    %v775 = vunpack.c.h.b16 %v514
    %v776 = vunpack.c.l.b16 %v515
    %v777 = vunpack.c.h.b16 %v515
    %v778 = vunpack.c.l.b16 %v516
    %v779 = vunpack.c.h.b16 %v516
    %v780 = vunpack.c.l.b16 %v517
    %v781 = vunpack.c.h.b16 %v517
    %v782 = vunpack.c.l.b16 %v518
    %v783 = vunpack.c.h.b16 %v518
    %v784 = vunpack.c.l.b16 %v519
    %v785 = vunpack.c.h.b16 %v519
    %v786 = vunpack.c.l.b16 %v520
    %v787 = vunpack.c.h.b16 %v520
    %v788 = vunpack.c.l.b16 %v521
    %v789 = vunpack.c.h.b16 %v521
    %v790 = vunpack.c.l.b16 %v522
    %v791 = vunpack.c.h.b16 %v522
    %v792 = vunpack.c.l.b16 %v523
    %v793 = vunpack.c.h.b16 %v523
    %v794 = vunpack.c.l.b16 %v524
    %v795 = vunpack.c.h.b16 %v524
    %v796 = vunpack.c.l.b16 %v525
    %v797 = vunpack.c.h.b16 %v525
    %v798 = vunpack.c.l.b16 %v526
    %v799 = vunpack.c.h.b16 %v526
    %v800 = vunpack.c.l.b16 %v527
    %v801 = vunpack.c.h.b16 %v527
    %v802 = vunpack.c.l.b16 %v528
    %v803 = vunpack.c.h.b16 %v528
    %v804 = vunpack.c.l.b16 %v529
    %v805 = vunpack.c.h.b16 %v529
    %v806 = vunpack.c.l.b16 %v530
    %v807 = vunpack.c.h.b16 %v530
    %v808 = vunpack.c.l.b16 %v531
    %v809 = vunpack.c.h.b16 %v531
    %v810 = vunpack.c.l.b16 %v532
    %v811 = vunpack.c.h.b16 %v532
    %v812 = vunpack.c.l.b16 %v533
    %v813 = vunpack.c.h.b16 %v533
    %v814 = vunpack.c.l.b16 %v534
    %v815 = vunpack.c.h.b16 %v534
    %v816 = vunpack.c.l.b16 %v535
    %v817 = vunpack.c.h.b16 %v535
    %v818 = vunpack.c.l.b16 %v536
    %v819 = vunpack.c.h.b16 %v536
    %v820 = vunpack.c.l.b16 %v537
    %v821 = vunpack.c.h.b16 %v537
    %v822 = vunpack.c.l.b16 %v538
    %v823 = vunpack.c.h.b16 %v538
    %v824 = vunpack.c.l.b16 %v539
    %v825 = vunpack.c.h.b16 %v539
    %v826 = vunpack.c.l.b16 %v540
    %v827 = vunpack.c.h.b16 %v540
    %v828 = vunpack.c.l.b16 %v541
    %v829 = vunpack.c.h.b16 %v541
    %v830 = vunpack.c.l.b16 %v542
    %v831 = vunpack.c.h.b16 %v542
    %v832 = vunpack.c.l.b16 %v543
    %v833 = vunpack.c.h.b16 %v543
    %v834 = vunpack.c.l.b16 %v544
    %v835 = vunpack.c.h.b16 %v544
    %v836 = vunpack.c.l.b16 %v545
    %v837 = vunpack.c.h.b16 %v545
    %v838 = vunpack.c.l.b16 %v546
    %v839 = vunpack.c.h.b16 %v546
    %v840 = vunpack.c.l.b16 %v547
    %v841 = vunpack.c.h.b16 %v547
    %v842 = vunpack.c.l.b16 %v548
    %v843 = vunpack.c.h.b16 %v548
    %v844 = vunpack.c.l.b16 %v549
    %v845 = vunpack.c.h.b16 %v549
    %v846 = vunpack.c.l.b16 %v550
    %v847 = vunpack.c.h.b16 %v550
    %v848 = vunpack.c.l.b16 %v551
    %v849 = vunpack.c.h.b16 %v551
    %v850 = vunpack.c.l.b16 %v552
    %v851 = vunpack.c.h.b16 %v552
    %v852 = vunpack.c.l.b16 %v553
    %v853 = vunpack.c.h.b16 %v553
    %v854 = vunpack.c.l.b16 %v554
    %v855 = vunpack.c.h.b16 %v554
    %v856 = vunpack.c.l.b16 %v555
    %v857 = vunpack.c.h.b16 %v555
    %v858 = vunpack.c.l.b16 %v556
    %v859 = vunpack.c.h.b16 %v556
    %v860 = vunpack.c.l.b16 %v557
    %v861 = vunpack.c.h.b16 %v557
    %v862 = vunpack.c.l.b16 %v558
    %v863 = vunpack.c.h.b16 %v558
    %v864 = vunpack.c.l.b16 %v559
    %v865 = vunpack.c.h.b16 %v559
    %v866 = vunpack.c.l.b16 %v560
    %v867 = vunpack.c.h.b16 %v560
    %v868 = vunpack.c.l.b16 %v561
    %v869 = vunpack.c.h.b16 %v561
    %v870 = vunpack.c.l.b16 %v562
    %v871 = vunpack.c.h.b16 %v562
    %v872 = vunpack.c.l.b16 %v563
    %v873 = vunpack.c.h.b16 %v563
    %v874 = vunpack.c.l.b16 %v564
    %v875 = vunpack.c.h.b16 %v564
    %v876 = vunpack.c.l.b16 %v565
    %v877 = vunpack.c.h.b16 %v565
    %v878 = vunpack.c.l.b16 %v566
    %v879 = vunpack.c.h.b16 %v566
    %v880 = vunpack.c.l.b16 %v567
    %v881 = vunpack.c.h.b16 %v567
    %v882 = vunpack.c.l.b16 %v568
    %v883 = vunpack.c.h.b16 %v568
    %v884 = vunpack.c.l.b16 %v569
    %v885 = vunpack.c.h.b16 %v569
    %v886 = vunpack.c.l.b16 %v570
    %v887 = vunpack.c.h.b16 %v570
    %v888 = vunpack.c.l.b16 %v571
    %v889 = vunpack.c.h.b16 %v571
    %v890 = vunpack.c.l.b16 %v572
    %v891 = vunpack.c.h.b16 %v572
    %v892 = vunpack.c.l.b16 %v573
    %v893 = vunpack.c.h.b16 %v573
    %v894 = vunpack.c.l.b16 %v574
    %v895 = vunpack.c.h.b16 %v574
    %v896 = vunpack.c.l.b16 %v575
    %v897 = vunpack.c.h.b16 %v575
    %v898 = vunpack.c.l.b16 %v576
    %v899 = vunpack.c.h.b16 %v576
    %v900 = vunpack.c.l.b16 %v577
    %v901 = vunpack.c.h.b16 %v577
    %v902 = vunpack.c.l.b16 %v578
    %v903 = vunpack.c.h.b16 %v578
    %v904 = vunpack.c.l.b16 %v579
    %v905 = vunpack.c.h.b16 %v579
    %v906 = vunpack.c.l.b16 %v580
    %v907 = vunpack.c.h.b16 %v580
    %v908 = vunpack.c.l.b16 %v581
    %v909 = vunpack.c.h.b16 %v581
    %v910 = vunpack.c.l.b16 %v582
    %v911 = vunpack.c.h.b16 %v582
    %v912 = vunpack.c.l.b16 %v583
    %v913 = vunpack.c.h.b16 %v583
    %v914 = vunpack.c.l.b16 %v584
    %v915 = vunpack.c.h.b16 %v584
    %v916 = vunpack.c.l.b16 %v585
    %v917 = vunpack.c.h.b16 %v585
    %v918 = vunpack.c.l.b16 %v586
    %v919 = vunpack.c.h.b16 %v586
    %v920 = vunpack.c.l.b16 %v587
    %v921 = vunpack.c.h.b16 %v587
    %v922 = vunpack.c.l.b16 %v588
    %v923 = vunpack.c.h.b16 %v588
    %v924 = vunpack.c.l.b16 %v589
    %v925 = vunpack.c.h.b16 %v589
    %v926 = vunpack.c.l.b16 %v590
    %v927 = vunpack.c.h.b16 %v590
    %v928 = vunpack.c.l.b16 %v591
    %v929 = vunpack.c.h.b16 %v591
    %v930 = vunpack.c.l.b16 %v592
    %v931 = vunpack.c.h.b16 %v592
    %v932 = vunpack.c.l.b16 %v593
    %v933 = vunpack.c.h.b16 %v593
    %v934 = vunpack.c.l.b16 %v594
    %v935 = vunpack.c.h.b16 %v594
    %v936 = vunpack.c.l.b16 %v595
    %v937 = vunpack.c.h.b16 %v595
    %v938 = vunpack.c.l.b16 %v596
    %v939 = vunpack.c.h.b16 %v596
    %v940 = vunpack.c.l.b16 %v597
    %v941 = vunpack.c.h.b16 %v597
    %v942 = vunpack.c.l.b16 %v598
    %v943 = vunpack.c.h.b16 %v598
    %v944 = vunpack.c.l.b16 %v599
    %v945 = vunpack.c.h.b16 %v599
    %v946 = vunpack.c.l.b16 %v600
    %v947 = vunpack.c.h.b16 %v600
    %v948 = vunpack.c.l.b16 %v601
    %v949 = vunpack.c.h.b16 %v601
    %v950 = vunpack.c.l.b16 %v602
    %v951 = vunpack.c.h.b16 %v602
    %v952 = vunpack.c.l.b16 %v603
    %v953 = vunpack.c.h.b16 %v603
    %v954 = vunpack.c.l.b16 %v604
    %v955 = vunpack.c.h.b16 %v604
    %v956 = vunpack.c.l.b16 %v605
    %v957 = vunpack.c.h.b16 %v605
    %v958 = vunpack.c.l.b16 %v606
    %v959 = vunpack.c.h.b16 %v606
    %v960 = vunpack.c.l.b16 %v607
    %v961 = vunpack.c.h.b16 %v607
    %v962 = vunpack.c.l.b16 %v608
    %v963 = vunpack.c.h.b16 %v608
    %v964 = vunpack.c.l.b16 %v609
    %v965 = vunpack.c.h.b16 %v609
    %v966 = vunpack.c.l.b16 %v610
    %v967 = vunpack.c.h.b16 %v610
    %v968 = vunpack.c.l.b16 %v611
    %v969 = vunpack.c.h.b16 %v611
    %v970 = vunpack.c.l.b16 %v612
    %v971 = vunpack.c.h.b16 %v612
    %v972 = vunpack.c.l.b16 %v613
    %v973 = vunpack.c.h.b16 %v613
    %v974 = vunpack.c.l.b16 %v614
    %v975 = vunpack.c.h.b16 %v614
    %v976 = vunpack.c.l.b16 %v615
    %v977 = vunpack.c.h.b16 %v615
    %v978 = vunpack.c.l.b16 %v616
    %v979 = vunpack.c.h.b16 %v616
    %v980 = vunpack.c.l.b16 %v617
    %v981 = vunpack.c.h.b16 %v617
    %v982 = vunpack.c.l.b16 %v618
    %v983 = vunpack.c.h.b16 %v618
    %v984 = vunpack.c.l.b16 %v619
    %v985 = vunpack.c.h.b16 %v619
    %v986 = vunpack.c.l.b16 %v620
    %v987 = vunpack.c.h.b16 %v620
    %v988 = vunpack.c.l.b16 %v621
    %v989 = vunpack.c.h.b16 %v621
    %v990 = vunpack.c.l.b16 %v622
    %v991 = vunpack.c.h.b16 %v622
    %v992 = vunpack.c.l.b16 %v623
    %v993 = vunpack.c.h.b16 %v623
    %v994 = vunpack.c.l.b16 %v624
    %v995 = vunpack.c.h.b16 %v624
    %v996 = vunpack.c.l.b16 %v625
    %v997 = vunpack.c.h.b16 %v625
    %v998 = vunpack.c.l.b16 %v626
    %v999 = vunpack.c.h.b16 %v626
    %v1000 = vunpack.c.l.b16 %v627
    %v1001 = vunpack.c.h.b16 %v627
    %v1002 = vunpack.c.l.b16 %v628
    %v1003 = vunpack.c.h.b16 %v628
    %v1004 = vunpack.c.l.b16 %v629
    %v1005 = vunpack.c.h.b16 %v629
    %v1006 = vunpack.c.l.b16 %v630
    %v1007 = vunpack.c.h.b16 %v630
    %v1008 = vunpack.c.l.b16 %v631
    %v1009 = vunpack.c.h.b16 %v631
    %v1010 = vunpack.c.l.b16 %v632
    %v1011 = vunpack.c.h.b16 %v632
    %v1012 = vunpack.c.l.b16 %v633
    %v1013 = vunpack.c.h.b16 %v633
    %v1014 = vunpack.c.l.b16 %v634
    %v1015 = vunpack.c.h.b16 %v634
    %v1016 = vunpack.c.l.b16 %v635
    %v1017 = vunpack.c.h.b16 %v635
    %v1018 = vunpack.c.l.b16 %v636
    %v1019 = vunpack.c.h.b16 %v636
    %v1020 = vunpack.c.l.b16 %v637
    %v1021 = vunpack.c.h.b16 %v637
    %v1022 = vpack.c.b16 %v774, %v766
    %v1023 = vpack.c.b16 %v775, %v767
    %v1024 = vpack.c.b16 %v776, %v768
    %v1025 = vpack.c.b16 %v777, %v769
    %v1026 = vpack.c.b16 %v778, %v770
    %v1027 = vpack.c.b16 %v779, %v771
    %v1028 = vpack.c.b16 %v780, %v772
    %v1029 = vpack.c.b16 %v781, %v773
    %v1030 = vpack.c.b16 %v790, %v782
    %v1031 = vpack.c.b16 %v791, %v783
    %v1032 = vpack.c.b16 %v792, %v784
    %v1033 = vpack.c.b16 %v793, %v785
    %v1034 = vpack.c.b16 %v794, %v786
    %v1035 = vpack.c.b16 %v795, %v787
    %v1036 = vpack.c.b16 %v796, %v788
    %v1037 = vpack.c.b16 %v797, %v789
    %v1038 = vpack.c.b16 %v806, %v798
    %v1039 = vpack.c.b16 %v807, %v799
    %v1040 = vpack.c.b16 %v808, %v800
    %v1041 = vpack.c.b16 %v809, %v801
    %v1042 = vpack.c.b16 %v810, %v802
    %v1043 = vpack.c.b16 %v811, %v803
    %v1044 = vpack.c.b16 %v812, %v804
    %v1045 = vpack.c.b16 %v813, %v805
    %v1046 = vpack.c.b16 %v822, %v814
    %v1047 = vpack.c.b16 %v823, %v815
    %v1048 = vpack.c.b16 %v824, %v816
    %v1049 = vpack.c.b16 %v825, %v817
    %v1050 = vpack.c.b16 %v826, %v818
    %v1051 = vpack.c.b16 %v827, %v819
    %v1052 = vpack.c.b16 %v828, %v820
    %v1053 = vpack.c.b16 %v829, %v821
    %v1054 = vpack.c.b16 %v838, %v830
    %v1055 = vpack.c.b16 %v839, %v831
    %v1056 = vpack.c.b16 %v840, %v832
    %v1057 = vpack.c.b16 %v841, %v833
    %v1058 = vpack.c.b16 %v842, %v834
    %v1059 = vpack.c.b16 %v843, %v835
    %v1060 = vpack.c.b16 %v844, %v836
    %v1061 = vpack.c.b16 %v845, %v837
    %v1062 = vpack.c.b16 %v854, %v846
    %v1063 = vpack.c.b16 %v855, %v847
    %v1064 = vpack.c.b16 %v856, %v848
    %v1065 = vpack.c.b16 %v857, %v849
    %v1066 = vpack.c.b16 %v858, %v850
    %v1067 = vpack.c.b16 %v859, %v851
    %v1068 = vpack.c.b16 %v860, %v852
    %v1069 = vpack.c.b16 %v861, %v853
    %v1070 = vpack.c.b16 %v870, %v862
    %v1071 = vpack.c.b16 %v871, %v863
    %v1072 = vpack.c.b16 %v872, %v864
    %v1073 = vpack.c.b16 %v873, %v865
    %v1074 = vpack.c.b16 %v874, %v866
    %v1075 = vpack.c.b16 %v875, %v867
    %v1076 = vpack.c.b16 %v876, %v868
    %v1077 = vpack.c.b16 %v877, %v869
    %v1078 = vpack.c.b16 %v886, %v878
    %v1079 = vpack.c.b16 %v887, %v879
    %v1080 = vpack.c.b16 %v888, %v880
    %v1081 = vpack.c.b16 %v889, %v881
    %v1082 = vpack.c.b16 %v890, %v882
    %v1083 = vpack.c.b16 %v891, %v883
    %v1084 = vpack.c.b16 %v892, %v884
    %v1085 = vpack.c.b16 %v893, %v885
    %v1086 = vpack.c.b16 %v902, %v894
    %v1087 = vpack.c.b16 %v903, %v895
    %v1088 = vpack.c.b16 %v904, %v896
    %v1089 = vpack.c.b16 %v905, %v897
    %v1090 = vpack.c.b16 %v906, %v898
    %v1091 = vpack.c.b16 %v907, %v899
    %v1092 = vpack.c.b16 %v908, %v900
    %v1093 = vpack.c.b16 %v909, %v901
    %v1094 = vpack.c.b16 %v918, %v910
    %v1095 = vpack.c.b16 %v919, %v911
    %v1096 = vpack.c.b16 %v920, %v912
    %v1097 = vpack.c.b16 %v921, %v913
    %v1098 = vpack.c.b16 %v922, %v914
    %v1099 = vpack.c.b16 %v923, %v915
    %v1100 = vpack.c.b16 %v924, %v916
    %v1101 = vpack.c.b16 %v925, %v917
    %v1102 = vpack.c.b16 %v934, %v926
    %v1103 = vpack.c.b16 %v935, %v927
    %v1104 = vpack.c.b16 %v936, %v928
    %v1105 = vpack.c.b16 %v937, %v929
    %v1106 = vpack.c.b16 %v938, %v930
    %v1107 = vpack.c.b16 %v939, %v931
    %v1108 = vpack.c.b16 %v940, %v932
    %v1109 = vpack.c.b16 %v941, %v933
    %v1110 = vpack.c.b16 %v950, %v942
    %v1111 = vpack.c.b16 %v951, %v943
    %v1112 = vpack.c.b16 %v952, %v944
    %v1113 = vpack.c.b16 %v953, %v945
    %v1114 = vpack.c.b16 %v954, %v946
    %v1115 = vpack.c.b16 %v955, %v947
    %v1116 = vpack.c.b16 %v956, %v948
    %v1117 = vpack.c.b16 %v957, %v949
    %v1118 = vpack.c.b16 %v966, %v958
    %v1119 = vpack.c.b16 %v967, %v959
    %v1120 = vpack.c.b16 %v968, %v960
    %v1121 = vpack.c.b16 %v969, %v961
    %v1122 = vpack.c.b16 %v970, %v962
    %v1123 = vpack.c.b16 %v971, %v963
    %v1124 = vpack.c.b16 %v972, %v964
    %v1125 = vpack.c.b16 %v973, %v965
    %v1126 = vpack.c.b16 %v982, %v974
    %v1127 = vpack.c.b16 %v983, %v975
    %v1128 = vpack.c.b16 %v984, %v976
    %v1129 = vpack.c.b16 %v985, %v977
    %v1130 = vpack.c.b16 %v986, %v978
    %v1131 = vpack.c.b16 %v987, %v979
    %v1132 = vpack.c.b16 %v988, %v980
    %v1133 = vpack.c.b16 %v989, %v981
    %v1134 = vpack.c.b16 %v998, %v990
    %v1135 = vpack.c.b16 %v999, %v991
    %v1136 = vpack.c.b16 %v1000, %v992
    %v1137 = vpack.c.b16 %v1001, %v993
    %v1138 = vpack.c.b16 %v1002, %v994
    %v1139 = vpack.c.b16 %v1003, %v995
    %v1140 = vpack.c.b16 %v1004, %v996
    %v1141 = vpack.c.b16 %v1005, %v997
    %v1142 = vpack.c.b16 %v1014, %v1006
    %v1143 = vpack.c.b16 %v1015, %v1007
    %v1144 = vpack.c.b16 %v1016, %v1008
    %v1145 = vpack.c.b16 %v1017, %v1009
    %v1146 = vpack.c.b16 %v1018, %v1010
    %v1147 = vpack.c.b16 %v1019, %v1011
    %v1148 = vpack.c.b16 %v1020, %v1012
    %v1149 = vpack.c.b16 %v1021, %v1013
    %1278 = vmatprep.subr.bf16.mxu0 %v1023
    %1279 = vmatpush1.bf16.msra.mxu0 %v1022
    %1280 = vmatprep.subr.bf16.mxu0 %v1031
    %1281 = vmatpush1.bf16.msra.mxu0 %v1030
    %1282 = vmatprep.subr.bf16.mxu0 %v1039
    %1283 = vmatpush1.bf16.msra.mxu0 %v1038
    %1284 = vmatprep.subr.bf16.mxu0 %v1047
    %1285 = vmatpush1.bf16.msra.mxu0 %v1046
    %1286 = vmatprep.subr.bf16.mxu0 %v1055
    %1287 = vmatpush1.bf16.msra.mxu0 %v1054
    %1288 = vmatprep.subr.bf16.mxu0 %v1063
    %1289 = vmatpush1.bf16.msra.mxu0 %v1062
    %1290 = vmatprep.subr.bf16.mxu0 %v1071
    %1291 = vmatpush1.bf16.msra.mxu0 %v1070
    %1292 = vmatprep.subr.bf16.mxu0 %v1079
    %1293 = vmatpush1.bf16.msra.mxu0 %v1078
    %1294 = vmatprep.subr.bf16.mxu0 %v1087
    %1295 = vmatpush1.bf16.msra.mxu0 %v1086
    %1296 = vmatprep.subr.bf16.mxu0 %v1095
    %1297 = vmatpush1.bf16.msra.mxu0 %v1094
    %1298 = vmatprep.subr.bf16.mxu0 %v1103
    %1299 = vmatpush1.bf16.msra.mxu0 %v1102
    %1300 = vmatprep.subr.bf16.mxu0 %v1111
    %1301 = vmatpush1.bf16.msra.mxu0 %v1110
    %1302 = vmatprep.subr.bf16.mxu0 %v1119
    %1303 = vmatpush1.bf16.msra.mxu0 %v1118
    %1304 = vmatprep.subr.bf16.mxu0 %v1127
    %1305 = vmatpush1.bf16.msra.mxu0 %v1126
    %1306 = vmatprep.subr.bf16.mxu0 %v1135
    %1307 = vmatpush1.bf16.msra.mxu0 %v1134
    %1308 = vmatprep.subr.bf16.mxu0 %v1143
    %1309 = vmatpush1.bf16.msra.mxu0 %v1142
    %1310 = vmatprep.mubr.bf16.mxu0 %v509
    %1311 = vmatmul.mubr.bf16.gmra.mrb[0].mxu0 %v508
    %v1312 = vpop.f32.mrb[0].mxu0
    %v1313 = vadd.f32 0.0, %v1312
    %v1314 = vpop.f32.mrb[0].mxu0
    %v1315 = vadd.f32 0.0, %v1314
    %v1316 = vpop.f32.mrb[0].mxu0
    %v1317 = vpop.f32.mrb[0].mxu0
    %1318 = vdwg.mxu0
    %1319 = vmatprep.subr.bf16.mxu0 %v1025
    %1320 = vmatpush1.bf16.msra.mxu0 %v1024
    %1321 = vmatprep.subr.bf16.mxu0 %v1033
    %1322 = vmatpush1.bf16.msra.mxu0 %v1032
    %1323 = vmatprep.subr.bf16.mxu0 %v1041
    %1324 = vmatpush1.bf16.msra.mxu0 %v1040
    %1325 = vmatprep.subr.bf16.mxu0 %v1049
    %1326 = vmatpush1.bf16.msra.mxu0 %v1048
    %1327 = vmatprep.subr.bf16.mxu0 %v1057
    %1328 = vmatpush1.bf16.msra.mxu0 %v1056
    %1329 = vmatprep.subr.bf16.mxu0 %v1065
    %1330 = vmatpush1.bf16.msra.mxu0 %v1064
    %1331 = vmatprep.subr.bf16.mxu0 %v1073
    %1332 = vmatpush1.bf16.msra.mxu0 %v1072
    %1333 = vmatprep.subr.bf16.mxu0 %v1081
    %1334 = vmatpush1.bf16.msra.mxu0 %v1080
    %1335 = vmatprep.subr.bf16.mxu0 %v1089
    %1336 = vmatpush1.bf16.msra.mxu0 %v1088
    %1337 = vmatprep.subr.bf16.mxu0 %v1097
    %1338 = vmatpush1.bf16.msra.mxu0 %v1096
    %1339 = vmatprep.subr.bf16.mxu0 %v1105
    %1340 = vmatpush1.bf16.msra.mxu0 %v1104
    %1341 = vmatprep.subr.bf16.mxu0 %v1113
    %1342 = vmatpush1.bf16.msra.mxu0 %v1112
    %1343 = vmatprep.subr.bf16.mxu0 %v1121
    %1344 = vmatpush1.bf16.msra.mxu0 %v1120
    %1345 = vmatprep.subr.bf16.mxu0 %v1129
    %1346 = vmatpush1.bf16.msra.mxu0 %v1128
    %1347 = vmatprep.subr.bf16.mxu0 %v1137
    %1348 = vmatpush1.bf16.msra.mxu0 %v1136
    %1349 = vmatprep.subr.bf16.mxu0 %v1145
    %1350 = vmatpush1.bf16.msra.mxu0 %v1144
    %1351 = vmatprep.mubr.bf16.mxu0 %v509
    %1352 = vmatmul.mubr.bf16.gmra.mrb[0].mxu0 %v508
    %v1353 = vpop.f32.mrb[0].mxu0
    %v1354 = vadd.f32 0.0, %v1353
    %v1355 = vpop.f32.mrb[0].mxu0
    %v1356 = vadd.f32 0.0, %v1355
    %v1357 = vpop.f32.mrb[0].mxu0
    %v1358 = vpop.f32.mrb[0].mxu0
    %1359 = vdwg.mxu0
    %1360 = vmatprep.subr.bf16.mxu0 %v1027
    %1361 = vmatpush1.bf16.msra.mxu0 %v1026
    %1362 = vmatprep.subr.bf16.mxu0 %v1035
    %1363 = vmatpush1.bf16.msra.mxu0 %v1034
    %1364 = vmatprep.subr.bf16.mxu0 %v1043
    %1365 = vmatpush1.bf16.msra.mxu0 %v1042
    %1366 = vmatprep.subr.bf16.mxu0 %v1051
    %1367 = vmatpush1.bf16.msra.mxu0 %v1050
    %1368 = vmatprep.subr.bf16.mxu0 %v1059
    %1369 = vmatpush1.bf16.msra.mxu0 %v1058
    %1370 = vmatprep.subr.bf16.mxu0 %v1067
    %1371 = vmatpush1.bf16.msra.mxu0 %v1066
    %1372 = vmatprep.subr.bf16.mxu0 %v1075
    %1373 = vmatpush1.bf16.msra.mxu0 %v1074
    %1374 = vmatprep.subr.bf16.mxu0 %v1083
    %1375 = vmatpush1.bf16.msra.mxu0 %v1082
    %1376 = vmatprep.subr.bf16.mxu0 %v1091
    %1377 = vmatpush1.bf16.msra.mxu0 %v1090
    %1378 = vmatprep.subr.bf16.mxu0 %v1099
    %1379 = vmatpush1.bf16.msra.mxu0 %v1098
    %1380 = vmatprep.subr.bf16.mxu0 %v1107
    %1381 = vmatpush1.bf16.msra.mxu0 %v1106
    %1382 = vmatprep.subr.bf16.mxu0 %v1115
    %1383 = vmatpush1.bf16.msra.mxu0 %v1114
    %1384 = vmatprep.subr.bf16.mxu0 %v1123
    %1385 = vmatpush1.bf16.msra.mxu0 %v1122
    %1386 = vmatprep.subr.bf16.mxu0 %v1131
    %1387 = vmatpush1.bf16.msra.mxu0 %v1130
    %1388 = vmatprep.subr.bf16.mxu0 %v1139
    %1389 = vmatpush1.bf16.msra.mxu0 %v1138
    %1390 = vmatprep.subr.bf16.mxu0 %v1147
    %1391 = vmatpush1.bf16.msra.mxu0 %v1146
    %1392 = vmatprep.mubr.bf16.mxu0 %v509
    %1393 = vmatmul.mubr.bf16.gmra.mrb[0].mxu0 %v508
    %v1394 = vpop.f32.mrb[0].mxu0
    %v1395 = vadd.f32 0.0, %v1394
    %v1396 = vpop.f32.mrb[0].mxu0
    %v1397 = vadd.f32 0.0, %v1396
    %v1398 = vpop.f32.mrb[0].mxu0
    %v1399 = vpop.f32.mrb[0].mxu0
    %1400 = vdwg.mxu0
    %1401 = vmatprep.subr.bf16.mxu0 %v1029
    %1402 = vmatpush1.bf16.msra.mxu0 %v1028
    %1403 = vmatprep.subr.bf16.mxu0 %v1037
    %1404 = vmatpush1.bf16.msra.mxu0 %v1036
    %1405 = vmatprep.subr.bf16.mxu0 %v1045
    %1406 = vmatpush1.bf16.msra.mxu0 %v1044
    %1407 = vmatprep.subr.bf16.mxu0 %v1053
    %1408 = vmatpush1.bf16.msra.mxu0 %v1052
    %1409 = vmatprep.subr.bf16.mxu0 %v1061
    %1410 = vmatpush1.bf16.msra.mxu0 %v1060
    %1411 = vmatprep.subr.bf16.mxu0 %v1069
    %1412 = vmatpush1.bf16.msra.mxu0 %v1068
    %1413 = vmatprep.subr.bf16.mxu0 %v1077
    %1414 = vmatpush1.bf16.msra.mxu0 %v1076
    %1415 = vmatprep.subr.bf16.mxu0 %v1085
    %1416 = vmatpush1.bf16.msra.mxu0 %v1084
    %1417 = vmatprep.subr.bf16.mxu0 %v1093
    %1418 = vmatpush1.bf16.msra.mxu0 %v1092
    %1419 = vmatprep.subr.bf16.mxu0 %v1101
    %1420 = vmatpush1.bf16.msra.mxu0 %v1100
    %1421 = vmatprep.subr.bf16.mxu0 %v1109
    %1422 = vmatpush1.bf16.msra.mxu0 %v1108
    %1423 = vmatprep.subr.bf16.mxu0 %v1117
    %1424 = vmatpush1.bf16.msra.mxu0 %v1116
    %1425 = vmatprep.subr.bf16.mxu0 %v1125
    %1426 = vmatpush1.bf16.msra.mxu0 %v1124
    %1427 = vmatprep.subr.bf16.mxu0 %v1133
    %1428 = vmatpush1.bf16.msra.mxu0 %v1132
    %1429 = vmatprep.subr.bf16.mxu0 %v1141
    %1430 = vmatpush1.bf16.msra.mxu0 %v1140
    %1431 = vmatprep.subr.bf16.mxu0 %v1149
    %1432 = vmatpush1.bf16.msra.mxu0 %v1148
    %1433 = vmatprep.mubr.bf16.mxu0 %v509
    %1434 = vmatmul.mubr.bf16.gmra.mrb[0].mxu0 %v508
    %v1435 = vpop.f32.mrb[0].mxu0
    %v1436 = vadd.f32 0.0, %v1435
    %v1437 = vpop.f32.mrb[0].mxu0
    %v1438 = vadd.f32 0.0, %v1437
    %v1439 = vpop.f32.mrb[0].mxu0
    %v1440 = vpop.f32.mrb[0].mxu0
    %1441 = vdwg.mxu0
    %s1442 = scalar_lea.vmem [#allocation3], 32
    %v1443 = vld [vmem:[%s1442] sm:$0xff]
    %v1444 = vld [vmem:[%s1442 + $0x8] sm:$0xff]
    %v1445 = vld [vmem:[%s1442 + $0x10] sm:$0xff]
    %v1446 = vld [vmem:[%s1442 + $0x18] sm:$0xff]
    %v1447 = vadd.f32 %v1313, %v1443
    %v1448 = vadd.f32 %v1315, %v1444
    %v1449 = vadd.f32 %v1354, %v1445
    %v1450 = vadd.f32 %v1356, %v1446
    %v1452 = vlaneseq
    %v1453 = vshrl.u32 %v1452, 7
    %v1454 = vsub.s32 0, %v1453
    %v1455 = vrot.slane %v479, %v1454
    %v1456 = vlaneseq
    %v1457 = vshrl.u32 %v1456, 7
    %v1458 = vsub.s32 1, %v1457
    %v1459 = vrot.slane %v479, %v1458
    %v1460 = vlaneseq
    %v1461 = vshrl.u32 %v1460, 7
    %v1462 = vsub.s32 2, %v1461
    %v1463 = vrot.slane %v479, %v1462
    %v1464 = vlaneseq
    %v1465 = vshrl.u32 %v1464, 7
    %v1466 = vsub.s32 3, %v1465
    %v1467 = vrot.slane %v479, %v1466
    %v1472 = vadd.f32 %v1395, %v1455
    %v1473 = vadd.f32 %v1397, %v1459
    %v1474 = vadd.f32 %v1436, %v1463
    %v1475 = vadd.f32 %v1438, %v1467
    %v1476 = vxor.u32 %v1447, 2147483648
    %v1477 = vmul.f32 %v1476, 1.442695
    %v1478 = vpow.pop %v1477
    %v1479 = vadd.f32 %v1478, 1.0
    %v1480 = vrcp.pop %v1479
    %v1481 = vmul.f32 1.0, %v1480
    %v1482 = vxor.u32 %v1448, 2147483648
    %v1483 = vmul.f32 %v1482, 1.442695
    %v1484 = vpow.pop %v1483
    %v1485 = vadd.f32 %v1484, 1.0
    %v1486 = vrcp.pop %v1485
    %v1487 = vmul.f32 1.0, %v1486
    %v1488 = vtanh.pop %v1449
    %v1489 = vxor.u32 %v1450, 2147483648
    %v1490 = vmul.f32 %v1489, 1.442695
    %v1491 = vpow.pop %v1490
    %v1492 = vadd.f32 %v1491, 1.0
    %v1493 = vrcp.pop %v1492
    %v1494 = vmul.f32 1.0, %v1493
    %v1495 = vmul.f32 %v1487, %v505
    %v1496 = vmul.f32 %v1481, %v1488
    %v1497 = vadd.f32 %v1495, %v1496
    %v1498 = vtanh.pop %v1497
    %v1499 = vmul.f32 %v1494, %v1498
    %v1500 = vxor.u32 %v1472, 2147483648
    %v1501 = vmul.f32 %v1500, 1.442695
    %v1502 = vpow.pop %v1501
    %v1503 = vadd.f32 %v1502, 1.0
    %v1504 = vrcp.pop %v1503
    %v1505 = vmul.f32 1.0, %v1504
    %v1506 = vxor.u32 %v1473, 2147483648
    %v1507 = vmul.f32 %v1506, 1.442695
    %v1508 = vpow.pop %v1507
    %v1509 = vadd.f32 %v1508, 1.0
    %v1510 = vrcp.pop %v1509
    %v1511 = vmul.f32 1.0, %v1510
    %v1512 = vtanh.pop %v1474
    %v1513 = vxor.u32 %v1475, 2147483648
    %v1514 = vmul.f32 %v1513, 1.442695
    %v1515 = vpow.pop %v1514
    %v1516 = vadd.f32 %v1515, 1.0
    %v1517 = vrcp.pop %v1516
    %v1518 = vmul.f32 1.0, %v1517
    %v1519 = vmul.f32 %v1511, 0.0
    %v1520 = vmul.f32 %v1505, %v1512
    %v1521 = vadd.f32 %v1519, %v1520
    %v1522 = vtanh.pop %v1521
    %v1523 = vmul.f32 %v1518, %v1522
    %1524 = vst [vmem:[#allocation2] sm:$0xff] %v1523
    %v1525 = vpack.c.bf16 %v1499, %v1499
    %v1526 = vpack.c.bf16 %v1523, %v1523
    %v1527 = vld [vmem:[#allocation11] sm:$0xff]
    %v1528 = vld [vmem:[#allocation11 + $0x8] sm:$0xff]
    %v1529 = vld [vmem:[#allocation11 + $0x10] sm:$0xff]
    %v1530 = vld [vmem:[#allocation11 + $0x18] sm:$0xff]
    %v1531 = vld [vmem:[#allocation11 + $0x20] sm:$0xff]
    %v1532 = vld [vmem:[#allocation11 + $0x28] sm:$0xff]
    %v1533 = vld [vmem:[#allocation11 + $0x30] sm:$0xff]
    %v1534 = vld [vmem:[#allocation11 + $0x38] sm:$0xff]
    %v1535 = vld [vmem:[#allocation11 + $0x40] sm:$0xff]
    %v1536 = vld [vmem:[#allocation11 + $0x48] sm:$0xff]
    %v1537 = vld [vmem:[#allocation11 + $0x50] sm:$0xff]
    %v1538 = vld [vmem:[#allocation11 + $0x58] sm:$0xff]
    %v1539 = vld [vmem:[#allocation11 + $0x60] sm:$0xff]
    %v1540 = vld [vmem:[#allocation11 + $0x68] sm:$0xff]
    %v1541 = vld [vmem:[#allocation11 + $0x70] sm:$0xff]
    %v1542 = vld [vmem:[#allocation11 + $0x78] sm:$0xff]
    %v1543 = vld [vmem:[#allocation11 + $0x80] sm:$0xff]
    %v1544 = vld [vmem:[#allocation11 + $0x88] sm:$0xff]
    %v1545 = vld [vmem:[#allocation11 + $0x90] sm:$0xff]
    %v1546 = vld [vmem:[#allocation11 + $0x98] sm:$0xff]
    %v1547 = vld [vmem:[#allocation11 + $0xa0] sm:$0xff]
    %v1548 = vld [vmem:[#allocation11 + $0xa8] sm:$0xff]
    %v1549 = vld [vmem:[#allocation11 + $0xb0] sm:$0xff]
    %v1550 = vld [vmem:[#allocation11 + $0xb8] sm:$0xff]
    %v1551 = vld [vmem:[#allocation11 + $0xc0] sm:$0xff]
    %v1552 = vld [vmem:[#allocation11 + $0xc8] sm:$0xff]
    %v1553 = vld [vmem:[#allocation11 + $0xd0] sm:$0xff]
    %v1554 = vld [vmem:[#allocation11 + $0xd8] sm:$0xff]
    %v1555 = vld [vmem:[#allocation11 + $0xe0] sm:$0xff]
    %v1556 = vld [vmem:[#allocation11 + $0xe8] sm:$0xff]
    %v1557 = vld [vmem:[#allocation11 + $0xf0] sm:$0xff]
    %v1558 = vld [vmem:[#allocation11 + $0xf8] sm:$0xff]
    %v1559 = vld [vmem:[#allocation11 + $0x100] sm:$0xff]
    %v1560 = vld [vmem:[#allocation11 + $0x108] sm:$0xff]
    %v1561 = vld [vmem:[#allocation11 + $0x110] sm:$0xff]
    %v1562 = vld [vmem:[#allocation11 + $0x118] sm:$0xff]
    %v1563 = vld [vmem:[#allocation11 + $0x120] sm:$0xff]
    %v1564 = vld [vmem:[#allocation11 + $0x128] sm:$0xff]
    %v1565 = vld [vmem:[#allocation11 + $0x130] sm:$0xff]
    %v1566 = vld [vmem:[#allocation11 + $0x138] sm:$0xff]
    %v1567 = vld [vmem:[#allocation11 + $0x140] sm:$0xff]
    %v1568 = vld [vmem:[#allocation11 + $0x148] sm:$0xff]
    %v1569 = vld [vmem:[#allocation11 + $0x150] sm:$0xff]
    %v1570 = vld [vmem:[#allocation11 + $0x158] sm:$0xff]
    %v1571 = vld [vmem:[#allocation11 + $0x160] sm:$0xff]
    %v1572 = vld [vmem:[#allocation11 + $0x168] sm:$0xff]
    %v1573 = vld [vmem:[#allocation11 + $0x170] sm:$0xff]
    %v1574 = vld [vmem:[#allocation11 + $0x178] sm:$0xff]
    %v1575 = vld [vmem:[#allocation11 + $0x180] sm:$0xff]
    %v1576 = vld [vmem:[#allocation11 + $0x188] sm:$0xff]
    %v1577 = vld [vmem:[#allocation11 + $0x190] sm:$0xff]
    %v1578 = vld [vmem:[#allocation11 + $0x198] sm:$0xff]
    %v1579 = vld [vmem:[#allocation11 + $0x1a0] sm:$0xff]
    %v1580 = vld [vmem:[#allocation11 + $0x1a8] sm:$0xff]
    %v1581 = vld [vmem:[#allocation11 + $0x1b0] sm:$0xff]
    %v1582 = vld [vmem:[#allocation11 + $0x1b8] sm:$0xff]
    %v1583 = vld [vmem:[#allocation11 + $0x1c0] sm:$0xff]
    %v1584 = vld [vmem:[#allocation11 + $0x1c8] sm:$0xff]
    %v1585 = vld [vmem:[#allocation11 + $0x1d0] sm:$0xff]
    %v1586 = vld [vmem:[#allocation11 + $0x1d8] sm:$0xff]
    %v1587 = vld [vmem:[#allocation11 + $0x1e0] sm:$0xff]
    %v1588 = vld [vmem:[#allocation11 + $0x1e8] sm:$0xff]
    %v1589 = vld [vmem:[#allocation11 + $0x1f0] sm:$0xff]
    %v1590 = vld [vmem:[#allocation11 + $0x1f8] sm:$0xff]
    %v1591 = vld [vmem:[#allocation11 + $0x200] sm:$0xff]
    %v1592 = vld [vmem:[#allocation11 + $0x208] sm:$0xff]
    %v1593 = vld [vmem:[#allocation11 + $0x210] sm:$0xff]
    %v1594 = vld [vmem:[#allocation11 + $0x218] sm:$0xff]
    %v1595 = vld [vmem:[#allocation11 + $0x220] sm:$0xff]
    %v1596 = vld [vmem:[#allocation11 + $0x228] sm:$0xff]
    %v1597 = vld [vmem:[#allocation11 + $0x230] sm:$0xff]
    %v1598 = vld [vmem:[#allocation11 + $0x238] sm:$0xff]
    %v1599 = vld [vmem:[#allocation11 + $0x240] sm:$0xff]
    %v1600 = vld [vmem:[#allocation11 + $0x248] sm:$0xff]
    %v1601 = vld [vmem:[#allocation11 + $0x250] sm:$0xff]
    %v1602 = vld [vmem:[#allocation11 + $0x258] sm:$0xff]
    %v1603 = vld [vmem:[#allocation11 + $0x260] sm:$0xff]
    %v1604 = vld [vmem:[#allocation11 + $0x268] sm:$0xff]
    %v1605 = vld [vmem:[#allocation11 + $0x270] sm:$0xff]
    %v1606 = vld [vmem:[#allocation11 + $0x278] sm:$0xff]
    %v1607 = vld [vmem:[#allocation11 + $0x280] sm:$0xff]
    %v1608 = vld [vmem:[#allocation11 + $0x288] sm:$0xff]
    %v1609 = vld [vmem:[#allocation11 + $0x290] sm:$0xff]
    %v1610 = vld [vmem:[#allocation11 + $0x298] sm:$0xff]
    %v1611 = vld [vmem:[#allocation11 + $0x2a0] sm:$0xff]
    %v1612 = vld [vmem:[#allocation11 + $0x2a8] sm:$0xff]
    %v1613 = vld [vmem:[#allocation11 + $0x2b0] sm:$0xff]
    %v1614 = vld [vmem:[#allocation11 + $0x2b8] sm:$0xff]
    %v1615 = vld [vmem:[#allocation11 + $0x2c0] sm:$0xff]
    %v1616 = vld [vmem:[#allocation11 + $0x2c8] sm:$0xff]
    %v1617 = vld [vmem:[#allocation11 + $0x2d0] sm:$0xff]
    %v1618 = vld [vmem:[#allocation11 + $0x2d8] sm:$0xff]
    %v1619 = vld [vmem:[#allocation11 + $0x2e0] sm:$0xff]
    %v1620 = vld [vmem:[#allocation11 + $0x2e8] sm:$0xff]
    %v1621 = vld [vmem:[#allocation11 + $0x2f0] sm:$0xff]
    %v1622 = vld [vmem:[#allocation11 + $0x2f8] sm:$0xff]
    %v1623 = vld [vmem:[#allocation11 + $0x300] sm:$0xff]
    %v1624 = vld [vmem:[#allocation11 + $0x308] sm:$0xff]
    %v1625 = vld [vmem:[#allocation11 + $0x310] sm:$0xff]
    %v1626 = vld [vmem:[#allocation11 + $0x318] sm:$0xff]
    %v1627 = vld [vmem:[#allocation11 + $0x320] sm:$0xff]
    %v1628 = vld [vmem:[#allocation11 + $0x328] sm:$0xff]
    %v1629 = vld [vmem:[#allocation11 + $0x330] sm:$0xff]
    %v1630 = vld [vmem:[#allocation11 + $0x338] sm:$0xff]
    %v1631 = vld [vmem:[#allocation11 + $0x340] sm:$0xff]
    %v1632 = vld [vmem:[#allocation11 + $0x348] sm:$0xff]
    %v1633 = vld [vmem:[#allocation11 + $0x350] sm:$0xff]
    %v1634 = vld [vmem:[#allocation11 + $0x358] sm:$0xff]
    %v1635 = vld [vmem:[#allocation11 + $0x360] sm:$0xff]
    %v1636 = vld [vmem:[#allocation11 + $0x368] sm:$0xff]
    %v1637 = vld [vmem:[#allocation11 + $0x370] sm:$0xff]
    %v1638 = vld [vmem:[#allocation11 + $0x378] sm:$0xff]
    %v1639 = vld [vmem:[#allocation11 + $0x380] sm:$0xff]
    %v1640 = vld [vmem:[#allocation11 + $0x388] sm:$0xff]
    %v1641 = vld [vmem:[#allocation11 + $0x390] sm:$0xff]
    %v1642 = vld [vmem:[#allocation11 + $0x398] sm:$0xff]
    %v1643 = vld [vmem:[#allocation11 + $0x3a0] sm:$0xff]
    %v1644 = vld [vmem:[#allocation11 + $0x3a8] sm:$0xff]
    %v1645 = vld [vmem:[#allocation11 + $0x3b0] sm:$0xff]
    %v1646 = vld [vmem:[#allocation11 + $0x3b8] sm:$0xff]
    %v1647 = vld [vmem:[#allocation11 + $0x3c0] sm:$0xff]
    %v1648 = vld [vmem:[#allocation11 + $0x3c8] sm:$0xff]
    %v1649 = vld [vmem:[#allocation11 + $0x3d0] sm:$0xff]
    %v1650 = vld [vmem:[#allocation11 + $0x3d8] sm:$0xff]
    %v1651 = vld [vmem:[#allocation11 + $0x3e0] sm:$0xff]
    %v1652 = vld [vmem:[#allocation11 + $0x3e8] sm:$0xff]
    %v1653 = vld [vmem:[#allocation11 + $0x3f0] sm:$0xff]
    %v1654 = vld [vmem:[#allocation11 + $0x3f8] sm:$0xff]
    %v1783 = vunpack.c.l.b16 %v1527
    %v1784 = vunpack.c.h.b16 %v1527
    %v1785 = vunpack.c.l.b16 %v1528
    %v1786 = vunpack.c.h.b16 %v1528
    %v1787 = vunpack.c.l.b16 %v1529
    %v1788 = vunpack.c.h.b16 %v1529
    %v1789 = vunpack.c.l.b16 %v1530
    %v1790 = vunpack.c.h.b16 %v1530
    %v1791 = vunpack.c.l.b16 %v1531
    %v1792 = vunpack.c.h.b16 %v1531
    %v1793 = vunpack.c.l.b16 %v1532
    %v1794 = vunpack.c.h.b16 %v1532
    %v1795 = vunpack.c.l.b16 %v1533
    %v1796 = vunpack.c.h.b16 %v1533
    %v1797 = vunpack.c.l.b16 %v1534
    %v1798 = vunpack.c.h.b16 %v1534
    %v1799 = vunpack.c.l.b16 %v1535
    %v1800 = vunpack.c.h.b16 %v1535
    %v1801 = vunpack.c.l.b16 %v1536
    %v1802 = vunpack.c.h.b16 %v1536
    %v1803 = vunpack.c.l.b16 %v1537
    %v1804 = vunpack.c.h.b16 %v1537
    %v1805 = vunpack.c.l.b16 %v1538
    %v1806 = vunpack.c.h.b16 %v1538
    %v1807 = vunpack.c.l.b16 %v1539
    %v1808 = vunpack.c.h.b16 %v1539
    %v1809 = vunpack.c.l.b16 %v1540
    %v1810 = vunpack.c.h.b16 %v1540
    %v1811 = vunpack.c.l.b16 %v1541
    %v1812 = vunpack.c.h.b16 %v1541
    %v1813 = vunpack.c.l.b16 %v1542
    %v1814 = vunpack.c.h.b16 %v1542
    %v1815 = vunpack.c.l.b16 %v1543
    %v1816 = vunpack.c.h.b16 %v1543
    %v1817 = vunpack.c.l.b16 %v1544
    %v1818 = vunpack.c.h.b16 %v1544
    %v1819 = vunpack.c.l.b16 %v1545
    %v1820 = vunpack.c.h.b16 %v1545
    %v1821 = vunpack.c.l.b16 %v1546
    %v1822 = vunpack.c.h.b16 %v1546
    %v1823 = vunpack.c.l.b16 %v1547
    %v1824 = vunpack.c.h.b16 %v1547
    %v1825 = vunpack.c.l.b16 %v1548
    %v1826 = vunpack.c.h.b16 %v1548
    %v1827 = vunpack.c.l.b16 %v1549
    %v1828 = vunpack.c.h.b16 %v1549
    %v1829 = vunpack.c.l.b16 %v1550
    %v1830 = vunpack.c.h.b16 %v1550
    %v1831 = vunpack.c.l.b16 %v1551
    %v1832 = vunpack.c.h.b16 %v1551
    %v1833 = vunpack.c.l.b16 %v1552
    %v1834 = vunpack.c.h.b16 %v1552
    %v1835 = vunpack.c.l.b16 %v1553
    %v1836 = vunpack.c.h.b16 %v1553
    %v1837 = vunpack.c.l.b16 %v1554
    %v1838 = vunpack.c.h.b16 %v1554
    %v1839 = vunpack.c.l.b16 %v1555
    %v1840 = vunpack.c.h.b16 %v1555
    %v1841 = vunpack.c.l.b16 %v1556
    %v1842 = vunpack.c.h.b16 %v1556
    %v1843 = vunpack.c.l.b16 %v1557
    %v1844 = vunpack.c.h.b16 %v1557
    %v1845 = vunpack.c.l.b16 %v1558
    %v1846 = vunpack.c.h.b16 %v1558
    %v1847 = vunpack.c.l.b16 %v1559
    %v1848 = vunpack.c.h.b16 %v1559
    %v1849 = vunpack.c.l.b16 %v1560
    %v1850 = vunpack.c.h.b16 %v1560
    %v1851 = vunpack.c.l.b16 %v1561
    %v1852 = vunpack.c.h.b16 %v1561
    %v1853 = vunpack.c.l.b16 %v1562
    %v1854 = vunpack.c.h.b16 %v1562
    %v1855 = vunpack.c.l.b16 %v1563
    %v1856 = vunpack.c.h.b16 %v1563
    %v1857 = vunpack.c.l.b16 %v1564
    %v1858 = vunpack.c.h.b16 %v1564
    %v1859 = vunpack.c.l.b16 %v1565
    %v1860 = vunpack.c.h.b16 %v1565
    %v1861 = vunpack.c.l.b16 %v1566
    %v1862 = vunpack.c.h.b16 %v1566
    %v1863 = vunpack.c.l.b16 %v1567
    %v1864 = vunpack.c.h.b16 %v1567
    %v1865 = vunpack.c.l.b16 %v1568
    %v1866 = vunpack.c.h.b16 %v1568
    %v1867 = vunpack.c.l.b16 %v1569
    %v1868 = vunpack.c.h.b16 %v1569
    %v1869 = vunpack.c.l.b16 %v1570
    %v1870 = vunpack.c.h.b16 %v1570
    %v1871 = vunpack.c.l.b16 %v1571
    %v1872 = vunpack.c.h.b16 %v1571
    %v1873 = vunpack.c.l.b16 %v1572
    %v1874 = vunpack.c.h.b16 %v1572
    %v1875 = vunpack.c.l.b16 %v1573
    %v1876 = vunpack.c.h.b16 %v1573
    %v1877 = vunpack.c.l.b16 %v1574
    %v1878 = vunpack.c.h.b16 %v1574
    %v1879 = vunpack.c.l.b16 %v1575
    %v1880 = vunpack.c.h.b16 %v1575
    %v1881 = vunpack.c.l.b16 %v1576
    %v1882 = vunpack.c.h.b16 %v1576
    %v1883 = vunpack.c.l.b16 %v1577
    %v1884 = vunpack.c.h.b16 %v1577
    %v1885 = vunpack.c.l.b16 %v1578
    %v1886 = vunpack.c.h.b16 %v1578
    %v1887 = vunpack.c.l.b16 %v1579
    %v1888 = vunpack.c.h.b16 %v1579
    %v1889 = vunpack.c.l.b16 %v1580
    %v1890 = vunpack.c.h.b16 %v1580
    %v1891 = vunpack.c.l.b16 %v1581
    %v1892 = vunpack.c.h.b16 %v1581
    %v1893 = vunpack.c.l.b16 %v1582
    %v1894 = vunpack.c.h.b16 %v1582
    %v1895 = vunpack.c.l.b16 %v1583
    %v1896 = vunpack.c.h.b16 %v1583
    %v1897 = vunpack.c.l.b16 %v1584
    %v1898 = vunpack.c.h.b16 %v1584
    %v1899 = vunpack.c.l.b16 %v1585
    %v1900 = vunpack.c.h.b16 %v1585
    %v1901 = vunpack.c.l.b16 %v1586
    %v1902 = vunpack.c.h.b16 %v1586
    %v1903 = vunpack.c.l.b16 %v1587
    %v1904 = vunpack.c.h.b16 %v1587
    %v1905 = vunpack.c.l.b16 %v1588
    %v1906 = vunpack.c.h.b16 %v1588
    %v1907 = vunpack.c.l.b16 %v1589
    %v1908 = vunpack.c.h.b16 %v1589
    %v1909 = vunpack.c.l.b16 %v1590
    %v1910 = vunpack.c.h.b16 %v1590
    %v1911 = vunpack.c.l.b16 %v1591
    %v1912 = vunpack.c.h.b16 %v1591
    %v1913 = vunpack.c.l.b16 %v1592
    %v1914 = vunpack.c.h.b16 %v1592
    %v1915 = vunpack.c.l.b16 %v1593
    %v1916 = vunpack.c.h.b16 %v1593
    %v1917 = vunpack.c.l.b16 %v1594
    %v1918 = vunpack.c.h.b16 %v1594
    %v1919 = vunpack.c.l.b16 %v1595
    %v1920 = vunpack.c.h.b16 %v1595
    %v1921 = vunpack.c.l.b16 %v1596
    %v1922 = vunpack.c.h.b16 %v1596
    %v1923 = vunpack.c.l.b16 %v1597
    %v1924 = vunpack.c.h.b16 %v1597
    %v1925 = vunpack.c.l.b16 %v1598
    %v1926 = vunpack.c.h.b16 %v1598
    %v1927 = vunpack.c.l.b16 %v1599
    %v1928 = vunpack.c.h.b16 %v1599
    %v1929 = vunpack.c.l.b16 %v1600
    %v1930 = vunpack.c.h.b16 %v1600
    %v1931 = vunpack.c.l.b16 %v1601
    %v1932 = vunpack.c.h.b16 %v1601
    %v1933 = vunpack.c.l.b16 %v1602
    %v1934 = vunpack.c.h.b16 %v1602
    %v1935 = vunpack.c.l.b16 %v1603
    %v1936 = vunpack.c.h.b16 %v1603
    %v1937 = vunpack.c.l.b16 %v1604
    %v1938 = vunpack.c.h.b16 %v1604
    %v1939 = vunpack.c.l.b16 %v1605
    %v1940 = vunpack.c.h.b16 %v1605
    %v1941 = vunpack.c.l.b16 %v1606
    %v1942 = vunpack.c.h.b16 %v1606
    %v1943 = vunpack.c.l.b16 %v1607
    %v1944 = vunpack.c.h.b16 %v1607
    %v1945 = vunpack.c.l.b16 %v1608
    %v1946 = vunpack.c.h.b16 %v1608
    %v1947 = vunpack.c.l.b16 %v1609
    %v1948 = vunpack.c.h.b16 %v1609
    %v1949 = vunpack.c.l.b16 %v1610
    %v1950 = vunpack.c.h.b16 %v1610
    %v1951 = vunpack.c.l.b16 %v1611
    %v1952 = vunpack.c.h.b16 %v1611
    %v1953 = vunpack.c.l.b16 %v1612
    %v1954 = vunpack.c.h.b16 %v1612
    %v1955 = vunpack.c.l.b16 %v1613
    %v1956 = vunpack.c.h.b16 %v1613
    %v1957 = vunpack.c.l.b16 %v1614
    %v1958 = vunpack.c.h.b16 %v1614
    %v1959 = vunpack.c.l.b16 %v1615
    %v1960 = vunpack.c.h.b16 %v1615
    %v1961 = vunpack.c.l.b16 %v1616
    %v1962 = vunpack.c.h.b16 %v1616
    %v1963 = vunpack.c.l.b16 %v1617
    %v1964 = vunpack.c.h.b16 %v1617
    %v1965 = vunpack.c.l.b16 %v1618
    %v1966 = vunpack.c.h.b16 %v1618
    %v1967 = vunpack.c.l.b16 %v1619
    %v1968 = vunpack.c.h.b16 %v1619
    %v1969 = vunpack.c.l.b16 %v1620
    %v1970 = vunpack.c.h.b16 %v1620
    %v1971 = vunpack.c.l.b16 %v1621
    %v1972 = vunpack.c.h.b16 %v1621
    %v1973 = vunpack.c.l.b16 %v1622
    %v1974 = vunpack.c.h.b16 %v1622
    %v1975 = vunpack.c.l.b16 %v1623
    %v1976 = vunpack.c.h.b16 %v1623
    %v1977 = vunpack.c.l.b16 %v1624
    %v1978 = vunpack.c.h.b16 %v1624
    %v1979 = vunpack.c.l.b16 %v1625
    %v1980 = vunpack.c.h.b16 %v1625
    %v1981 = vunpack.c.l.b16 %v1626
    %v1982 = vunpack.c.h.b16 %v1626
    %v1983 = vunpack.c.l.b16 %v1627
    %v1984 = vunpack.c.h.b16 %v1627
    %v1985 = vunpack.c.l.b16 %v1628
    %v1986 = vunpack.c.h.b16 %v1628
    %v1987 = vunpack.c.l.b16 %v1629
    %v1988 = vunpack.c.h.b16 %v1629
    %v1989 = vunpack.c.l.b16 %v1630
    %v1990 = vunpack.c.h.b16 %v1630
    %v1991 = vunpack.c.l.b16 %v1631
    %v1992 = vunpack.c.h.b16 %v1631
    %v1993 = vunpack.c.l.b16 %v1632
    %v1994 = vunpack.c.h.b16 %v1632
    %v1995 = vunpack.c.l.b16 %v1633
    %v1996 = vunpack.c.h.b16 %v1633
    %v1997 = vunpack.c.l.b16 %v1634
    %v1998 = vunpack.c.h.b16 %v1634
    %v1999 = vunpack.c.l.b16 %v1635
    %v2000 = vunpack.c.h.b16 %v1635
    %v2001 = vunpack.c.l.b16 %v1636
    %v2002 = vunpack.c.h.b16 %v1636
    %v2003 = vunpack.c.l.b16 %v1637
    %v2004 = vunpack.c.h.b16 %v1637
    %v2005 = vunpack.c.l.b16 %v1638
    %v2006 = vunpack.c.h.b16 %v1638
    %v2007 = vunpack.c.l.b16 %v1639
    %v2008 = vunpack.c.h.b16 %v1639
    %v2009 = vunpack.c.l.b16 %v1640
    %v2010 = vunpack.c.h.b16 %v1640
    %v2011 = vunpack.c.l.b16 %v1641
    %v2012 = vunpack.c.h.b16 %v1641
    %v2013 = vunpack.c.l.b16 %v1642
    %v2014 = vunpack.c.h.b16 %v1642
    %v2015 = vunpack.c.l.b16 %v1643
    %v2016 = vunpack.c.h.b16 %v1643
    %v2017 = vunpack.c.l.b16 %v1644
    %v2018 = vunpack.c.h.b16 %v1644
    %v2019 = vunpack.c.l.b16 %v1645
    %v2020 = vunpack.c.h.b16 %v1645
    %v2021 = vunpack.c.l.b16 %v1646
    %v2022 = vunpack.c.h.b16 %v1646
    %v2023 = vunpack.c.l.b16 %v1647
    %v2024 = vunpack.c.h.b16 %v1647
    %v2025 = vunpack.c.l.b16 %v1648
    %v2026 = vunpack.c.h.b16 %v1648
    %v2027 = vunpack.c.l.b16 %v1649
    %v2028 = vunpack.c.h.b16 %v1649
    %v2029 = vunpack.c.l.b16 %v1650
    %v2030 = vunpack.c.h.b16 %v1650
    %v2031 = vunpack.c.l.b16 %v1651
    %v2032 = vunpack.c.h.b16 %v1651
    %v2033 = vunpack.c.l.b16 %v1652
    %v2034 = vunpack.c.h.b16 %v1652
    %v2035 = vunpack.c.l.b16 %v1653
    %v2036 = vunpack.c.h.b16 %v1653
    %v2037 = vunpack.c.l.b16 %v1654
    %v2038 = vunpack.c.h.b16 %v1654
    %v2039 = vpack.c.b16 %v1791, %v1783
    %v2040 = vpack.c.b16 %v1792, %v1784
    %v2041 = vpack.c.b16 %v1793, %v1785
    %v2042 = vpack.c.b16 %v1794, %v1786
    %v2043 = vpack.c.b16 %v1795, %v1787
    %v2044 = vpack.c.b16 %v1796, %v1788
    %v2045 = vpack.c.b16 %v1797, %v1789
    %v2046 = vpack.c.b16 %v1798, %v1790
    %v2047 = vpack.c.b16 %v1807, %v1799
    %v2048 = vpack.c.b16 %v1808, %v1800
    %v2049 = vpack.c.b16 %v1809, %v1801
    %v2050 = vpack.c.b16 %v1810, %v1802
    %v2051 = vpack.c.b16 %v1811, %v1803
    %v2052 = vpack.c.b16 %v1812, %v1804
    %v2053 = vpack.c.b16 %v1813, %v1805
    %v2054 = vpack.c.b16 %v1814, %v1806
    %v2055 = vpack.c.b16 %v1823, %v1815
    %v2056 = vpack.c.b16 %v1824, %v1816
    %v2057 = vpack.c.b16 %v1825, %v1817
    %v2058 = vpack.c.b16 %v1826, %v1818
    %v2059 = vpack.c.b16 %v1827, %v1819
    %v2060 = vpack.c.b16 %v1828, %v1820
    %v2061 = vpack.c.b16 %v1829, %v1821
    %v2062 = vpack.c.b16 %v1830, %v1822
    %v2063 = vpack.c.b16 %v1839, %v1831
    %v2064 = vpack.c.b16 %v1840, %v1832
    %v2065 = vpack.c.b16 %v1841, %v1833
    %v2066 = vpack.c.b16 %v1842, %v1834
    %v2067 = vpack.c.b16 %v1843, %v1835
    %v2068 = vpack.c.b16 %v1844, %v1836
    %v2069 = vpack.c.b16 %v1845, %v1837
    %v2070 = vpack.c.b16 %v1846, %v1838
    %v2071 = vpack.c.b16 %v1855, %v1847
    %v2072 = vpack.c.b16 %v1856, %v1848
    %v2073 = vpack.c.b16 %v1857, %v1849
    %v2074 = vpack.c.b16 %v1858, %v1850
    %v2075 = vpack.c.b16 %v1859, %v1851
    %v2076 = vpack.c.b16 %v1860, %v1852
    %v2077 = vpack.c.b16 %v1861, %v1853
    %v2078 = vpack.c.b16 %v1862, %v1854
    %v2079 = vpack.c.b16 %v1871, %v1863
    %v2080 = vpack.c.b16 %v1872, %v1864
    %v2081 = vpack.c.b16 %v1873, %v1865
    %v2082 = vpack.c.b16 %v1874, %v1866
    %v2083 = vpack.c.b16 %v1875, %v1867
    %v2084 = vpack.c.b16 %v1876, %v1868
    %v2085 = vpack.c.b16 %v1877, %v1869
    %v2086 = vpack.c.b16 %v1878, %v1870
    %v2087 = vpack.c.b16 %v1887, %v1879
    %v2088 = vpack.c.b16 %v1888, %v1880
    %v2089 = vpack.c.b16 %v1889, %v1881
    %v2090 = vpack.c.b16 %v1890, %v1882
    %v2091 = vpack.c.b16 %v1891, %v1883
    %v2092 = vpack.c.b16 %v1892, %v1884
    %v2093 = vpack.c.b16 %v1893, %v1885
    %v2094 = vpack.c.b16 %v1894, %v1886
    %v2095 = vpack.c.b16 %v1903, %v1895
    %v2096 = vpack.c.b16 %v1904, %v1896
    %v2097 = vpack.c.b16 %v1905, %v1897
    %v2098 = vpack.c.b16 %v1906, %v1898
    %v2099 = vpack.c.b16 %v1907, %v1899
    %v2100 = vpack.c.b16 %v1908, %v1900
    %v2101 = vpack.c.b16 %v1909, %v1901
    %v2102 = vpack.c.b16 %v1910, %v1902
    %v2103 = vpack.c.b16 %v1919, %v1911
    %v2104 = vpack.c.b16 %v1920, %v1912
    %v2105 = vpack.c.b16 %v1921, %v1913
    %v2106 = vpack.c.b16 %v1922, %v1914
    %v2107 = vpack.c.b16 %v1923, %v1915
    %v2108 = vpack.c.b16 %v1924, %v1916
    %v2109 = vpack.c.b16 %v1925, %v1917
    %v2110 = vpack.c.b16 %v1926, %v1918
    %v2111 = vpack.c.b16 %v1935, %v1927
    %v2112 = vpack.c.b16 %v1936, %v1928
    %v2113 = vpack.c.b16 %v1937, %v1929
    %v2114 = vpack.c.b16 %v1938, %v1930
    %v2115 = vpack.c.b16 %v1939, %v1931
    %v2116 = vpack.c.b16 %v1940, %v1932
    %v2117 = vpack.c.b16 %v1941, %v1933
    %v2118 = vpack.c.b16 %v1942, %v1934
    %v2119 = vpack.c.b16 %v1951, %v1943
    %v2120 = vpack.c.b16 %v1952, %v1944
    %v2121 = vpack.c.b16 %v1953, %v1945
    %v2122 = vpack.c.b16 %v1954, %v1946
    %v2123 = vpack.c.b16 %v1955, %v1947
    %v2124 = vpack.c.b16 %v1956, %v1948
    %v2125 = vpack.c.b16 %v1957, %v1949
    %v2126 = vpack.c.b16 %v1958, %v1950
    %v2127 = vpack.c.b16 %v1967, %v1959
    %v2128 = vpack.c.b16 %v1968, %v1960
    %v2129 = vpack.c.b16 %v1969, %v1961
    %v2130 = vpack.c.b16 %v1970, %v1962
    %v2131 = vpack.c.b16 %v1971, %v1963
    %v2132 = vpack.c.b16 %v1972, %v1964
    %v2133 = vpack.c.b16 %v1973, %v1965
    %v2134 = vpack.c.b16 %v1974, %v1966
    %v2135 = vpack.c.b16 %v1983, %v1975
    %v2136 = vpack.c.b16 %v1984, %v1976
    %v2137 = vpack.c.b16 %v1985, %v1977
    %v2138 = vpack.c.b16 %v1986, %v1978
    %v2139 = vpack.c.b16 %v1987, %v1979
    %v2140 = vpack.c.b16 %v1988, %v1980
    %v2141 = vpack.c.b16 %v1989, %v1981
    %v2142 = vpack.c.b16 %v1990, %v1982
    %v2143 = vpack.c.b16 %v1999, %v1991
    %v2144 = vpack.c.b16 %v2000, %v1992
    %v2145 = vpack.c.b16 %v2001, %v1993
    %v2146 = vpack.c.b16 %v2002, %v1994
    %v2147 = vpack.c.b16 %v2003, %v1995
    %v2148 = vpack.c.b16 %v2004, %v1996
    %v2149 = vpack.c.b16 %v2005, %v1997
    %v2150 = vpack.c.b16 %v2006, %v1998
    %v2151 = vpack.c.b16 %v2015, %v2007
    %v2152 = vpack.c.b16 %v2016, %v2008
    %v2153 = vpack.c.b16 %v2017, %v2009
    %v2154 = vpack.c.b16 %v2018, %v2010
    %v2155 = vpack.c.b16 %v2019, %v2011
    %v2156 = vpack.c.b16 %v2020, %v2012
    %v2157 = vpack.c.b16 %v2021, %v2013
    %v2158 = vpack.c.b16 %v2022, %v2014
    %v2159 = vpack.c.b16 %v2031, %v2023
    %v2160 = vpack.c.b16 %v2032, %v2024
    %v2161 = vpack.c.b16 %v2033, %v2025
    %v2162 = vpack.c.b16 %v2034, %v2026
    %v2163 = vpack.c.b16 %v2035, %v2027
    %v2164 = vpack.c.b16 %v2036, %v2028
    %v2165 = vpack.c.b16 %v2037, %v2029
    %v2166 = vpack.c.b16 %v2038, %v2030
    %2295 = vmatprep.subr.bf16.mxu0 %v2040
    %2296 = vmatpush1.bf16.msra.mxu0 %v2039
    %2297 = vmatprep.subr.bf16.mxu0 %v2048
    %2298 = vmatpush1.bf16.msra.mxu0 %v2047
    %2299 = vmatprep.subr.bf16.mxu0 %v2056
    %2300 = vmatpush1.bf16.msra.mxu0 %v2055
    %2301 = vmatprep.subr.bf16.mxu0 %v2064
    %2302 = vmatpush1.bf16.msra.mxu0 %v2063
    %2303 = vmatprep.subr.bf16.mxu0 %v2072
    %2304 = vmatpush1.bf16.msra.mxu0 %v2071
    %2305 = vmatprep.subr.bf16.mxu0 %v2080
    %2306 = vmatpush1.bf16.msra.mxu0 %v2079
    %2307 = vmatprep.subr.bf16.mxu0 %v2088
    %2308 = vmatpush1.bf16.msra.mxu0 %v2087
    %2309 = vmatprep.subr.bf16.mxu0 %v2096
    %2310 = vmatpush1.bf16.msra.mxu0 %v2095
    %2311 = vmatprep.subr.bf16.mxu0 %v2104
    %2312 = vmatpush1.bf16.msra.mxu0 %v2103
    %2313 = vmatprep.subr.bf16.mxu0 %v2112
    %2314 = vmatpush1.bf16.msra.mxu0 %v2111
    %2315 = vmatprep.subr.bf16.mxu0 %v2120
    %2316 = vmatpush1.bf16.msra.mxu0 %v2119
    %2317 = vmatprep.subr.bf16.mxu0 %v2128
    %2318 = vmatpush1.bf16.msra.mxu0 %v2127
    %2319 = vmatprep.subr.bf16.mxu0 %v2136
    %2320 = vmatpush1.bf16.msra.mxu0 %v2135
    %2321 = vmatprep.subr.bf16.mxu0 %v2144
    %2322 = vmatpush1.bf16.msra.mxu0 %v2143
    %2323 = vmatprep.subr.bf16.mxu0 %v2152
    %2324 = vmatpush1.bf16.msra.mxu0 %v2151
    %2325 = vmatprep.subr.bf16.mxu0 %v2160
    %2326 = vmatpush1.bf16.msra.mxu0 %v2159
    %2327 = vmatprep.mubr.bf16.mxu0 %v1526
    %2328 = vmatmul.mubr.bf16.gmra.mrb[0].mxu0 %v1525
    %v2329 = vpop.f32.mrb[0].mxu0
    %v2330 = vadd.f32 0.0, %v2329
    %v2331 = vpop.f32.mrb[0].mxu0
    %v2332 = vadd.f32 0.0, %v2331
    %v2333 = vpop.f32.mrb[0].mxu0
    %v2334 = vpop.f32.mrb[0].mxu0
    %2335 = vdwg.mxu0
    %2336 = vmatprep.subr.bf16.mxu0 %v2042
    %2337 = vmatpush1.bf16.msra.mxu0 %v2041
    %2338 = vmatprep.subr.bf16.mxu0 %v2050
    %2339 = vmatpush1.bf16.msra.mxu0 %v2049
    %2340 = vmatprep.subr.bf16.mxu0 %v2058
    %2341 = vmatpush1.bf16.msra.mxu0 %v2057
    %2342 = vmatprep.subr.bf16.mxu0 %v2066
    %2343 = vmatpush1.bf16.msra.mxu0 %v2065
    %2344 = vmatprep.subr.bf16.mxu0 %v2074
    %2345 = vmatpush1.bf16.msra.mxu0 %v2073
    %2346 = vmatprep.subr.bf16.mxu0 %v2082
    %2347 = vmatpush1.bf16.msra.mxu0 %v2081
    %2348 = vmatprep.subr.bf16.mxu0 %v2090
    %2349 = vmatpush1.bf16.msra.mxu0 %v2089
    %2350 = vmatprep.subr.bf16.mxu0 %v2098
    %2351 = vmatpush1.bf16.msra.mxu0 %v2097
    %2352 = vmatprep.subr.bf16.mxu0 %v2106
    %2353 = vmatpush1.bf16.msra.mxu0 %v2105
    %2354 = vmatprep.subr.bf16.mxu0 %v2114
    %2355 = vmatpush1.bf16.msra.mxu0 %v2113
    %2356 = vmatprep.subr.bf16.mxu0 %v2122
    %2357 = vmatpush1.bf16.msra.mxu0 %v2121
    %2358 = vmatprep.subr.bf16.mxu0 %v2130
    %2359 = vmatpush1.bf16.msra.mxu0 %v2129
    %2360 = vmatprep.subr.bf16.mxu0 %v2138
    %2361 = vmatpush1.bf16.msra.mxu0 %v2137
    %2362 = vmatprep.subr.bf16.mxu0 %v2146
    %2363 = vmatpush1.bf16.msra.mxu0 %v2145
    %2364 = vmatprep.subr.bf16.mxu0 %v2154
    %2365 = vmatpush1.bf16.msra.mxu0 %v2153
    %2366 = vmatprep.subr.bf16.mxu0 %v2162
    %2367 = vmatpush1.bf16.msra.mxu0 %v2161
    %2368 = vmatprep.mubr.bf16.mxu0 %v1526
    %2369 = vmatmul.mubr.bf16.gmra.mrb[0].mxu0 %v1525
    %v2370 = vpop.f32.mrb[0].mxu0
    %v2371 = vadd.f32 0.0, %v2370
    %v2372 = vpop.f32.mrb[0].mxu0
    %v2373 = vadd.f32 0.0, %v2372
    %v2374 = vpop.f32.mrb[0].mxu0
    %v2375 = vpop.f32.mrb[0].mxu0
    %2376 = vdwg.mxu0
    %2377 = vmatprep.subr.bf16.mxu0 %v2044
    %2378 = vmatpush1.bf16.msra.mxu0 %v2043
    %2379 = vmatprep.subr.bf16.mxu0 %v2052
    %2380 = vmatpush1.bf16.msra.mxu0 %v2051
    %2381 = vmatprep.subr.bf16.mxu0 %v2060
    %2382 = vmatpush1.bf16.msra.mxu0 %v2059
    %2383 = vmatprep.subr.bf16.mxu0 %v2068
    %2384 = vmatpush1.bf16.msra.mxu0 %v2067
    %2385 = vmatprep.subr.bf16.mxu0 %v2076
    %2386 = vmatpush1.bf16.msra.mxu0 %v2075
    %2387 = vmatprep.subr.bf16.mxu0 %v2084
    %2388 = vmatpush1.bf16.msra.mxu0 %v2083
    %2389 = vmatprep.subr.bf16.mxu0 %v2092
    %2390 = vmatpush1.bf16.msra.mxu0 %v2091
    %2391 = vmatprep.subr.bf16.mxu0 %v2100
    %2392 = vmatpush1.bf16.msra.mxu0 %v2099
    %2393 = vmatprep.subr.bf16.mxu0 %v2108
    %2394 = vmatpush1.bf16.msra.mxu0 %v2107
    %2395 = vmatprep.subr.bf16.mxu0 %v2116
    %2396 = vmatpush1.bf16.msra.mxu0 %v2115
    %2397 = vmatprep.subr.bf16.mxu0 %v2124
    %2398 = vmatpush1.bf16.msra.mxu0 %v2123
    %2399 = vmatprep.subr.bf16.mxu0 %v2132
    %2400 = vmatpush1.bf16.msra.mxu0 %v2131
    %2401 = vmatprep.subr.bf16.mxu0 %v2140
    %2402 = vmatpush1.bf16.msra.mxu0 %v2139
    %2403 = vmatprep.subr.bf16.mxu0 %v2148
    %2404 = vmatpush1.bf16.msra.mxu0 %v2147
    %2405 = vmatprep.subr.bf16.mxu0 %v2156
    %2406 = vmatpush1.bf16.msra.mxu0 %v2155
    %2407 = vmatprep.subr.bf16.mxu0 %v2164
    %2408 = vmatpush1.bf16.msra.mxu0 %v2163
    %2409 = vmatprep.mubr.bf16.mxu0 %v1526
    %2410 = vmatmul.mubr.bf16.gmra.mrb[0].mxu0 %v1525
    %v2411 = vpop.f32.mrb[0].mxu0
    %v2412 = vadd.f32 0.0, %v2411
    %v2413 = vpop.f32.mrb[0].mxu0
    %v2414 = vadd.f32 0.0, %v2413
    %v2415 = vpop.f32.mrb[0].mxu0
    %v2416 = vpop.f32.mrb[0].mxu0
    %2417 = vdwg.mxu0
    %2418 = vmatprep.subr.bf16.mxu0 %v2046
    %2419 = vmatpush1.bf16.msra.mxu0 %v2045
    %2420 = vmatprep.subr.bf16.mxu0 %v2054
    %2421 = vmatpush1.bf16.msra.mxu0 %v2053
    %2422 = vmatprep.subr.bf16.mxu0 %v2062
    %2423 = vmatpush1.bf16.msra.mxu0 %v2061
    %2424 = vmatprep.subr.bf16.mxu0 %v2070
    %2425 = vmatpush1.bf16.msra.mxu0 %v2069
    %2426 = vmatprep.subr.bf16.mxu0 %v2078
    %2427 = vmatpush1.bf16.msra.mxu0 %v2077
    %2428 = vmatprep.subr.bf16.mxu0 %v2086
    %2429 = vmatpush1.bf16.msra.mxu0 %v2085
    %2430 = vmatprep.subr.bf16.mxu0 %v2094
    %2431 = vmatpush1.bf16.msra.mxu0 %v2093
    %2432 = vmatprep.subr.bf16.mxu0 %v2102
    %2433 = vmatpush1.bf16.msra.mxu0 %v2101
    %2434 = vmatprep.subr.bf16.mxu0 %v2110
    %2435 = vmatpush1.bf16.msra.mxu0 %v2109
    %2436 = vmatprep.subr.bf16.mxu0 %v2118
    %2437 = vmatpush1.bf16.msra.mxu0 %v2117
    %2438 = vmatprep.subr.bf16.mxu0 %v2126
    %2439 = vmatpush1.bf16.msra.mxu0 %v2125
    %2440 = vmatprep.subr.bf16.mxu0 %v2134
    %2441 = vmatpush1.bf16.msra.mxu0 %v2133
    %2442 = vmatprep.subr.bf16.mxu0 %v2142
    %2443 = vmatpush1.bf16.msra.mxu0 %v2141
    %2444 = vmatprep.subr.bf16.mxu0 %v2150
    %2445 = vmatpush1.bf16.msra.mxu0 %v2149
    %2446 = vmatprep.subr.bf16.mxu0 %v2158
    %2447 = vmatpush1.bf16.msra.mxu0 %v2157
    %2448 = vmatprep.subr.bf16.mxu0 %v2166
    %2449 = vmatpush1.bf16.msra.mxu0 %v2165
    %2450 = vmatprep.mubr.bf16.mxu0 %v1526
    %2451 = vmatmul.mubr.bf16.gmra.mrb[0].mxu0 %v1525
    %v2452 = vpop.f32.mrb[0].mxu0
    %v2453 = vadd.f32 0.0, %v2452
    %v2454 = vpop.f32.mrb[0].mxu0
    %v2455 = vadd.f32 0.0, %v2454
    %v2456 = vpop.f32.mrb[0].mxu0
    %v2457 = vpop.f32.mrb[0].mxu0
    %2458 = vdwg.mxu0
    %s2459 = scalar_lea.vmem [#allocation3], 64
    %v2460 = vld [vmem:[%s2459] sm:$0xff]
    %v2461 = vld [vmem:[%s2459 + $0x8] sm:$0xff]
    %v2462 = vld [vmem:[%s2459 + $0x10] sm:$0xff]
    %v2463 = vld [vmem:[%s2459 + $0x18] sm:$0xff]
    %v2464 = vadd.f32 %v2330, %v2460
    %v2465 = vadd.f32 %v2332, %v2461
    %v2466 = vadd.f32 %v2371, %v2462
    %v2467 = vadd.f32 %v2373, %v2463
    %v2468 = vadd.f32 %v2412, %v1455
    %v2469 = vadd.f32 %v2414, %v1459
    %v2470 = vadd.f32 %v2453, %v1463
    %v2471 = vadd.f32 %v2455, %v1467
    %v2472 = vxor.u32 %v2464, 2147483648
    %v2473 = vmul.f32 %v2472, 1.442695
    %v2474 = vpow.pop %v2473
    %v2475 = vadd.f32 %v2474, 1.0
    %v2476 = vrcp.pop %v2475
    %v2477 = vmul.f32 1.0, %v2476
    %v2478 = vxor.u32 %v2465, 2147483648
    %v2479 = vmul.f32 %v2478, 1.442695
    %v2480 = vpow.pop %v2479
    %v2481 = vadd.f32 %v2480, 1.0
    %v2482 = vrcp.pop %v2481
    %v2483 = vmul.f32 1.0, %v2482
    %v2484 = vtanh.pop %v2466
    %v2485 = vxor.u32 %v2467, 2147483648
    %v2486 = vmul.f32 %v2485, 1.442695
    %v2487 = vpow.pop %v2486
    %v2488 = vadd.f32 %v2487, 1.0
    %v2489 = vrcp.pop %v2488
    %v2490 = vmul.f32 1.0, %v2489
    %v2491 = vmul.f32 %v2483, %v1497
    %v2492 = vmul.f32 %v2477, %v2484
    %v2493 = vadd.f32 %v2491, %v2492
    %v2494 = vtanh.pop %v2493
    %v2495 = vmul.f32 %v2490, %v2494
    %v2496 = vxor.u32 %v2468, 2147483648
    %v2497 = vmul.f32 %v2496, 1.442695
    %v2498 = vpow.pop %v2497
    %v2499 = vadd.f32 %v2498, 1.0
    %v2500 = vrcp.pop %v2499
    %v2501 = vmul.f32 1.0, %v2500
    %v2502 = vxor.u32 %v2469, 2147483648
    %v2503 = vmul.f32 %v2502, 1.442695
    %v2504 = vpow.pop %v2503
    %v2505 = vadd.f32 %v2504, 1.0
    %v2506 = vrcp.pop %v2505
    %v2507 = vmul.f32 1.0, %v2506
    %v2508 = vtanh.pop %v2470
    %v2509 = vxor.u32 %v2471, 2147483648
    %v2510 = vmul.f32 %v2509, 1.442695
    %v2511 = vpow.pop %v2510
    %v2512 = vadd.f32 %v2511, 1.0
    %v2513 = vrcp.pop %v2512
    %v2514 = vmul.f32 1.0, %v2513
    %v2515 = vmul.f32 %v2507, %v1521
    %v2516 = vmul.f32 %v2501, %v2508
    %v2517 = vadd.f32 %v2515, %v2516
    %v2518 = vtanh.pop %v2517
    %v2519 = vmul.f32 %v2514, %v2518
    %s2520 = scalar_lea.vmem [#allocation2], 8
    %2521 = vst [vmem:[%s2520] sm:$0xff] %v2519
    %v2522 = vpack.c.bf16 %v2495, %v2495
    %v2523 = vpack.c.bf16 %v2519, %v2519
    %v2524 = vld [vmem:[#allocation11] sm:$0xff]
    %v2525 = vld [vmem:[#allocation11 + $0x8] sm:$0xff]
    %v2526 = vld [vmem:[#allocation11 + $0x10] sm:$0xff]
    %v2527 = vld [vmem:[#allocation11 + $0x18] sm:$0xff]
    %v2528 = vld [vmem:[#allocation11 + $0x20] sm:$0xff]
    %v2529 = vld [vmem:[#allocation11 + $0x28] sm:$0xff]
    %v2530 = vld [vmem:[#allocation11 + $0x30] sm:$0xff]
    %v2531 = vld [vmem:[#allocation11 + $0x38] sm:$0xff]
    %v2532 = vld [vmem:[#allocation11 + $0x40] sm:$0xff]
    %v2533 = vld [vmem:[#allocation11 + $0x48] sm:$0xff]
    %v2534 = vld [vmem:[#allocation11 + $0x50] sm:$0xff]
    %v2535 = vld [vmem:[#allocation11 + $0x58] sm:$0xff]
    %v2536 = vld [vmem:[#allocation11 + $0x60] sm:$0xff]
    %v2537 = vld [vmem:[#allocation11 + $0x68] sm:$0xff]
    %v2538 = vld [vmem:[#allocation11 + $0x70] sm:$0xff]
    %v2539 = vld [vmem:[#allocation11 + $0x78] sm:$0xff]
    %v2540 = vld [vmem:[#allocation11 + $0x80] sm:$0xff]
    %v2541 = vld [vmem:[#allocation11 + $0x88] sm:$0xff]
    %v2542 = vld [vmem:[#allocation11 + $0x90] sm:$0xff]
    %v2543 = vld [vmem:[#allocation11 + $0x98] sm:$0xff]
    %v2544 = vld [vmem:[#allocation11 + $0xa0] sm:$0xff]
    %v2545 = vld [vmem:[#allocation11 + $0xa8] sm:$0xff]
    %v2546 = vld [vmem:[#allocation11 + $0xb0] sm:$0xff]
    %v2547 = vld [vmem:[#allocation11 + $0xb8] sm:$0xff]
    %v2548 = vld [vmem:[#allocation11 + $0xc0] sm:$0xff]
    %v2549 = vld [vmem:[#allocation11 + $0xc8] sm:$0xff]
    %v2550 = vld [vmem:[#allocation11 + $0xd0] sm:$0xff]
    %v2551 = vld [vmem:[#allocation11 + $0xd8] sm:$0xff]
    %v2552 = vld [vmem:[#allocation11 + $0xe0] sm:$0xff]
    %v2553 = vld [vmem:[#allocation11 + $0xe8] sm:$0xff]
    %v2554 = vld [vmem:[#allocation11 + $0xf0] sm:$0xff]
    %v2555 = vld [vmem:[#allocation11 + $0xf8] sm:$0xff]
    %v2556 = vld [vmem:[#allocation11 + $0x100] sm:$0xff]
    %v2557 = vld [vmem:[#allocation11 + $0x108] sm:$0xff]
    %v2558 = vld [vmem:[#allocation11 + $0x110] sm:$0xff]
    %v2559 = vld [vmem:[#allocation11 + $0x118] sm:$0xff]
    %v2560 = vld [vmem:[#allocation11 + $0x120] sm:$0xff]
    %v2561 = vld [vmem:[#allocation11 + $0x128] sm:$0xff]
    %v2562 = vld [vmem:[#allocation11 + $0x130] sm:$0xff]
    %v2563 = vld [vmem:[#allocation11 + $0x138] sm:$0xff]
    %v2564 = vld [vmem:[#allocation11 + $0x140] sm:$0xff]
    %v2565 = vld [vmem:[#allocation11 + $0x148] sm:$0xff]
    %v2566 = vld [vmem:[#allocation11 + $0x150] sm:$0xff]
    %v2567 = vld [vmem:[#allocation11 + $0x158] sm:$0xff]
    %v2568 = vld [vmem:[#allocation11 + $0x160] sm:$0xff]
    %v2569 = vld [vmem:[#allocation11 + $0x168] sm:$0xff]
    %v2570 = vld [vmem:[#allocation11 + $0x170] sm:$0xff]
    %v2571 = vld [vmem:[#allocation11 + $0x178] sm:$0xff]
    %v2572 = vld [vmem:[#allocation11 + $0x180] sm:$0xff]
    %v2573 = vld [vmem:[#allocation11 + $0x188] sm:$0xff]
    %v2574 = vld [vmem:[#allocation11 + $0x190] sm:$0xff]
    %v2575 = vld [vmem:[#allocation11 + $0x198] sm:$0xff]
    %v2576 = vld [vmem:[#allocation11 + $0x1a0] sm:$0xff]
    %v2577 = vld [vmem:[#allocation11 + $0x1a8] sm:$0xff]
    %v2578 = vld [vmem:[#allocation11 + $0x1b0] sm:$0xff]
    %v2579 = vld [vmem:[#allocation11 + $0x1b8] sm:$0xff]
    %v2580 = vld [vmem:[#allocation11 + $0x1c0] sm:$0xff]
    %v2581 = vld [vmem:[#allocation11 + $0x1c8] sm:$0xff]
    %v2582 = vld [vmem:[#allocation11 + $0x1d0] sm:$0xff]
    %v2583 = vld [vmem:[#allocation11 + $0x1d8] sm:$0xff]
    %v2584 = vld [vmem:[#allocation11 + $0x1e0] sm:$0xff]
    %v2585 = vld [vmem:[#allocation11 + $0x1e8] sm:$0xff]
    %v2586 = vld [vmem:[#allocation11 + $0x1f0] sm:$0xff]
    %v2587 = vld [vmem:[#allocation11 + $0x1f8] sm:$0xff]
    %v2588 = vld [vmem:[#allocation11 + $0x200] sm:$0xff]
    %v2589 = vld [vmem:[#allocation11 + $0x208] sm:$0xff]
    %v2590 = vld [vmem:[#allocation11 + $0x210] sm:$0xff]
    %v2591 = vld [vmem:[#allocation11 + $0x218] sm:$0xff]
    %v2592 = vld [vmem:[#allocation11 + $0x220] sm:$0xff]
    %v2593 = vld [vmem:[#allocation11 + $0x228] sm:$0xff]
    %v2594 = vld [vmem:[#allocation11 + $0x230] sm:$0xff]
    %v2595 = vld [vmem:[#allocation11 + $0x238] sm:$0xff]
    %v2596 = vld [vmem:[#allocation11 + $0x240] sm:$0xff]
    %v2597 = vld [vmem:[#allocation11 + $0x248] sm:$0xff]
    %v2598 = vld [vmem:[#allocation11 + $0x250] sm:$0xff]
    %v2599 = vld [vmem:[#allocation11 + $0x258] sm:$0xff]
    %v2600 = vld [vmem:[#allocation11 + $0x260] sm:$0xff]
    %v2601 = vld [vmem:[#allocation11 + $0x268] sm:$0xff]
    %v2602 = vld [vmem:[#allocation11 + $0x270] sm:$0xff]
    %v2603 = vld [vmem:[#allocation11 + $0x278] sm:$0xff]
    %v2604 = vld [vmem:[#allocation11 + $0x280] sm:$0xff]
    %v2605 = vld [vmem:[#allocation11 + $0x288] sm:$0xff]
    %v2606 = vld [vmem:[#allocation11 + $0x290] sm:$0xff]
    %v2607 = vld [vmem:[#allocation11 + $0x298] sm:$0xff]
    %v2608 = vld [vmem:[#allocation11 + $0x2a0] sm:$0xff]
    %v2609 = vld [vmem:[#allocation11 + $0x2a8] sm:$0xff]
    %v2610 = vld [vmem:[#allocation11 + $0x2b0] sm:$0xff]
    %v2611 = vld [vmem:[#allocation11 + $0x2b8] sm:$0xff]
    %v2612 = vld [vmem:[#allocation11 + $0x2c0] sm:$0xff]
    %v2613 = vld [vmem:[#allocation11 + $0x2c8] sm:$0xff]
    %v2614 = vld [vmem:[#allocation11 + $0x2d0] sm:$0xff]
    %v2615 = vld [vmem:[#allocation11 + $0x2d8] sm:$0xff]
    %v2616 = vld [vmem:[#allocation11 + $0x2e0] sm:$0xff]
    %v2617 = vld [vmem:[#allocation11 + $0x2e8] sm:$0xff]
    %v2618 = vld [vmem:[#allocation11 + $0x2f0] sm:$0xff]
    %v2619 = vld [vmem:[#allocation11 + $0x2f8] sm:$0xff]
    %v2620 = vld [vmem:[#allocation11 + $0x300] sm:$0xff]
    %v2621 = vld [vmem:[#allocation11 + $0x308] sm:$0xff]
    %v2622 = vld [vmem:[#allocation11 + $0x310] sm:$0xff]
    %v2623 = vld [vmem:[#allocation11 + $0x318] sm:$0xff]
    %v2624 = vld [vmem:[#allocation11 + $0x320] sm:$0xff]
    %v2625 = vld [vmem:[#allocation11 + $0x328] sm:$0xff]
    %v2626 = vld [vmem:[#allocation11 + $0x330] sm:$0xff]
    %v2627 = vld [vmem:[#allocation11 + $0x338] sm:$0xff]
    %v2628 = vld [vmem:[#allocation11 + $0x340] sm:$0xff]
    %v2629 = vld [vmem:[#allocation11 + $0x348] sm:$0xff]
    %v2630 = vld [vmem:[#allocation11 + $0x350] sm:$0xff]
    %v2631 = vld [vmem:[#allocation11 + $0x358] sm:$0xff]
    %v2632 = vld [vmem:[#allocation11 + $0x360] sm:$0xff]
    %v2633 = vld [vmem:[#allocation11 + $0x368] sm:$0xff]
    %v2634 = vld [vmem:[#allocation11 + $0x370] sm:$0xff]
    %v2635 = vld [vmem:[#allocation11 + $0x378] sm:$0xff]
    %v2636 = vld [vmem:[#allocation11 + $0x380] sm:$0xff]
    %v2637 = vld [vmem:[#allocation11 + $0x388] sm:$0xff]
    %v2638 = vld [vmem:[#allocation11 + $0x390] sm:$0xff]
    %v2639 = vld [vmem:[#allocation11 + $0x398] sm:$0xff]
    %v2640 = vld [vmem:[#allocation11 + $0x3a0] sm:$0xff]
    %v2641 = vld [vmem:[#allocation11 + $0x3a8] sm:$0xff]
    %v2642 = vld [vmem:[#allocation11 + $0x3b0] sm:$0xff]
    %v2643 = vld [vmem:[#allocation11 + $0x3b8] sm:$0xff]
    %v2644 = vld [vmem:[#allocation11 + $0x3c0] sm:$0xff]
    %v2645 = vld [vmem:[#allocation11 + $0x3c8] sm:$0xff]
    %v2646 = vld [vmem:[#allocation11 + $0x3d0] sm:$0xff]
    %v2647 = vld [vmem:[#allocation11 + $0x3d8] sm:$0xff]
    %v2648 = vld [vmem:[#allocation11 + $0x3e0] sm:$0xff]
    %v2649 = vld [vmem:[#allocation11 + $0x3e8] sm:$0xff]
    %v2650 = vld [vmem:[#allocation11 + $0x3f0] sm:$0xff]
    %v2651 = vld [vmem:[#allocation11 + $0x3f8] sm:$0xff]
    %v2780 = vunpack.c.l.b16 %v2524
    %v2781 = vunpack.c.h.b16 %v2524
    %v2782 = vunpack.c.l.b16 %v2525
    %v2783 = vunpack.c.h.b16 %v2525
    %v2784 = vunpack.c.l.b16 %v2526
    %v2785 = vunpack.c.h.b16 %v2526
    %v2786 = vunpack.c.l.b16 %v2527
    %v2787 = vunpack.c.h.b16 %v2527
    %v2788 = vunpack.c.l.b16 %v2528
    %v2789 = vunpack.c.h.b16 %v2528
    %v2790 = vunpack.c.l.b16 %v2529
    %v2791 = vunpack.c.h.b16 %v2529
    %v2792 = vunpack.c.l.b16 %v2530
    %v2793 = vunpack.c.h.b16 %v2530
    %v2794 = vunpack.c.l.b16 %v2531
    %v2795 = vunpack.c.h.b16 %v2531
    %v2796 = vunpack.c.l.b16 %v2532
    %v2797 = vunpack.c.h.b16 %v2532
    %v2798 = vunpack.c.l.b16 %v2533
    %v2799 = vunpack.c.h.b16 %v2533
    %v2800 = vunpack.c.l.b16 %v2534
    %v2801 = vunpack.c.h.b16 %v2534
    %v2802 = vunpack.c.l.b16 %v2535
    %v2803 = vunpack.c.h.b16 %v2535
    %v2804 = vunpack.c.l.b16 %v2536
    %v2805 = vunpack.c.h.b16 %v2536
    %v2806 = vunpack.c.l.b16 %v2537
    %v2807 = vunpack.c.h.b16 %v2537
    %v2808 = vunpack.c.l.b16 %v2538
    %v2809 = vunpack.c.h.b16 %v2538
    %v2810 = vunpack.c.l.b16 %v2539
    %v2811 = vunpack.c.h.b16 %v2539
    %v2812 = vunpack.c.l.b16 %v2540
    %v2813 = vunpack.c.h.b16 %v2540
    %v2814 = vunpack.c.l.b16 %v2541
    %v2815 = vunpack.c.h.b16 %v2541
    %v2816 = vunpack.c.l.b16 %v2542
    %v2817 = vunpack.c.h.b16 %v2542
    %v2818 = vunpack.c.l.b16 %v2543
    %v2819 = vunpack.c.h.b16 %v2543
    %v2820 = vunpack.c.l.b16 %v2544
    %v2821 = vunpack.c.h.b16 %v2544
    %v2822 = vunpack.c.l.b16 %v2545
    %v2823 = vunpack.c.h.b16 %v2545
    %v2824 = vunpack.c.l.b16 %v2546
    %v2825 = vunpack.c.h.b16 %v2546
    %v2826 = vunpack.c.l.b16 %v2547
    %v2827 = vunpack.c.h.b16 %v2547
    %v2828 = vunpack.c.l.b16 %v2548
    %v2829 = vunpack.c.h.b16 %v2548
    %v2830 = vunpack.c.l.b16 %v2549
    %v2831 = vunpack.c.h.b16 %v2549
    %v2832 = vunpack.c.l.b16 %v2550
    %v2833 = vunpack.c.h.b16 %v2550
    %v2834 = vunpack.c.l.b16 %v2551
    %v2835 = vunpack.c.h.b16 %v2551
    %v2836 = vunpack.c.l.b16 %v2552
    %v2837 = vunpack.c.h.b16 %v2552
    %v2838 = vunpack.c.l.b16 %v2553
    %v2839 = vunpack.c.h.b16 %v2553
    %v2840 = vunpack.c.l.b16 %v2554
    %v2841 = vunpack.c.h.b16 %v2554
    %v2842 = vunpack.c.l.b16 %v2555
    %v2843 = vunpack.c.h.b16 %v2555
    %v2844 = vunpack.c.l.b16 %v2556
    %v2845 = vunpack.c.h.b16 %v2556
    %v2846 = vunpack.c.l.b16 %v2557
    %v2847 = vunpack.c.h.b16 %v2557
    %v2848 = vunpack.c.l.b16 %v2558
    %v2849 = vunpack.c.h.b16 %v2558
    %v2850 = vunpack.c.l.b16 %v2559
    %v2851 = vunpack.c.h.b16 %v2559
    %v2852 = vunpack.c.l.b16 %v2560
    %v2853 = vunpack.c.h.b16 %v2560
    %v2854 = vunpack.c.l.b16 %v2561
    %v2855 = vunpack.c.h.b16 %v2561
    %v2856 = vunpack.c.l.b16 %v2562
    %v2857 = vunpack.c.h.b16 %v2562
    %v2858 = vunpack.c.l.b16 %v2563
    %v2859 = vunpack.c.h.b16 %v2563
    %v2860 = vunpack.c.l.b16 %v2564
    %v2861 = vunpack.c.h.b16 %v2564
    %v2862 = vunpack.c.l.b16 %v2565
    %v2863 = vunpack.c.h.b16 %v2565
    %v2864 = vunpack.c.l.b16 %v2566
    %v2865 = vunpack.c.h.b16 %v2566
    %v2866 = vunpack.c.l.b16 %v2567
    %v2867 = vunpack.c.h.b16 %v2567
    %v2868 = vunpack.c.l.b16 %v2568
    %v2869 = vunpack.c.h.b16 %v2568
    %v2870 = vunpack.c.l.b16 %v2569
    %v2871 = vunpack.c.h.b16 %v2569
    %v2872 = vunpack.c.l.b16 %v2570
    %v2873 = vunpack.c.h.b16 %v2570
    %v2874 = vunpack.c.l.b16 %v2571
    %v2875 = vunpack.c.h.b16 %v2571
    %v2876 = vunpack.c.l.b16 %v2572
    %v2877 = vunpack.c.h.b16 %v2572
    %v2878 = vunpack.c.l.b16 %v2573
    %v2879 = vunpack.c.h.b16 %v2573
    %v2880 = vunpack.c.l.b16 %v2574
    %v2881 = vunpack.c.h.b16 %v2574
    %v2882 = vunpack.c.l.b16 %v2575
    %v2883 = vunpack.c.h.b16 %v2575
    %v2884 = vunpack.c.l.b16 %v2576
    %v2885 = vunpack.c.h.b16 %v2576
    %v2886 = vunpack.c.l.b16 %v2577
    %v2887 = vunpack.c.h.b16 %v2577
    %v2888 = vunpack.c.l.b16 %v2578
    %v2889 = vunpack.c.h.b16 %v2578
    %v2890 = vunpack.c.l.b16 %v2579
    %v2891 = vunpack.c.h.b16 %v2579
    %v2892 = vunpack.c.l.b16 %v2580
    %v2893 = vunpack.c.h.b16 %v2580
    %v2894 = vunpack.c.l.b16 %v2581
    %v2895 = vunpack.c.h.b16 %v2581
    %v2896 = vunpack.c.l.b16 %v2582
    %v2897 = vunpack.c.h.b16 %v2582
    %v2898 = vunpack.c.l.b16 %v2583
    %v2899 = vunpack.c.h.b16 %v2583
    %v2900 = vunpack.c.l.b16 %v2584
    %v2901 = vunpack.c.h.b16 %v2584
    %v2902 = vunpack.c.l.b16 %v2585
    %v2903 = vunpack.c.h.b16 %v2585
    %v2904 = vunpack.c.l.b16 %v2586
    %v2905 = vunpack.c.h.b16 %v2586
    %v2906 = vunpack.c.l.b16 %v2587
    %v2907 = vunpack.c.h.b16 %v2587
    %v2908 = vunpack.c.l.b16 %v2588
    %v2909 = vunpack.c.h.b16 %v2588
    %v2910 = vunpack.c.l.b16 %v2589
    %v2911 = vunpack.c.h.b16 %v2589
    %v2912 = vunpack.c.l.b16 %v2590
    %v2913 = vunpack.c.h.b16 %v2590
    %v2914 = vunpack.c.l.b16 %v2591
    %v2915 = vunpack.c.h.b16 %v2591
    %v2916 = vunpack.c.l.b16 %v2592
    %v2917 = vunpack.c.h.b16 %v2592
    %v2918 = vunpack.c.l.b16 %v2593
    %v2919 = vunpack.c.h.b16 %v2593
    %v2920 = vunpack.c.l.b16 %v2594
    %v2921 = vunpack.c.h.b16 %v2594
    %v2922 = vunpack.c.l.b16 %v2595
    %v2923 = vunpack.c.h.b16 %v2595
    %v2924 = vunpack.c.l.b16 %v2596
    %v2925 = vunpack.c.h.b16 %v2596
    %v2926 = vunpack.c.l.b16 %v2597
    %v2927 = vunpack.c.h.b16 %v2597
    %v2928 = vunpack.c.l.b16 %v2598
    %v2929 = vunpack.c.h.b16 %v2598
    %v2930 = vunpack.c.l.b16 %v2599
    %v2931 = vunpack.c.h.b16 %v2599
    %v2932 = vunpack.c.l.b16 %v2600
    %v2933 = vunpack.c.h.b16 %v2600
    %v2934 = vunpack.c.l.b16 %v2601
    %v2935 = vunpack.c.h.b16 %v2601
    %v2936 = vunpack.c.l.b16 %v2602
    %v2937 = vunpack.c.h.b16 %v2602
    %v2938 = vunpack.c.l.b16 %v2603
    %v2939 = vunpack.c.h.b16 %v2603
    %v2940 = vunpack.c.l.b16 %v2604
    %v2941 = vunpack.c.h.b16 %v2604
    %v2942 = vunpack.c.l.b16 %v2605
    %v2943 = vunpack.c.h.b16 %v2605
    %v2944 = vunpack.c.l.b16 %v2606
    %v2945 = vunpack.c.h.b16 %v2606
    %v2946 = vunpack.c.l.b16 %v2607
    %v2947 = vunpack.c.h.b16 %v2607
    %v2948 = vunpack.c.l.b16 %v2608
    %v2949 = vunpack.c.h.b16 %v2608
    %v2950 = vunpack.c.l.b16 %v2609
    %v2951 = vunpack.c.h.b16 %v2609
    %v2952 = vunpack.c.l.b16 %v2610
    %v2953 = vunpack.c.h.b16 %v2610
    %v2954 = vunpack.c.l.b16 %v2611
    %v2955 = vunpack.c.h.b16 %v2611
    %v2956 = vunpack.c.l.b16 %v2612
    %v2957 = vunpack.c.h.b16 %v2612
    %v2958 = vunpack.c.l.b16 %v2613
    %v2959 = vunpack.c.h.b16 %v2613
    %v2960 = vunpack.c.l.b16 %v2614
    %v2961 = vunpack.c.h.b16 %v2614
    %v2962 = vunpack.c.l.b16 %v2615
    %v2963 = vunpack.c.h.b16 %v2615
    %v2964 = vunpack.c.l.b16 %v2616
    %v2965 = vunpack.c.h.b16 %v2616
    %v2966 = vunpack.c.l.b16 %v2617
    %v2967 = vunpack.c.h.b16 %v2617
    %v2968 = vunpack.c.l.b16 %v2618
    %v2969 = vunpack.c.h.b16 %v2618
    %v2970 = vunpack.c.l.b16 %v2619
    %v2971 = vunpack.c.h.b16 %v2619
    %v2972 = vunpack.c.l.b16 %v2620
    %v2973 = vunpack.c.h.b16 %v2620
    %v2974 = vunpack.c.l.b16 %v2621
    %v2975 = vunpack.c.h.b16 %v2621
    %v2976 = vunpack.c.l.b16 %v2622
    %v2977 = vunpack.c.h.b16 %v2622
    %v2978 = vunpack.c.l.b16 %v2623
    %v2979 = vunpack.c.h.b16 %v2623
    %v2980 = vunpack.c.l.b16 %v2624
    %v2981 = vunpack.c.h.b16 %v2624
    %v2982 = vunpack.c.l.b16 %v2625
    %v2983 = vunpack.c.h.b16 %v2625
    %v2984 = vunpack.c.l.b16 %v2626
    %v2985 = vunpack.c.h.b16 %v2626
    %v2986 = vunpack.c.l.b16 %v2627
    %v2987 = vunpack.c.h.b16 %v2627
    %v2988 = vunpack.c.l.b16 %v2628
    %v2989 = vunpack.c.h.b16 %v2628
    %v2990 = vunpack.c.l.b16 %v2629
    %v2991 = vunpack.c.h.b16 %v2629
    %v2992 = vunpack.c.l.b16 %v2630
    %v2993 = vunpack.c.h.b16 %v2630
    %v2994 = vunpack.c.l.b16 %v2631
    %v2995 = vunpack.c.h.b16 %v2631
    %v2996 = vunpack.c.l.b16 %v2632
    %v2997 = vunpack.c.h.b16 %v2632
    %v2998 = vunpack.c.l.b16 %v2633
    %v2999 = vunpack.c.h.b16 %v2633
    %v3000 = vunpack.c.l.b16 %v2634
    %v3001 = vunpack.c.h.b16 %v2634
    %v3002 = vunpack.c.l.b16 %v2635
    %v3003 = vunpack.c.h.b16 %v2635
    %v3004 = vunpack.c.l.b16 %v2636
    %v3005 = vunpack.c.h.b16 %v2636
    %v3006 = vunpack.c.l.b16 %v2637
    %v3007 = vunpack.c.h.b16 %v2637
    %v3008 = vunpack.c.l.b16 %v2638
    %v3009 = vunpack.c.h.b16 %v2638
    %v3010 = vunpack.c.l.b16 %v2639
    %v3011 = vunpack.c.h.b16 %v2639
    %v3012 = vunpack.c.l.b16 %v2640
    %v3013 = vunpack.c.h.b16 %v2640
    %v3014 = vunpack.c.l.b16 %v2641
    %v3015 = vunpack.c.h.b16 %v2641
    %v3016 = vunpack.c.l.b16 %v2642
    %v3017 = vunpack.c.h.b16 %v2642
    %v3018 = vunpack.c.l.b16 %v2643
    %v3019 = vunpack.c.h.b16 %v2643
    %v3020 = vunpack.c.l.b16 %v2644
    %v3021 = vunpack.c.h.b16 %v2644
    %v3022 = vunpack.c.l.b16 %v2645
    %v3023 = vunpack.c.h.b16 %v2645
    %v3024 = vunpack.c.l.b16 %v2646
    %v3025 = vunpack.c.h.b16 %v2646
    %v3026 = vunpack.c.l.b16 %v2647
    %v3027 = vunpack.c.h.b16 %v2647
    %v3028 = vunpack.c.l.b16 %v2648
    %v3029 = vunpack.c.h.b16 %v2648
    %v3030 = vunpack.c.l.b16 %v2649
    %v3031 = vunpack.c.h.b16 %v2649
    %v3032 = vunpack.c.l.b16 %v2650
    %v3033 = vunpack.c.h.b16 %v2650
    %v3034 = vunpack.c.l.b16 %v2651
    %v3035 = vunpack.c.h.b16 %v2651
    %v3036 = vpack.c.b16 %v2788, %v2780
    %v3037 = vpack.c.b16 %v2789, %v2781
    %v3038 = vpack.c.b16 %v2790, %v2782
    %v3039 = vpack.c.b16 %v2791, %v2783
    %v3040 = vpack.c.b16 %v2792, %v2784
    %v3041 = vpack.c.b16 %v2793, %v2785
    %v3042 = vpack.c.b16 %v2794, %v2786
    %v3043 = vpack.c.b16 %v2795, %v2787
    %v3044 = vpack.c.b16 %v2804, %v2796
    %v3045 = vpack.c.b16 %v2805, %v2797
    %v3046 = vpack.c.b16 %v2806, %v2798
    %v3047 = vpack.c.b16 %v2807, %v2799
    %v3048 = vpack.c.b16 %v2808, %v2800
    %v3049 = vpack.c.b16 %v2809, %v2801
    %v3050 = vpack.c.b16 %v2810, %v2802
    %v3051 = vpack.c.b16 %v2811, %v2803
    %v3052 = vpack.c.b16 %v2820, %v2812
    %v3053 = vpack.c.b16 %v2821, %v2813
    %v3054 = vpack.c.b16 %v2822, %v2814
    %v3055 = vpack.c.b16 %v2823, %v2815
    %v3056 = vpack.c.b16 %v2824, %v2816
    %v3057 = vpack.c.b16 %v2825, %v2817
    %v3058 = vpack.c.b16 %v2826, %v2818
    %v3059 = vpack.c.b16 %v2827, %v2819
    %v3060 = vpack.c.b16 %v2836, %v2828
    %v3061 = vpack.c.b16 %v2837, %v2829
    %v3062 = vpack.c.b16 %v2838, %v2830
    %v3063 = vpack.c.b16 %v2839, %v2831
    %v3064 = vpack.c.b16 %v2840, %v2832
    %v3065 = vpack.c.b16 %v2841, %v2833
    %v3066 = vpack.c.b16 %v2842, %v2834
    %v3067 = vpack.c.b16 %v2843, %v2835
    %v3068 = vpack.c.b16 %v2852, %v2844
    %v3069 = vpack.c.b16 %v2853, %v2845
    %v3070 = vpack.c.b16 %v2854, %v2846
    %v3071 = vpack.c.b16 %v2855, %v2847
    %v3072 = vpack.c.b16 %v2856, %v2848
    %v3073 = vpack.c.b16 %v2857, %v2849
    %v3074 = vpack.c.b16 %v2858, %v2850
    %v3075 = vpack.c.b16 %v2859, %v2851
    %v3076 = vpack.c.b16 %v2868, %v2860
    %v3077 = vpack.c.b16 %v2869, %v2861
    %v3078 = vpack.c.b16 %v2870, %v2862
    %v3079 = vpack.c.b16 %v2871, %v2863
    %v3080 = vpack.c.b16 %v2872, %v2864
    %v3081 = vpack.c.b16 %v2873, %v2865
    %v3082 = vpack.c.b16 %v2874, %v2866
    %v3083 = vpack.c.b16 %v2875, %v2867
    %v3084 = vpack.c.b16 %v2884, %v2876
    %v3085 = vpack.c.b16 %v2885, %v2877
    %v3086 = vpack.c.b16 %v2886, %v2878
    %v3087 = vpack.c.b16 %v2887, %v2879
    %v3088 = vpack.c.b16 %v2888, %v2880
    %v3089 = vpack.c.b16 %v2889, %v2881
    %v3090 = vpack.c.b16 %v2890, %v2882
    %v3091 = vpack.c.b16 %v2891, %v2883
    %v3092 = vpack.c.b16 %v2900, %v2892
    %v3093 = vpack.c.b16 %v2901, %v2893
    %v3094 = vpack.c.b16 %v2902, %v2894
    %v3095 = vpack.c.b16 %v2903, %v2895
    %v3096 = vpack.c.b16 %v2904, %v2896
    %v3097 = vpack.c.b16 %v2905, %v2897
    %v3098 = vpack.c.b16 %v2906, %v2898
    %v3099 = vpack.c.b16 %v2907, %v2899
    %v3100 = vpack.c.b16 %v2916, %v2908
    %v3101 = vpack.c.b16 %v2917, %v2909
    %v3102 = vpack.c.b16 %v2918, %v2910
    %v3103 = vpack.c.b16 %v2919, %v2911
    %v3104 = vpack.c.b16 %v2920, %v2912
    %v3105 = vpack.c.b16 %v2921, %v2913
    %v3106 = vpack.c.b16 %v2922, %v2914
    %v3107 = vpack.c.b16 %v2923, %v2915
    %v3108 = vpack.c.b16 %v2932, %v2924
    %v3109 = vpack.c.b16 %v2933, %v2925
    %v3110 = vpack.c.b16 %v2934, %v2926
    %v3111 = vpack.c.b16 %v2935, %v2927
    %v3112 = vpack.c.b16 %v2936, %v2928
    %v3113 = vpack.c.b16 %v2937, %v2929
    %v3114 = vpack.c.b16 %v2938, %v2930
    %v3115 = vpack.c.b16 %v2939, %v2931
    %v3116 = vpack.c.b16 %v2948, %v2940
    %v3117 = vpack.c.b16 %v2949, %v2941
    %v3118 = vpack.c.b16 %v2950, %v2942
    %v3119 = vpack.c.b16 %v2951, %v2943
    %v3120 = vpack.c.b16 %v2952, %v2944
    %v3121 = vpack.c.b16 %v2953, %v2945
    %v3122 = vpack.c.b16 %v2954, %v2946
    %v3123 = vpack.c.b16 %v2955, %v2947
    %v3124 = vpack.c.b16 %v2964, %v2956
    %v3125 = vpack.c.b16 %v2965, %v2957
    %v3126 = vpack.c.b16 %v2966, %v2958
    %v3127 = vpack.c.b16 %v2967, %v2959
    %v3128 = vpack.c.b16 %v2968, %v2960
    %v3129 = vpack.c.b16 %v2969, %v2961
    %v3130 = vpack.c.b16 %v2970, %v2962
    %v3131 = vpack.c.b16 %v2971, %v2963
    %v3132 = vpack.c.b16 %v2980, %v2972
    %v3133 = vpack.c.b16 %v2981, %v2973
    %v3134 = vpack.c.b16 %v2982, %v2974
    %v3135 = vpack.c.b16 %v2983, %v2975
    %v3136 = vpack.c.b16 %v2984, %v2976
    %v3137 = vpack.c.b16 %v2985, %v2977
    %v3138 = vpack.c.b16 %v2986, %v2978
    %v3139 = vpack.c.b16 %v2987, %v2979
    %v3140 = vpack.c.b16 %v2996, %v2988
    %v3141 = vpack.c.b16 %v2997, %v2989
    %v3142 = vpack.c.b16 %v2998, %v2990
    %v3143 = vpack.c.b16 %v2999, %v2991
    %v3144 = vpack.c.b16 %v3000, %v2992
    %v3145 = vpack.c.b16 %v3001, %v2993
    %v3146 = vpack.c.b16 %v3002, %v2994
    %v3147 = vpack.c.b16 %v3003, %v2995
    %v3148 = vpack.c.b16 %v3012, %v3004
    %v3149 = vpack.c.b16 %v3013, %v3005
    %v3150 = vpack.c.b16 %v3014, %v3006
    %v3151 = vpack.c.b16 %v3015, %v3007
    %v3152 = vpack.c.b16 %v3016, %v3008
    %v3153 = vpack.c.b16 %v3017, %v3009
    %v3154 = vpack.c.b16 %v3018, %v3010
    %v3155 = vpack.c.b16 %v3019, %v3011
    %v3156 = vpack.c.b16 %v3028, %v3020
    %v3157 = vpack.c.b16 %v3029, %v3021
    %v3158 = vpack.c.b16 %v3030, %v3022
    %v3159 = vpack.c.b16 %v3031, %v3023
    %v3160 = vpack.c.b16 %v3032, %v3024
    %v3161 = vpack.c.b16 %v3033, %v3025
    %v3162 = vpack.c.b16 %v3034, %v3026
    %v3163 = vpack.c.b16 %v3035, %v3027
    %3292 = vmatprep.subr.bf16.mxu0 %v3037
    %3293 = vmatpush1.bf16.msra.mxu0 %v3036
    %3294 = vmatprep.subr.bf16.mxu0 %v3045
    %3295 = vmatpush1.bf16.msra.mxu0 %v3044
    %3296 = vmatprep.subr.bf16.mxu0 %v3053
    %3297 = vmatpush1.bf16.msra.mxu0 %v3052
    %3298 = vmatprep.subr.bf16.mxu0 %v3061
    %3299 = vmatpush1.bf16.msra.mxu0 %v3060
    %3300 = vmatprep.subr.bf16.mxu0 %v3069
    %3301 = vmatpush1.bf16.msra.mxu0 %v3068
    %3302 = vmatprep.subr.bf16.mxu0 %v3077
    %3303 = vmatpush1.bf16.msra.mxu0 %v3076
    %3304 = vmatprep.subr.bf16.mxu0 %v3085
    %3305 = vmatpush1.bf16.msra.mxu0 %v3084
    %3306 = vmatprep.subr.bf16.mxu0 %v3093
    %3307 = vmatpush1.bf16.msra.mxu0 %v3092
    %3308 = vmatprep.subr.bf16.mxu0 %v3101
    %3309 = vmatpush1.bf16.msra.mxu0 %v3100
    %3310 = vmatprep.subr.bf16.mxu0 %v3109
    %3311 = vmatpush1.bf16.msra.mxu0 %v3108
    %3312 = vmatprep.subr.bf16.mxu0 %v3117
    %3313 = vmatpush1.bf16.msra.mxu0 %v3116
    %3314 = vmatprep.subr.bf16.mxu0 %v3125
    %3315 = vmatpush1.bf16.msra.mxu0 %v3124
    %3316 = vmatprep.subr.bf16.mxu0 %v3133
    %3317 = vmatpush1.bf16.msra.mxu0 %v3132
    %3318 = vmatprep.subr.bf16.mxu0 %v3141
    %3319 = vmatpush1.bf16.msra.mxu0 %v3140
    %3320 = vmatprep.subr.bf16.mxu0 %v3149
    %3321 = vmatpush1.bf16.msra.mxu0 %v3148
    %3322 = vmatprep.subr.bf16.mxu0 %v3157
    %3323 = vmatpush1.bf16.msra.mxu0 %v3156
    %3324 = vmatprep.mubr.bf16.mxu0 %v2523
    %3325 = vmatmul.mubr.bf16.gmra.mrb[0].mxu0 %v2522
    %v3326 = vpop.f32.mrb[0].mxu0
    %v3327 = vadd.f32 0.0, %v3326
    %v3328 = vpop.f32.mrb[0].mxu0
    %v3329 = vadd.f32 0.0, %v3328
    %v3330 = vpop.f32.mrb[0].mxu0
    %v3331 = vpop.f32.mrb[0].mxu0
    %3332 = vdwg.mxu0
    %3333 = vmatprep.subr.bf16.mxu0 %v3039
    %3334 = vmatpush1.bf16.msra.mxu0 %v3038
    %3335 = vmatprep.subr.bf16.mxu0 %v3047
    %3336 = vmatpush1.bf16.msra.mxu0 %v3046
    %3337 = vmatprep.subr.bf16.mxu0 %v3055
    %3338 = vmatpush1.bf16.msra.mxu0 %v3054
    %3339 = vmatprep.subr.bf16.mxu0 %v3063
    %3340 = vmatpush1.bf16.msra.mxu0 %v3062
    %3341 = vmatprep.subr.bf16.mxu0 %v3071
    %3342 = vmatpush1.bf16.msra.mxu0 %v3070
    %3343 = vmatprep.subr.bf16.mxu0 %v3079
    %3344 = vmatpush1.bf16.msra.mxu0 %v3078
    %3345 = vmatprep.subr.bf16.mxu0 %v3087
    %3346 = vmatpush1.bf16.msra.mxu0 %v3086
    %3347 = vmatprep.subr.bf16.mxu0 %v3095
    %3348 = vmatpush1.bf16.msra.mxu0 %v3094
    %3349 = vmatprep.subr.bf16.mxu0 %v3103
    %3350 = vmatpush1.bf16.msra.mxu0 %v3102
    %3351 = vmatprep.subr.bf16.mxu0 %v3111
    %3352 = vmatpush1.bf16.msra.mxu0 %v3110
    %3353 = vmatprep.subr.bf16.mxu0 %v3119
    %3354 = vmatpush1.bf16.msra.mxu0 %v3118
    %3355 = vmatprep.subr.bf16.mxu0 %v3127
    %3356 = vmatpush1.bf16.msra.mxu0 %v3126
    %3357 = vmatprep.subr.bf16.mxu0 %v3135
    %3358 = vmatpush1.bf16.msra.mxu0 %v3134
    %3359 = vmatprep.subr.bf16.mxu0 %v3143
    %3360 = vmatpush1.bf16.msra.mxu0 %v3142
    %3361 = vmatprep.subr.bf16.mxu0 %v3151
    %3362 = vmatpush1.bf16.msra.mxu0 %v3150
    %3363 = vmatprep.subr.bf16.mxu0 %v3159
    %3364 = vmatpush1.bf16.msra.mxu0 %v3158
    %3365 = vmatprep.mubr.bf16.mxu0 %v2523
    %3366 = vmatmul.mubr.bf16.gmra.mrb[0].mxu0 %v2522
    %v3367 = vpop.f32.mrb[0].mxu0
    %v3368 = vadd.f32 0.0, %v3367
    %v3369 = vpop.f32.mrb[0].mxu0
    %v3370 = vadd.f32 0.0, %v3369
    %v3371 = vpop.f32.mrb[0].mxu0
    %v3372 = vpop.f32.mrb[0].mxu0
    %3373 = vdwg.mxu0
    %3374 = vmatprep.subr.bf16.mxu0 %v3041
    %3375 = vmatpush1.bf16.msra.mxu0 %v3040
    %3376 = vmatprep.subr.bf16.mxu0 %v3049
    %3377 = vmatpush1.bf16.msra.mxu0 %v3048
    %3378 = vmatprep.subr.bf16.mxu0 %v3057
    %3379 = vmatpush1.bf16.msra.mxu0 %v3056
    %3380 = vmatprep.subr.bf16.mxu0 %v3065
    %3381 = vmatpush1.bf16.msra.mxu0 %v3064
    %3382 = vmatprep.subr.bf16.mxu0 %v3073
    %3383 = vmatpush1.bf16.msra.mxu0 %v3072
    %3384 = vmatprep.subr.bf16.mxu0 %v3081
    %3385 = vmatpush1.bf16.msra.mxu0 %v3080
    %3386 = vmatprep.subr.bf16.mxu0 %v3089
    %3387 = vmatpush1.bf16.msra.mxu0 %v3088
    %3388 = vmatprep.subr.bf16.mxu0 %v3097
    %3389 = vmatpush1.bf16.msra.mxu0 %v3096
    %3390 = vmatprep.subr.bf16.mxu0 %v3105
    %3391 = vmatpush1.bf16.msra.mxu0 %v3104
    %3392 = vmatprep.subr.bf16.mxu0 %v3113
    %3393 = vmatpush1.bf16.msra.mxu0 %v3112
    %3394 = vmatprep.subr.bf16.mxu0 %v3121
    %3395 = vmatpush1.bf16.msra.mxu0 %v3120
    %3396 = vmatprep.subr.bf16.mxu0 %v3129
    %3397 = vmatpush1.bf16.msra.mxu0 %v3128
    %3398 = vmatprep.subr.bf16.mxu0 %v3137
    %3399 = vmatpush1.bf16.msra.mxu0 %v3136
    %3400 = vmatprep.subr.bf16.mxu0 %v3145
    %3401 = vmatpush1.bf16.msra.mxu0 %v3144
    %3402 = vmatprep.subr.bf16.mxu0 %v3153
    %3403 = vmatpush1.bf16.msra.mxu0 %v3152
    %3404 = vmatprep.subr.bf16.mxu0 %v3161
    %3405 = vmatpush1.bf16.msra.mxu0 %v3160
    %3406 = vmatprep.mubr.bf16.mxu0 %v2523
    %3407 = vmatmul.mubr.bf16.gmra.mrb[0].mxu0 %v2522
    %v3408 = vpop.f32.mrb[0].mxu0
    %v3409 = vadd.f32 0.0, %v3408
    %v3410 = vpop.f32.mrb[0].mxu0
    %v3411 = vadd.f32 0.0, %v3410
    %v3412 = vpop.f32.mrb[0].mxu0
    %v3413 = vpop.f32.mrb[0].mxu0
    %3414 = vdwg.mxu0
    %3415 = vmatprep.subr.bf16.mxu0 %v3043
    %3416 = vmatpush1.bf16.msra.mxu0 %v3042
    %3417 = vmatprep.subr.bf16.mxu0 %v3051
    %3418 = vmatpush1.bf16.msra.mxu0 %v3050
    %3419 = vmatprep.subr.bf16.mxu0 %v3059
    %3420 = vmatpush1.bf16.msra.mxu0 %v3058
    %3421 = vmatprep.subr.bf16.mxu0 %v3067
    %3422 = vmatpush1.bf16.msra.mxu0 %v3066
    %3423 = vmatprep.subr.bf16.mxu0 %v3075
    %3424 = vmatpush1.bf16.msra.mxu0 %v3074
    %3425 = vmatprep.subr.bf16.mxu0 %v3083
    %3426 = vmatpush1.bf16.msra.mxu0 %v3082
    %3427 = vmatprep.subr.bf16.mxu0 %v3091
    %3428 = vmatpush1.bf16.msra.mxu0 %v3090
    %3429 = vmatprep.subr.bf16.mxu0 %v3099
    %3430 = vmatpush1.bf16.msra.mxu0 %v3098
    %3431 = vmatprep.subr.bf16.mxu0 %v3107
    %3432 = vmatpush1.bf16.msra.mxu0 %v3106
    %3433 = vmatprep.subr.bf16.mxu0 %v3115
    %3434 = vmatpush1.bf16.msra.mxu0 %v3114
    %3435 = vmatprep.subr.bf16.mxu0 %v3123
    %3436 = vmatpush1.bf16.msra.mxu0 %v3122
    %3437 = vmatprep.subr.bf16.mxu0 %v3131
    %3438 = vmatpush1.bf16.msra.mxu0 %v3130
    %3439 = vmatprep.subr.bf16.mxu0 %v3139
    %3440 = vmatpush1.bf16.msra.mxu0 %v3138
    %3441 = vmatprep.subr.bf16.mxu0 %v3147
    %3442 = vmatpush1.bf16.msra.mxu0 %v3146
    %3443 = vmatprep.subr.bf16.mxu0 %v3155
    %3444 = vmatpush1.bf16.msra.mxu0 %v3154
    %3445 = vmatprep.subr.bf16.mxu0 %v3163
    %3446 = vmatpush1.bf16.msra.mxu0 %v3162
    %3447 = vmatprep.mubr.bf16.mxu0 %v2523
    %3448 = vmatmul.mubr.bf16.gmra.mrb[0].mxu0 %v2522
    %v3449 = vpop.f32.mrb[0].mxu0
    %v3450 = vadd.f32 0.0, %v3449
    %v3451 = vpop.f32.mrb[0].mxu0
    %v3452 = vadd.f32 0.0, %v3451
    %v3453 = vpop.f32.mrb[0].mxu0
    %v3454 = vpop.f32.mrb[0].mxu0
    %3455 = vdwg.mxu0
    %s3456 = scalar_lea.vmem [#allocation3], 96
    %v3457 = vld [vmem:[%s3456] sm:$0xff]
    %v3458 = vld [vmem:[%s3456 + $0x8] sm:$0xff]
    %v3459 = vld [vmem:[%s3456 + $0x10] sm:$0xff]
    %v3460 = vld [vmem:[%s3456 + $0x18] sm:$0xff]
    %v3461 = vadd.f32 %v3327, %v3457
    %v3462 = vadd.f32 %v3329, %v3458
    %v3463 = vadd.f32 %v3368, %v3459
    %v3464 = vadd.f32 %v3370, %v3460
    %v3465 = vadd.f32 %v3409, %v1455
    %v3466 = vadd.f32 %v3411, %v1459
    %v3467 = vadd.f32 %v3450, %v1463
    %v3468 = vadd.f32 %v3452, %v1467
    %v3469 = vxor.u32 %v3461, 2147483648
    %v3470 = vmul.f32 %v3469, 1.442695
    %v3471 = vpow.pop %v3470
    %v3472 = vadd.f32 %v3471, 1.0
    %v3473 = vrcp.pop %v3472
    %v3474 = vmul.f32 1.0, %v3473
    %v3475 = vxor.u32 %v3462, 2147483648
    %v3476 = vmul.f32 %v3475, 1.442695
    %v3477 = vpow.pop %v3476
    %v3478 = vadd.f32 %v3477, 1.0
    %v3479 = vrcp.pop %v3478
    %v3480 = vmul.f32 1.0, %v3479
    %v3481 = vtanh.pop %v3463
    %v3482 = vxor.u32 %v3464, 2147483648
    %v3483 = vmul.f32 %v3482, 1.442695
    %v3484 = vpow.pop %v3483
    %v3485 = vadd.f32 %v3484, 1.0
    %v3486 = vrcp.pop %v3485
    %v3487 = vmul.f32 1.0, %v3486
    %v3488 = vmul.f32 %v3480, %v2493
    %v3489 = vmul.f32 %v3474, %v3481
    %v3490 = vadd.f32 %v3488, %v3489
    %v3491 = vtanh.pop %v3490
    %v3492 = vmul.f32 %v3487, %v3491
    %v3493 = vxor.u32 %v3465, 2147483648
    %v3494 = vmul.f32 %v3493, 1.442695
    %v3495 = vpow.pop %v3494
    %v3496 = vadd.f32 %v3495, 1.0
    %v3497 = vrcp.pop %v3496
    %v3498 = vmul.f32 1.0, %v3497
    %v3499 = vxor.u32 %v3466, 2147483648
    %v3500 = vmul.f32 %v3499, 1.442695
    %v3501 = vpow.pop %v3500
    %v3502 = vadd.f32 %v3501, 1.0
    %v3503 = vrcp.pop %v3502
    %v3504 = vmul.f32 1.0, %v3503
    %v3505 = vtanh.pop %v3467
    %v3506 = vxor.u32 %v3468, 2147483648
    %v3507 = vmul.f32 %v3506, 1.442695
    %v3508 = vpow.pop %v3507
    %v3509 = vadd.f32 %v3508, 1.0
    %v3510 = vrcp.pop %v3509
    %v3511 = vmul.f32 1.0, %v3510
    %v3512 = vmul.f32 %v3504, %v2517
    %v3513 = vmul.f32 %v3498, %v3505
    %v3514 = vadd.f32 %v3512, %v3513
    %v3515 = vtanh.pop %v3514
    %v3516 = vmul.f32 %v3511, %v3515
    %s3517 = scalar_lea.vmem [#allocation2], 16
    %3518 = vst [vmem:[%s3517] sm:$0xff] %v3516
    %v3519 = vpack.c.bf16 %v3492, %v3492
    %v3520 = vpack.c.bf16 %v3516, %v3516
    %v3521 = vld [vmem:[#allocation11] sm:$0xff]
    %v3522 = vld [vmem:[#allocation11 + $0x8] sm:$0xff]
    %v3523 = vld [vmem:[#allocation11 + $0x10] sm:$0xff]
    %v3524 = vld [vmem:[#allocation11 + $0x18] sm:$0xff]
    %v3525 = vld [vmem:[#allocation11 + $0x20] sm:$0xff]
    %v3526 = vld [vmem:[#allocation11 + $0x28] sm:$0xff]
    %v3527 = vld [vmem:[#allocation11 + $0x30] sm:$0xff]
    %v3528 = vld [vmem:[#allocation11 + $0x38] sm:$0xff]
    %v3529 = vld [vmem:[#allocation11 + $0x40] sm:$0xff]
    %v3530 = vld [vmem:[#allocation11 + $0x48] sm:$0xff]
    %v3531 = vld [vmem:[#allocation11 + $0x50] sm:$0xff]
    %v3532 = vld [vmem:[#allocation11 + $0x58] sm:$0xff]
    %v3533 = vld [vmem:[#allocation11 + $0x60] sm:$0xff]
    %v3534 = vld [vmem:[#allocation11 + $0x68] sm:$0xff]
    %v3535 = vld [vmem:[#allocation11 + $0x70] sm:$0xff]
    %v3536 = vld [vmem:[#allocation11 + $0x78] sm:$0xff]
    %v3537 = vld [vmem:[#allocation11 + $0x80] sm:$0xff]
    %v3538 = vld [vmem:[#allocation11 + $0x88] sm:$0xff]
    %v3539 = vld [vmem:[#allocation11 + $0x90] sm:$0xff]
    %v3540 = vld [vmem:[#allocation11 + $0x98] sm:$0xff]
    %v3541 = vld [vmem:[#allocation11 + $0xa0] sm:$0xff]
    %v3542 = vld [vmem:[#allocation11 + $0xa8] sm:$0xff]
    %v3543 = vld [vmem:[#allocation11 + $0xb0] sm:$0xff]
    %v3544 = vld [vmem:[#allocation11 + $0xb8] sm:$0xff]
    %v3545 = vld [vmem:[#allocation11 + $0xc0] sm:$0xff]
    %v3546 = vld [vmem:[#allocation11 + $0xc8] sm:$0xff]
    %v3547 = vld [vmem:[#allocation11 + $0xd0] sm:$0xff]
    %v3548 = vld [vmem:[#allocation11 + $0xd8] sm:$0xff]
    %v3549 = vld [vmem:[#allocation11 + $0xe0] sm:$0xff]
    %v3550 = vld [vmem:[#allocation11 + $0xe8] sm:$0xff]
    %v3551 = vld [vmem:[#allocation11 + $0xf0] sm:$0xff]
    %v3552 = vld [vmem:[#allocation11 + $0xf8] sm:$0xff]
    %v3553 = vld [vmem:[#allocation11 + $0x100] sm:$0xff]
    %v3554 = vld [vmem:[#allocation11 + $0x108] sm:$0xff]
    %v3555 = vld [vmem:[#allocation11 + $0x110] sm:$0xff]
    %v3556 = vld [vmem:[#allocation11 + $0x118] sm:$0xff]
    %v3557 = vld [vmem:[#allocation11 + $0x120] sm:$0xff]
    %v3558 = vld [vmem:[#allocation11 + $0x128] sm:$0xff]
    %v3559 = vld [vmem:[#allocation11 + $0x130] sm:$0xff]
    %v3560 = vld [vmem:[#allocation11 + $0x138] sm:$0xff]
    %v3561 = vld [vmem:[#allocation11 + $0x140] sm:$0xff]
    %v3562 = vld [vmem:[#allocation11 + $0x148] sm:$0xff]
    %v3563 = vld [vmem:[#allocation11 + $0x150] sm:$0xff]
    %v3564 = vld [vmem:[#allocation11 + $0x158] sm:$0xff]
    %v3565 = vld [vmem:[#allocation11 + $0x160] sm:$0xff]
    %v3566 = vld [vmem:[#allocation11 + $0x168] sm:$0xff]
    %v3567 = vld [vmem:[#allocation11 + $0x170] sm:$0xff]
    %v3568 = vld [vmem:[#allocation11 + $0x178] sm:$0xff]
    %v3569 = vld [vmem:[#allocation11 + $0x180] sm:$0xff]
    %v3570 = vld [vmem:[#allocation11 + $0x188] sm:$0xff]
    %v3571 = vld [vmem:[#allocation11 + $0x190] sm:$0xff]
    %v3572 = vld [vmem:[#allocation11 + $0x198] sm:$0xff]
    %v3573 = vld [vmem:[#allocation11 + $0x1a0] sm:$0xff]
    %v3574 = vld [vmem:[#allocation11 + $0x1a8] sm:$0xff]
    %v3575 = vld [vmem:[#allocation11 + $0x1b0] sm:$0xff]
    %v3576 = vld [vmem:[#allocation11 + $0x1b8] sm:$0xff]
    %v3577 = vld [vmem:[#allocation11 + $0x1c0] sm:$0xff]
    %v3578 = vld [vmem:[#allocation11 + $0x1c8] sm:$0xff]
    %v3579 = vld [vmem:[#allocation11 + $0x1d0] sm:$0xff]
    %v3580 = vld [vmem:[#allocation11 + $0x1d8] sm:$0xff]
    %v3581 = vld [vmem:[#allocation11 + $0x1e0] sm:$0xff]
    %v3582 = vld [vmem:[#allocation11 + $0x1e8] sm:$0xff]
    %v3583 = vld [vmem:[#allocation11 + $0x1f0] sm:$0xff]
    %v3584 = vld [vmem:[#allocation11 + $0x1f8] sm:$0xff]
    %v3585 = vld [vmem:[#allocation11 + $0x200] sm:$0xff]
    %v3586 = vld [vmem:[#allocation11 + $0x208] sm:$0xff]
    %v3587 = vld [vmem:[#allocation11 + $0x210] sm:$0xff]
    %v3588 = vld [vmem:[#allocation11 + $0x218] sm:$0xff]
    %v3589 = vld [vmem:[#allocation11 + $0x220] sm:$0xff]
    %v3590 = vld [vmem:[#allocation11 + $0x228] sm:$0xff]
    %v3591 = vld [vmem:[#allocation11 + $0x230] sm:$0xff]
    %v3592 = vld [vmem:[#allocation11 + $0x238] sm:$0xff]
    %v3593 = vld [vmem:[#allocation11 + $0x240] sm:$0xff]
    %v3594 = vld [vmem:[#allocation11 + $0x248] sm:$0xff]
    %v3595 = vld [vmem:[#allocation11 + $0x250] sm:$0xff]
    %v3596 = vld [vmem:[#allocation11 + $0x258] sm:$0xff]
    %v3597 = vld [vmem:[#allocation11 + $0x260] sm:$0xff]
    %v3598 = vld [vmem:[#allocation11 + $0x268] sm:$0xff]
    %v3599 = vld [vmem:[#allocation11 + $0x270] sm:$0xff]
    %v3600 = vld [vmem:[#allocation11 + $0x278] sm:$0xff]
    %v3601 = vld [vmem:[#allocation11 + $0x280] sm:$0xff]
    %v3602 = vld [vmem:[#allocation11 + $0x288] sm:$0xff]
    %v3603 = vld [vmem:[#allocation11 + $0x290] sm:$0xff]
    %v3604 = vld [vmem:[#allocation11 + $0x298] sm:$0xff]
    %v3605 = vld [vmem:[#allocation11 + $0x2a0] sm:$0xff]
    %v3606 = vld [vmem:[#allocation11 + $0x2a8] sm:$0xff]
    %v3607 = vld [vmem:[#allocation11 + $0x2b0] sm:$0xff]
    %v3608 = vld [vmem:[#allocation11 + $0x2b8] sm:$0xff]
    %v3609 = vld [vmem:[#allocation11 + $0x2c0] sm:$0xff]
    %v3610 = vld [vmem:[#allocation11 + $0x2c8] sm:$0xff]
    %v3611 = vld [vmem:[#allocation11 + $0x2d0] sm:$0xff]
    %v3612 = vld [vmem:[#allocation11 + $0x2d8] sm:$0xff]
    %v3613 = vld [vmem:[#allocation11 + $0x2e0] sm:$0xff]
    %v3614 = vld [vmem:[#allocation11 + $0x2e8] sm:$0xff]
    %v3615 = vld [vmem:[#allocation11 + $0x2f0] sm:$0xff]
    %v3616 = vld [vmem:[#allocation11 + $0x2f8] sm:$0xff]
    %v3617 = vld [vmem:[#allocation11 + $0x300] sm:$0xff]
    %v3618 = vld [vmem:[#allocation11 + $0x308] sm:$0xff]
    %v3619 = vld [vmem:[#allocation11 + $0x310] sm:$0xff]
    %v3620 = vld [vmem:[#allocation11 + $0x318] sm:$0xff]
    %v3621 = vld [vmem:[#allocation11 + $0x320] sm:$0xff]
    %v3622 = vld [vmem:[#allocation11 + $0x328] sm:$0xff]
    %v3623 = vld [vmem:[#allocation11 + $0x330] sm:$0xff]
    %v3624 = vld [vmem:[#allocation11 + $0x338] sm:$0xff]
    %v3625 = vld [vmem:[#allocation11 + $0x340] sm:$0xff]
    %v3626 = vld [vmem:[#allocation11 + $0x348] sm:$0xff]
    %v3627 = vld [vmem:[#allocation11 + $0x350] sm:$0xff]
    %v3628 = vld [vmem:[#allocation11 + $0x358] sm:$0xff]
    %v3629 = vld [vmem:[#allocation11 + $0x360] sm:$0xff]
    %v3630 = vld [vmem:[#allocation11 + $0x368] sm:$0xff]
    %v3631 = vld [vmem:[#allocation11 + $0x370] sm:$0xff]
    %v3632 = vld [vmem:[#allocation11 + $0x378] sm:$0xff]
    %v3633 = vld [vmem:[#allocation11 + $0x380] sm:$0xff]
    %v3634 = vld [vmem:[#allocation11 + $0x388] sm:$0xff]
    %v3635 = vld [vmem:[#allocation11 + $0x390] sm:$0xff]
    %v3636 = vld [vmem:[#allocation11 + $0x398] sm:$0xff]
    %v3637 = vld [vmem:[#allocation11 + $0x3a0] sm:$0xff]
    %v3638 = vld [vmem:[#allocation11 + $0x3a8] sm:$0xff]
    %v3639 = vld [vmem:[#allocation11 + $0x3b0] sm:$0xff]
    %v3640 = vld [vmem:[#allocation11 + $0x3b8] sm:$0xff]
    %v3641 = vld [vmem:[#allocation11 + $0x3c0] sm:$0xff]
    %v3642 = vld [vmem:[#allocation11 + $0x3c8] sm:$0xff]
    %v3643 = vld [vmem:[#allocation11 + $0x3d0] sm:$0xff]
    %v3644 = vld [vmem:[#allocation11 + $0x3d8] sm:$0xff]
    %v3645 = vld [vmem:[#allocation11 + $0x3e0] sm:$0xff]
    %v3646 = vld [vmem:[#allocation11 + $0x3e8] sm:$0xff]
    %v3647 = vld [vmem:[#allocation11 + $0x3f0] sm:$0xff]
    %v3648 = vld [vmem:[#allocation11 + $0x3f8] sm:$0xff]
    %v3777 = vunpack.c.l.b16 %v3521
    %v3778 = vunpack.c.h.b16 %v3521
    %v3779 = vunpack.c.l.b16 %v3522
    %v3780 = vunpack.c.h.b16 %v3522
    %v3781 = vunpack.c.l.b16 %v3523
    %v3782 = vunpack.c.h.b16 %v3523
    %v3783 = vunpack.c.l.b16 %v3524
    %v3784 = vunpack.c.h.b16 %v3524
    %v3785 = vunpack.c.l.b16 %v3525
    %v3786 = vunpack.c.h.b16 %v3525
    %v3787 = vunpack.c.l.b16 %v3526
    %v3788 = vunpack.c.h.b16 %v3526
    %v3789 = vunpack.c.l.b16 %v3527
    %v3790 = vunpack.c.h.b16 %v3527
    %v3791 = vunpack.c.l.b16 %v3528
    %v3792 = vunpack.c.h.b16 %v3528
    %v3793 = vunpack.c.l.b16 %v3529
    %v3794 = vunpack.c.h.b16 %v3529
    %v3795 = vunpack.c.l.b16 %v3530
    %v3796 = vunpack.c.h.b16 %v3530
    %v3797 = vunpack.c.l.b16 %v3531
    %v3798 = vunpack.c.h.b16 %v3531
    %v3799 = vunpack.c.l.b16 %v3532
    %v3800 = vunpack.c.h.b16 %v3532
    %v3801 = vunpack.c.l.b16 %v3533
    %v3802 = vunpack.c.h.b16 %v3533
    %v3803 = vunpack.c.l.b16 %v3534
    %v3804 = vunpack.c.h.b16 %v3534
    %v3805 = vunpack.c.l.b16 %v3535
    %v3806 = vunpack.c.h.b16 %v3535
    %v3807 = vunpack.c.l.b16 %v3536
    %v3808 = vunpack.c.h.b16 %v3536
    %v3809 = vunpack.c.l.b16 %v3537
    %v3810 = vunpack.c.h.b16 %v3537
    %v3811 = vunpack.c.l.b16 %v3538
    %v3812 = vunpack.c.h.b16 %v3538
    %v3813 = vunpack.c.l.b16 %v3539
    %v3814 = vunpack.c.h.b16 %v3539
    %v3815 = vunpack.c.l.b16 %v3540
    %v3816 = vunpack.c.h.b16 %v3540
    %v3817 = vunpack.c.l.b16 %v3541
    %v3818 = vunpack.c.h.b16 %v3541
    %v3819 = vunpack.c.l.b16 %v3542
    %v3820 = vunpack.c.h.b16 %v3542
    %v3821 = vunpack.c.l.b16 %v3543
    %v3822 = vunpack.c.h.b16 %v3543
    %v3823 = vunpack.c.l.b16 %v3544
    %v3824 = vunpack.c.h.b16 %v3544
    %v3825 = vunpack.c.l.b16 %v3545
    %v3826 = vunpack.c.h.b16 %v3545
    %v3827 = vunpack.c.l.b16 %v3546
    %v3828 = vunpack.c.h.b16 %v3546
    %v3829 = vunpack.c.l.b16 %v3547
    %v3830 = vunpack.c.h.b16 %v3547
    %v3831 = vunpack.c.l.b16 %v3548
    %v3832 = vunpack.c.h.b16 %v3548
    %v3833 = vunpack.c.l.b16 %v3549
    %v3834 = vunpack.c.h.b16 %v3549
    %v3835 = vunpack.c.l.b16 %v3550
    %v3836 = vunpack.c.h.b16 %v3550
    %v3837 = vunpack.c.l.b16 %v3551
    %v3838 = vunpack.c.h.b16 %v3551
    %v3839 = vunpack.c.l.b16 %v3552
    %v3840 = vunpack.c.h.b16 %v3552
    %v3841 = vunpack.c.l.b16 %v3553
    %v3842 = vunpack.c.h.b16 %v3553
    %v3843 = vunpack.c.l.b16 %v3554
    %v3844 = vunpack.c.h.b16 %v3554
    %v3845 = vunpack.c.l.b16 %v3555
    %v3846 = vunpack.c.h.b16 %v3555
    %v3847 = vunpack.c.l.b16 %v3556
    %v3848 = vunpack.c.h.b16 %v3556
    %v3849 = vunpack.c.l.b16 %v3557
    %v3850 = vunpack.c.h.b16 %v3557
    %v3851 = vunpack.c.l.b16 %v3558
    %v3852 = vunpack.c.h.b16 %v3558
    %v3853 = vunpack.c.l.b16 %v3559
    %v3854 = vunpack.c.h.b16 %v3559
    %v3855 = vunpack.c.l.b16 %v3560
    %v3856 = vunpack.c.h.b16 %v3560
    %v3857 = vunpack.c.l.b16 %v3561
    %v3858 = vunpack.c.h.b16 %v3561
    %v3859 = vunpack.c.l.b16 %v3562
    %v3860 = vunpack.c.h.b16 %v3562
    %v3861 = vunpack.c.l.b16 %v3563
    %v3862 = vunpack.c.h.b16 %v3563
    %v3863 = vunpack.c.l.b16 %v3564
    %v3864 = vunpack.c.h.b16 %v3564
    %v3865 = vunpack.c.l.b16 %v3565
    %v3866 = vunpack.c.h.b16 %v3565
    %v3867 = vunpack.c.l.b16 %v3566
    %v3868 = vunpack.c.h.b16 %v3566
    %v3869 = vunpack.c.l.b16 %v3567
    %v3870 = vunpack.c.h.b16 %v3567
    %v3871 = vunpack.c.l.b16 %v3568
    %v3872 = vunpack.c.h.b16 %v3568
    %v3873 = vunpack.c.l.b16 %v3569
    %v3874 = vunpack.c.h.b16 %v3569
    %v3875 = vunpack.c.l.b16 %v3570
    %v3876 = vunpack.c.h.b16 %v3570
    %v3877 = vunpack.c.l.b16 %v3571
    %v3878 = vunpack.c.h.b16 %v3571
    %v3879 = vunpack.c.l.b16 %v3572
    %v3880 = vunpack.c.h.b16 %v3572
    %v3881 = vunpack.c.l.b16 %v3573
    %v3882 = vunpack.c.h.b16 %v3573
    %v3883 = vunpack.c.l.b16 %v3574
    %v3884 = vunpack.c.h.b16 %v3574
    %v3885 = vunpack.c.l.b16 %v3575
    %v3886 = vunpack.c.h.b16 %v3575
    %v3887 = vunpack.c.l.b16 %v3576
    %v3888 = vunpack.c.h.b16 %v3576
    %v3889 = vunpack.c.l.b16 %v3577
    %v3890 = vunpack.c.h.b16 %v3577
    %v3891 = vunpack.c.l.b16 %v3578
    %v3892 = vunpack.c.h.b16 %v3578
    %v3893 = vunpack.c.l.b16 %v3579
    %v3894 = vunpack.c.h.b16 %v3579
    %v3895 = vunpack.c.l.b16 %v3580
    %v3896 = vunpack.c.h.b16 %v3580
    %v3897 = vunpack.c.l.b16 %v3581
    %v3898 = vunpack.c.h.b16 %v3581
    %v3899 = vunpack.c.l.b16 %v3582
    %v3900 = vunpack.c.h.b16 %v3582
    %v3901 = vunpack.c.l.b16 %v3583
    %v3902 = vunpack.c.h.b16 %v3583
    %v3903 = vunpack.c.l.b16 %v3584
    %v3904 = vunpack.c.h.b16 %v3584
    %v3905 = vunpack.c.l.b16 %v3585
    %v3906 = vunpack.c.h.b16 %v3585
    %v3907 = vunpack.c.l.b16 %v3586
    %v3908 = vunpack.c.h.b16 %v3586
    %v3909 = vunpack.c.l.b16 %v3587
    %v3910 = vunpack.c.h.b16 %v3587
    %v3911 = vunpack.c.l.b16 %v3588
    %v3912 = vunpack.c.h.b16 %v3588
    %v3913 = vunpack.c.l.b16 %v3589
    %v3914 = vunpack.c.h.b16 %v3589
    %v3915 = vunpack.c.l.b16 %v3590
    %v3916 = vunpack.c.h.b16 %v3590
    %v3917 = vunpack.c.l.b16 %v3591
    %v3918 = vunpack.c.h.b16 %v3591
    %v3919 = vunpack.c.l.b16 %v3592
    %v3920 = vunpack.c.h.b16 %v3592
    %v3921 = vunpack.c.l.b16 %v3593
    %v3922 = vunpack.c.h.b16 %v3593
    %v3923 = vunpack.c.l.b16 %v3594
    %v3924 = vunpack.c.h.b16 %v3594
    %v3925 = vunpack.c.l.b16 %v3595
    %v3926 = vunpack.c.h.b16 %v3595
    %v3927 = vunpack.c.l.b16 %v3596
    %v3928 = vunpack.c.h.b16 %v3596
    %v3929 = vunpack.c.l.b16 %v3597
    %v3930 = vunpack.c.h.b16 %v3597
    %v3931 = vunpack.c.l.b16 %v3598
    %v3932 = vunpack.c.h.b16 %v3598
    %v3933 = vunpack.c.l.b16 %v3599
    %v3934 = vunpack.c.h.b16 %v3599
    %v3935 = vunpack.c.l.b16 %v3600
    %v3936 = vunpack.c.h.b16 %v3600
    %v3937 = vunpack.c.l.b16 %v3601
    %v3938 = vunpack.c.h.b16 %v3601
    %v3939 = vunpack.c.l.b16 %v3602
    %v3940 = vunpack.c.h.b16 %v3602
    %v3941 = vunpack.c.l.b16 %v3603
    %v3942 = vunpack.c.h.b16 %v3603
    %v3943 = vunpack.c.l.b16 %v3604
    %v3944 = vunpack.c.h.b16 %v3604
    %v3945 = vunpack.c.l.b16 %v3605
    %v3946 = vunpack.c.h.b16 %v3605
    %v3947 = vunpack.c.l.b16 %v3606
    %v3948 = vunpack.c.h.b16 %v3606
    %v3949 = vunpack.c.l.b16 %v3607
    %v3950 = vunpack.c.h.b16 %v3607
    %v3951 = vunpack.c.l.b16 %v3608
    %v3952 = vunpack.c.h.b16 %v3608
    %v3953 = vunpack.c.l.b16 %v3609
    %v3954 = vunpack.c.h.b16 %v3609
    %v3955 = vunpack.c.l.b16 %v3610
    %v3956 = vunpack.c.h.b16 %v3610
    %v3957 = vunpack.c.l.b16 %v3611
    %v3958 = vunpack.c.h.b16 %v3611
    %v3959 = vunpack.c.l.b16 %v3612
    %v3960 = vunpack.c.h.b16 %v3612
    %v3961 = vunpack.c.l.b16 %v3613
    %v3962 = vunpack.c.h.b16 %v3613
    %v3963 = vunpack.c.l.b16 %v3614
    %v3964 = vunpack.c.h.b16 %v3614
    %v3965 = vunpack.c.l.b16 %v3615
    %v3966 = vunpack.c.h.b16 %v3615
    %v3967 = vunpack.c.l.b16 %v3616
    %v3968 = vunpack.c.h.b16 %v3616
    %v3969 = vunpack.c.l.b16 %v3617
    %v3970 = vunpack.c.h.b16 %v3617
    %v3971 = vunpack.c.l.b16 %v3618
    %v3972 = vunpack.c.h.b16 %v3618
    %v3973 = vunpack.c.l.b16 %v3619
    %v3974 = vunpack.c.h.b16 %v3619
    %v3975 = vunpack.c.l.b16 %v3620
    %v3976 = vunpack.c.h.b16 %v3620
    %v3977 = vunpack.c.l.b16 %v3621
    %v3978 = vunpack.c.h.b16 %v3621
    %v3979 = vunpack.c.l.b16 %v3622
    %v3980 = vunpack.c.h.b16 %v3622
    %v3981 = vunpack.c.l.b16 %v3623
    %v3982 = vunpack.c.h.b16 %v3623
    %v3983 = vunpack.c.l.b16 %v3624
    %v3984 = vunpack.c.h.b16 %v3624
    %v3985 = vunpack.c.l.b16 %v3625
    %v3986 = vunpack.c.h.b16 %v3625
    %v3987 = vunpack.c.l.b16 %v3626
    %v3988 = vunpack.c.h.b16 %v3626
    %v3989 = vunpack.c.l.b16 %v3627
    %v3990 = vunpack.c.h.b16 %v3627
    %v3991 = vunpack.c.l.b16 %v3628
    %v3992 = vunpack.c.h.b16 %v3628
    %v3993 = vunpack.c.l.b16 %v3629
    %v3994 = vunpack.c.h.b16 %v3629
    %v3995 = vunpack.c.l.b16 %v3630
    %v3996 = vunpack.c.h.b16 %v3630
    %v3997 = vunpack.c.l.b16 %v3631
    %v3998 = vunpack.c.h.b16 %v3631
    %v3999 = vunpack.c.l.b16 %v3632
    %v4000 = vunpack.c.h.b16 %v3632
    %v4001 = vunpack.c.l.b16 %v3633
    %v4002 = vunpack.c.h.b16 %v3633
    %v4003 = vunpack.c.l.b16 %v3634
    %v4004 = vunpack.c.h.b16 %v3634
    %v4005 = vunpack.c.l.b16 %v3635
    %v4006 = vunpack.c.h.b16 %v3635
    %v4007 = vunpack.c.l.b16 %v3636
    %v4008 = vunpack.c.h.b16 %v3636
    %v4009 = vunpack.c.l.b16 %v3637
    %v4010 = vunpack.c.h.b16 %v3637
    %v4011 = vunpack.c.l.b16 %v3638
    %v4012 = vunpack.c.h.b16 %v3638
    %v4013 = vunpack.c.l.b16 %v3639
    %v4014 = vunpack.c.h.b16 %v3639
    %v4015 = vunpack.c.l.b16 %v3640
    %v4016 = vunpack.c.h.b16 %v3640
    %v4017 = vunpack.c.l.b16 %v3641
    %v4018 = vunpack.c.h.b16 %v3641
    %v4019 = vunpack.c.l.b16 %v3642
    %v4020 = vunpack.c.h.b16 %v3642
    %v4021 = vunpack.c.l.b16 %v3643
    %v4022 = vunpack.c.h.b16 %v3643
    %v4023 = vunpack.c.l.b16 %v3644
    %v4024 = vunpack.c.h.b16 %v3644
    %v4025 = vunpack.c.l.b16 %v3645
    %v4026 = vunpack.c.h.b16 %v3645
    %v4027 = vunpack.c.l.b16 %v3646
    %v4028 = vunpack.c.h.b16 %v3646
    %v4029 = vunpack.c.l.b16 %v3647
    %v4030 = vunpack.c.h.b16 %v3647
    %v4031 = vunpack.c.l.b16 %v3648
    %v4032 = vunpack.c.h.b16 %v3648
    %v4033 = vpack.c.b16 %v3785, %v3777
    %v4034 = vpack.c.b16 %v3786, %v3778
    %v4035 = vpack.c.b16 %v3787, %v3779
    %v4036 = vpack.c.b16 %v3788, %v3780
    %v4037 = vpack.c.b16 %v3789, %v3781
    %v4038 = vpack.c.b16 %v3790, %v3782
    %v4039 = vpack.c.b16 %v3791, %v3783
    %v4040 = vpack.c.b16 %v3792, %v3784
    %v4041 = vpack.c.b16 %v3801, %v3793
    %v4042 = vpack.c.b16 %v3802, %v3794
    %v4043 = vpack.c.b16 %v3803, %v3795
    %v4044 = vpack.c.b16 %v3804, %v3796
    %v4045 = vpack.c.b16 %v3805, %v3797
    %v4046 = vpack.c.b16 %v3806, %v3798
    %v4047 = vpack.c.b16 %v3807, %v3799
    %v4048 = vpack.c.b16 %v3808, %v3800
    %v4049 = vpack.c.b16 %v3817, %v3809
    %v4050 = vpack.c.b16 %v3818, %v3810
    %v4051 = vpack.c.b16 %v3819, %v3811
    %v4052 = vpack.c.b16 %v3820, %v3812
    %v4053 = vpack.c.b16 %v3821, %v3813
    %v4054 = vpack.c.b16 %v3822, %v3814
    %v4055 = vpack.c.b16 %v3823, %v3815
    %v4056 = vpack.c.b16 %v3824, %v3816
    %v4057 = vpack.c.b16 %v3833, %v3825
    %v4058 = vpack.c.b16 %v3834, %v3826
    %v4059 = vpack.c.b16 %v3835, %v3827
    %v4060 = vpack.c.b16 %v3836, %v3828
    %v4061 = vpack.c.b16 %v3837, %v3829
    %v4062 = vpack.c.b16 %v3838, %v3830
    %v4063 = vpack.c.b16 %v3839, %v3831
    %v4064 = vpack.c.b16 %v3840, %v3832
    %v4065 = vpack.c.b16 %v3849, %v3841
    %v4066 = vpack.c.b16 %v3850, %v3842
    %v4067 = vpack.c.b16 %v3851, %v3843
    %v4068 = vpack.c.b16 %v3852, %v3844
    %v4069 = vpack.c.b16 %v3853, %v3845
    %v4070 = vpack.c.b16 %v3854, %v3846
    %v4071 = vpack.c.b16 %v3855, %v3847
    %v4072 = vpack.c.b16 %v3856, %v3848
    %v4073 = vpack.c.b16 %v3865, %v3857
    %v4074 = vpack.c.b16 %v3866, %v3858
    %v4075 = vpack.c.b16 %v3867, %v3859
    %v4076 = vpack.c.b16 %v3868, %v3860
    %v4077 = vpack.c.b16 %v3869, %v3861
    %v4078 = vpack.c.b16 %v3870, %v3862
    %v4079 = vpack.c.b16 %v3871, %v3863
    %v4080 = vpack.c.b16 %v3872, %v3864
    %v4081 = vpack.c.b16 %v3881, %v3873
    %v4082 = vpack.c.b16 %v3882, %v3874
    %v4083 = vpack.c.b16 %v3883, %v3875
    %v4084 = vpack.c.b16 %v3884, %v3876
    %v4085 = vpack.c.b16 %v3885, %v3877
    %v4086 = vpack.c.b16 %v3886, %v3878
    %v4087 = vpack.c.b16 %v3887, %v3879
    %v4088 = vpack.c.b16 %v3888, %v3880
    %v4089 = vpack.c.b16 %v3897, %v3889
    %v4090 = vpack.c.b16 %v3898, %v3890
    %v4091 = vpack.c.b16 %v3899, %v3891
    %v4092 = vpack.c.b16 %v3900, %v3892
    %v4093 = vpack.c.b16 %v3901, %v3893
    %v4094 = vpack.c.b16 %v3902, %v3894
    %v4095 = vpack.c.b16 %v3903, %v3895
    %v4096 = vpack.c.b16 %v3904, %v3896
    %v4097 = vpack.c.b16 %v3913, %v3905
    %v4098 = vpack.c.b16 %v3914, %v3906
    %v4099 = vpack.c.b16 %v3915, %v3907
    %v4100 = vpack.c.b16 %v3916, %v3908
    %v4101 = vpack.c.b16 %v3917, %v3909
    %v4102 = vpack.c.b16 %v3918, %v3910
    %v4103 = vpack.c.b16 %v3919, %v3911
    %v4104 = vpack.c.b16 %v3920, %v3912
    %v4105 = vpack.c.b16 %v3929, %v3921
    %v4106 = vpack.c.b16 %v3930, %v3922
    %v4107 = vpack.c.b16 %v3931, %v3923
    %v4108 = vpack.c.b16 %v3932, %v3924
    %v4109 = vpack.c.b16 %v3933, %v3925
    %v4110 = vpack.c.b16 %v3934, %v3926
    %v4111 = vpack.c.b16 %v3935, %v3927
    %v4112 = vpack.c.b16 %v3936, %v3928
    %v4113 = vpack.c.b16 %v3945, %v3937
    %v4114 = vpack.c.b16 %v3946, %v3938
    %v4115 = vpack.c.b16 %v3947, %v3939
    %v4116 = vpack.c.b16 %v3948, %v3940
    %v4117 = vpack.c.b16 %v3949, %v3941
    %v4118 = vpack.c.b16 %v3950, %v3942
    %v4119 = vpack.c.b16 %v3951, %v3943
    %v4120 = vpack.c.b16 %v3952, %v3944
    %v4121 = vpack.c.b16 %v3961, %v3953
    %v4122 = vpack.c.b16 %v3962, %v3954
    %v4123 = vpack.c.b16 %v3963, %v3955
    %v4124 = vpack.c.b16 %v3964, %v3956
    %v4125 = vpack.c.b16 %v3965, %v3957
    %v4126 = vpack.c.b16 %v3966, %v3958
    %v4127 = vpack.c.b16 %v3967, %v3959
    %v4128 = vpack.c.b16 %v3968, %v3960
    %v4129 = vpack.c.b16 %v3977, %v3969
    %v4130 = vpack.c.b16 %v3978, %v3970
    %v4131 = vpack.c.b16 %v3979, %v3971
    %v4132 = vpack.c.b16 %v3980, %v3972
    %v4133 = vpack.c.b16 %v3981, %v3973
    %v4134 = vpack.c.b16 %v3982, %v3974
    %v4135 = vpack.c.b16 %v3983, %v3975
    %v4136 = vpack.c.b16 %v3984, %v3976
    %v4137 = vpack.c.b16 %v3993, %v3985
    %v4138 = vpack.c.b16 %v3994, %v3986
    %v4139 = vpack.c.b16 %v3995, %v3987
    %v4140 = vpack.c.b16 %v3996, %v3988
    %v4141 = vpack.c.b16 %v3997, %v3989
    %v4142 = vpack.c.b16 %v3998, %v3990
    %v4143 = vpack.c.b16 %v3999, %v3991
    %v4144 = vpack.c.b16 %v4000, %v3992
    %v4145 = vpack.c.b16 %v4009, %v4001
    %v4146 = vpack.c.b16 %v4010, %v4002
    %v4147 = vpack.c.b16 %v4011, %v4003
    %v4148 = vpack.c.b16 %v4012, %v4004
    %v4149 = vpack.c.b16 %v4013, %v4005
    %v4150 = vpack.c.b16 %v4014, %v4006
    %v4151 = vpack.c.b16 %v4015, %v4007
    %v4152 = vpack.c.b16 %v4016, %v4008
    %v4153 = vpack.c.b16 %v4025, %v4017
    %v4154 = vpack.c.b16 %v4026, %v4018
    %v4155 = vpack.c.b16 %v4027, %v4019
    %v4156 = vpack.c.b16 %v4028, %v4020
    %v4157 = vpack.c.b16 %v4029, %v4021
    %v4158 = vpack.c.b16 %v4030, %v4022
    %v4159 = vpack.c.b16 %v4031, %v4023
    %v4160 = vpack.c.b16 %v4032, %v4024
    %4289 = vmatprep.subr.bf16.mxu0 %v4034
    %4290 = vmatpush1.bf16.msra.mxu0 %v4033
    %4291 = vmatprep.subr.bf16.mxu0 %v4042
    %4292 = vmatpush1.bf16.msra.mxu0 %v4041
    %4293 = vmatprep.subr.bf16.mxu0 %v4050
    %4294 = vmatpush1.bf16.msra.mxu0 %v4049
    %4295 = vmatprep.subr.bf16.mxu0 %v4058
    %4296 = vmatpush1.bf16.msra.mxu0 %v4057
    %4297 = vmatprep.subr.bf16.mxu0 %v4066
    %4298 = vmatpush1.bf16.msra.mxu0 %v4065
    %4299 = vmatprep.subr.bf16.mxu0 %v4074
    %4300 = vmatpush1.bf16.msra.mxu0 %v4073
    %4301 = vmatprep.subr.bf16.mxu0 %v4082
    %4302 = vmatpush1.bf16.msra.mxu0 %v4081
    %4303 = vmatprep.subr.bf16.mxu0 %v4090
    %4304 = vmatpush1.bf16.msra.mxu0 %v4089
    %4305 = vmatprep.subr.bf16.mxu0 %v4098
    %4306 = vmatpush1.bf16.msra.mxu0 %v4097
    %4307 = vmatprep.subr.bf16.mxu0 %v4106
    %4308 = vmatpush1.bf16.msra.mxu0 %v4105
    %4309 = vmatprep.subr.bf16.mxu0 %v4114
    %4310 = vmatpush1.bf16.msra.mxu0 %v4113
    %4311 = vmatprep.subr.bf16.mxu0 %v4122
    %4312 = vmatpush1.bf16.msra.mxu0 %v4121
    %4313 = vmatprep.subr.bf16.mxu0 %v4130
    %4314 = vmatpush1.bf16.msra.mxu0 %v4129
    %4315 = vmatprep.subr.bf16.mxu0 %v4138
    %4316 = vmatpush1.bf16.msra.mxu0 %v4137
    %4317 = vmatprep.subr.bf16.mxu0 %v4146
    %4318 = vmatpush1.bf16.msra.mxu0 %v4145
    %4319 = vmatprep.subr.bf16.mxu0 %v4154
    %4320 = vmatpush1.bf16.msra.mxu0 %v4153
    %4321 = vmatprep.mubr.bf16.mxu0 %v3520
    %4322 = vmatmul.mubr.bf16.gmra.mrb[0].mxu0 %v3519
    %v4323 = vpop.f32.mrb[0].mxu0
    %v4324 = vadd.f32 0.0, %v4323
    %v4325 = vpop.f32.mrb[0].mxu0
    %v4326 = vadd.f32 0.0, %v4325
    %v4327 = vpop.f32.mrb[0].mxu0
    %v4328 = vpop.f32.mrb[0].mxu0
    %4329 = vdwg.mxu0
    %4330 = vmatprep.subr.bf16.mxu0 %v4036
    %4331 = vmatpush1.bf16.msra.mxu0 %v4035
    %4332 = vmatprep.subr.bf16.mxu0 %v4044
    %4333 = vmatpush1.bf16.msra.mxu0 %v4043
    %4334 = vmatprep.subr.bf16.mxu0 %v4052
    %4335 = vmatpush1.bf16.msra.mxu0 %v4051
    %4336 = vmatprep.subr.bf16.mxu0 %v4060
    %4337 = vmatpush1.bf16.msra.mxu0 %v4059
    %4338 = vmatprep.subr.bf16.mxu0 %v4068
    %4339 = vmatpush1.bf16.msra.mxu0 %v4067
    %4340 = vmatprep.subr.bf16.mxu0 %v4076
    %4341 = vmatpush1.bf16.msra.mxu0 %v4075
    %4342 = vmatprep.subr.bf16.mxu0 %v4084
    %4343 = vmatpush1.bf16.msra.mxu0 %v4083
    %4344 = vmatprep.subr.bf16.mxu0 %v4092
    %4345 = vmatpush1.bf16.msra.mxu0 %v4091
    %4346 = vmatprep.subr.bf16.mxu0 %v4100
    %4347 = vmatpush1.bf16.msra.mxu0 %v4099
    %4348 = vmatprep.subr.bf16.mxu0 %v4108
    %4349 = vmatpush1.bf16.msra.mxu0 %v4107
    %4350 = vmatprep.subr.bf16.mxu0 %v4116
    %4351 = vmatpush1.bf16.msra.mxu0 %v4115
    %4352 = vmatprep.subr.bf16.mxu0 %v4124
    %4353 = vmatpush1.bf16.msra.mxu0 %v4123
    %4354 = vmatprep.subr.bf16.mxu0 %v4132
    %4355 = vmatpush1.bf16.msra.mxu0 %v4131
    %4356 = vmatprep.subr.bf16.mxu0 %v4140
    %4357 = vmatpush1.bf16.msra.mxu0 %v4139
    %4358 = vmatprep.subr.bf16.mxu0 %v4148
    %4359 = vmatpush1.bf16.msra.mxu0 %v4147
    %4360 = vmatprep.subr.bf16.mxu0 %v4156
    %4361 = vmatpush1.bf16.msra.mxu0 %v4155
    %4362 = vmatprep.mubr.bf16.mxu0 %v3520
    %4363 = vmatmul.mubr.bf16.gmra.mrb[0].mxu0 %v3519
    %v4364 = vpop.f32.mrb[0].mxu0
    %v4365 = vadd.f32 0.0, %v4364
    %v4366 = vpop.f32.mrb[0].mxu0
    %v4367 = vadd.f32 0.0, %v4366
    %v4368 = vpop.f32.mrb[0].mxu0
    %v4369 = vpop.f32.mrb[0].mxu0
    %4370 = vdwg.mxu0
    %4371 = vmatprep.subr.bf16.mxu0 %v4038
    %4372 = vmatpush1.bf16.msra.mxu0 %v4037
    %4373 = vmatprep.subr.bf16.mxu0 %v4046
    %4374 = vmatpush1.bf16.msra.mxu0 %v4045
    %4375 = vmatprep.subr.bf16.mxu0 %v4054
    %4376 = vmatpush1.bf16.msra.mxu0 %v4053
    %4377 = vmatprep.subr.bf16.mxu0 %v4062
    %4378 = vmatpush1.bf16.msra.mxu0 %v4061
    %4379 = vmatprep.subr.bf16.mxu0 %v4070
    %4380 = vmatpush1.bf16.msra.mxu0 %v4069
    %4381 = vmatprep.subr.bf16.mxu0 %v4078
    %4382 = vmatpush1.bf16.msra.mxu0 %v4077
    %4383 = vmatprep.subr.bf16.mxu0 %v4086
    %4384 = vmatpush1.bf16.msra.mxu0 %v4085
    %4385 = vmatprep.subr.bf16.mxu0 %v4094
    %4386 = vmatpush1.bf16.msra.mxu0 %v4093
    %4387 = vmatprep.subr.bf16.mxu0 %v4102
    %4388 = vmatpush1.bf16.msra.mxu0 %v4101
    %4389 = vmatprep.subr.bf16.mxu0 %v4110
    %4390 = vmatpush1.bf16.msra.mxu0 %v4109
    %4391 = vmatprep.subr.bf16.mxu0 %v4118
    %4392 = vmatpush1.bf16.msra.mxu0 %v4117
    %4393 = vmatprep.subr.bf16.mxu0 %v4126
    %4394 = vmatpush1.bf16.msra.mxu0 %v4125
    %4395 = vmatprep.subr.bf16.mxu0 %v4134
    %4396 = vmatpush1.bf16.msra.mxu0 %v4133
    %4397 = vmatprep.subr.bf16.mxu0 %v4142
    %4398 = vmatpush1.bf16.msra.mxu0 %v4141
    %4399 = vmatprep.subr.bf16.mxu0 %v4150
    %4400 = vmatpush1.bf16.msra.mxu0 %v4149
    %4401 = vmatprep.subr.bf16.mxu0 %v4158
    %4402 = vmatpush1.bf16.msra.mxu0 %v4157
    %4403 = vmatprep.mubr.bf16.mxu0 %v3520
    %4404 = vmatmul.mubr.bf16.gmra.mrb[0].mxu0 %v3519
    %v4405 = vpop.f32.mrb[0].mxu0
    %v4406 = vadd.f32 0.0, %v4405
    %v4407 = vpop.f32.mrb[0].mxu0
    %v4408 = vadd.f32 0.0, %v4407
    %v4409 = vpop.f32.mrb[0].mxu0
    %v4410 = vpop.f32.mrb[0].mxu0
    %4411 = vdwg.mxu0
    %4412 = vmatprep.subr.bf16.mxu0 %v4040
    %4413 = vmatpush1.bf16.msra.mxu0 %v4039
    %4414 = vmatprep.subr.bf16.mxu0 %v4048
    %4415 = vmatpush1.bf16.msra.mxu0 %v4047
    %4416 = vmatprep.subr.bf16.mxu0 %v4056
    %4417 = vmatpush1.bf16.msra.mxu0 %v4055
    %4418 = vmatprep.subr.bf16.mxu0 %v4064
    %4419 = vmatpush1.bf16.msra.mxu0 %v4063
    %4420 = vmatprep.subr.bf16.mxu0 %v4072
    %4421 = vmatpush1.bf16.msra.mxu0 %v4071
    %4422 = vmatprep.subr.bf16.mxu0 %v4080
    %4423 = vmatpush1.bf16.msra.mxu0 %v4079
    %4424 = vmatprep.subr.bf16.mxu0 %v4088
    %4425 = vmatpush1.bf16.msra.mxu0 %v4087
    %4426 = vmatprep.subr.bf16.mxu0 %v4096
    %4427 = vmatpush1.bf16.msra.mxu0 %v4095
    %4428 = vmatprep.subr.bf16.mxu0 %v4104
    %4429 = vmatpush1.bf16.msra.mxu0 %v4103
    %4430 = vmatprep.subr.bf16.mxu0 %v4112
    %4431 = vmatpush1.bf16.msra.mxu0 %v4111
    %4432 = vmatprep.subr.bf16.mxu0 %v4120
    %4433 = vmatpush1.bf16.msra.mxu0 %v4119
    %4434 = vmatprep.subr.bf16.mxu0 %v4128
    %4435 = vmatpush1.bf16.msra.mxu0 %v4127
    %4436 = vmatprep.subr.bf16.mxu0 %v4136
    %4437 = vmatpush1.bf16.msra.mxu0 %v4135
    %4438 = vmatprep.subr.bf16.mxu0 %v4144
    %4439 = vmatpush1.bf16.msra.mxu0 %v4143
    %4440 = vmatprep.subr.bf16.mxu0 %v4152
    %4441 = vmatpush1.bf16.msra.mxu0 %v4151
    %4442 = vmatprep.subr.bf16.mxu0 %v4160
    %4443 = vmatpush1.bf16.msra.mxu0 %v4159
    %4444 = vmatprep.mubr.bf16.mxu0 %v3520
    %4445 = vmatmul.mubr.bf16.gmra.mrb[0].mxu0 %v3519
    %v4446 = vpop.f32.mrb[0].mxu0
    %v4447 = vadd.f32 0.0, %v4446
    %v4448 = vpop.f32.mrb[0].mxu0
    %v4449 = vadd.f32 0.0, %v4448
    %v4450 = vpop.f32.mrb[0].mxu0
    %v4451 = vpop.f32.mrb[0].mxu0
    %4452 = vdwg.mxu0
    %s4453 = scalar_lea.vmem [#allocation3], 128
    %v4454 = vld [vmem:[%s4453] sm:$0xff]
    %v4455 = vld [vmem:[%s4453 + $0x8] sm:$0xff]
    %v4456 = vld [vmem:[%s4453 + $0x10] sm:$0xff]
    %v4457 = vld [vmem:[%s4453 + $0x18] sm:$0xff]
    %v4458 = vadd.f32 %v4324, %v4454
    %v4459 = vadd.f32 %v4326, %v4455
    %v4460 = vadd.f32 %v4365, %v4456
    %v4461 = vadd.f32 %v4367, %v4457
    %v4462 = vadd.f32 %v4406, %v1455
    %v4463 = vadd.f32 %v4408, %v1459
    %v4464 = vadd.f32 %v4447, %v1463
    %v4465 = vadd.f32 %v4449, %v1467
    %v4466 = vxor.u32 %v4458, 2147483648
    %v4467 = vmul.f32 %v4466, 1.442695
    %v4468 = vpow.pop %v4467
    %v4469 = vadd.f32 %v4468, 1.0
    %v4470 = vrcp.pop %v4469
    %v4471 = vmul.f32 1.0, %v4470
    %v4472 = vxor.u32 %v4459, 2147483648
    %v4473 = vmul.f32 %v4472, 1.442695
    %v4474 = vpow.pop %v4473
    %v4475 = vadd.f32 %v4474, 1.0
    %v4476 = vrcp.pop %v4475
    %v4477 = vmul.f32 1.0, %v4476
    %v4478 = vtanh.pop %v4460
    %v4479 = vxor.u32 %v4461, 2147483648
    %v4480 = vmul.f32 %v4479, 1.442695
    %v4481 = vpow.pop %v4480
    %v4482 = vadd.f32 %v4481, 1.0
    %v4483 = vrcp.pop %v4482
    %v4484 = vmul.f32 1.0, %v4483
    %v4485 = vmul.f32 %v4477, %v3490
    %v4486 = vmul.f32 %v4471, %v4478
    %v4487 = vadd.f32 %v4485, %v4486
    %v4488 = vtanh.pop %v4487
    %v4489 = vmul.f32 %v4484, %v4488
    %v4490 = vxor.u32 %v4462, 2147483648
    %v4491 = vmul.f32 %v4490, 1.442695
    %v4492 = vpow.pop %v4491
    %v4493 = vadd.f32 %v4492, 1.0
    %v4494 = vrcp.pop %v4493
    %v4495 = vmul.f32 1.0, %v4494
    %v4496 = vxor.u32 %v4463, 2147483648
    %v4497 = vmul.f32 %v4496, 1.442695
    %v4498 = vpow.pop %v4497
    %v4499 = vadd.f32 %v4498, 1.0
    %v4500 = vrcp.pop %v4499
    %v4501 = vmul.f32 1.0, %v4500
    %v4502 = vtanh.pop %v4464
    %v4503 = vxor.u32 %v4465, 2147483648
    %v4504 = vmul.f32 %v4503, 1.442695
    %v4505 = vpow.pop %v4504
    %v4506 = vadd.f32 %v4505, 1.0
    %v4507 = vrcp.pop %v4506
    %v4508 = vmul.f32 1.0, %v4507
    %v4509 = vmul.f32 %v4501, %v3514
    %v4510 = vmul.f32 %v4495, %v4502
    %v4511 = vadd.f32 %v4509, %v4510
    %v4512 = vtanh.pop %v4511
    %v4513 = vmul.f32 %v4508, %v4512
    %s4514 = scalar_lea.vmem [#allocation2], 24
    %4515 = vst [vmem:[%s4514] sm:$0xff] %v4513
    %v4516 = vpack.c.bf16 %v4489, %v4489
    %v4517 = vpack.c.bf16 %v4513, %v4513
    %v4518 = vld [vmem:[#allocation11] sm:$0xff]
    %v4519 = vld [vmem:[#allocation11 + $0x8] sm:$0xff]
    %v4520 = vld [vmem:[#allocation11 + $0x10] sm:$0xff]
    %v4521 = vld [vmem:[#allocation11 + $0x18] sm:$0xff]
    %v4522 = vld [vmem:[#allocation11 + $0x20] sm:$0xff]
    %v4523 = vld [vmem:[#allocation11 + $0x28] sm:$0xff]
    %v4524 = vld [vmem:[#allocation11 + $0x30] sm:$0xff]
    %v4525 = vld [vmem:[#allocation11 + $0x38] sm:$0xff]
    %v4526 = vld [vmem:[#allocation11 + $0x40] sm:$0xff]
    %v4527 = vld [vmem:[#allocation11 + $0x48] sm:$0xff]
    %v4528 = vld [vmem:[#allocation11 + $0x50] sm:$0xff]
    %v4529 = vld [vmem:[#allocation11 + $0x58] sm:$0xff]
    %v4530 = vld [vmem:[#allocation11 + $0x60] sm:$0xff]
    %v4531 = vld [vmem:[#allocation11 + $0x68] sm:$0xff]
    %v4532 = vld [vmem:[#allocation11 + $0x70] sm:$0xff]
    %v4533 = vld [vmem:[#allocation11 + $0x78] sm:$0xff]
    %v4534 = vld [vmem:[#allocation11 + $0x80] sm:$0xff]
    %v4535 = vld [vmem:[#allocation11 + $0x88] sm:$0xff]
    %v4536 = vld [vmem:[#allocation11 + $0x90] sm:$0xff]
    %v4537 = vld [vmem:[#allocation11 + $0x98] sm:$0xff]
    %v4538 = vld [vmem:[#allocation11 + $0xa0] sm:$0xff]
    %v4539 = vld [vmem:[#allocation11 + $0xa8] sm:$0xff]
    %v4540 = vld [vmem:[#allocation11 + $0xb0] sm:$0xff]
    %v4541 = vld [vmem:[#allocation11 + $0xb8] sm:$0xff]
    %v4542 = vld [vmem:[#allocation11 + $0xc0] sm:$0xff]
    %v4543 = vld [vmem:[#allocation11 + $0xc8] sm:$0xff]
    %v4544 = vld [vmem:[#allocation11 + $0xd0] sm:$0xff]
    %v4545 = vld [vmem:[#allocation11 + $0xd8] sm:$0xff]
    %v4546 = vld [vmem:[#allocation11 + $0xe0] sm:$0xff]
    %v4547 = vld [vmem:[#allocation11 + $0xe8] sm:$0xff]
    %v4548 = vld [vmem:[#allocation11 + $0xf0] sm:$0xff]
    %v4549 = vld [vmem:[#allocation11 + $0xf8] sm:$0xff]
    %v4550 = vld [vmem:[#allocation11 + $0x100] sm:$0xff]
    %v4551 = vld [vmem:[#allocation11 + $0x108] sm:$0xff]
    %v4552 = vld [vmem:[#allocation11 + $0x110] sm:$0xff]
    %v4553 = vld [vmem:[#allocation11 + $0x118] sm:$0xff]
    %v4554 = vld [vmem:[#allocation11 + $0x120] sm:$0xff]
    %v4555 = vld [vmem:[#allocation11 + $0x128] sm:$0xff]
    %v4556 = vld [vmem:[#allocation11 + $0x130] sm:$0xff]
    %v4557 = vld [vmem:[#allocation11 + $0x138] sm:$0xff]
    %v4558 = vld [vmem:[#allocation11 + $0x140] sm:$0xff]
    %v4559 = vld [vmem:[#allocation11 + $0x148] sm:$0xff]
    %v4560 = vld [vmem:[#allocation11 + $0x150] sm:$0xff]
    %v4561 = vld [vmem:[#allocation11 + $0x158] sm:$0xff]
    %v4562 = vld [vmem:[#allocation11 + $0x160] sm:$0xff]
    %v4563 = vld [vmem:[#allocation11 + $0x168] sm:$0xff]
    %v4564 = vld [vmem:[#allocation11 + $0x170] sm:$0xff]
    %v4565 = vld [vmem:[#allocation11 + $0x178] sm:$0xff]
    %v4566 = vld [vmem:[#allocation11 + $0x180] sm:$0xff]
    %v4567 = vld [vmem:[#allocation11 + $0x188] sm:$0xff]
    %v4568 = vld [vmem:[#allocation11 + $0x190] sm:$0xff]
    %v4569 = vld [vmem:[#allocation11 + $0x198] sm:$0xff]
    %v4570 = vld [vmem:[#allocation11 + $0x1a0] sm:$0xff]
    %v4571 = vld [vmem:[#allocation11 + $0x1a8] sm:$0xff]
    %v4572 = vld [vmem:[#allocation11 + $0x1b0] sm:$0xff]
    %v4573 = vld [vmem:[#allocation11 + $0x1b8] sm:$0xff]
    %v4574 = vld [vmem:[#allocation11 + $0x1c0] sm:$0xff]
    %v4575 = vld [vmem:[#allocation11 + $0x1c8] sm:$0xff]
    %v4576 = vld [vmem:[#allocation11 + $0x1d0] sm:$0xff]
    %v4577 = vld [vmem:[#allocation11 + $0x1d8] sm:$0xff]
    %v4578 = vld [vmem:[#allocation11 + $0x1e0] sm:$0xff]
    %v4579 = vld [vmem:[#allocation11 + $0x1e8] sm:$0xff]
    %v4580 = vld [vmem:[#allocation11 + $0x1f0] sm:$0xff]
    %v4581 = vld [vmem:[#allocation11 + $0x1f8] sm:$0xff]
    %v4582 = vld [vmem:[#allocation11 + $0x200] sm:$0xff]
    %v4583 = vld [vmem:[#allocation11 + $0x208] sm:$0xff]
    %v4584 = vld [vmem:[#allocation11 + $0x210] sm:$0xff]
    %v4585 = vld [vmem:[#allocation11 + $0x218] sm:$0xff]
    %v4586 = vld [vmem:[#allocation11 + $0x220] sm:$0xff]
    %v4587 = vld [vmem:[#allocation11 + $0x228] sm:$0xff]
    %v4588 = vld [vmem:[#allocation11 + $0x230] sm:$0xff]
    %v4589 = vld [vmem:[#allocation11 + $0x238] sm:$0xff]
    %v4590 = vld [vmem:[#allocation11 + $0x240] sm:$0xff]
    %v4591 = vld [vmem:[#allocation11 + $0x248] sm:$0xff]
    %v4592 = vld [vmem:[#allocation11 + $0x250] sm:$0xff]
    %v4593 = vld [vmem:[#allocation11 + $0x258] sm:$0xff]
    %v4594 = vld [vmem:[#allocation11 + $0x260] sm:$0xff]
    %v4595 = vld [vmem:[#allocation11 + $0x268] sm:$0xff]
    %v4596 = vld [vmem:[#allocation11 + $0x270] sm:$0xff]
    %v4597 = vld [vmem:[#allocation11 + $0x278] sm:$0xff]
    %v4598 = vld [vmem:[#allocation11 + $0x280] sm:$0xff]
    %v4599 = vld [vmem:[#allocation11 + $0x288] sm:$0xff]
    %v4600 = vld [vmem:[#allocation11 + $0x290] sm:$0xff]
    %v4601 = vld [vmem:[#allocation11 + $0x298] sm:$0xff]
    %v4602 = vld [vmem:[#allocation11 + $0x2a0] sm:$0xff]
    %v4603 = vld [vmem:[#allocation11 + $0x2a8] sm:$0xff]
    %v4604 = vld [vmem:[#allocation11 + $0x2b0] sm:$0xff]
    %v4605 = vld [vmem:[#allocation11 + $0x2b8] sm:$0xff]
    %v4606 = vld [vmem:[#allocation11 + $0x2c0] sm:$0xff]
    %v4607 = vld [vmem:[#allocation11 + $0x2c8] sm:$0xff]
    %v4608 = vld [vmem:[#allocation11 + $0x2d0] sm:$0xff]
    %v4609 = vld [vmem:[#allocation11 + $0x2d8] sm:$0xff]
    %v4610 = vld [vmem:[#allocation11 + $0x2e0] sm:$0xff]
    %v4611 = vld [vmem:[#allocation11 + $0x2e8] sm:$0xff]
    %v4612 = vld [vmem:[#allocation11 + $0x2f0] sm:$0xff]
    %v4613 = vld [vmem:[#allocation11 + $0x2f8] sm:$0xff]
    %v4614 = vld [vmem:[#allocation11 + $0x300] sm:$0xff]
    %v4615 = vld [vmem:[#allocation11 + $0x308] sm:$0xff]
    %v4616 = vld [vmem:[#allocation11 + $0x310] sm:$0xff]
    %v4617 = vld [vmem:[#allocation11 + $0x318] sm:$0xff]
    %v4618 = vld [vmem:[#allocation11 + $0x320] sm:$0xff]
    %v4619 = vld [vmem:[#allocation11 + $0x328] sm:$0xff]
    %v4620 = vld [vmem:[#allocation11 + $0x330] sm:$0xff]
    %v4621 = vld [vmem:[#allocation11 + $0x338] sm:$0xff]
    %v4622 = vld [vmem:[#allocation11 + $0x340] sm:$0xff]
    %v4623 = vld [vmem:[#allocation11 + $0x348] sm:$0xff]
    %v4624 = vld [vmem:[#allocation11 + $0x350] sm:$0xff]
    %v4625 = vld [vmem:[#allocation11 + $0x358] sm:$0xff]
    %v4626 = vld [vmem:[#allocation11 + $0x360] sm:$0xff]
    %v4627 = vld [vmem:[#allocation11 + $0x368] sm:$0xff]
    %v4628 = vld [vmem:[#allocation11 + $0x370] sm:$0xff]
    %v4629 = vld [vmem:[#allocation11 + $0x378] sm:$0xff]
    %v4630 = vld [vmem:[#allocation11 + $0x380] sm:$0xff]
    %v4631 = vld [vmem:[#allocation11 + $0x388] sm:$0xff]
    %v4632 = vld [vmem:[#allocation11 + $0x390] sm:$0xff]
    %v4633 = vld [vmem:[#allocation11 + $0x398] sm:$0xff]
    %v4634 = vld [vmem:[#allocation11 + $0x3a0] sm:$0xff]
    %v4635 = vld [vmem:[#allocation11 + $0x3a8] sm:$0xff]
    %v4636 = vld [vmem:[#allocation11 + $0x3b0] sm:$0xff]
    %v4637 = vld [vmem:[#allocation11 + $0x3b8] sm:$0xff]
    %v4638 = vld [vmem:[#allocation11 + $0x3c0] sm:$0xff]
    %v4639 = vld [vmem:[#allocation11 + $0x3c8] sm:$0xff]
    %v4640 = vld [vmem:[#allocation11 + $0x3d0] sm:$0xff]
    %v4641 = vld [vmem:[#allocation11 + $0x3d8] sm:$0xff]
    %v4642 = vld [vmem:[#allocation11 + $0x3e0] sm:$0xff]
    %v4643 = vld [vmem:[#allocation11 + $0x3e8] sm:$0xff]
    %v4644 = vld [vmem:[#allocation11 + $0x3f0] sm:$0xff]
    %v4645 = vld [vmem:[#allocation11 + $0x3f8] sm:$0xff]
    %v4774 = vunpack.c.l.b16 %v4518
    %v4775 = vunpack.c.h.b16 %v4518
    %v4776 = vunpack.c.l.b16 %v4519
    %v4777 = vunpack.c.h.b16 %v4519
    %v4778 = vunpack.c.l.b16 %v4520
    %v4779 = vunpack.c.h.b16 %v4520
    %v4780 = vunpack.c.l.b16 %v4521
    %v4781 = vunpack.c.h.b16 %v4521
    %v4782 = vunpack.c.l.b16 %v4522
    %v4783 = vunpack.c.h.b16 %v4522
    %v4784 = vunpack.c.l.b16 %v4523
    %v4785 = vunpack.c.h.b16 %v4523
    %v4786 = vunpack.c.l.b16 %v4524
    %v4787 = vunpack.c.h.b16 %v4524
    %v4788 = vunpack.c.l.b16 %v4525
    %v4789 = vunpack.c.h.b16 %v4525
    %v4790 = vunpack.c.l.b16 %v4526
    %v4791 = vunpack.c.h.b16 %v4526
    %v4792 = vunpack.c.l.b16 %v4527
    %v4793 = vunpack.c.h.b16 %v4527
    %v4794 = vunpack.c.l.b16 %v4528
    %v4795 = vunpack.c.h.b16 %v4528
    %v4796 = vunpack.c.l.b16 %v4529
    %v4797 = vunpack.c.h.b16 %v4529
    %v4798 = vunpack.c.l.b16 %v4530
    %v4799 = vunpack.c.h.b16 %v4530
    %v4800 = vunpack.c.l.b16 %v4531
    %v4801 = vunpack.c.h.b16 %v4531
    %v4802 = vunpack.c.l.b16 %v4532
    %v4803 = vunpack.c.h.b16 %v4532
    %v4804 = vunpack.c.l.b16 %v4533
    %v4805 = vunpack.c.h.b16 %v4533
    %v4806 = vunpack.c.l.b16 %v4534
    %v4807 = vunpack.c.h.b16 %v4534
    %v4808 = vunpack.c.l.b16 %v4535
    %v4809 = vunpack.c.h.b16 %v4535
    %v4810 = vunpack.c.l.b16 %v4536
    %v4811 = vunpack.c.h.b16 %v4536
    %v4812 = vunpack.c.l.b16 %v4537
    %v4813 = vunpack.c.h.b16 %v4537
    %v4814 = vunpack.c.l.b16 %v4538
    %v4815 = vunpack.c.h.b16 %v4538
    %v4816 = vunpack.c.l.b16 %v4539
    %v4817 = vunpack.c.h.b16 %v4539
    %v4818 = vunpack.c.l.b16 %v4540
    %v4819 = vunpack.c.h.b16 %v4540
    %v4820 = vunpack.c.l.b16 %v4541
    %v4821 = vunpack.c.h.b16 %v4541
    %v4822 = vunpack.c.l.b16 %v4542
    %v4823 = vunpack.c.h.b16 %v4542
    %v4824 = vunpack.c.l.b16 %v4543
    %v4825 = vunpack.c.h.b16 %v4543
    %v4826 = vunpack.c.l.b16 %v4544
    %v4827 = vunpack.c.h.b16 %v4544
    %v4828 = vunpack.c.l.b16 %v4545
    %v4829 = vunpack.c.h.b16 %v4545
    %v4830 = vunpack.c.l.b16 %v4546
    %v4831 = vunpack.c.h.b16 %v4546
    %v4832 = vunpack.c.l.b16 %v4547
    %v4833 = vunpack.c.h.b16 %v4547
    %v4834 = vunpack.c.l.b16 %v4548
    %v4835 = vunpack.c.h.b16 %v4548
    %v4836 = vunpack.c.l.b16 %v4549
    %v4837 = vunpack.c.h.b16 %v4549
    %v4838 = vunpack.c.l.b16 %v4550
    %v4839 = vunpack.c.h.b16 %v4550
    %v4840 = vunpack.c.l.b16 %v4551
    %v4841 = vunpack.c.h.b16 %v4551
    %v4842 = vunpack.c.l.b16 %v4552
    %v4843 = vunpack.c.h.b16 %v4552
    %v4844 = vunpack.c.l.b16 %v4553
    %v4845 = vunpack.c.h.b16 %v4553
    %v4846 = vunpack.c.l.b16 %v4554
    %v4847 = vunpack.c.h.b16 %v4554
    %v4848 = vunpack.c.l.b16 %v4555
    %v4849 = vunpack.c.h.b16 %v4555
    %v4850 = vunpack.c.l.b16 %v4556
    %v4851 = vunpack.c.h.b16 %v4556
    %v4852 = vunpack.c.l.b16 %v4557
    %v4853 = vunpack.c.h.b16 %v4557
    %v4854 = vunpack.c.l.b16 %v4558
    %v4855 = vunpack.c.h.b16 %v4558
    %v4856 = vunpack.c.l.b16 %v4559
    %v4857 = vunpack.c.h.b16 %v4559
    %v4858 = vunpack.c.l.b16 %v4560
    %v4859 = vunpack.c.h.b16 %v4560
    %v4860 = vunpack.c.l.b16 %v4561
    %v4861 = vunpack.c.h.b16 %v4561
    %v4862 = vunpack.c.l.b16 %v4562
    %v4863 = vunpack.c.h.b16 %v4562
    %v4864 = vunpack.c.l.b16 %v4563
    %v4865 = vunpack.c.h.b16 %v4563
    %v4866 = vunpack.c.l.b16 %v4564
    %v4867 = vunpack.c.h.b16 %v4564
    %v4868 = vunpack.c.l.b16 %v4565
    %v4869 = vunpack.c.h.b16 %v4565
    %v4870 = vunpack.c.l.b16 %v4566
    %v4871 = vunpack.c.h.b16 %v4566
    %v4872 = vunpack.c.l.b16 %v4567
    %v4873 = vunpack.c.h.b16 %v4567
    %v4874 = vunpack.c.l.b16 %v4568
    %v4875 = vunpack.c.h.b16 %v4568
    %v4876 = vunpack.c.l.b16 %v4569
    %v4877 = vunpack.c.h.b16 %v4569
    %v4878 = vunpack.c.l.b16 %v4570
    %v4879 = vunpack.c.h.b16 %v4570
    %v4880 = vunpack.c.l.b16 %v4571
    %v4881 = vunpack.c.h.b16 %v4571
    %v4882 = vunpack.c.l.b16 %v4572
    %v4883 = vunpack.c.h.b16 %v4572
    %v4884 = vunpack.c.l.b16 %v4573
    %v4885 = vunpack.c.h.b16 %v4573
    %v4886 = vunpack.c.l.b16 %v4574
    %v4887 = vunpack.c.h.b16 %v4574
    %v4888 = vunpack.c.l.b16 %v4575
    %v4889 = vunpack.c.h.b16 %v4575
    %v4890 = vunpack.c.l.b16 %v4576
    %v4891 = vunpack.c.h.b16 %v4576
    %v4892 = vunpack.c.l.b16 %v4577
    %v4893 = vunpack.c.h.b16 %v4577
    %v4894 = vunpack.c.l.b16 %v4578
    %v4895 = vunpack.c.h.b16 %v4578
    %v4896 = vunpack.c.l.b16 %v4579
    %v4897 = vunpack.c.h.b16 %v4579
    %v4898 = vunpack.c.l.b16 %v4580
    %v4899 = vunpack.c.h.b16 %v4580
    %v4900 = vunpack.c.l.b16 %v4581
    %v4901 = vunpack.c.h.b16 %v4581
    %v4902 = vunpack.c.l.b16 %v4582
    %v4903 = vunpack.c.h.b16 %v4582
    %v4904 = vunpack.c.l.b16 %v4583
    %v4905 = vunpack.c.h.b16 %v4583
    %v4906 = vunpack.c.l.b16 %v4584
    %v4907 = vunpack.c.h.b16 %v4584
    %v4908 = vunpack.c.l.b16 %v4585
    %v4909 = vunpack.c.h.b16 %v4585
    %v4910 = vunpack.c.l.b16 %v4586
    %v4911 = vunpack.c.h.b16 %v4586
    %v4912 = vunpack.c.l.b16 %v4587
    %v4913 = vunpack.c.h.b16 %v4587
    %v4914 = vunpack.c.l.b16 %v4588
    %v4915 = vunpack.c.h.b16 %v4588
    %v4916 = vunpack.c.l.b16 %v4589
    %v4917 = vunpack.c.h.b16 %v4589
    %v4918 = vunpack.c.l.b16 %v4590
    %v4919 = vunpack.c.h.b16 %v4590
    %v4920 = vunpack.c.l.b16 %v4591
    %v4921 = vunpack.c.h.b16 %v4591
    %v4922 = vunpack.c.l.b16 %v4592
    %v4923 = vunpack.c.h.b16 %v4592
    %v4924 = vunpack.c.l.b16 %v4593
    %v4925 = vunpack.c.h.b16 %v4593
    %v4926 = vunpack.c.l.b16 %v4594
    %v4927 = vunpack.c.h.b16 %v4594
    %v4928 = vunpack.c.l.b16 %v4595
    %v4929 = vunpack.c.h.b16 %v4595
    %v4930 = vunpack.c.l.b16 %v4596
    %v4931 = vunpack.c.h.b16 %v4596
    %v4932 = vunpack.c.l.b16 %v4597
    %v4933 = vunpack.c.h.b16 %v4597
    %v4934 = vunpack.c.l.b16 %v4598
    %v4935 = vunpack.c.h.b16 %v4598
    %v4936 = vunpack.c.l.b16 %v4599
    %v4937 = vunpack.c.h.b16 %v4599
    %v4938 = vunpack.c.l.b16 %v4600
    %v4939 = vunpack.c.h.b16 %v4600
    %v4940 = vunpack.c.l.b16 %v4601
    %v4941 = vunpack.c.h.b16 %v4601
    %v4942 = vunpack.c.l.b16 %v4602
    %v4943 = vunpack.c.h.b16 %v4602
    %v4944 = vunpack.c.l.b16 %v4603
    %v4945 = vunpack.c.h.b16 %v4603
    %v4946 = vunpack.c.l.b16 %v4604
    %v4947 = vunpack.c.h.b16 %v4604
    %v4948 = vunpack.c.l.b16 %v4605
    %v4949 = vunpack.c.h.b16 %v4605
    %v4950 = vunpack.c.l.b16 %v4606
    %v4951 = vunpack.c.h.b16 %v4606
    %v4952 = vunpack.c.l.b16 %v4607
    %v4953 = vunpack.c.h.b16 %v4607
    %v4954 = vunpack.c.l.b16 %v4608
    %v4955 = vunpack.c.h.b16 %v4608
    %v4956 = vunpack.c.l.b16 %v4609
    %v4957 = vunpack.c.h.b16 %v4609
    %v4958 = vunpack.c.l.b16 %v4610
    %v4959 = vunpack.c.h.b16 %v4610
    %v4960 = vunpack.c.l.b16 %v4611
    %v4961 = vunpack.c.h.b16 %v4611
    %v4962 = vunpack.c.l.b16 %v4612
    %v4963 = vunpack.c.h.b16 %v4612
    %v4964 = vunpack.c.l.b16 %v4613
    %v4965 = vunpack.c.h.b16 %v4613
    %v4966 = vunpack.c.l.b16 %v4614
    %v4967 = vunpack.c.h.b16 %v4614
    %v4968 = vunpack.c.l.b16 %v4615
    %v4969 = vunpack.c.h.b16 %v4615
    %v4970 = vunpack.c.l.b16 %v4616
    %v4971 = vunpack.c.h.b16 %v4616
    %v4972 = vunpack.c.l.b16 %v4617
    %v4973 = vunpack.c.h.b16 %v4617
    %v4974 = vunpack.c.l.b16 %v4618
    %v4975 = vunpack.c.h.b16 %v4618
    %v4976 = vunpack.c.l.b16 %v4619
    %v4977 = vunpack.c.h.b16 %v4619
    %v4978 = vunpack.c.l.b16 %v4620
    %v4979 = vunpack.c.h.b16 %v4620
    %v4980 = vunpack.c.l.b16 %v4621
    %v4981 = vunpack.c.h.b16 %v4621
    %v4982 = vunpack.c.l.b16 %v4622
    %v4983 = vunpack.c.h.b16 %v4622
    %v4984 = vunpack.c.l.b16 %v4623
    %v4985 = vunpack.c.h.b16 %v4623
    %v4986 = vunpack.c.l.b16 %v4624
    %v4987 = vunpack.c.h.b16 %v4624
    %v4988 = vunpack.c.l.b16 %v4625
    %v4989 = vunpack.c.h.b16 %v4625
    %v4990 = vunpack.c.l.b16 %v4626
    %v4991 = vunpack.c.h.b16 %v4626
    %v4992 = vunpack.c.l.b16 %v4627
    %v4993 = vunpack.c.h.b16 %v4627
    %v4994 = vunpack.c.l.b16 %v4628
    %v4995 = vunpack.c.h.b16 %v4628
    %v4996 = vunpack.c.l.b16 %v4629
    %v4997 = vunpack.c.h.b16 %v4629
    %v4998 = vunpack.c.l.b16 %v4630
    %v4999 = vunpack.c.h.b16 %v4630
    %v5000 = vunpack.c.l.b16 %v4631
    %v5001 = vunpack.c.h.b16 %v4631
    %v5002 = vunpack.c.l.b16 %v4632
    %v5003 = vunpack.c.h.b16 %v4632
    %v5004 = vunpack.c.l.b16 %v4633
    %v5005 = vunpack.c.h.b16 %v4633
    %v5006 = vunpack.c.l.b16 %v4634
    %v5007 = vunpack.c.h.b16 %v4634
    %v5008 = vunpack.c.l.b16 %v4635
    %v5009 = vunpack.c.h.b16 %v4635
    %v5010 = vunpack.c.l.b16 %v4636
    %v5011 = vunpack.c.h.b16 %v4636
    %v5012 = vunpack.c.l.b16 %v4637
    %v5013 = vunpack.c.h.b16 %v4637
    %v5014 = vunpack.c.l.b16 %v4638
    %v5015 = vunpack.c.h.b16 %v4638
    %v5016 = vunpack.c.l.b16 %v4639
    %v5017 = vunpack.c.h.b16 %v4639
    %v5018 = vunpack.c.l.b16 %v4640
    %v5019 = vunpack.c.h.b16 %v4640
    %v5020 = vunpack.c.l.b16 %v4641
    %v5021 = vunpack.c.h.b16 %v4641
    %v5022 = vunpack.c.l.b16 %v4642
    %v5023 = vunpack.c.h.b16 %v4642
    %v5024 = vunpack.c.l.b16 %v4643
    %v5025 = vunpack.c.h.b16 %v4643
    %v5026 = vunpack.c.l.b16 %v4644
    %v5027 = vunpack.c.h.b16 %v4644
    %v5028 = vunpack.c.l.b16 %v4645
    %v5029 = vunpack.c.h.b16 %v4645
    %v5030 = vpack.c.b16 %v4782, %v4774
    %v5031 = vpack.c.b16 %v4783, %v4775
    %v5032 = vpack.c.b16 %v4784, %v4776
    %v5033 = vpack.c.b16 %v4785, %v4777
    %v5034 = vpack.c.b16 %v4786, %v4778
    %v5035 = vpack.c.b16 %v4787, %v4779
    %v5036 = vpack.c.b16 %v4788, %v4780
    %v5037 = vpack.c.b16 %v4789, %v4781
    %v5038 = vpack.c.b16 %v4798, %v4790
    %v5039 = vpack.c.b16 %v4799, %v4791
    %v5040 = vpack.c.b16 %v4800, %v4792
    %v5041 = vpack.c.b16 %v4801, %v4793
    %v5042 = vpack.c.b16 %v4802, %v4794
    %v5043 = vpack.c.b16 %v4803, %v4795
    %v5044 = vpack.c.b16 %v4804, %v4796
    %v5045 = vpack.c.b16 %v4805, %v4797
    %v5046 = vpack.c.b16 %v4814, %v4806
    %v5047 = vpack.c.b16 %v4815, %v4807
    %v5048 = vpack.c.b16 %v4816, %v4808
    %v5049 = vpack.c.b16 %v4817, %v4809
    %v5050 = vpack.c.b16 %v4818, %v4810
    %v5051 = vpack.c.b16 %v4819, %v4811
    %v5052 = vpack.c.b16 %v4820, %v4812
    %v5053 = vpack.c.b16 %v4821, %v4813
    %v5054 = vpack.c.b16 %v4830, %v4822
    %v5055 = vpack.c.b16 %v4831, %v4823
    %v5056 = vpack.c.b16 %v4832, %v4824
    %v5057 = vpack.c.b16 %v4833, %v4825
    %v5058 = vpack.c.b16 %v4834, %v4826
    %v5059 = vpack.c.b16 %v4835, %v4827
    %v5060 = vpack.c.b16 %v4836, %v4828
    %v5061 = vpack.c.b16 %v4837, %v4829
    %v5062 = vpack.c.b16 %v4846, %v4838
    %v5063 = vpack.c.b16 %v4847, %v4839
    %v5064 = vpack.c.b16 %v4848, %v4840
    %v5065 = vpack.c.b16 %v4849, %v4841
    %v5066 = vpack.c.b16 %v4850, %v4842
    %v5067 = vpack.c.b16 %v4851, %v4843
    %v5068 = vpack.c.b16 %v4852, %v4844
    %v5069 = vpack.c.b16 %v4853, %v4845
    %v5070 = vpack.c.b16 %v4862, %v4854
    %v5071 = vpack.c.b16 %v4863, %v4855
    %v5072 = vpack.c.b16 %v4864, %v4856
    %v5073 = vpack.c.b16 %v4865, %v4857
    %v5074 = vpack.c.b16 %v4866, %v4858
    %v5075 = vpack.c.b16 %v4867, %v4859
    %v5076 = vpack.c.b16 %v4868, %v4860
    %v5077 = vpack.c.b16 %v4869, %v4861
    %v5078 = vpack.c.b16 %v4878, %v4870
    %v5079 = vpack.c.b16 %v4879, %v4871
    %v5080 = vpack.c.b16 %v4880, %v4872
    %v5081 = vpack.c.b16 %v4881, %v4873
    %v5082 = vpack.c.b16 %v4882, %v4874
    %v5083 = vpack.c.b16 %v4883, %v4875
    %v5084 = vpack.c.b16 %v4884, %v4876
    %v5085 = vpack.c.b16 %v4885, %v4877
    %v5086 = vpack.c.b16 %v4894, %v4886
    %v5087 = vpack.c.b16 %v4895, %v4887
    %v5088 = vpack.c.b16 %v4896, %v4888
    %v5089 = vpack.c.b16 %v4897, %v4889
    %v5090 = vpack.c.b16 %v4898, %v4890
    %v5091 = vpack.c.b16 %v4899, %v4891
    %v5092 = vpack.c.b16 %v4900, %v4892
    %v5093 = vpack.c.b16 %v4901, %v4893
    %v5094 = vpack.c.b16 %v4910, %v4902
    %v5095 = vpack.c.b16 %v4911, %v4903
    %v5096 = vpack.c.b16 %v4912, %v4904
    %v5097 = vpack.c.b16 %v4913, %v4905
    %v5098 = vpack.c.b16 %v4914, %v4906
    %v5099 = vpack.c.b16 %v4915, %v4907
    %v5100 = vpack.c.b16 %v4916, %v4908
    %v5101 = vpack.c.b16 %v4917, %v4909
    %v5102 = vpack.c.b16 %v4926, %v4918
    %v5103 = vpack.c.b16 %v4927, %v4919
    %v5104 = vpack.c.b16 %v4928, %v4920
    %v5105 = vpack.c.b16 %v4929, %v4921
    %v5106 = vpack.c.b16 %v4930, %v4922
    %v5107 = vpack.c.b16 %v4931, %v4923
    %v5108 = vpack.c.b16 %v4932, %v4924
    %v5109 = vpack.c.b16 %v4933, %v4925
    %v5110 = vpack.c.b16 %v4942, %v4934
    %v5111 = vpack.c.b16 %v4943, %v4935
    %v5112 = vpack.c.b16 %v4944, %v4936
    %v5113 = vpack.c.b16 %v4945, %v4937
    %v5114 = vpack.c.b16 %v4946, %v4938
    %v5115 = vpack.c.b16 %v4947, %v4939
    %v5116 = vpack.c.b16 %v4948, %v4940
    %v5117 = vpack.c.b16 %v4949, %v4941
    %v5118 = vpack.c.b16 %v4958, %v4950
    %v5119 = vpack.c.b16 %v4959, %v4951
    %v5120 = vpack.c.b16 %v4960, %v4952
    %v5121 = vpack.c.b16 %v4961, %v4953
    %v5122 = vpack.c.b16 %v4962, %v4954
    %v5123 = vpack.c.b16 %v4963, %v4955
    %v5124 = vpack.c.b16 %v4964, %v4956
    %v5125 = vpack.c.b16 %v4965, %v4957
    %v5126 = vpack.c.b16 %v4974, %v4966
    %v5127 = vpack.c.b16 %v4975, %v4967
    %v5128 = vpack.c.b16 %v4976, %v4968
    %v5129 = vpack.c.b16 %v4977, %v4969
    %v5130 = vpack.c.b16 %v4978, %v4970
    %v5131 = vpack.c.b16 %v4979, %v4971
    %v5132 = vpack.c.b16 %v4980, %v4972
    %v5133 = vpack.c.b16 %v4981, %v4973
    %v5134 = vpack.c.b16 %v4990, %v4982
    %v5135 = vpack.c.b16 %v4991, %v4983
    %v5136 = vpack.c.b16 %v4992, %v4984
    %v5137 = vpack.c.b16 %v4993, %v4985
    %v5138 = vpack.c.b16 %v4994, %v4986
    %v5139 = vpack.c.b16 %v4995, %v4987
    %v5140 = vpack.c.b16 %v4996, %v4988
    %v5141 = vpack.c.b16 %v4997, %v4989
    %v5142 = vpack.c.b16 %v5006, %v4998
    %v5143 = vpack.c.b16 %v5007, %v4999
    %v5144 = vpack.c.b16 %v5008, %v5000
    %v5145 = vpack.c.b16 %v5009, %v5001
    %v5146 = vpack.c.b16 %v5010, %v5002
    %v5147 = vpack.c.b16 %v5011, %v5003
    %v5148 = vpack.c.b16 %v5012, %v5004
    %v5149 = vpack.c.b16 %v5013, %v5005
    %v5150 = vpack.c.b16 %v5022, %v5014
    %v5151 = vpack.c.b16 %v5023, %v5015
    %v5152 = vpack.c.b16 %v5024, %v5016
    %v5153 = vpack.c.b16 %v5025, %v5017
    %v5154 = vpack.c.b16 %v5026, %v5018
    %v5155 = vpack.c.b16 %v5027, %v5019
    %v5156 = vpack.c.b16 %v5028, %v5020
    %v5157 = vpack.c.b16 %v5029, %v5021
    %5286 = vmatprep.subr.bf16.mxu0 %v5031
    %5287 = vmatpush1.bf16.msra.mxu0 %v5030
    %5288 = vmatprep.subr.bf16.mxu0 %v5039
    %5289 = vmatpush1.bf16.msra.mxu0 %v5038
    %5290 = vmatprep.subr.bf16.mxu0 %v5047
    %5291 = vmatpush1.bf16.msra.mxu0 %v5046
    %5292 = vmatprep.subr.bf16.mxu0 %v5055
    %5293 = vmatpush1.bf16.msra.mxu0 %v5054
    %5294 = vmatprep.subr.bf16.mxu0 %v5063
    %5295 = vmatpush1.bf16.msra.mxu0 %v5062
    %5296 = vmatprep.subr.bf16.mxu0 %v5071
    %5297 = vmatpush1.bf16.msra.mxu0 %v5070
    %5298 = vmatprep.subr.bf16.mxu0 %v5079
    %5299 = vmatpush1.bf16.msra.mxu0 %v5078
    %5300 = vmatprep.subr.bf16.mxu0 %v5087
    %5301 = vmatpush1.bf16.msra.mxu0 %v5086
    %5302 = vmatprep.subr.bf16.mxu0 %v5095
    %5303 = vmatpush1.bf16.msra.mxu0 %v5094
    %5304 = vmatprep.subr.bf16.mxu0 %v5103
    %5305 = vmatpush1.bf16.msra.mxu0 %v5102
    %5306 = vmatprep.subr.bf16.mxu0 %v5111
    %5307 = vmatpush1.bf16.msra.mxu0 %v5110
    %5308 = vmatprep.subr.bf16.mxu0 %v5119
    %5309 = vmatpush1.bf16.msra.mxu0 %v5118
    %5310 = vmatprep.subr.bf16.mxu0 %v5127
    %5311 = vmatpush1.bf16.msra.mxu0 %v5126
    %5312 = vmatprep.subr.bf16.mxu0 %v5135
    %5313 = vmatpush1.bf16.msra.mxu0 %v5134
    %5314 = vmatprep.subr.bf16.mxu0 %v5143
    %5315 = vmatpush1.bf16.msra.mxu0 %v5142
    %5316 = vmatprep.subr.bf16.mxu0 %v5151
    %5317 = vmatpush1.bf16.msra.mxu0 %v5150
    %5318 = vmatprep.mubr.bf16.mxu0 %v4517
    %5319 = vmatmul.mubr.bf16.gmra.mrb[0].mxu0 %v4516
    %v5320 = vpop.f32.mrb[0].mxu0
    %v5321 = vadd.f32 0.0, %v5320
    %v5322 = vpop.f32.mrb[0].mxu0
    %v5323 = vadd.f32 0.0, %v5322
    %v5324 = vpop.f32.mrb[0].mxu0
    %v5325 = vpop.f32.mrb[0].mxu0
    %5326 = vdwg.mxu0
    %5327 = vmatprep.subr.bf16.mxu0 %v5033
    %5328 = vmatpush1.bf16.msra.mxu0 %v5032
    %5329 = vmatprep.subr.bf16.mxu0 %v5041
    %5330 = vmatpush1.bf16.msra.mxu0 %v5040
    %5331 = vmatprep.subr.bf16.mxu0 %v5049
    %5332 = vmatpush1.bf16.msra.mxu0 %v5048
    %5333 = vmatprep.subr.bf16.mxu0 %v5057
    %5334 = vmatpush1.bf16.msra.mxu0 %v5056
    %5335 = vmatprep.subr.bf16.mxu0 %v5065
    %5336 = vmatpush1.bf16.msra.mxu0 %v5064
    %5337 = vmatprep.subr.bf16.mxu0 %v5073
    %5338 = vmatpush1.bf16.msra.mxu0 %v5072
    %5339 = vmatprep.subr.bf16.mxu0 %v5081
    %5340 = vmatpush1.bf16.msra.mxu0 %v5080
    %5341 = vmatprep.subr.bf16.mxu0 %v5089
    %5342 = vmatpush1.bf16.msra.mxu0 %v5088
    %5343 = vmatprep.subr.bf16.mxu0 %v5097
    %5344 = vmatpush1.bf16.msra.mxu0 %v5096
    %5345 = vmatprep.subr.bf16.mxu0 %v5105
    %5346 = vmatpush1.bf16.msra.mxu0 %v5104
    %5347 = vmatprep.subr.bf16.mxu0 %v5113
    %5348 = vmatpush1.bf16.msra.mxu0 %v5112
    %5349 = vmatprep.subr.bf16.mxu0 %v5121
    %5350 = vmatpush1.bf16.msra.mxu0 %v5120
    %5351 = vmatprep.subr.bf16.mxu0 %v5129
    %5352 = vmatpush1.bf16.msra.mxu0 %v5128
    %5353 = vmatprep.subr.bf16.mxu0 %v5137
    %5354 = vmatpush1.bf16.msra.mxu0 %v5136
    %5355 = vmatprep.subr.bf16.mxu0 %v5145
    %5356 = vmatpush1.bf16.msra.mxu0 %v5144
    %5357 = vmatprep.subr.bf16.mxu0 %v5153
    %5358 = vmatpush1.bf16.msra.mxu0 %v5152
    %5359 = vmatprep.mubr.bf16.mxu0 %v4517
    %5360 = vmatmul.mubr.bf16.gmra.mrb[0].mxu0 %v4516
    %v5361 = vpop.f32.mrb[0].mxu0
    %v5362 = vadd.f32 0.0, %v5361
    %v5363 = vpop.f32.mrb[0].mxu0
    %v5364 = vadd.f32 0.0, %v5363
    %v5365 = vpop.f32.mrb[0].mxu0
    %v5366 = vpop.f32.mrb[0].mxu0
    %5367 = vdwg.mxu0
    %5368 = vmatprep.subr.bf16.mxu0 %v5035
    %5369 = vmatpush1.bf16.msra.mxu0 %v5034
    %5370 = vmatprep.subr.bf16.mxu0 %v5043
    %5371 = vmatpush1.bf16.msra.mxu0 %v5042
    %5372 = vmatprep.subr.bf16.mxu0 %v5051
    %5373 = vmatpush1.bf16.msra.mxu0 %v5050
    %5374 = vmatprep.subr.bf16.mxu0 %v5059
    %5375 = vmatpush1.bf16.msra.mxu0 %v5058
    %5376 = vmatprep.subr.bf16.mxu0 %v5067
    %5377 = vmatpush1.bf16.msra.mxu0 %v5066
    %5378 = vmatprep.subr.bf16.mxu0 %v5075
    %5379 = vmatpush1.bf16.msra.mxu0 %v5074
    %5380 = vmatprep.subr.bf16.mxu0 %v5083
    %5381 = vmatpush1.bf16.msra.mxu0 %v5082
    %5382 = vmatprep.subr.bf16.mxu0 %v5091
    %5383 = vmatpush1.bf16.msra.mxu0 %v5090
    %5384 = vmatprep.subr.bf16.mxu0 %v5099
    %5385 = vmatpush1.bf16.msra.mxu0 %v5098
    %5386 = vmatprep.subr.bf16.mxu0 %v5107
    %5387 = vmatpush1.bf16.msra.mxu0 %v5106
    %5388 = vmatprep.subr.bf16.mxu0 %v5115
    %5389 = vmatpush1.bf16.msra.mxu0 %v5114
    %5390 = vmatprep.subr.bf16.mxu0 %v5123
    %5391 = vmatpush1.bf16.msra.mxu0 %v5122
    %5392 = vmatprep.subr.bf16.mxu0 %v5131
    %5393 = vmatpush1.bf16.msra.mxu0 %v5130
    %5394 = vmatprep.subr.bf16.mxu0 %v5139
    %5395 = vmatpush1.bf16.msra.mxu0 %v5138
    %5396 = vmatprep.subr.bf16.mxu0 %v5147
    %5397 = vmatpush1.bf16.msra.mxu0 %v5146
    %5398 = vmatprep.subr.bf16.mxu0 %v5155
    %5399 = vmatpush1.bf16.msra.mxu0 %v5154
    %5400 = vmatprep.mubr.bf16.mxu0 %v4517
    %5401 = vmatmul.mubr.bf16.gmra.mrb[0].mxu0 %v4516
    %v5402 = vpop.f32.mrb[0].mxu0
    %v5403 = vadd.f32 0.0, %v5402
    %v5404 = vpop.f32.mrb[0].mxu0
    %v5405 = vadd.f32 0.0, %v5404
    %v5406 = vpop.f32.mrb[0].mxu0
    %v5407 = vpop.f32.mrb[0].mxu0
    %5408 = vdwg.mxu0
    %5409 = vmatprep.subr.bf16.mxu0 %v5037
    %5410 = vmatpush1.bf16.msra.mxu0 %v5036
    %5411 = vmatprep.subr.bf16.mxu0 %v5045
    %5412 = vmatpush1.bf16.msra.mxu0 %v5044
    %5413 = vmatprep.subr.bf16.mxu0 %v5053
    %5414 = vmatpush1.bf16.msra.mxu0 %v5052
    %5415 = vmatprep.subr.bf16.mxu0 %v5061
    %5416 = vmatpush1.bf16.msra.mxu0 %v5060
    %5417 = vmatprep.subr.bf16.mxu0 %v5069
    %5418 = vmatpush1.bf16.msra.mxu0 %v5068
    %5419 = vmatprep.subr.bf16.mxu0 %v5077
    %5420 = vmatpush1.bf16.msra.mxu0 %v5076
    %5421 = vmatprep.subr.bf16.mxu0 %v5085
    %5422 = vmatpush1.bf16.msra.mxu0 %v5084
    %5423 = vmatprep.subr.bf16.mxu0 %v5093
    %5424 = vmatpush1.bf16.msra.mxu0 %v5092
    %5425 = vmatprep.subr.bf16.mxu0 %v5101
    %5426 = vmatpush1.bf16.msra.mxu0 %v5100
    %5427 = vmatprep.subr.bf16.mxu0 %v5109
    %5428 = vmatpush1.bf16.msra.mxu0 %v5108
    %5429 = vmatprep.subr.bf16.mxu0 %v5117
    %5430 = vmatpush1.bf16.msra.mxu0 %v5116
    %5431 = vmatprep.subr.bf16.mxu0 %v5125
    %5432 = vmatpush1.bf16.msra.mxu0 %v5124
    %5433 = vmatprep.subr.bf16.mxu0 %v5133
    %5434 = vmatpush1.bf16.msra.mxu0 %v5132
    %5435 = vmatprep.subr.bf16.mxu0 %v5141
    %5436 = vmatpush1.bf16.msra.mxu0 %v5140
    %5437 = vmatprep.subr.bf16.mxu0 %v5149
    %5438 = vmatpush1.bf16.msra.mxu0 %v5148
    %5439 = vmatprep.subr.bf16.mxu0 %v5157
    %5440 = vmatpush1.bf16.msra.mxu0 %v5156
    %5441 = vmatprep.mubr.bf16.mxu0 %v4517
    %5442 = vmatmul.mubr.bf16.gmra.mrb[0].mxu0 %v4516
    %v5443 = vpop.f32.mrb[0].mxu0
    %v5444 = vadd.f32 0.0, %v5443
    %v5445 = vpop.f32.mrb[0].mxu0
    %v5446 = vadd.f32 0.0, %v5445
    %v5447 = vpop.f32.mrb[0].mxu0
    %v5448 = vpop.f32.mrb[0].mxu0
    %5449 = vdwg.mxu0
    %s5450 = scalar_lea.vmem [#allocation3], 160
    %v5451 = vld [vmem:[%s5450] sm:$0xff]
    %v5452 = vld [vmem:[%s5450 + $0x8] sm:$0xff]
    %v5453 = vld [vmem:[%s5450 + $0x10] sm:$0xff]
    %v5454 = vld [vmem:[%s5450 + $0x18] sm:$0xff]
    %v5455 = vadd.f32 %v5321, %v5451
    %v5456 = vadd.f32 %v5323, %v5452
    %v5457 = vadd.f32 %v5362, %v5453
    %v5458 = vadd.f32 %v5364, %v5454
    %v5459 = vadd.f32 %v5403, %v1455
    %v5460 = vadd.f32 %v5405, %v1459
    %v5461 = vadd.f32 %v5444, %v1463
    %v5462 = vadd.f32 %v5446, %v1467
    %v5463 = vxor.u32 %v5455, 2147483648
    %v5464 = vmul.f32 %v5463, 1.442695
    %v5465 = vpow.pop %v5464
    %v5466 = vadd.f32 %v5465, 1.0
    %v5467 = vrcp.pop %v5466
    %v5468 = vmul.f32 1.0, %v5467
    %v5469 = vxor.u32 %v5456, 2147483648
    %v5470 = vmul.f32 %v5469, 1.442695
    %v5471 = vpow.pop %v5470
    %v5472 = vadd.f32 %v5471, 1.0
    %v5473 = vrcp.pop %v5472
    %v5474 = vmul.f32 1.0, %v5473
    %v5475 = vtanh.pop %v5457
    %v5476 = vxor.u32 %v5458, 2147483648
    %v5477 = vmul.f32 %v5476, 1.442695
    %v5478 = vpow.pop %v5477
    %v5479 = vadd.f32 %v5478, 1.0
    %v5480 = vrcp.pop %v5479
    %v5481 = vmul.f32 1.0, %v5480
    %v5482 = vmul.f32 %v5474, %v4487
    %v5483 = vmul.f32 %v5468, %v5475
    %v5484 = vadd.f32 %v5482, %v5483
    %v5485 = vtanh.pop %v5484
    %v5486 = vmul.f32 %v5481, %v5485
    %v5487 = vxor.u32 %v5459, 2147483648
    %v5488 = vmul.f32 %v5487, 1.442695
    %v5489 = vpow.pop %v5488
    %v5490 = vadd.f32 %v5489, 1.0
    %v5491 = vrcp.pop %v5490
    %v5492 = vmul.f32 1.0, %v5491
    %v5493 = vxor.u32 %v5460, 2147483648
    %v5494 = vmul.f32 %v5493, 1.442695
    %v5495 = vpow.pop %v5494
    %v5496 = vadd.f32 %v5495, 1.0
    %v5497 = vrcp.pop %v5496
    %v5498 = vmul.f32 1.0, %v5497
    %v5499 = vtanh.pop %v5461
    %v5500 = vxor.u32 %v5462, 2147483648
    %v5501 = vmul.f32 %v5500, 1.442695
    %v5502 = vpow.pop %v5501
    %v5503 = vadd.f32 %v5502, 1.0
    %v5504 = vrcp.pop %v5503
    %v5505 = vmul.f32 1.0, %v5504
    %v5506 = vmul.f32 %v5498, %v4511
    %v5507 = vmul.f32 %v5492, %v5499
    %v5508 = vadd.f32 %v5506, %v5507
    %v5509 = vtanh.pop %v5508
    %v5510 = vmul.f32 %v5505, %v5509
    %s5511 = scalar_lea.vmem [#allocation2], 32
    %5512 = vst [vmem:[%s5511] sm:$0xff] %v5510
    %v5513 = vpack.c.bf16 %v5486, %v5486
    %v5514 = vpack.c.bf16 %v5510, %v5510
    %v5515 = vld [vmem:[#allocation11] sm:$0xff]
    %v5516 = vld [vmem:[#allocation11 + $0x8] sm:$0xff]
    %v5517 = vld [vmem:[#allocation11 + $0x10] sm:$0xff]
    %v5518 = vld [vmem:[#allocation11 + $0x18] sm:$0xff]
    %v5519 = vld [vmem:[#allocation11 + $0x20] sm:$0xff]
    %v5520 = vld [vmem:[#allocation11 + $0x28] sm:$0xff]
    %v5521 = vld [vmem:[#allocation11 + $0x30] sm:$0xff]
    %v5522 = vld [vmem:[#allocation11 + $0x38] sm:$0xff]
    %v5523 = vld [vmem:[#allocation11 + $0x40] sm:$0xff]
    %v5524 = vld [vmem:[#allocation11 + $0x48] sm:$0xff]
    %v5525 = vld [vmem:[#allocation11 + $0x50] sm:$0xff]
    %v5526 = vld [vmem:[#allocation11 + $0x58] sm:$0xff]
    %v5527 = vld [vmem:[#allocation11 + $0x60] sm:$0xff]
    %v5528 = vld [vmem:[#allocation11 + $0x68] sm:$0xff]
    %v5529 = vld [vmem:[#allocation11 + $0x70] sm:$0xff]
    %v5530 = vld [vmem:[#allocation11 + $0x78] sm:$0xff]
    %v5531 = vld [vmem:[#allocation11 + $0x80] sm:$0xff]
    %v5532 = vld [vmem:[#allocation11 + $0x88] sm:$0xff]
    %v5533 = vld [vmem:[#allocation11 + $0x90] sm:$0xff]
    %v5534 = vld [vmem:[#allocation11 + $0x98] sm:$0xff]
    %v5535 = vld [vmem:[#allocation11 + $0xa0] sm:$0xff]
    %v5536 = vld [vmem:[#allocation11 + $0xa8] sm:$0xff]
    %v5537 = vld [vmem:[#allocation11 + $0xb0] sm:$0xff]
    %v5538 = vld [vmem:[#allocation11 + $0xb8] sm:$0xff]
    %v5539 = vld [vmem:[#allocation11 + $0xc0] sm:$0xff]
    %v5540 = vld [vmem:[#allocation11 + $0xc8] sm:$0xff]
    %v5541 = vld [vmem:[#allocation11 + $0xd0] sm:$0xff]
    %v5542 = vld [vmem:[#allocation11 + $0xd8] sm:$0xff]
    %v5543 = vld [vmem:[#allocation11 + $0xe0] sm:$0xff]
    %v5544 = vld [vmem:[#allocation11 + $0xe8] sm:$0xff]
    %v5545 = vld [vmem:[#allocation11 + $0xf0] sm:$0xff]
    %v5546 = vld [vmem:[#allocation11 + $0xf8] sm:$0xff]
    %v5547 = vld [vmem:[#allocation11 + $0x100] sm:$0xff]
    %v5548 = vld [vmem:[#allocation11 + $0x108] sm:$0xff]
    %v5549 = vld [vmem:[#allocation11 + $0x110] sm:$0xff]
    %v5550 = vld [vmem:[#allocation11 + $0x118] sm:$0xff]
    %v5551 = vld [vmem:[#allocation11 + $0x120] sm:$0xff]
    %v5552 = vld [vmem:[#allocation11 + $0x128] sm:$0xff]
    %v5553 = vld [vmem:[#allocation11 + $0x130] sm:$0xff]
    %v5554 = vld [vmem:[#allocation11 + $0x138] sm:$0xff]
    %v5555 = vld [vmem:[#allocation11 + $0x140] sm:$0xff]
    %v5556 = vld [vmem:[#allocation11 + $0x148] sm:$0xff]
    %v5557 = vld [vmem:[#allocation11 + $0x150] sm:$0xff]
    %v5558 = vld [vmem:[#allocation11 + $0x158] sm:$0xff]
    %v5559 = vld [vmem:[#allocation11 + $0x160] sm:$0xff]
    %v5560 = vld [vmem:[#allocation11 + $0x168] sm:$0xff]
    %v5561 = vld [vmem:[#allocation11 + $0x170] sm:$0xff]
    %v5562 = vld [vmem:[#allocation11 + $0x178] sm:$0xff]
    %v5563 = vld [vmem:[#allocation11 + $0x180] sm:$0xff]
    %v5564 = vld [vmem:[#allocation11 + $0x188] sm:$0xff]
    %v5565 = vld [vmem:[#allocation11 + $0x190] sm:$0xff]
    %v5566 = vld [vmem:[#allocation11 + $0x198] sm:$0xff]
    %v5567 = vld [vmem:[#allocation11 + $0x1a0] sm:$0xff]
    %v5568 = vld [vmem:[#allocation11 + $0x1a8] sm:$0xff]
    %v5569 = vld [vmem:[#allocation11 + $0x1b0] sm:$0xff]
    %v5570 = vld [vmem:[#allocation11 + $0x1b8] sm:$0xff]
    %v5571 = vld [vmem:[#allocation11 + $0x1c0] sm:$0xff]
    %v5572 = vld [vmem:[#allocation11 + $0x1c8] sm:$0xff]
    %v5573 = vld [vmem:[#allocation11 + $0x1d0] sm:$0xff]
    %v5574 = vld [vmem:[#allocation11 + $0x1d8] sm:$0xff]
    %v5575 = vld [vmem:[#allocation11 + $0x1e0] sm:$0xff]
    %v5576 = vld [vmem:[#allocation11 + $0x1e8] sm:$0xff]
    %v5577 = vld [vmem:[#allocation11 + $0x1f0] sm:$0xff]
    %v5578 = vld [vmem:[#allocation11 + $0x1f8] sm:$0xff]
    %v5579 = vld [vmem:[#allocation11 + $0x200] sm:$0xff]
    %v5580 = vld [vmem:[#allocation11 + $0x208] sm:$0xff]
    %v5581 = vld [vmem:[#allocation11 + $0x210] sm:$0xff]
    %v5582 = vld [vmem:[#allocation11 + $0x218] sm:$0xff]
    %v5583 = vld [vmem:[#allocation11 + $0x220] sm:$0xff]
    %v5584 = vld [vmem:[#allocation11 + $0x228] sm:$0xff]
    %v5585 = vld [vmem:[#allocation11 + $0x230] sm:$0xff]
    %v5586 = vld [vmem:[#allocation11 + $0x238] sm:$0xff]
    %v5587 = vld [vmem:[#allocation11 + $0x240] sm:$0xff]
    %v5588 = vld [vmem:[#allocation11 + $0x248] sm:$0xff]
    %v5589 = vld [vmem:[#allocation11 + $0x250] sm:$0xff]
    %v5590 = vld [vmem:[#allocation11 + $0x258] sm:$0xff]
    %v5591 = vld [vmem:[#allocation11 + $0x260] sm:$0xff]
    %v5592 = vld [vmem:[#allocation11 + $0x268] sm:$0xff]
    %v5593 = vld [vmem:[#allocation11 + $0x270] sm:$0xff]
    %v5594 = vld [vmem:[#allocation11 + $0x278] sm:$0xff]
    %v5595 = vld [vmem:[#allocation11 + $0x280] sm:$0xff]
    %v5596 = vld [vmem:[#allocation11 + $0x288] sm:$0xff]
    %v5597 = vld [vmem:[#allocation11 + $0x290] sm:$0xff]
    %v5598 = vld [vmem:[#allocation11 + $0x298] sm:$0xff]
    %v5599 = vld [vmem:[#allocation11 + $0x2a0] sm:$0xff]
    %v5600 = vld [vmem:[#allocation11 + $0x2a8] sm:$0xff]
    %v5601 = vld [vmem:[#allocation11 + $0x2b0] sm:$0xff]
    %v5602 = vld [vmem:[#allocation11 + $0x2b8] sm:$0xff]
    %v5603 = vld [vmem:[#allocation11 + $0x2c0] sm:$0xff]
    %v5604 = vld [vmem:[#allocation11 + $0x2c8] sm:$0xff]
    %v5605 = vld [vmem:[#allocation11 + $0x2d0] sm:$0xff]
    %v5606 = vld [vmem:[#allocation11 + $0x2d8] sm:$0xff]
    %v5607 = vld [vmem:[#allocation11 + $0x2e0] sm:$0xff]
    %v5608 = vld [vmem:[#allocation11 + $0x2e8] sm:$0xff]
    %v5609 = vld [vmem:[#allocation11 + $0x2f0] sm:$0xff]
    %v5610 = vld [vmem:[#allocation11 + $0x2f8] sm:$0xff]
    %v5611 = vld [vmem:[#allocation11 + $0x300] sm:$0xff]
    %v5612 = vld [vmem:[#allocation11 + $0x308] sm:$0xff]
    %v5613 = vld [vmem:[#allocation11 + $0x310] sm:$0xff]
    %v5614 = vld [vmem:[#allocation11 + $0x318] sm:$0xff]
    %v5615 = vld [vmem:[#allocation11 + $0x320] sm:$0xff]
    %v5616 = vld [vmem:[#allocation11 + $0x328] sm:$0xff]
    %v5617 = vld [vmem:[#allocation11 + $0x330] sm:$0xff]
    %v5618 = vld [vmem:[#allocation11 + $0x338] sm:$0xff]
    %v5619 = vld [vmem:[#allocation11 + $0x340] sm:$0xff]
    %v5620 = vld [vmem:[#allocation11 + $0x348] sm:$0xff]
    %v5621 = vld [vmem:[#allocation11 + $0x350] sm:$0xff]
    %v5622 = vld [vmem:[#allocation11 + $0x358] sm:$0xff]
    %v5623 = vld [vmem:[#allocation11 + $0x360] sm:$0xff]
    %v5624 = vld [vmem:[#allocation11 + $0x368] sm:$0xff]
    %v5625 = vld [vmem:[#allocation11 + $0x370] sm:$0xff]
    %v5626 = vld [vmem:[#allocation11 + $0x378] sm:$0xff]
    %v5627 = vld [vmem:[#allocation11 + $0x380] sm:$0xff]
    %v5628 = vld [vmem:[#allocation11 + $0x388] sm:$0xff]
    %v5629 = vld [vmem:[#allocation11 + $0x390] sm:$0xff]
    %v5630 = vld [vmem:[#allocation11 + $0x398] sm:$0xff]
    %v5631 = vld [vmem:[#allocation11 + $0x3a0] sm:$0xff]
    %v5632 = vld [vmem:[#allocation11 + $0x3a8] sm:$0xff]
    %v5633 = vld [vmem:[#allocation11 + $0x3b0] sm:$0xff]
    %v5634 = vld [vmem:[#allocation11 + $0x3b8] sm:$0xff]
    %v5635 = vld [vmem:[#allocation11 + $0x3c0] sm:$0xff]
    %v5636 = vld [vmem:[#allocation11 + $0x3c8] sm:$0xff]
    %v5637 = vld [vmem:[#allocation11 + $0x3d0] sm:$0xff]
    %v5638 = vld [vmem:[#allocation11 + $0x3d8] sm:$0xff]
    %v5639 = vld [vmem:[#allocation11 + $0x3e0] sm:$0xff]
    %v5640 = vld [vmem:[#allocation11 + $0x3e8] sm:$0xff]
    %v5641 = vld [vmem:[#allocation11 + $0x3f0] sm:$0xff]
    %v5642 = vld [vmem:[#allocation11 + $0x3f8] sm:$0xff]
    %v5771 = vunpack.c.l.b16 %v5515
    %v5772 = vunpack.c.h.b16 %v5515
    %v5773 = vunpack.c.l.b16 %v5516
    %v5774 = vunpack.c.h.b16 %v5516
    %v5775 = vunpack.c.l.b16 %v5517
    %v5776 = vunpack.c.h.b16 %v5517
    %v5777 = vunpack.c.l.b16 %v5518
    %v5778 = vunpack.c.h.b16 %v5518
    %v5779 = vunpack.c.l.b16 %v5519
    %v5780 = vunpack.c.h.b16 %v5519
    %v5781 = vunpack.c.l.b16 %v5520
    %v5782 = vunpack.c.h.b16 %v5520
    %v5783 = vunpack.c.l.b16 %v5521
    %v5784 = vunpack.c.h.b16 %v5521
    %v5785 = vunpack.c.l.b16 %v5522
    %v5786 = vunpack.c.h.b16 %v5522
    %v5787 = vunpack.c.l.b16 %v5523
    %v5788 = vunpack.c.h.b16 %v5523
    %v5789 = vunpack.c.l.b16 %v5524
    %v5790 = vunpack.c.h.b16 %v5524
    %v5791 = vunpack.c.l.b16 %v5525
    %v5792 = vunpack.c.h.b16 %v5525
    %v5793 = vunpack.c.l.b16 %v5526
    %v5794 = vunpack.c.h.b16 %v5526
    %v5795 = vunpack.c.l.b16 %v5527
    %v5796 = vunpack.c.h.b16 %v5527
    %v5797 = vunpack.c.l.b16 %v5528
    %v5798 = vunpack.c.h.b16 %v5528
    %v5799 = vunpack.c.l.b16 %v5529
    %v5800 = vunpack.c.h.b16 %v5529
    %v5801 = vunpack.c.l.b16 %v5530
    %v5802 = vunpack.c.h.b16 %v5530
    %v5803 = vunpack.c.l.b16 %v5531
    %v5804 = vunpack.c.h.b16 %v5531
    %v5805 = vunpack.c.l.b16 %v5532
    %v5806 = vunpack.c.h.b16 %v5532
    %v5807 = vunpack.c.l.b16 %v5533
    %v5808 = vunpack.c.h.b16 %v5533
    %v5809 = vunpack.c.l.b16 %v5534
    %v5810 = vunpack.c.h.b16 %v5534
    %v5811 = vunpack.c.l.b16 %v5535
    %v5812 = vunpack.c.h.b16 %v5535
    %v5813 = vunpack.c.l.b16 %v5536
    %v5814 = vunpack.c.h.b16 %v5536
    %v5815 = vunpack.c.l.b16 %v5537
    %v5816 = vunpack.c.h.b16 %v5537
    %v5817 = vunpack.c.l.b16 %v5538
    %v5818 = vunpack.c.h.b16 %v5538
    %v5819 = vunpack.c.l.b16 %v5539
    %v5820 = vunpack.c.h.b16 %v5539
    %v5821 = vunpack.c.l.b16 %v5540
    %v5822 = vunpack.c.h.b16 %v5540
    %v5823 = vunpack.c.l.b16 %v5541
    %v5824 = vunpack.c.h.b16 %v5541
    %v5825 = vunpack.c.l.b16 %v5542
    %v5826 = vunpack.c.h.b16 %v5542
    %v5827 = vunpack.c.l.b16 %v5543
    %v5828 = vunpack.c.h.b16 %v5543
    %v5829 = vunpack.c.l.b16 %v5544
    %v5830 = vunpack.c.h.b16 %v5544
    %v5831 = vunpack.c.l.b16 %v5545
    %v5832 = vunpack.c.h.b16 %v5545
    %v5833 = vunpack.c.l.b16 %v5546
    %v5834 = vunpack.c.h.b16 %v5546
    %v5835 = vunpack.c.l.b16 %v5547
    %v5836 = vunpack.c.h.b16 %v5547
    %v5837 = vunpack.c.l.b16 %v5548
    %v5838 = vunpack.c.h.b16 %v5548
    %v5839 = vunpack.c.l.b16 %v5549
    %v5840 = vunpack.c.h.b16 %v5549
    %v5841 = vunpack.c.l.b16 %v5550
    %v5842 = vunpack.c.h.b16 %v5550
    %v5843 = vunpack.c.l.b16 %v5551
    %v5844 = vunpack.c.h.b16 %v5551
    %v5845 = vunpack.c.l.b16 %v5552
    %v5846 = vunpack.c.h.b16 %v5552
    %v5847 = vunpack.c.l.b16 %v5553
    %v5848 = vunpack.c.h.b16 %v5553
    %v5849 = vunpack.c.l.b16 %v5554
    %v5850 = vunpack.c.h.b16 %v5554
    %v5851 = vunpack.c.l.b16 %v5555
    %v5852 = vunpack.c.h.b16 %v5555
    %v5853 = vunpack.c.l.b16 %v5556
    %v5854 = vunpack.c.h.b16 %v5556
    %v5855 = vunpack.c.l.b16 %v5557
    %v5856 = vunpack.c.h.b16 %v5557
    %v5857 = vunpack.c.l.b16 %v5558
    %v5858 = vunpack.c.h.b16 %v5558
    %v5859 = vunpack.c.l.b16 %v5559
    %v5860 = vunpack.c.h.b16 %v5559
    %v5861 = vunpack.c.l.b16 %v5560
    %v5862 = vunpack.c.h.b16 %v5560
    %v5863 = vunpack.c.l.b16 %v5561
    %v5864 = vunpack.c.h.b16 %v5561
    %v5865 = vunpack.c.l.b16 %v5562
    %v5866 = vunpack.c.h.b16 %v5562
    %v5867 = vunpack.c.l.b16 %v5563
    %v5868 = vunpack.c.h.b16 %v5563
    %v5869 = vunpack.c.l.b16 %v5564
    %v5870 = vunpack.c.h.b16 %v5564
    %v5871 = vunpack.c.l.b16 %v5565
    %v5872 = vunpack.c.h.b16 %v5565
    %v5873 = vunpack.c.l.b16 %v5566
    %v5874 = vunpack.c.h.b16 %v5566
    %v5875 = vunpack.c.l.b16 %v5567
    %v5876 = vunpack.c.h.b16 %v5567
    %v5877 = vunpack.c.l.b16 %v5568
    %v5878 = vunpack.c.h.b16 %v5568
    %v5879 = vunpack.c.l.b16 %v5569
    %v5880 = vunpack.c.h.b16 %v5569
    %v5881 = vunpack.c.l.b16 %v5570
    %v5882 = vunpack.c.h.b16 %v5570
    %v5883 = vunpack.c.l.b16 %v5571
    %v5884 = vunpack.c.h.b16 %v5571
    %v5885 = vunpack.c.l.b16 %v5572
    %v5886 = vunpack.c.h.b16 %v5572
    %v5887 = vunpack.c.l.b16 %v5573
    %v5888 = vunpack.c.h.b16 %v5573
    %v5889 = vunpack.c.l.b16 %v5574
    %v5890 = vunpack.c.h.b16 %v5574
    %v5891 = vunpack.c.l.b16 %v5575
    %v5892 = vunpack.c.h.b16 %v5575
    %v5893 = vunpack.c.l.b16 %v5576
    %v5894 = vunpack.c.h.b16 %v5576
    %v5895 = vunpack.c.l.b16 %v5577
    %v5896 = vunpack.c.h.b16 %v5577
    %v5897 = vunpack.c.l.b16 %v5578
    %v5898 = vunpack.c.h.b16 %v5578
    %v5899 = vunpack.c.l.b16 %v5579
    %v5900 = vunpack.c.h.b16 %v5579
    %v5901 = vunpack.c.l.b16 %v5580
    %v5902 = vunpack.c.h.b16 %v5580
    %v5903 = vunpack.c.l.b16 %v5581
    %v5904 = vunpack.c.h.b16 %v5581
    %v5905 = vunpack.c.l.b16 %v5582
    %v5906 = vunpack.c.h.b16 %v5582
    %v5907 = vunpack.c.l.b16 %v5583
    %v5908 = vunpack.c.h.b16 %v5583
    %v5909 = vunpack.c.l.b16 %v5584
    %v5910 = vunpack.c.h.b16 %v5584
    %v5911 = vunpack.c.l.b16 %v5585
    %v5912 = vunpack.c.h.b16 %v5585
    %v5913 = vunpack.c.l.b16 %v5586
    %v5914 = vunpack.c.h.b16 %v5586
    %v5915 = vunpack.c.l.b16 %v5587
    %v5916 = vunpack.c.h.b16 %v5587
    %v5917 = vunpack.c.l.b16 %v5588
    %v5918 = vunpack.c.h.b16 %v5588
    %v5919 = vunpack.c.l.b16 %v5589
    %v5920 = vunpack.c.h.b16 %v5589
    %v5921 = vunpack.c.l.b16 %v5590
    %v5922 = vunpack.c.h.b16 %v5590
    %v5923 = vunpack.c.l.b16 %v5591
    %v5924 = vunpack.c.h.b16 %v5591
    %v5925 = vunpack.c.l.b16 %v5592
    %v5926 = vunpack.c.h.b16 %v5592
    %v5927 = vunpack.c.l.b16 %v5593
    %v5928 = vunpack.c.h.b16 %v5593
    %v5929 = vunpack.c.l.b16 %v5594
    %v5930 = vunpack.c.h.b16 %v5594
    %v5931 = vunpack.c.l.b16 %v5595
    %v5932 = vunpack.c.h.b16 %v5595
    %v5933 = vunpack.c.l.b16 %v5596
    %v5934 = vunpack.c.h.b16 %v5596
    %v5935 = vunpack.c.l.b16 %v5597
    %v5936 = vunpack.c.h.b16 %v5597
    %v5937 = vunpack.c.l.b16 %v5598
    %v5938 = vunpack.c.h.b16 %v5598
    %v5939 = vunpack.c.l.b16 %v5599
    %v5940 = vunpack.c.h.b16 %v5599
    %v5941 = vunpack.c.l.b16 %v5600
    %v5942 = vunpack.c.h.b16 %v5600
    %v5943 = vunpack.c.l.b16 %v5601
    %v5944 = vunpack.c.h.b16 %v5601
    %v5945 = vunpack.c.l.b16 %v5602
    %v5946 = vunpack.c.h.b16 %v5602
    %v5947 = vunpack.c.l.b16 %v5603
    %v5948 = vunpack.c.h.b16 %v5603
    %v5949 = vunpack.c.l.b16 %v5604
    %v5950 = vunpack.c.h.b16 %v5604
    %v5951 = vunpack.c.l.b16 %v5605
    %v5952 = vunpack.c.h.b16 %v5605
    %v5953 = vunpack.c.l.b16 %v5606
    %v5954 = vunpack.c.h.b16 %v5606
    %v5955 = vunpack.c.l.b16 %v5607
    %v5956 = vunpack.c.h.b16 %v5607
    %v5957 = vunpack.c.l.b16 %v5608
    %v5958 = vunpack.c.h.b16 %v5608
    %v5959 = vunpack.c.l.b16 %v5609
    %v5960 = vunpack.c.h.b16 %v5609
    %v5961 = vunpack.c.l.b16 %v5610
    %v5962 = vunpack.c.h.b16 %v5610
    %v5963 = vunpack.c.l.b16 %v5611
    %v5964 = vunpack.c.h.b16 %v5611
    %v5965 = vunpack.c.l.b16 %v5612
    %v5966 = vunpack.c.h.b16 %v5612
    %v5967 = vunpack.c.l.b16 %v5613
    %v5968 = vunpack.c.h.b16 %v5613
    %v5969 = vunpack.c.l.b16 %v5614
    %v5970 = vunpack.c.h.b16 %v5614
    %v5971 = vunpack.c.l.b16 %v5615
    %v5972 = vunpack.c.h.b16 %v5615
    %v5973 = vunpack.c.l.b16 %v5616
    %v5974 = vunpack.c.h.b16 %v5616
    %v5975 = vunpack.c.l.b16 %v5617
    %v5976 = vunpack.c.h.b16 %v5617
    %v5977 = vunpack.c.l.b16 %v5618
    %v5978 = vunpack.c.h.b16 %v5618
    %v5979 = vunpack.c.l.b16 %v5619
    %v5980 = vunpack.c.h.b16 %v5619
    %v5981 = vunpack.c.l.b16 %v5620
    %v5982 = vunpack.c.h.b16 %v5620
    %v5983 = vunpack.c.l.b16 %v5621
    %v5984 = vunpack.c.h.b16 %v5621
    %v5985 = vunpack.c.l.b16 %v5622
    %v5986 = vunpack.c.h.b16 %v5622
    %v5987 = vunpack.c.l.b16 %v5623
    %v5988 = vunpack.c.h.b16 %v5623
    %v5989 = vunpack.c.l.b16 %v5624
    %v5990 = vunpack.c.h.b16 %v5624
    %v5991 = vunpack.c.l.b16 %v5625
    %v5992 = vunpack.c.h.b16 %v5625
    %v5993 = vunpack.c.l.b16 %v5626
    %v5994 = vunpack.c.h.b16 %v5626
    %v5995 = vunpack.c.l.b16 %v5627
    %v5996 = vunpack.c.h.b16 %v5627
    %v5997 = vunpack.c.l.b16 %v5628
    %v5998 = vunpack.c.h.b16 %v5628
    %v5999 = vunpack.c.l.b16 %v5629
    %v6000 = vunpack.c.h.b16 %v5629
    %v6001 = vunpack.c.l.b16 %v5630
    %v6002 = vunpack.c.h.b16 %v5630
    %v6003 = vunpack.c.l.b16 %v5631
    %v6004 = vunpack.c.h.b16 %v5631
    %v6005 = vunpack.c.l.b16 %v5632
    %v6006 = vunpack.c.h.b16 %v5632
    %v6007 = vunpack.c.l.b16 %v5633
    %v6008 = vunpack.c.h.b16 %v5633
    %v6009 = vunpack.c.l.b16 %v5634
    %v6010 = vunpack.c.h.b16 %v5634
    %v6011 = vunpack.c.l.b16 %v5635
    %v6012 = vunpack.c.h.b16 %v5635
    %v6013 = vunpack.c.l.b16 %v5636
    %v6014 = vunpack.c.h.b16 %v5636
    %v6015 = vunpack.c.l.b16 %v5637
    %v6016 = vunpack.c.h.b16 %v5637
    %v6017 = vunpack.c.l.b16 %v5638
    %v6018 = vunpack.c.h.b16 %v5638
    %v6019 = vunpack.c.l.b16 %v5639
    %v6020 = vunpack.c.h.b16 %v5639
    %v6021 = vunpack.c.l.b16 %v5640
    %v6022 = vunpack.c.h.b16 %v5640
    %v6023 = vunpack.c.l.b16 %v5641
    %v6024 = vunpack.c.h.b16 %v5641
    %v6025 = vunpack.c.l.b16 %v5642
    %v6026 = vunpack.c.h.b16 %v5642
    %v6027 = vpack.c.b16 %v5779, %v5771
    %v6028 = vpack.c.b16 %v5780, %v5772
    %v6029 = vpack.c.b16 %v5781, %v5773
    %v6030 = vpack.c.b16 %v5782, %v5774
    %v6031 = vpack.c.b16 %v5783, %v5775
    %v6032 = vpack.c.b16 %v5784, %v5776
    %v6033 = vpack.c.b16 %v5785, %v5777
    %v6034 = vpack.c.b16 %v5786, %v5778
    %v6035 = vpack.c.b16 %v5795, %v5787
    %v6036 = vpack.c.b16 %v5796, %v5788
    %v6037 = vpack.c.b16 %v5797, %v5789
    %v6038 = vpack.c.b16 %v5798, %v5790
    %v6039 = vpack.c.b16 %v5799, %v5791
    %v6040 = vpack.c.b16 %v5800, %v5792
    %v6041 = vpack.c.b16 %v5801, %v5793
    %v6042 = vpack.c.b16 %v5802, %v5794
    %v6043 = vpack.c.b16 %v5811, %v5803
    %v6044 = vpack.c.b16 %v5812, %v5804
    %v6045 = vpack.c.b16 %v5813, %v5805
    %v6046 = vpack.c.b16 %v5814, %v5806
    %v6047 = vpack.c.b16 %v5815, %v5807
    %v6048 = vpack.c.b16 %v5816, %v5808
    %v6049 = vpack.c.b16 %v5817, %v5809
    %v6050 = vpack.c.b16 %v5818, %v5810
    %v6051 = vpack.c.b16 %v5827, %v5819
    %v6052 = vpack.c.b16 %v5828, %v5820
    %v6053 = vpack.c.b16 %v5829, %v5821
    %v6054 = vpack.c.b16 %v5830, %v5822
    %v6055 = vpack.c.b16 %v5831, %v5823
    %v6056 = vpack.c.b16 %v5832, %v5824
    %v6057 = vpack.c.b16 %v5833, %v5825
    %v6058 = vpack.c.b16 %v5834, %v5826
    %v6059 = vpack.c.b16 %v5843, %v5835
    %v6060 = vpack.c.b16 %v5844, %v5836
    %v6061 = vpack.c.b16 %v5845, %v5837
    %v6062 = vpack.c.b16 %v5846, %v5838
    %v6063 = vpack.c.b16 %v5847, %v5839
    %v6064 = vpack.c.b16 %v5848, %v5840
    %v6065 = vpack.c.b16 %v5849, %v5841
    %v6066 = vpack.c.b16 %v5850, %v5842
    %v6067 = vpack.c.b16 %v5859, %v5851
    %v6068 = vpack.c.b16 %v5860, %v5852
    %v6069 = vpack.c.b16 %v5861, %v5853
    %v6070 = vpack.c.b16 %v5862, %v5854
    %v6071 = vpack.c.b16 %v5863, %v5855
    %v6072 = vpack.c.b16 %v5864, %v5856
    %v6073 = vpack.c.b16 %v5865, %v5857
    %v6074 = vpack.c.b16 %v5866, %v5858
    %v6075 = vpack.c.b16 %v5875, %v5867
    %v6076 = vpack.c.b16 %v5876, %v5868
    %v6077 = vpack.c.b16 %v5877, %v5869
    %v6078 = vpack.c.b16 %v5878, %v5870
    %v6079 = vpack.c.b16 %v5879, %v5871
    %v6080 = vpack.c.b16 %v5880, %v5872
    %v6081 = vpack.c.b16 %v5881, %v5873
    %v6082 = vpack.c.b16 %v5882, %v5874
    %v6083 = vpack.c.b16 %v5891, %v5883
    %v6084 = vpack.c.b16 %v5892, %v5884
    %v6085 = vpack.c.b16 %v5893, %v5885
    %v6086 = vpack.c.b16 %v5894, %v5886
    %v6087 = vpack.c.b16 %v5895, %v5887
    %v6088 = vpack.c.b16 %v5896, %v5888
    %v6089 = vpack.c.b16 %v5897, %v5889
    %v6090 = vpack.c.b16 %v5898, %v5890
    %v6091 = vpack.c.b16 %v5907, %v5899
    %v6092 = vpack.c.b16 %v5908, %v5900
    %v6093 = vpack.c.b16 %v5909, %v5901
    %v6094 = vpack.c.b16 %v5910, %v5902
    %v6095 = vpack.c.b16 %v5911, %v5903
    %v6096 = vpack.c.b16 %v5912, %v5904
    %v6097 = vpack.c.b16 %v5913, %v5905
    %v6098 = vpack.c.b16 %v5914, %v5906
    %v6099 = vpack.c.b16 %v5923, %v5915
    %v6100 = vpack.c.b16 %v5924, %v5916
    %v6101 = vpack.c.b16 %v5925, %v5917
    %v6102 = vpack.c.b16 %v5926, %v5918
    %v6103 = vpack.c.b16 %v5927, %v5919
    %v6104 = vpack.c.b16 %v5928, %v5920
    %v6105 = vpack.c.b16 %v5929, %v5921
    %v6106 = vpack.c.b16 %v5930, %v5922
    %v6107 = vpack.c.b16 %v5939, %v5931
    %v6108 = vpack.c.b16 %v5940, %v5932
    %v6109 = vpack.c.b16 %v5941, %v5933
    %v6110 = vpack.c.b16 %v5942, %v5934
    %v6111 = vpack.c.b16 %v5943, %v5935
    %v6112 = vpack.c.b16 %v5944, %v5936
    %v6113 = vpack.c.b16 %v5945, %v5937
    %v6114 = vpack.c.b16 %v5946, %v5938
    %v6115 = vpack.c.b16 %v5955, %v5947
    %v6116 = vpack.c.b16 %v5956, %v5948
    %v6117 = vpack.c.b16 %v5957, %v5949
    %v6118 = vpack.c.b16 %v5958, %v5950
    %v6119 = vpack.c.b16 %v5959, %v5951
    %v6120 = vpack.c.b16 %v5960, %v5952
    %v6121 = vpack.c.b16 %v5961, %v5953
    %v6122 = vpack.c.b16 %v5962, %v5954
    %v6123 = vpack.c.b16 %v5971, %v5963
    %v6124 = vpack.c.b16 %v5972, %v5964
    %v6125 = vpack.c.b16 %v5973, %v5965
    %v6126 = vpack.c.b16 %v5974, %v5966
    %v6127 = vpack.c.b16 %v5975, %v5967
    %v6128 = vpack.c.b16 %v5976, %v5968
    %v6129 = vpack.c.b16 %v5977, %v5969
    %v6130 = vpack.c.b16 %v5978, %v5970
    %v6131 = vpack.c.b16 %v5987, %v5979
    %v6132 = vpack.c.b16 %v5988, %v5980
    %v6133 = vpack.c.b16 %v5989, %v5981
    %v6134 = vpack.c.b16 %v5990, %v5982
    %v6135 = vpack.c.b16 %v5991, %v5983
    %v6136 = vpack.c.b16 %v5992, %v5984
    %v6137 = vpack.c.b16 %v5993, %v5985
    %v6138 = vpack.c.b16 %v5994, %v5986
    %v6139 = vpack.c.b16 %v6003, %v5995
    %v6140 = vpack.c.b16 %v6004, %v5996
    %v6141 = vpack.c.b16 %v6005, %v5997
    %v6142 = vpack.c.b16 %v6006, %v5998
    %v6143 = vpack.c.b16 %v6007, %v5999
    %v6144 = vpack.c.b16 %v6008, %v6000
    %v6145 = vpack.c.b16 %v6009, %v6001
    %v6146 = vpack.c.b16 %v6010, %v6002
    %v6147 = vpack.c.b16 %v6019, %v6011
    %v6148 = vpack.c.b16 %v6020, %v6012
    %v6149 = vpack.c.b16 %v6021, %v6013
    %v6150 = vpack.c.b16 %v6022, %v6014
    %v6151 = vpack.c.b16 %v6023, %v6015
    %v6152 = vpack.c.b16 %v6024, %v6016
    %v6153 = vpack.c.b16 %v6025, %v6017
    %v6154 = vpack.c.b16 %v6026, %v6018
    %6283 = vmatprep.subr.bf16.mxu0 %v6028
    %6284 = vmatpush1.bf16.msra.mxu0 %v6027
    %6285 = vmatprep.subr.bf16.mxu0 %v6036
    %6286 = vmatpush1.bf16.msra.mxu0 %v6035
    %6287 = vmatprep.subr.bf16.mxu0 %v6044
    %6288 = vmatpush1.bf16.msra.mxu0 %v6043
    %6289 = vmatprep.subr.bf16.mxu0 %v6052
    %6290 = vmatpush1.bf16.msra.mxu0 %v6051
    %6291 = vmatprep.subr.bf16.mxu0 %v6060
    %6292 = vmatpush1.bf16.msra.mxu0 %v6059
    %6293 = vmatprep.subr.bf16.mxu0 %v6068
    %6294 = vmatpush1.bf16.msra.mxu0 %v6067
    %6295 = vmatprep.subr.bf16.mxu0 %v6076
    %6296 = vmatpush1.bf16.msra.mxu0 %v6075
    %6297 = vmatprep.subr.bf16.mxu0 %v6084
    %6298 = vmatpush1.bf16.msra.mxu0 %v6083
    %6299 = vmatprep.subr.bf16.mxu0 %v6092
    %6300 = vmatpush1.bf16.msra.mxu0 %v6091
    %6301 = vmatprep.subr.bf16.mxu0 %v6100
    %6302 = vmatpush1.bf16.msra.mxu0 %v6099
    %6303 = vmatprep.subr.bf16.mxu0 %v6108
    %6304 = vmatpush1.bf16.msra.mxu0 %v6107
    %6305 = vmatprep.subr.bf16.mxu0 %v6116
    %6306 = vmatpush1.bf16.msra.mxu0 %v6115
    %6307 = vmatprep.subr.bf16.mxu0 %v6124
    %6308 = vmatpush1.bf16.msra.mxu0 %v6123
    %6309 = vmatprep.subr.bf16.mxu0 %v6132
    %6310 = vmatpush1.bf16.msra.mxu0 %v6131
    %6311 = vmatprep.subr.bf16.mxu0 %v6140
    %6312 = vmatpush1.bf16.msra.mxu0 %v6139
    %6313 = vmatprep.subr.bf16.mxu0 %v6148
    %6314 = vmatpush1.bf16.msra.mxu0 %v6147
    %6315 = vmatprep.mubr.bf16.mxu0 %v5514
    %6316 = vmatmul.mubr.bf16.gmra.mrb[0].mxu0 %v5513
    %v6317 = vpop.f32.mrb[0].mxu0
    %v6318 = vadd.f32 0.0, %v6317
    %v6319 = vpop.f32.mrb[0].mxu0
    %v6320 = vadd.f32 0.0, %v6319
    %v6321 = vpop.f32.mrb[0].mxu0
    %v6322 = vpop.f32.mrb[0].mxu0
    %6323 = vdwg.mxu0
    %6324 = vmatprep.subr.bf16.mxu0 %v6030
    %6325 = vmatpush1.bf16.msra.mxu0 %v6029
    %6326 = vmatprep.subr.bf16.mxu0 %v6038
    %6327 = vmatpush1.bf16.msra.mxu0 %v6037
    %6328 = vmatprep.subr.bf16.mxu0 %v6046
    %6329 = vmatpush1.bf16.msra.mxu0 %v6045
    %6330 = vmatprep.subr.bf16.mxu0 %v6054
    %6331 = vmatpush1.bf16.msra.mxu0 %v6053
    %6332 = vmatprep.subr.bf16.mxu0 %v6062
    %6333 = vmatpush1.bf16.msra.mxu0 %v6061
    %6334 = vmatprep.subr.bf16.mxu0 %v6070
    %6335 = vmatpush1.bf16.msra.mxu0 %v6069
    %6336 = vmatprep.subr.bf16.mxu0 %v6078
    %6337 = vmatpush1.bf16.msra.mxu0 %v6077
    %6338 = vmatprep.subr.bf16.mxu0 %v6086
    %6339 = vmatpush1.bf16.msra.mxu0 %v6085
    %6340 = vmatprep.subr.bf16.mxu0 %v6094
    %6341 = vmatpush1.bf16.msra.mxu0 %v6093
    %6342 = vmatprep.subr.bf16.mxu0 %v6102
    %6343 = vmatpush1.bf16.msra.mxu0 %v6101
    %6344 = vmatprep.subr.bf16.mxu0 %v6110
    %6345 = vmatpush1.bf16.msra.mxu0 %v6109
    %6346 = vmatprep.subr.bf16.mxu0 %v6118
    %6347 = vmatpush1.bf16.msra.mxu0 %v6117
    %6348 = vmatprep.subr.bf16.mxu0 %v6126
    %6349 = vmatpush1.bf16.msra.mxu0 %v6125
    %6350 = vmatprep.subr.bf16.mxu0 %v6134
    %6351 = vmatpush1.bf16.msra.mxu0 %v6133
    %6352 = vmatprep.subr.bf16.mxu0 %v6142
    %6353 = vmatpush1.bf16.msra.mxu0 %v6141
    %6354 = vmatprep.subr.bf16.mxu0 %v6150
    %6355 = vmatpush1.bf16.msra.mxu0 %v6149
    %6356 = vmatprep.mubr.bf16.mxu0 %v5514
    %6357 = vmatmul.mubr.bf16.gmra.mrb[0].mxu0 %v5513
    %v6358 = vpop.f32.mrb[0].mxu0
    %v6359 = vadd.f32 0.0, %v6358
    %v6360 = vpop.f32.mrb[0].mxu0
    %v6361 = vadd.f32 0.0, %v6360
    %v6362 = vpop.f32.mrb[0].mxu0
    %v6363 = vpop.f32.mrb[0].mxu0
    %6364 = vdwg.mxu0
    %6365 = vmatprep.subr.bf16.mxu0 %v6032
    %6366 = vmatpush1.bf16.msra.mxu0 %v6031
    %6367 = vmatprep.subr.bf16.mxu0 %v6040
    %6368 = vmatpush1.bf16.msra.mxu0 %v6039
    %6369 = vmatprep.subr.bf16.mxu0 %v6048
    %6370 = vmatpush1.bf16.msra.mxu0 %v6047
    %6371 = vmatprep.subr.bf16.mxu0 %v6056
    %6372 = vmatpush1.bf16.msra.mxu0 %v6055
    %6373 = vmatprep.subr.bf16.mxu0 %v6064
    %6374 = vmatpush1.bf16.msra.mxu0 %v6063
    %6375 = vmatprep.subr.bf16.mxu0 %v6072
    %6376 = vmatpush1.bf16.msra.mxu0 %v6071
    %6377 = vmatprep.subr.bf16.mxu0 %v6080
    %6378 = vmatpush1.bf16.msra.mxu0 %v6079
    %6379 = vmatprep.subr.bf16.mxu0 %v6088
    %6380 = vmatpush1.bf16.msra.mxu0 %v6087
    %6381 = vmatprep.subr.bf16.mxu0 %v6096
    %6382 = vmatpush1.bf16.msra.mxu0 %v6095
    %6383 = vmatprep.subr.bf16.mxu0 %v6104
    %6384 = vmatpush1.bf16.msra.mxu0 %v6103
    %6385 = vmatprep.subr.bf16.mxu0 %v6112
    %6386 = vmatpush1.bf16.msra.mxu0 %v6111
    %6387 = vmatprep.subr.bf16.mxu0 %v6120
    %6388 = vmatpush1.bf16.msra.mxu0 %v6119
    %6389 = vmatprep.subr.bf16.mxu0 %v6128
    %6390 = vmatpush1.bf16.msra.mxu0 %v6127
    %6391 = vmatprep.subr.bf16.mxu0 %v6136
    %6392 = vmatpush1.bf16.msra.mxu0 %v6135
    %6393 = vmatprep.subr.bf16.mxu0 %v6144
    %6394 = vmatpush1.bf16.msra.mxu0 %v6143
    %6395 = vmatprep.subr.bf16.mxu0 %v6152
    %6396 = vmatpush1.bf16.msra.mxu0 %v6151
    %6397 = vmatprep.mubr.bf16.mxu0 %v5514
    %6398 = vmatmul.mubr.bf16.gmra.mrb[0].mxu0 %v5513
    %v6399 = vpop.f32.mrb[0].mxu0
    %v6400 = vadd.f32 0.0, %v6399
    %v6401 = vpop.f32.mrb[0].mxu0
    %v6402 = vadd.f32 0.0, %v6401
    %v6403 = vpop.f32.mrb[0].mxu0
    %v6404 = vpop.f32.mrb[0].mxu0
    %6405 = vdwg.mxu0
    %6406 = vmatprep.subr.bf16.mxu0 %v6034
    %6407 = vmatpush1.bf16.msra.mxu0 %v6033
    %6408 = vmatprep.subr.bf16.mxu0 %v6042
    %6409 = vmatpush1.bf16.msra.mxu0 %v6041
    %6410 = vmatprep.subr.bf16.mxu0 %v6050
    %6411 = vmatpush1.bf16.msra.mxu0 %v6049
    %6412 = vmatprep.subr.bf16.mxu0 %v6058
    %6413 = vmatpush1.bf16.msra.mxu0 %v6057
    %6414 = vmatprep.subr.bf16.mxu0 %v6066
    %6415 = vmatpush1.bf16.msra.mxu0 %v6065
    %6416 = vmatprep.subr.bf16.mxu0 %v6074
    %6417 = vmatpush1.bf16.msra.mxu0 %v6073
    %6418 = vmatprep.subr.bf16.mxu0 %v6082
    %6419 = vmatpush1.bf16.msra.mxu0 %v6081
    %6420 = vmatprep.subr.bf16.mxu0 %v6090
    %6421 = vmatpush1.bf16.msra.mxu0 %v6089
    %6422 = vmatprep.subr.bf16.mxu0 %v6098
    %6423 = vmatpush1.bf16.msra.mxu0 %v6097
    %6424 = vmatprep.subr.bf16.mxu0 %v6106
    %6425 = vmatpush1.bf16.msra.mxu0 %v6105
    %6426 = vmatprep.subr.bf16.mxu0 %v6114
    %6427 = vmatpush1.bf16.msra.mxu0 %v6113
    %6428 = vmatprep.subr.bf16.mxu0 %v6122
    %6429 = vmatpush1.bf16.msra.mxu0 %v6121
    %6430 = vmatprep.subr.bf16.mxu0 %v6130
    %6431 = vmatpush1.bf16.msra.mxu0 %v6129
    %6432 = vmatprep.subr.bf16.mxu0 %v6138
    %6433 = vmatpush1.bf16.msra.mxu0 %v6137
    %6434 = vmatprep.subr.bf16.mxu0 %v6146
    %6435 = vmatpush1.bf16.msra.mxu0 %v6145
    %6436 = vmatprep.subr.bf16.mxu0 %v6154
    %6437 = vmatpush1.bf16.msra.mxu0 %v6153
    %6438 = vmatprep.mubr.bf16.mxu0 %v5514
    %6439 = vmatmul.mubr.bf16.gmra.mrb[0].mxu0 %v5513
    %v6440 = vpop.f32.mrb[0].mxu0
    %v6441 = vadd.f32 0.0, %v6440
    %v6442 = vpop.f32.mrb[0].mxu0
    %v6443 = vadd.f32 0.0, %v6442
    %v6444 = vpop.f32.mrb[0].mxu0
    %v6445 = vpop.f32.mrb[0].mxu0
    %6446 = vdwg.mxu0
    %s6447 = scalar_lea.vmem [#allocation3], 192
    %v6448 = vld [vmem:[%s6447] sm:$0xff]
    %v6449 = vld [vmem:[%s6447 + $0x8] sm:$0xff]
    %v6450 = vld [vmem:[%s6447 + $0x10] sm:$0xff]
    %v6451 = vld [vmem:[%s6447 + $0x18] sm:$0xff]
    %v6452 = vadd.f32 %v6318, %v6448
    %v6453 = vadd.f32 %v6320, %v6449
    %v6454 = vadd.f32 %v6359, %v6450
    %v6455 = vadd.f32 %v6361, %v6451
    %v6456 = vadd.f32 %v6400, %v1455
    %v6457 = vadd.f32 %v6402, %v1459
    %v6458 = vadd.f32 %v6441, %v1463
    %v6459 = vadd.f32 %v6443, %v1467
    %v6460 = vxor.u32 %v6452, 2147483648
    %v6461 = vmul.f32 %v6460, 1.442695
    %v6462 = vpow.pop %v6461
    %v6463 = vadd.f32 %v6462, 1.0
    %v6464 = vrcp.pop %v6463
    %v6465 = vmul.f32 1.0, %v6464
    %v6466 = vxor.u32 %v6453, 2147483648
    %v6467 = vmul.f32 %v6466, 1.442695
    %v6468 = vpow.pop %v6467
    %v6469 = vadd.f32 %v6468, 1.0
    %v6470 = vrcp.pop %v6469
    %v6471 = vmul.f32 1.0, %v6470
    %v6472 = vtanh.pop %v6454
    %v6473 = vxor.u32 %v6455, 2147483648
    %v6474 = vmul.f32 %v6473, 1.442695
    %v6475 = vpow.pop %v6474
    %v6476 = vadd.f32 %v6475, 1.0
    %v6477 = vrcp.pop %v6476
    %v6478 = vmul.f32 1.0, %v6477
    %v6479 = vmul.f32 %v6471, %v5484
    %v6480 = vmul.f32 %v6465, %v6472
    %v6481 = vadd.f32 %v6479, %v6480
    %v6482 = vtanh.pop %v6481
    %v6483 = vmul.f32 %v6478, %v6482
    %v6484 = vxor.u32 %v6456, 2147483648
    %v6485 = vmul.f32 %v6484, 1.442695
    %v6486 = vpow.pop %v6485
    %v6487 = vadd.f32 %v6486, 1.0
    %v6488 = vrcp.pop %v6487
    %v6489 = vmul.f32 1.0, %v6488
    %v6490 = vxor.u32 %v6457, 2147483648
    %v6491 = vmul.f32 %v6490, 1.442695
    %v6492 = vpow.pop %v6491
    %v6493 = vadd.f32 %v6492, 1.0
    %v6494 = vrcp.pop %v6493
    %v6495 = vmul.f32 1.0, %v6494
    %v6496 = vtanh.pop %v6458
    %v6497 = vxor.u32 %v6459, 2147483648
    %v6498 = vmul.f32 %v6497, 1.442695
    %v6499 = vpow.pop %v6498
    %v6500 = vadd.f32 %v6499, 1.0
    %v6501 = vrcp.pop %v6500
    %v6502 = vmul.f32 1.0, %v6501
    %v6503 = vmul.f32 %v6495, %v5508
    %v6504 = vmul.f32 %v6489, %v6496
    %v6505 = vadd.f32 %v6503, %v6504
    %v6506 = vtanh.pop %v6505
    %v6507 = vmul.f32 %v6502, %v6506
    %s6508 = scalar_lea.vmem [#allocation2], 40
    %6509 = vst [vmem:[%s6508] sm:$0xff] %v6507
    %v6510 = vpack.c.bf16 %v6483, %v6483
    %v6511 = vpack.c.bf16 %v6507, %v6507
    %v6512 = vld [vmem:[#allocation11] sm:$0xff]
    %v6513 = vld [vmem:[#allocation11 + $0x8] sm:$0xff]
    %v6514 = vld [vmem:[#allocation11 + $0x10] sm:$0xff]
    %v6515 = vld [vmem:[#allocation11 + $0x18] sm:$0xff]
    %v6516 = vld [vmem:[#allocation11 + $0x20] sm:$0xff]
    %v6517 = vld [vmem:[#allocation11 + $0x28] sm:$0xff]
    %v6518 = vld [vmem:[#allocation11 + $0x30] sm:$0xff]
    %v6519 = vld [vmem:[#allocation11 + $0x38] sm:$0xff]
    %v6520 = vld [vmem:[#allocation11 + $0x40] sm:$0xff]
    %v6521 = vld [vmem:[#allocation11 + $0x48] sm:$0xff]
    %v6522 = vld [vmem:[#allocation11 + $0x50] sm:$0xff]
    %v6523 = vld [vmem:[#allocation11 + $0x58] sm:$0xff]
    %v6524 = vld [vmem:[#allocation11 + $0x60] sm:$0xff]
    %v6525 = vld [vmem:[#allocation11 + $0x68] sm:$0xff]
    %v6526 = vld [vmem:[#allocation11 + $0x70] sm:$0xff]
    %v6527 = vld [vmem:[#allocation11 + $0x78] sm:$0xff]
    %v6528 = vld [vmem:[#allocation11 + $0x80] sm:$0xff]
    %v6529 = vld [vmem:[#allocation11 + $0x88] sm:$0xff]
    %v6530 = vld [vmem:[#allocation11 + $0x90] sm:$0xff]
    %v6531 = vld [vmem:[#allocation11 + $0x98] sm:$0xff]
    %v6532 = vld [vmem:[#allocation11 + $0xa0] sm:$0xff]
    %v6533 = vld [vmem:[#allocation11 + $0xa8] sm:$0xff]
    %v6534 = vld [vmem:[#allocation11 + $0xb0] sm:$0xff]
    %v6535 = vld [vmem:[#allocation11 + $0xb8] sm:$0xff]
    %v6536 = vld [vmem:[#allocation11 + $0xc0] sm:$0xff]
    %v6537 = vld [vmem:[#allocation11 + $0xc8] sm:$0xff]
    %v6538 = vld [vmem:[#allocation11 + $0xd0] sm:$0xff]
    %v6539 = vld [vmem:[#allocation11 + $0xd8] sm:$0xff]
    %v6540 = vld [vmem:[#allocation11 + $0xe0] sm:$0xff]
    %v6541 = vld [vmem:[#allocation11 + $0xe8] sm:$0xff]
    %v6542 = vld [vmem:[#allocation11 + $0xf0] sm:$0xff]
    %v6543 = vld [vmem:[#allocation11 + $0xf8] sm:$0xff]
    %v6544 = vld [vmem:[#allocation11 + $0x100] sm:$0xff]
    %v6545 = vld [vmem:[#allocation11 + $0x108] sm:$0xff]
    %v6546 = vld [vmem:[#allocation11 + $0x110] sm:$0xff]
    %v6547 = vld [vmem:[#allocation11 + $0x118] sm:$0xff]
    %v6548 = vld [vmem:[#allocation11 + $0x120] sm:$0xff]
    %v6549 = vld [vmem:[#allocation11 + $0x128] sm:$0xff]
    %v6550 = vld [vmem:[#allocation11 + $0x130] sm:$0xff]
    %v6551 = vld [vmem:[#allocation11 + $0x138] sm:$0xff]
    %v6552 = vld [vmem:[#allocation11 + $0x140] sm:$0xff]
    %v6553 = vld [vmem:[#allocation11 + $0x148] sm:$0xff]
    %v6554 = vld [vmem:[#allocation11 + $0x150] sm:$0xff]
    %v6555 = vld [vmem:[#allocation11 + $0x158] sm:$0xff]
    %v6556 = vld [vmem:[#allocation11 + $0x160] sm:$0xff]
    %v6557 = vld [vmem:[#allocation11 + $0x168] sm:$0xff]
    %v6558 = vld [vmem:[#allocation11 + $0x170] sm:$0xff]
    %v6559 = vld [vmem:[#allocation11 + $0x178] sm:$0xff]
    %v6560 = vld [vmem:[#allocation11 + $0x180] sm:$0xff]
    %v6561 = vld [vmem:[#allocation11 + $0x188] sm:$0xff]
    %v6562 = vld [vmem:[#allocation11 + $0x190] sm:$0xff]
    %v6563 = vld [vmem:[#allocation11 + $0x198] sm:$0xff]
    %v6564 = vld [vmem:[#allocation11 + $0x1a0] sm:$0xff]
    %v6565 = vld [vmem:[#allocation11 + $0x1a8] sm:$0xff]
    %v6566 = vld [vmem:[#allocation11 + $0x1b0] sm:$0xff]
    %v6567 = vld [vmem:[#allocation11 + $0x1b8] sm:$0xff]
    %v6568 = vld [vmem:[#allocation11 + $0x1c0] sm:$0xff]
    %v6569 = vld [vmem:[#allocation11 + $0x1c8] sm:$0xff]
    %v6570 = vld [vmem:[#allocation11 + $0x1d0] sm:$0xff]
    %v6571 = vld [vmem:[#allocation11 + $0x1d8] sm:$0xff]
    %v6572 = vld [vmem:[#allocation11 + $0x1e0] sm:$0xff]
    %v6573 = vld [vmem:[#allocation11 + $0x1e8] sm:$0xff]
    %v6574 = vld [vmem:[#allocation11 + $0x1f0] sm:$0xff]
    %v6575 = vld [vmem:[#allocation11 + $0x1f8] sm:$0xff]
    %v6576 = vld [vmem:[#allocation11 + $0x200] sm:$0xff]
    %v6577 = vld [vmem:[#allocation11 + $0x208] sm:$0xff]
    %v6578 = vld [vmem:[#allocation11 + $0x210] sm:$0xff]
    %v6579 = vld [vmem:[#allocation11 + $0x218] sm:$0xff]
    %v6580 = vld [vmem:[#allocation11 + $0x220] sm:$0xff]
    %v6581 = vld [vmem:[#allocation11 + $0x228] sm:$0xff]
    %v6582 = vld [vmem:[#allocation11 + $0x230] sm:$0xff]
    %v6583 = vld [vmem:[#allocation11 + $0x238] sm:$0xff]
    %v6584 = vld [vmem:[#allocation11 + $0x240] sm:$0xff]
    %v6585 = vld [vmem:[#allocation11 + $0x248] sm:$0xff]
    %v6586 = vld [vmem:[#allocation11 + $0x250] sm:$0xff]
    %v6587 = vld [vmem:[#allocation11 + $0x258] sm:$0xff]
    %v6588 = vld [vmem:[#allocation11 + $0x260] sm:$0xff]
    %v6589 = vld [vmem:[#allocation11 + $0x268] sm:$0xff]
    %v6590 = vld [vmem:[#allocation11 + $0x270] sm:$0xff]
    %v6591 = vld [vmem:[#allocation11 + $0x278] sm:$0xff]
    %v6592 = vld [vmem:[#allocation11 + $0x280] sm:$0xff]
    %v6593 = vld [vmem:[#allocation11 + $0x288] sm:$0xff]
    %v6594 = vld [vmem:[#allocation11 + $0x290] sm:$0xff]
    %v6595 = vld [vmem:[#allocation11 + $0x298] sm:$0xff]
    %v6596 = vld [vmem:[#allocation11 + $0x2a0] sm:$0xff]
    %v6597 = vld [vmem:[#allocation11 + $0x2a8] sm:$0xff]
    %v6598 = vld [vmem:[#allocation11 + $0x2b0] sm:$0xff]
    %v6599 = vld [vmem:[#allocation11 + $0x2b8] sm:$0xff]
    %v6600 = vld [vmem:[#allocation11 + $0x2c0] sm:$0xff]
    %v6601 = vld [vmem:[#allocation11 + $0x2c8] sm:$0xff]
    %v6602 = vld [vmem:[#allocation11 + $0x2d0] sm:$0xff]
    %v6603 = vld [vmem:[#allocation11 + $0x2d8] sm:$0xff]
    %v6604 = vld [vmem:[#allocation11 + $0x2e0] sm:$0xff]
    %v6605 = vld [vmem:[#allocation11 + $0x2e8] sm:$0xff]
    %v6606 = vld [vmem:[#allocation11 + $0x2f0] sm:$0xff]
    %v6607 = vld [vmem:[#allocation11 + $0x2f8] sm:$0xff]
    %v6608 = vld [vmem:[#allocation11 + $0x300] sm:$0xff]
    %v6609 = vld [vmem:[#allocation11 + $0x308] sm:$0xff]
    %v6610 = vld [vmem:[#allocation11 + $0x310] sm:$0xff]
    %v6611 = vld [vmem:[#allocation11 + $0x318] sm:$0xff]
    %v6612 = vld [vmem:[#allocation11 + $0x320] sm:$0xff]
    %v6613 = vld [vmem:[#allocation11 + $0x328] sm:$0xff]
    %v6614 = vld [vmem:[#allocation11 + $0x330] sm:$0xff]
    %v6615 = vld [vmem:[#allocation11 + $0x338] sm:$0xff]
    %v6616 = vld [vmem:[#allocation11 + $0x340] sm:$0xff]
    %v6617 = vld [vmem:[#allocation11 + $0x348] sm:$0xff]
    %v6618 = vld [vmem:[#allocation11 + $0x350] sm:$0xff]
    %v6619 = vld [vmem:[#allocation11 + $0x358] sm:$0xff]
    %v6620 = vld [vmem:[#allocation11 + $0x360] sm:$0xff]
    %v6621 = vld [vmem:[#allocation11 + $0x368] sm:$0xff]
    %v6622 = vld [vmem:[#allocation11 + $0x370] sm:$0xff]
    %v6623 = vld [vmem:[#allocation11 + $0x378] sm:$0xff]
    %v6624 = vld [vmem:[#allocation11 + $0x380] sm:$0xff]
    %v6625 = vld [vmem:[#allocation11 + $0x388] sm:$0xff]
    %v6626 = vld [vmem:[#allocation11 + $0x390] sm:$0xff]
    %v6627 = vld [vmem:[#allocation11 + $0x398] sm:$0xff]
    %v6628 = vld [vmem:[#allocation11 + $0x3a0] sm:$0xff]
    %v6629 = vld [vmem:[#allocation11 + $0x3a8] sm:$0xff]
    %v6630 = vld [vmem:[#allocation11 + $0x3b0] sm:$0xff]
    %v6631 = vld [vmem:[#allocation11 + $0x3b8] sm:$0xff]
    %v6632 = vld [vmem:[#allocation11 + $0x3c0] sm:$0xff]
    %v6633 = vld [vmem:[#allocation11 + $0x3c8] sm:$0xff]
    %v6634 = vld [vmem:[#allocation11 + $0x3d0] sm:$0xff]
    %v6635 = vld [vmem:[#allocation11 + $0x3d8] sm:$0xff]
    %v6636 = vld [vmem:[#allocation11 + $0x3e0] sm:$0xff]
    %v6637 = vld [vmem:[#allocation11 + $0x3e8] sm:$0xff]
    %v6638 = vld [vmem:[#allocation11 + $0x3f0] sm:$0xff]
    %v6639 = vld [vmem:[#allocation11 + $0x3f8] sm:$0xff]
    %v6768 = vunpack.c.l.b16 %v6512
    %v6769 = vunpack.c.h.b16 %v6512
    %v6770 = vunpack.c.l.b16 %v6513
    %v6771 = vunpack.c.h.b16 %v6513
    %v6772 = vunpack.c.l.b16 %v6514
    %v6773 = vunpack.c.h.b16 %v6514
    %v6774 = vunpack.c.l.b16 %v6515
    %v6775 = vunpack.c.h.b16 %v6515
    %v6776 = vunpack.c.l.b16 %v6516
    %v6777 = vunpack.c.h.b16 %v6516
    %v6778 = vunpack.c.l.b16 %v6517
    %v6779 = vunpack.c.h.b16 %v6517
    %v6780 = vunpack.c.l.b16 %v6518
    %v6781 = vunpack.c.h.b16 %v6518
    %v6782 = vunpack.c.l.b16 %v6519
    %v6783 = vunpack.c.h.b16 %v6519
    %v6784 = vunpack.c.l.b16 %v6520
    %v6785 = vunpack.c.h.b16 %v6520
    %v6786 = vunpack.c.l.b16 %v6521
    %v6787 = vunpack.c.h.b16 %v6521
    %v6788 = vunpack.c.l.b16 %v6522
    %v6789 = vunpack.c.h.b16 %v6522
    %v6790 = vunpack.c.l.b16 %v6523
    %v6791 = vunpack.c.h.b16 %v6523
    %v6792 = vunpack.c.l.b16 %v6524
    %v6793 = vunpack.c.h.b16 %v6524
    %v6794 = vunpack.c.l.b16 %v6525
    %v6795 = vunpack.c.h.b16 %v6525
    %v6796 = vunpack.c.l.b16 %v6526
    %v6797 = vunpack.c.h.b16 %v6526
    %v6798 = vunpack.c.l.b16 %v6527
    %v6799 = vunpack.c.h.b16 %v6527
    %v6800 = vunpack.c.l.b16 %v6528
    %v6801 = vunpack.c.h.b16 %v6528
    %v6802 = vunpack.c.l.b16 %v6529
    %v6803 = vunpack.c.h.b16 %v6529
    %v6804 = vunpack.c.l.b16 %v6530
    %v6805 = vunpack.c.h.b16 %v6530
    %v6806 = vunpack.c.l.b16 %v6531
    %v6807 = vunpack.c.h.b16 %v6531
    %v6808 = vunpack.c.l.b16 %v6532
    %v6809 = vunpack.c.h.b16 %v6532
    %v6810 = vunpack.c.l.b16 %v6533
    %v6811 = vunpack.c.h.b16 %v6533
    %v6812 = vunpack.c.l.b16 %v6534
    %v6813 = vunpack.c.h.b16 %v6534
    %v6814 = vunpack.c.l.b16 %v6535
    %v6815 = vunpack.c.h.b16 %v6535
    %v6816 = vunpack.c.l.b16 %v6536
    %v6817 = vunpack.c.h.b16 %v6536
    %v6818 = vunpack.c.l.b16 %v6537
    %v6819 = vunpack.c.h.b16 %v6537
    %v6820 = vunpack.c.l.b16 %v6538
    %v6821 = vunpack.c.h.b16 %v6538
    %v6822 = vunpack.c.l.b16 %v6539
    %v6823 = vunpack.c.h.b16 %v6539
    %v6824 = vunpack.c.l.b16 %v6540
    %v6825 = vunpack.c.h.b16 %v6540
    %v6826 = vunpack.c.l.b16 %v6541
    %v6827 = vunpack.c.h.b16 %v6541
    %v6828 = vunpack.c.l.b16 %v6542
    %v6829 = vunpack.c.h.b16 %v6542
    %v6830 = vunpack.c.l.b16 %v6543
    %v6831 = vunpack.c.h.b16 %v6543
    %v6832 = vunpack.c.l.b16 %v6544
    %v6833 = vunpack.c.h.b16 %v6544
    %v6834 = vunpack.c.l.b16 %v6545
    %v6835 = vunpack.c.h.b16 %v6545
    %v6836 = vunpack.c.l.b16 %v6546
    %v6837 = vunpack.c.h.b16 %v6546
    %v6838 = vunpack.c.l.b16 %v6547
    %v6839 = vunpack.c.h.b16 %v6547
    %v6840 = vunpack.c.l.b16 %v6548
    %v6841 = vunpack.c.h.b16 %v6548
    %v6842 = vunpack.c.l.b16 %v6549
    %v6843 = vunpack.c.h.b16 %v6549
    %v6844 = vunpack.c.l.b16 %v6550
    %v6845 = vunpack.c.h.b16 %v6550
    %v6846 = vunpack.c.l.b16 %v6551
    %v6847 = vunpack.c.h.b16 %v6551
    %v6848 = vunpack.c.l.b16 %v6552
    %v6849 = vunpack.c.h.b16 %v6552
    %v6850 = vunpack.c.l.b16 %v6553
    %v6851 = vunpack.c.h.b16 %v6553
    %v6852 = vunpack.c.l.b16 %v6554
    %v6853 = vunpack.c.h.b16 %v6554
    %v6854 = vunpack.c.l.b16 %v6555
    %v6855 = vunpack.c.h.b16 %v6555
    %v6856 = vunpack.c.l.b16 %v6556
    %v6857 = vunpack.c.h.b16 %v6556
    %v6858 = vunpack.c.l.b16 %v6557
    %v6859 = vunpack.c.h.b16 %v6557
    %v6860 = vunpack.c.l.b16 %v6558
    %v6861 = vunpack.c.h.b16 %v6558
    %v6862 = vunpack.c.l.b16 %v6559
    %v6863 = vunpack.c.h.b16 %v6559
    %v6864 = vunpack.c.l.b16 %v6560
    %v6865 = vunpack.c.h.b16 %v6560
    %v6866 = vunpack.c.l.b16 %v6561
    %v6867 = vunpack.c.h.b16 %v6561
    %v6868 = vunpack.c.l.b16 %v6562
    %v6869 = vunpack.c.h.b16 %v6562
    %v6870 = vunpack.c.l.b16 %v6563
    %v6871 = vunpack.c.h.b16 %v6563
    %v6872 = vunpack.c.l.b16 %v6564
    %v6873 = vunpack.c.h.b16 %v6564
    %v6874 = vunpack.c.l.b16 %v6565
    %v6875 = vunpack.c.h.b16 %v6565
    %v6876 = vunpack.c.l.b16 %v6566
    %v6877 = vunpack.c.h.b16 %v6566
    %v6878 = vunpack.c.l.b16 %v6567
    %v6879 = vunpack.c.h.b16 %v6567
    %v6880 = vunpack.c.l.b16 %v6568
    %v6881 = vunpack.c.h.b16 %v6568
    %v6882 = vunpack.c.l.b16 %v6569
    %v6883 = vunpack.c.h.b16 %v6569
    %v6884 = vunpack.c.l.b16 %v6570
    %v6885 = vunpack.c.h.b16 %v6570
    %v6886 = vunpack.c.l.b16 %v6571
    %v6887 = vunpack.c.h.b16 %v6571
    %v6888 = vunpack.c.l.b16 %v6572
    %v6889 = vunpack.c.h.b16 %v6572
    %v6890 = vunpack.c.l.b16 %v6573
    %v6891 = vunpack.c.h.b16 %v6573
    %v6892 = vunpack.c.l.b16 %v6574
    %v6893 = vunpack.c.h.b16 %v6574
    %v6894 = vunpack.c.l.b16 %v6575
    %v6895 = vunpack.c.h.b16 %v6575
    %v6896 = vunpack.c.l.b16 %v6576
    %v6897 = vunpack.c.h.b16 %v6576
    %v6898 = vunpack.c.l.b16 %v6577
    %v6899 = vunpack.c.h.b16 %v6577
    %v6900 = vunpack.c.l.b16 %v6578
    %v6901 = vunpack.c.h.b16 %v6578
    %v6902 = vunpack.c.l.b16 %v6579
    %v6903 = vunpack.c.h.b16 %v6579
    %v6904 = vunpack.c.l.b16 %v6580
    %v6905 = vunpack.c.h.b16 %v6580
    %v6906 = vunpack.c.l.b16 %v6581
    %v6907 = vunpack.c.h.b16 %v6581
    %v6908 = vunpack.c.l.b16 %v6582
    %v6909 = vunpack.c.h.b16 %v6582
    %v6910 = vunpack.c.l.b16 %v6583
    %v6911 = vunpack.c.h.b16 %v6583
    %v6912 = vunpack.c.l.b16 %v6584
    %v6913 = vunpack.c.h.b16 %v6584
    %v6914 = vunpack.c.l.b16 %v6585
    %v6915 = vunpack.c.h.b16 %v6585
    %v6916 = vunpack.c.l.b16 %v6586
    %v6917 = vunpack.c.h.b16 %v6586
    %v6918 = vunpack.c.l.b16 %v6587
    %v6919 = vunpack.c.h.b16 %v6587
    %v6920 = vunpack.c.l.b16 %v6588
    %v6921 = vunpack.c.h.b16 %v6588
    %v6922 = vunpack.c.l.b16 %v6589
    %v6923 = vunpack.c.h.b16 %v6589
    %v6924 = vunpack.c.l.b16 %v6590
    %v6925 = vunpack.c.h.b16 %v6590
    %v6926 = vunpack.c.l.b16 %v6591
    %v6927 = vunpack.c.h.b16 %v6591
    %v6928 = vunpack.c.l.b16 %v6592
    %v6929 = vunpack.c.h.b16 %v6592
    %v6930 = vunpack.c.l.b16 %v6593
    %v6931 = vunpack.c.h.b16 %v6593
    %v6932 = vunpack.c.l.b16 %v6594
    %v6933 = vunpack.c.h.b16 %v6594
    %v6934 = vunpack.c.l.b16 %v6595
    %v6935 = vunpack.c.h.b16 %v6595
    %v6936 = vunpack.c.l.b16 %v6596
    %v6937 = vunpack.c.h.b16 %v6596
    %v6938 = vunpack.c.l.b16 %v6597
    %v6939 = vunpack.c.h.b16 %v6597
    %v6940 = vunpack.c.l.b16 %v6598
    %v6941 = vunpack.c.h.b16 %v6598
    %v6942 = vunpack.c.l.b16 %v6599
    %v6943 = vunpack.c.h.b16 %v6599
    %v6944 = vunpack.c.l.b16 %v6600
    %v6945 = vunpack.c.h.b16 %v6600
    %v6946 = vunpack.c.l.b16 %v6601
    %v6947 = vunpack.c.h.b16 %v6601
    %v6948 = vunpack.c.l.b16 %v6602
    %v6949 = vunpack.c.h.b16 %v6602
    %v6950 = vunpack.c.l.b16 %v6603
    %v6951 = vunpack.c.h.b16 %v6603
    %v6952 = vunpack.c.l.b16 %v6604
    %v6953 = vunpack.c.h.b16 %v6604
    %v6954 = vunpack.c.l.b16 %v6605
    %v6955 = vunpack.c.h.b16 %v6605
    %v6956 = vunpack.c.l.b16 %v6606
    %v6957 = vunpack.c.h.b16 %v6606
    %v6958 = vunpack.c.l.b16 %v6607
    %v6959 = vunpack.c.h.b16 %v6607
    %v6960 = vunpack.c.l.b16 %v6608
    %v6961 = vunpack.c.h.b16 %v6608
    %v6962 = vunpack.c.l.b16 %v6609
    %v6963 = vunpack.c.h.b16 %v6609
    %v6964 = vunpack.c.l.b16 %v6610
    %v6965 = vunpack.c.h.b16 %v6610
    %v6966 = vunpack.c.l.b16 %v6611
    %v6967 = vunpack.c.h.b16 %v6611
    %v6968 = vunpack.c.l.b16 %v6612
    %v6969 = vunpack.c.h.b16 %v6612
    %v6970 = vunpack.c.l.b16 %v6613
    %v6971 = vunpack.c.h.b16 %v6613
    %v6972 = vunpack.c.l.b16 %v6614
    %v6973 = vunpack.c.h.b16 %v6614
    %v6974 = vunpack.c.l.b16 %v6615
    %v6975 = vunpack.c.h.b16 %v6615
    %v6976 = vunpack.c.l.b16 %v6616
    %v6977 = vunpack.c.h.b16 %v6616
    %v6978 = vunpack.c.l.b16 %v6617
    %v6979 = vunpack.c.h.b16 %v6617
    %v6980 = vunpack.c.l.b16 %v6618
    %v6981 = vunpack.c.h.b16 %v6618
    %v6982 = vunpack.c.l.b16 %v6619
    %v6983 = vunpack.c.h.b16 %v6619
    %v6984 = vunpack.c.l.b16 %v6620
    %v6985 = vunpack.c.h.b16 %v6620
    %v6986 = vunpack.c.l.b16 %v6621
    %v6987 = vunpack.c.h.b16 %v6621
    %v6988 = vunpack.c.l.b16 %v6622
    %v6989 = vunpack.c.h.b16 %v6622
    %v6990 = vunpack.c.l.b16 %v6623
    %v6991 = vunpack.c.h.b16 %v6623
    %v6992 = vunpack.c.l.b16 %v6624
    %v6993 = vunpack.c.h.b16 %v6624
    %v6994 = vunpack.c.l.b16 %v6625
    %v6995 = vunpack.c.h.b16 %v6625
    %v6996 = vunpack.c.l.b16 %v6626
    %v6997 = vunpack.c.h.b16 %v6626
    %v6998 = vunpack.c.l.b16 %v6627
    %v6999 = vunpack.c.h.b16 %v6627
    %v7000 = vunpack.c.l.b16 %v6628
    %v7001 = vunpack.c.h.b16 %v6628
    %v7002 = vunpack.c.l.b16 %v6629
    %v7003 = vunpack.c.h.b16 %v6629
    %v7004 = vunpack.c.l.b16 %v6630
    %v7005 = vunpack.c.h.b16 %v6630
    %v7006 = vunpack.c.l.b16 %v6631
    %v7007 = vunpack.c.h.b16 %v6631
    %v7008 = vunpack.c.l.b16 %v6632
    %v7009 = vunpack.c.h.b16 %v6632
    %v7010 = vunpack.c.l.b16 %v6633
    %v7011 = vunpack.c.h.b16 %v6633
    %v7012 = vunpack.c.l.b16 %v6634
    %v7013 = vunpack.c.h.b16 %v6634
    %v7014 = vunpack.c.l.b16 %v6635
    %v7015 = vunpack.c.h.b16 %v6635
    %v7016 = vunpack.c.l.b16 %v6636
    %v7017 = vunpack.c.h.b16 %v6636
    %v7018 = vunpack.c.l.b16 %v6637
    %v7019 = vunpack.c.h.b16 %v6637
    %v7020 = vunpack.c.l.b16 %v6638
    %v7021 = vunpack.c.h.b16 %v6638
    %v7022 = vunpack.c.l.b16 %v6639
    %v7023 = vunpack.c.h.b16 %v6639
    %v7024 = vpack.c.b16 %v6776, %v6768
    %v7025 = vpack.c.b16 %v6777, %v6769
    %v7026 = vpack.c.b16 %v6778, %v6770
    %v7027 = vpack.c.b16 %v6779, %v6771
    %v7028 = vpack.c.b16 %v6780, %v6772
    %v7029 = vpack.c.b16 %v6781, %v6773
    %v7030 = vpack.c.b16 %v6782, %v6774
    %v7031 = vpack.c.b16 %v6783, %v6775
    %v7032 = vpack.c.b16 %v6792, %v6784
    %v7033 = vpack.c.b16 %v6793, %v6785
    %v7034 = vpack.c.b16 %v6794, %v6786
    %v7035 = vpack.c.b16 %v6795, %v6787
    %v7036 = vpack.c.b16 %v6796, %v6788
    %v7037 = vpack.c.b16 %v6797, %v6789
    %v7038 = vpack.c.b16 %v6798, %v6790
    %v7039 = vpack.c.b16 %v6799, %v6791
    %v7040 = vpack.c.b16 %v6808, %v6800
    %v7041 = vpack.c.b16 %v6809, %v6801
    %v7042 = vpack.c.b16 %v6810, %v6802
    %v7043 = vpack.c.b16 %v6811, %v6803
    %v7044 = vpack.c.b16 %v6812, %v6804
    %v7045 = vpack.c.b16 %v6813, %v6805
    %v7046 = vpack.c.b16 %v6814, %v6806
    %v7047 = vpack.c.b16 %v6815, %v6807
    %v7048 = vpack.c.b16 %v6824, %v6816
    %v7049 = vpack.c.b16 %v6825, %v6817
    %v7050 = vpack.c.b16 %v6826, %v6818
    %v7051 = vpack.c.b16 %v6827, %v6819
    %v7052 = vpack.c.b16 %v6828, %v6820
    %v7053 = vpack.c.b16 %v6829, %v6821
    %v7054 = vpack.c.b16 %v6830, %v6822
    %v7055 = vpack.c.b16 %v6831, %v6823
    %v7056 = vpack.c.b16 %v6840, %v6832
    %v7057 = vpack.c.b16 %v6841, %v6833
    %v7058 = vpack.c.b16 %v6842, %v6834
    %v7059 = vpack.c.b16 %v6843, %v6835
    %v7060 = vpack.c.b16 %v6844, %v6836
    %v7061 = vpack.c.b16 %v6845, %v6837
    %v7062 = vpack.c.b16 %v6846, %v6838
    %v7063 = vpack.c.b16 %v6847, %v6839
    %v7064 = vpack.c.b16 %v6856, %v6848
    %v7065 = vpack.c.b16 %v6857, %v6849
    %v7066 = vpack.c.b16 %v6858, %v6850
    %v7067 = vpack.c.b16 %v6859, %v6851
    %v7068 = vpack.c.b16 %v6860, %v6852
    %v7069 = vpack.c.b16 %v6861, %v6853
    %v7070 = vpack.c.b16 %v6862, %v6854
    %v7071 = vpack.c.b16 %v6863, %v6855
    %v7072 = vpack.c.b16 %v6872, %v6864
    %v7073 = vpack.c.b16 %v6873, %v6865
    %v7074 = vpack.c.b16 %v6874, %v6866
    %v7075 = vpack.c.b16 %v6875, %v6867
    %v7076 = vpack.c.b16 %v6876, %v6868
    %v7077 = vpack.c.b16 %v6877, %v6869
    %v7078 = vpack.c.b16 %v6878, %v6870
    %v7079 = vpack.c.b16 %v6879, %v6871
    %v7080 = vpack.c.b16 %v6888, %v6880
    %v7081 = vpack.c.b16 %v6889, %v6881
    %v7082 = vpack.c.b16 %v6890, %v6882
    %v7083 = vpack.c.b16 %v6891, %v6883
    %v7084 = vpack.c.b16 %v6892, %v6884
    %v7085 = vpack.c.b16 %v6893, %v6885
    %v7086 = vpack.c.b16 %v6894, %v6886
    %v7087 = vpack.c.b16 %v6895, %v6887
    %v7088 = vpack.c.b16 %v6904, %v6896
    %v7089 = vpack.c.b16 %v6905, %v6897
    %v7090 = vpack.c.b16 %v6906, %v6898
    %v7091 = vpack.c.b16 %v6907, %v6899
    %v7092 = vpack.c.b16 %v6908, %v6900
    %v7093 = vpack.c.b16 %v6909, %v6901
    %v7094 = vpack.c.b16 %v6910, %v6902
    %v7095 = vpack.c.b16 %v6911, %v6903
    %v7096 = vpack.c.b16 %v6920, %v6912
    %v7097 = vpack.c.b16 %v6921, %v6913
    %v7098 = vpack.c.b16 %v6922, %v6914
    %v7099 = vpack.c.b16 %v6923, %v6915
    %v7100 = vpack.c.b16 %v6924, %v6916
    %v7101 = vpack.c.b16 %v6925, %v6917
    %v7102 = vpack.c.b16 %v6926, %v6918
    %v7103 = vpack.c.b16 %v6927, %v6919
    %v7104 = vpack.c.b16 %v6936, %v6928
    %v7105 = vpack.c.b16 %v6937, %v6929
    %v7106 = vpack.c.b16 %v6938, %v6930
    %v7107 = vpack.c.b16 %v6939, %v6931
    %v7108 = vpack.c.b16 %v6940, %v6932
    %v7109 = vpack.c.b16 %v6941, %v6933
    %v7110 = vpack.c.b16 %v6942, %v6934
    %v7111 = vpack.c.b16 %v6943, %v6935
    %v7112 = vpack.c.b16 %v6952, %v6944
    %v7113 = vpack.c.b16 %v6953, %v6945
    %v7114 = vpack.c.b16 %v6954, %v6946
    %v7115 = vpack.c.b16 %v6955, %v6947
    %v7116 = vpack.c.b16 %v6956, %v6948
    %v7117 = vpack.c.b16 %v6957, %v6949
    %v7118 = vpack.c.b16 %v6958, %v6950
    %v7119 = vpack.c.b16 %v6959, %v6951
    %v7120 = vpack.c.b16 %v6968, %v6960
    %v7121 = vpack.c.b16 %v6969, %v6961
    %v7122 = vpack.c.b16 %v6970, %v6962
    %v7123 = vpack.c.b16 %v6971, %v6963
    %v7124 = vpack.c.b16 %v6972, %v6964
    %v7125 = vpack.c.b16 %v6973, %v6965
    %v7126 = vpack.c.b16 %v6974, %v6966
    %v7127 = vpack.c.b16 %v6975, %v6967
    %v7128 = vpack.c.b16 %v6984, %v6976
    %v7129 = vpack.c.b16 %v6985, %v6977
    %v7130 = vpack.c.b16 %v6986, %v6978
    %v7131 = vpack.c.b16 %v6987, %v6979
    %v7132 = vpack.c.b16 %v6988, %v6980
    %v7133 = vpack.c.b16 %v6989, %v6981
    %v7134 = vpack.c.b16 %v6990, %v6982
    %v7135 = vpack.c.b16 %v6991, %v6983
    %v7136 = vpack.c.b16 %v7000, %v6992
    %v7137 = vpack.c.b16 %v7001, %v6993
    %v7138 = vpack.c.b16 %v7002, %v6994
    %v7139 = vpack.c.b16 %v7003, %v6995
    %v7140 = vpack.c.b16 %v7004, %v6996
    %v7141 = vpack.c.b16 %v7005, %v6997
    %v7142 = vpack.c.b16 %v7006, %v6998
    %v7143 = vpack.c.b16 %v7007, %v6999
    %v7144 = vpack.c.b16 %v7016, %v7008
    %v7145 = vpack.c.b16 %v7017, %v7009
    %v7146 = vpack.c.b16 %v7018, %v7010
    %v7147 = vpack.c.b16 %v7019, %v7011
    %v7148 = vpack.c.b16 %v7020, %v7012
    %v7149 = vpack.c.b16 %v7021, %v7013
    %v7150 = vpack.c.b16 %v7022, %v7014
    %v7151 = vpack.c.b16 %v7023, %v7015
    %7280 = vmatprep.subr.bf16.mxu0 %v7025
    %7281 = vmatpush1.bf16.msra.mxu0 %v7024
    %7282 = vmatprep.subr.bf16.mxu0 %v7033
    %7283 = vmatpush1.bf16.msra.mxu0 %v7032
    %7284 = vmatprep.subr.bf16.mxu0 %v7041
    %7285 = vmatpush1.bf16.msra.mxu0 %v7040
    %7286 = vmatprep.subr.bf16.mxu0 %v7049
    %7287 = vmatpush1.bf16.msra.mxu0 %v7048
    %7288 = vmatprep.subr.bf16.mxu0 %v7057
    %7289 = vmatpush1.bf16.msra.mxu0 %v7056
    %7290 = vmatprep.subr.bf16.mxu0 %v7065
    %7291 = vmatpush1.bf16.msra.mxu0 %v7064
    %7292 = vmatprep.subr.bf16.mxu0 %v7073
    %7293 = vmatpush1.bf16.msra.mxu0 %v7072
    %7294 = vmatprep.subr.bf16.mxu0 %v7081
    %7295 = vmatpush1.bf16.msra.mxu0 %v7080
    %7296 = vmatprep.subr.bf16.mxu0 %v7089
    %7297 = vmatpush1.bf16.msra.mxu0 %v7088
    %7298 = vmatprep.subr.bf16.mxu0 %v7097
    %7299 = vmatpush1.bf16.msra.mxu0 %v7096
    %7300 = vmatprep.subr.bf16.mxu0 %v7105
    %7301 = vmatpush1.bf16.msra.mxu0 %v7104
    %7302 = vmatprep.subr.bf16.mxu0 %v7113
    %7303 = vmatpush1.bf16.msra.mxu0 %v7112
    %7304 = vmatprep.subr.bf16.mxu0 %v7121
    %7305 = vmatpush1.bf16.msra.mxu0 %v7120
    %7306 = vmatprep.subr.bf16.mxu0 %v7129
    %7307 = vmatpush1.bf16.msra.mxu0 %v7128
    %7308 = vmatprep.subr.bf16.mxu0 %v7137
    %7309 = vmatpush1.bf16.msra.mxu0 %v7136
    %7310 = vmatprep.subr.bf16.mxu0 %v7145
    %7311 = vmatpush1.bf16.msra.mxu0 %v7144
    %7312 = vmatprep.mubr.bf16.mxu0 %v6511
    %7313 = vmatmul.mubr.bf16.gmra.mrb[0].mxu0 %v6510
    %v7314 = vpop.f32.mrb[0].mxu0
    %v7315 = vadd.f32 0.0, %v7314
    %v7316 = vpop.f32.mrb[0].mxu0
    %v7317 = vadd.f32 0.0, %v7316
    %v7318 = vpop.f32.mrb[0].mxu0
    %v7319 = vpop.f32.mrb[0].mxu0
    %7320 = vdwg.mxu0
    %7321 = vmatprep.subr.bf16.mxu0 %v7027
    %7322 = vmatpush1.bf16.msra.mxu0 %v7026
    %7323 = vmatprep.subr.bf16.mxu0 %v7035
    %7324 = vmatpush1.bf16.msra.mxu0 %v7034
    %7325 = vmatprep.subr.bf16.mxu0 %v7043
    %7326 = vmatpush1.bf16.msra.mxu0 %v7042
    %7327 = vmatprep.subr.bf16.mxu0 %v7051
    %7328 = vmatpush1.bf16.msra.mxu0 %v7050
    %7329 = vmatprep.subr.bf16.mxu0 %v7059
    %7330 = vmatpush1.bf16.msra.mxu0 %v7058
    %7331 = vmatprep.subr.bf16.mxu0 %v7067
    %7332 = vmatpush1.bf16.msra.mxu0 %v7066
    %7333 = vmatprep.subr.bf16.mxu0 %v7075
    %7334 = vmatpush1.bf16.msra.mxu0 %v7074
    %7335 = vmatprep.subr.bf16.mxu0 %v7083
    %7336 = vmatpush1.bf16.msra.mxu0 %v7082
    %7337 = vmatprep.subr.bf16.mxu0 %v7091
    %7338 = vmatpush1.bf16.msra.mxu0 %v7090
    %7339 = vmatprep.subr.bf16.mxu0 %v7099
    %7340 = vmatpush1.bf16.msra.mxu0 %v7098
    %7341 = vmatprep.subr.bf16.mxu0 %v7107
    %7342 = vmatpush1.bf16.msra.mxu0 %v7106
    %7343 = vmatprep.subr.bf16.mxu0 %v7115
    %7344 = vmatpush1.bf16.msra.mxu0 %v7114
    %7345 = vmatprep.subr.bf16.mxu0 %v7123
    %7346 = vmatpush1.bf16.msra.mxu0 %v7122
    %7347 = vmatprep.subr.bf16.mxu0 %v7131
    %7348 = vmatpush1.bf16.msra.mxu0 %v7130
    %7349 = vmatprep.subr.bf16.mxu0 %v7139
    %7350 = vmatpush1.bf16.msra.mxu0 %v7138
    %7351 = vmatprep.subr.bf16.mxu0 %v7147
    %7352 = vmatpush1.bf16.msra.mxu0 %v7146
    %7353 = vmatprep.mubr.bf16.mxu0 %v6511
    %7354 = vmatmul.mubr.bf16.gmra.mrb[0].mxu0 %v6510
    %v7355 = vpop.f32.mrb[0].mxu0
    %v7356 = vadd.f32 0.0, %v7355
    %v7357 = vpop.f32.mrb[0].mxu0
    %v7358 = vadd.f32 0.0, %v7357
    %v7359 = vpop.f32.mrb[0].mxu0
    %v7360 = vpop.f32.mrb[0].mxu0
    %7361 = vdwg.mxu0
    %7362 = vmatprep.subr.bf16.mxu0 %v7029
    %7363 = vmatpush1.bf16.msra.mxu0 %v7028
    %7364 = vmatprep.subr.bf16.mxu0 %v7037
    %7365 = vmatpush1.bf16.msra.mxu0 %v7036
    %7366 = vmatprep.subr.bf16.mxu0 %v7045
    %7367 = vmatpush1.bf16.msra.mxu0 %v7044
    %7368 = vmatprep.subr.bf16.mxu0 %v7053
    %7369 = vmatpush1.bf16.msra.mxu0 %v7052
    %7370 = vmatprep.subr.bf16.mxu0 %v7061
    %7371 = vmatpush1.bf16.msra.mxu0 %v7060
    %7372 = vmatprep.subr.bf16.mxu0 %v7069
    %7373 = vmatpush1.bf16.msra.mxu0 %v7068
    %7374 = vmatprep.subr.bf16.mxu0 %v7077
    %7375 = vmatpush1.bf16.msra.mxu0 %v7076
    %7376 = vmatprep.subr.bf16.mxu0 %v7085
    %7377 = vmatpush1.bf16.msra.mxu0 %v7084
    %7378 = vmatprep.subr.bf16.mxu0 %v7093
    %7379 = vmatpush1.bf16.msra.mxu0 %v7092
    %7380 = vmatprep.subr.bf16.mxu0 %v7101
    %7381 = vmatpush1.bf16.msra.mxu0 %v7100
    %7382 = vmatprep.subr.bf16.mxu0 %v7109
    %7383 = vmatpush1.bf16.msra.mxu0 %v7108
    %7384 = vmatprep.subr.bf16.mxu0 %v7117
    %7385 = vmatpush1.bf16.msra.mxu0 %v7116
    %7386 = vmatprep.subr.bf16.mxu0 %v7125
    %7387 = vmatpush1.bf16.msra.mxu0 %v7124
    %7388 = vmatprep.subr.bf16.mxu0 %v7133
    %7389 = vmatpush1.bf16.msra.mxu0 %v7132
    %7390 = vmatprep.subr.bf16.mxu0 %v7141
    %7391 = vmatpush1.bf16.msra.mxu0 %v7140
    %7392 = vmatprep.subr.bf16.mxu0 %v7149
    %7393 = vmatpush1.bf16.msra.mxu0 %v7148
    %7394 = vmatprep.mubr.bf16.mxu0 %v6511
    %7395 = vmatmul.mubr.bf16.gmra.mrb[0].mxu0 %v6510
    %v7396 = vpop.f32.mrb[0].mxu0
    %v7397 = vadd.f32 0.0, %v7396
    %v7398 = vpop.f32.mrb[0].mxu0
    %v7399 = vadd.f32 0.0, %v7398
    %v7400 = vpop.f32.mrb[0].mxu0
    %v7401 = vpop.f32.mrb[0].mxu0
    %7402 = vdwg.mxu0
    %7403 = vmatprep.subr.bf16.mxu0 %v7031
    %7404 = vmatpush1.bf16.msra.mxu0 %v7030
    %7405 = vmatprep.subr.bf16.mxu0 %v7039
    %7406 = vmatpush1.bf16.msra.mxu0 %v7038
    %7407 = vmatprep.subr.bf16.mxu0 %v7047
    %7408 = vmatpush1.bf16.msra.mxu0 %v7046
    %7409 = vmatprep.subr.bf16.mxu0 %v7055
    %7410 = vmatpush1.bf16.msra.mxu0 %v7054
    %7411 = vmatprep.subr.bf16.mxu0 %v7063
    %7412 = vmatpush1.bf16.msra.mxu0 %v7062
    %7413 = vmatprep.subr.bf16.mxu0 %v7071
    %7414 = vmatpush1.bf16.msra.mxu0 %v7070
    %7415 = vmatprep.subr.bf16.mxu0 %v7079
    %7416 = vmatpush1.bf16.msra.mxu0 %v7078
    %7417 = vmatprep.subr.bf16.mxu0 %v7087
    %7418 = vmatpush1.bf16.msra.mxu0 %v7086
    %7419 = vmatprep.subr.bf16.mxu0 %v7095
    %7420 = vmatpush1.bf16.msra.mxu0 %v7094
    %7421 = vmatprep.subr.bf16.mxu0 %v7103
    %7422 = vmatpush1.bf16.msra.mxu0 %v7102
    %7423 = vmatprep.subr.bf16.mxu0 %v7111
    %7424 = vmatpush1.bf16.msra.mxu0 %v7110
    %7425 = vmatprep.subr.bf16.mxu0 %v7119
    %7426 = vmatpush1.bf16.msra.mxu0 %v7118
    %7427 = vmatprep.subr.bf16.mxu0 %v7127
    %7428 = vmatpush1.bf16.msra.mxu0 %v7126
    %7429 = vmatprep.subr.bf16.mxu0 %v7135
    %7430 = vmatpush1.bf16.msra.mxu0 %v7134
    %7431 = vmatprep.subr.bf16.mxu0 %v7143
    %7432 = vmatpush1.bf16.msra.mxu0 %v7142
    %7433 = vmatprep.subr.bf16.mxu0 %v7151
    %7434 = vmatpush1.bf16.msra.mxu0 %v7150
    %7435 = vmatprep.mubr.bf16.mxu0 %v6511
    %7436 = vmatmul.mubr.bf16.gmra.mrb[0].mxu0 %v6510
    %v7437 = vpop.f32.mrb[0].mxu0
    %v7438 = vadd.f32 0.0, %v7437
    %v7439 = vpop.f32.mrb[0].mxu0
    %v7440 = vadd.f32 0.0, %v7439
    %v7441 = vpop.f32.mrb[0].mxu0
    %v7442 = vpop.f32.mrb[0].mxu0
    %7443 = vdwg.mxu0
    %s7444 = scalar_lea.vmem [#allocation3], 224
    %v7445 = vld [vmem:[%s7444] sm:$0xff]
    %v7446 = vld [vmem:[%s7444 + $0x8] sm:$0xff]
    %v7447 = vld [vmem:[%s7444 + $0x10] sm:$0xff]
    %v7448 = vld [vmem:[%s7444 + $0x18] sm:$0xff]
    %v7449 = vadd.f32 %v7315, %v7445
    %v7450 = vadd.f32 %v7317, %v7446
    %v7451 = vadd.f32 %v7356, %v7447
    %v7452 = vadd.f32 %v7358, %v7448
    %v7453 = vadd.f32 %v7397, %v1455
    %v7454 = vadd.f32 %v7399, %v1459
    %v7455 = vadd.f32 %v7438, %v1463
    %v7456 = vadd.f32 %v7440, %v1467
    %v7457 = vxor.u32 %v7449, 2147483648
    %v7458 = vmul.f32 %v7457, 1.442695
    %v7459 = vpow.pop %v7458
    %v7460 = vadd.f32 %v7459, 1.0
    %v7461 = vrcp.pop %v7460
    %v7462 = vmul.f32 1.0, %v7461
    %v7463 = vxor.u32 %v7450, 2147483648
    %v7464 = vmul.f32 %v7463, 1.442695
    %v7465 = vpow.pop %v7464
    %v7466 = vadd.f32 %v7465, 1.0
    %v7467 = vrcp.pop %v7466
    %v7468 = vmul.f32 1.0, %v7467
    %v7469 = vtanh.pop %v7451
    %v7470 = vxor.u32 %v7452, 2147483648
    %v7471 = vmul.f32 %v7470, 1.442695
    %v7472 = vpow.pop %v7471
    %v7473 = vadd.f32 %v7472, 1.0
    %v7474 = vrcp.pop %v7473
    %v7475 = vmul.f32 1.0, %v7474
    %v7476 = vmul.f32 %v7468, %v6481
    %v7477 = vmul.f32 %v7462, %v7469
    %v7478 = vadd.f32 %v7476, %v7477
    %v7479 = vtanh.pop %v7478
    %v7480 = vmul.f32 %v7475, %v7479
    %v7481 = vxor.u32 %v7453, 2147483648
    %v7482 = vmul.f32 %v7481, 1.442695
    %v7483 = vpow.pop %v7482
    %v7484 = vadd.f32 %v7483, 1.0
    %v7485 = vrcp.pop %v7484
    %v7486 = vmul.f32 1.0, %v7485
    %v7487 = vxor.u32 %v7454, 2147483648
    %v7488 = vmul.f32 %v7487, 1.442695
    %v7489 = vpow.pop %v7488
    %v7490 = vadd.f32 %v7489, 1.0
    %v7491 = vrcp.pop %v7490
    %v7492 = vmul.f32 1.0, %v7491
    %v7493 = vtanh.pop %v7455
    %v7494 = vxor.u32 %v7456, 2147483648
    %v7495 = vmul.f32 %v7494, 1.442695
    %v7496 = vpow.pop %v7495
    %v7497 = vadd.f32 %v7496, 1.0
    %v7498 = vrcp.pop %v7497
    %v7499 = vmul.f32 1.0, %v7498
    %v7500 = vmul.f32 %v7492, %v6505
    %v7501 = vmul.f32 %v7486, %v7493
    %v7502 = vadd.f32 %v7500, %v7501
    %v7503 = vtanh.pop %v7502
    %v7504 = vmul.f32 %v7499, %v7503
    %s7505 = scalar_lea.vmem [#allocation2], 48
    %7506 = vst [vmem:[%s7505] sm:$0xff] %v7504
    %v7507 = vpack.c.bf16 %v7480, %v7480
    %v7508 = vpack.c.bf16 %v7504, %v7504
    %v7509 = vld [vmem:[#allocation11 + $0x10] sm:$0xff]
    %v7510 = vld [vmem:[#allocation11 + $0x18] sm:$0xff]
    %v7511 = vld [vmem:[#allocation11 + $0x30] sm:$0xff]
    %v7512 = vld [vmem:[#allocation11 + $0x38] sm:$0xff]
    %v7513 = vld [vmem:[#allocation11 + $0x50] sm:$0xff]
    %v7514 = vld [vmem:[#allocation11 + $0x58] sm:$0xff]
    %v7515 = vld [vmem:[#allocation11 + $0x70] sm:$0xff]
    %v7516 = vld [vmem:[#allocation11 + $0x78] sm:$0xff]
    %v7517 = vld [vmem:[#allocation11 + $0x90] sm:$0xff]
    %v7518 = vld [vmem:[#allocation11 + $0x98] sm:$0xff]
    %v7519 = vld [vmem:[#allocation11 + $0xb0] sm:$0xff]
    %v7520 = vld [vmem:[#allocation11 + $0xb8] sm:$0xff]
    %v7521 = vld [vmem:[#allocation11 + $0xd0] sm:$0xff]
    %v7522 = vld [vmem:[#allocation11 + $0xd8] sm:$0xff]
    %v7523 = vld [vmem:[#allocation11 + $0xf0] sm:$0xff]
    %v7524 = vld [vmem:[#allocation11 + $0xf8] sm:$0xff]
    %v7525 = vld [vmem:[#allocation11 + $0x110] sm:$0xff]
    %v7526 = vld [vmem:[#allocation11 + $0x118] sm:$0xff]
    %v7527 = vld [vmem:[#allocation11 + $0x130] sm:$0xff]
    %v7528 = vld [vmem:[#allocation11 + $0x138] sm:$0xff]
    %v7529 = vld [vmem:[#allocation11 + $0x150] sm:$0xff]
    %v7530 = vld [vmem:[#allocation11 + $0x158] sm:$0xff]
    %v7531 = vld [vmem:[#allocation11 + $0x170] sm:$0xff]
    %v7532 = vld [vmem:[#allocation11 + $0x178] sm:$0xff]
    %v7533 = vld [vmem:[#allocation11 + $0x190] sm:$0xff]
    %v7534 = vld [vmem:[#allocation11 + $0x198] sm:$0xff]
    %v7535 = vld [vmem:[#allocation11 + $0x1b0] sm:$0xff]
    %v7536 = vld [vmem:[#allocation11 + $0x1b8] sm:$0xff]
    %v7537 = vld [vmem:[#allocation11 + $0x1d0] sm:$0xff]
    %v7538 = vld [vmem:[#allocation11 + $0x1d8] sm:$0xff]
    %v7539 = vld [vmem:[#allocation11 + $0x1f0] sm:$0xff]
    %v7540 = vld [vmem:[#allocation11 + $0x1f8] sm:$0xff]
    %v7541 = vld [vmem:[#allocation11 + $0x210] sm:$0xff]
    %v7542 = vld [vmem:[#allocation11 + $0x218] sm:$0xff]
    %v7543 = vld [vmem:[#allocation11 + $0x230] sm:$0xff]
    %v7544 = vld [vmem:[#allocation11 + $0x238] sm:$0xff]
    %v7545 = vld [vmem:[#allocation11 + $0x250] sm:$0xff]
    %v7546 = vld [vmem:[#allocation11 + $0x258] sm:$0xff]
    %v7547 = vld [vmem:[#allocation11 + $0x270] sm:$0xff]
    %v7548 = vld [vmem:[#allocation11 + $0x278] sm:$0xff]
    %v7549 = vld [vmem:[#allocation11 + $0x290] sm:$0xff]
    %v7550 = vld [vmem:[#allocation11 + $0x298] sm:$0xff]
    %v7551 = vld [vmem:[#allocation11 + $0x2b0] sm:$0xff]
    %v7552 = vld [vmem:[#allocation11 + $0x2b8] sm:$0xff]
    %v7553 = vld [vmem:[#allocation11 + $0x2d0] sm:$0xff]
    %v7554 = vld [vmem:[#allocation11 + $0x2d8] sm:$0xff]
    %v7555 = vld [vmem:[#allocation11 + $0x2f0] sm:$0xff]
    %v7556 = vld [vmem:[#allocation11 + $0x2f8] sm:$0xff]
    %v7557 = vld [vmem:[#allocation11 + $0x310] sm:$0xff]
    %v7558 = vld [vmem:[#allocation11 + $0x318] sm:$0xff]
    %v7559 = vld [vmem:[#allocation11 + $0x330] sm:$0xff]
    %v7560 = vld [vmem:[#allocation11 + $0x338] sm:$0xff]
    %v7561 = vld [vmem:[#allocation11 + $0x350] sm:$0xff]
    %v7562 = vld [vmem:[#allocation11 + $0x358] sm:$0xff]
    %v7563 = vld [vmem:[#allocation11 + $0x370] sm:$0xff]
    %v7564 = vld [vmem:[#allocation11 + $0x378] sm:$0xff]
    %v7565 = vld [vmem:[#allocation11 + $0x390] sm:$0xff]
    %v7566 = vld [vmem:[#allocation11 + $0x398] sm:$0xff]
    %v7567 = vld [vmem:[#allocation11 + $0x3b0] sm:$0xff]
    %v7568 = vld [vmem:[#allocation11 + $0x3b8] sm:$0xff]
    %v7569 = vld [vmem:[#allocation11 + $0x3d0] sm:$0xff]
    %v7570 = vld [vmem:[#allocation11 + $0x3d8] sm:$0xff]
    %v7571 = vld [vmem:[#allocation11 + $0x3f0] sm:$0xff]
    %v7572 = vld [vmem:[#allocation11 + $0x3f8] sm:$0xff]
    %v7637 = vunpack.c.l.b16 %v7509
    %v7638 = vunpack.c.h.b16 %v7509
    %v7639 = vunpack.c.l.b16 %v7510
    %v7640 = vunpack.c.h.b16 %v7510
    %v7641 = vunpack.c.l.b16 %v7511
    %v7642 = vunpack.c.h.b16 %v7511
    %v7643 = vunpack.c.l.b16 %v7512
    %v7644 = vunpack.c.h.b16 %v7512
    %v7645 = vunpack.c.l.b16 %v7513
    %v7646 = vunpack.c.h.b16 %v7513
    %v7647 = vunpack.c.l.b16 %v7514
    %v7648 = vunpack.c.h.b16 %v7514
    %v7649 = vunpack.c.l.b16 %v7515
    %v7650 = vunpack.c.h.b16 %v7515
    %v7651 = vunpack.c.l.b16 %v7516
    %v7652 = vunpack.c.h.b16 %v7516
    %v7653 = vunpack.c.l.b16 %v7517
    %v7654 = vunpack.c.h.b16 %v7517
    %v7655 = vunpack.c.l.b16 %v7518
    %v7656 = vunpack.c.h.b16 %v7518
    %v7657 = vunpack.c.l.b16 %v7519
    %v7658 = vunpack.c.h.b16 %v7519
    %v7659 = vunpack.c.l.b16 %v7520
    %v7660 = vunpack.c.h.b16 %v7520
    %v7661 = vunpack.c.l.b16 %v7521
    %v7662 = vunpack.c.h.b16 %v7521
    %v7663 = vunpack.c.l.b16 %v7522
    %v7664 = vunpack.c.h.b16 %v7522
    %v7665 = vunpack.c.l.b16 %v7523
    %v7666 = vunpack.c.h.b16 %v7523
    %v7667 = vunpack.c.l.b16 %v7524
    %v7668 = vunpack.c.h.b16 %v7524
    %v7669 = vunpack.c.l.b16 %v7525
    %v7670 = vunpack.c.h.b16 %v7525
    %v7671 = vunpack.c.l.b16 %v7526
    %v7672 = vunpack.c.h.b16 %v7526
    %v7673 = vunpack.c.l.b16 %v7527
    %v7674 = vunpack.c.h.b16 %v7527
    %v7675 = vunpack.c.l.b16 %v7528
    %v7676 = vunpack.c.h.b16 %v7528
    %v7677 = vunpack.c.l.b16 %v7529
    %v7678 = vunpack.c.h.b16 %v7529
    %v7679 = vunpack.c.l.b16 %v7530
    %v7680 = vunpack.c.h.b16 %v7530
    %v7681 = vunpack.c.l.b16 %v7531
    %v7682 = vunpack.c.h.b16 %v7531
    %v7683 = vunpack.c.l.b16 %v7532
    %v7684 = vunpack.c.h.b16 %v7532
    %v7685 = vunpack.c.l.b16 %v7533
    %v7686 = vunpack.c.h.b16 %v7533
    %v7687 = vunpack.c.l.b16 %v7534
    %v7688 = vunpack.c.h.b16 %v7534
    %v7689 = vunpack.c.l.b16 %v7535
    %v7690 = vunpack.c.h.b16 %v7535
    %v7691 = vunpack.c.l.b16 %v7536
    %v7692 = vunpack.c.h.b16 %v7536
    %v7693 = vunpack.c.l.b16 %v7537
    %v7694 = vunpack.c.h.b16 %v7537
    %v7695 = vunpack.c.l.b16 %v7538
    %v7696 = vunpack.c.h.b16 %v7538
    %v7697 = vunpack.c.l.b16 %v7539
    %v7698 = vunpack.c.h.b16 %v7539
    %v7699 = vunpack.c.l.b16 %v7540
    %v7700 = vunpack.c.h.b16 %v7540
    %v7701 = vunpack.c.l.b16 %v7541
    %v7702 = vunpack.c.h.b16 %v7541
    %v7703 = vunpack.c.l.b16 %v7542
    %v7704 = vunpack.c.h.b16 %v7542
    %v7705 = vunpack.c.l.b16 %v7543
    %v7706 = vunpack.c.h.b16 %v7543
    %v7707 = vunpack.c.l.b16 %v7544
    %v7708 = vunpack.c.h.b16 %v7544
    %v7709 = vunpack.c.l.b16 %v7545
    %v7710 = vunpack.c.h.b16 %v7545
    %v7711 = vunpack.c.l.b16 %v7546
    %v7712 = vunpack.c.h.b16 %v7546
    %v7713 = vunpack.c.l.b16 %v7547
    %v7714 = vunpack.c.h.b16 %v7547
    %v7715 = vunpack.c.l.b16 %v7548
    %v7716 = vunpack.c.h.b16 %v7548
    %v7717 = vunpack.c.l.b16 %v7549
    %v7718 = vunpack.c.h.b16 %v7549
    %v7719 = vunpack.c.l.b16 %v7550
    %v7720 = vunpack.c.h.b16 %v7550
    %v7721 = vunpack.c.l.b16 %v7551
    %v7722 = vunpack.c.h.b16 %v7551
    %v7723 = vunpack.c.l.b16 %v7552
    %v7724 = vunpack.c.h.b16 %v7552
    %v7725 = vunpack.c.l.b16 %v7553
    %v7726 = vunpack.c.h.b16 %v7553
    %v7727 = vunpack.c.l.b16 %v7554
    %v7728 = vunpack.c.h.b16 %v7554
    %v7729 = vunpack.c.l.b16 %v7555
    %v7730 = vunpack.c.h.b16 %v7555
    %v7731 = vunpack.c.l.b16 %v7556
    %v7732 = vunpack.c.h.b16 %v7556
    %v7733 = vunpack.c.l.b16 %v7557
    %v7734 = vunpack.c.h.b16 %v7557
    %v7735 = vunpack.c.l.b16 %v7558
    %v7736 = vunpack.c.h.b16 %v7558
    %v7737 = vunpack.c.l.b16 %v7559
    %v7738 = vunpack.c.h.b16 %v7559
    %v7739 = vunpack.c.l.b16 %v7560
    %v7740 = vunpack.c.h.b16 %v7560
    %v7741 = vunpack.c.l.b16 %v7561
    %v7742 = vunpack.c.h.b16 %v7561
    %v7743 = vunpack.c.l.b16 %v7562
    %v7744 = vunpack.c.h.b16 %v7562
    %v7745 = vunpack.c.l.b16 %v7563
    %v7746 = vunpack.c.h.b16 %v7563
    %v7747 = vunpack.c.l.b16 %v7564
    %v7748 = vunpack.c.h.b16 %v7564
    %v7749 = vunpack.c.l.b16 %v7565
    %v7750 = vunpack.c.h.b16 %v7565
    %v7751 = vunpack.c.l.b16 %v7566
    %v7752 = vunpack.c.h.b16 %v7566
    %v7753 = vunpack.c.l.b16 %v7567
    %v7754 = vunpack.c.h.b16 %v7567
    %v7755 = vunpack.c.l.b16 %v7568
    %v7756 = vunpack.c.h.b16 %v7568
    %v7757 = vunpack.c.l.b16 %v7569
    %v7758 = vunpack.c.h.b16 %v7569
    %v7759 = vunpack.c.l.b16 %v7570
    %v7760 = vunpack.c.h.b16 %v7570
    %v7761 = vunpack.c.l.b16 %v7571
    %v7762 = vunpack.c.h.b16 %v7571
    %v7763 = vunpack.c.l.b16 %v7572
    %v7764 = vunpack.c.h.b16 %v7572
    %v7765 = vpack.c.b16 %v7641, %v7637
    %v7766 = vpack.c.b16 %v7642, %v7638
    %v7767 = vpack.c.b16 %v7643, %v7639
    %v7768 = vpack.c.b16 %v7644, %v7640
    %v7769 = vpack.c.b16 %v7649, %v7645
    %v7770 = vpack.c.b16 %v7650, %v7646
    %v7771 = vpack.c.b16 %v7651, %v7647
    %v7772 = vpack.c.b16 %v7652, %v7648
    %v7773 = vpack.c.b16 %v7657, %v7653
    %v7774 = vpack.c.b16 %v7658, %v7654
    %v7775 = vpack.c.b16 %v7659, %v7655
    %v7776 = vpack.c.b16 %v7660, %v7656
    %v7777 = vpack.c.b16 %v7665, %v7661
    %v7778 = vpack.c.b16 %v7666, %v7662
    %v7779 = vpack.c.b16 %v7667, %v7663
    %v7780 = vpack.c.b16 %v7668, %v7664
    %v7781 = vpack.c.b16 %v7673, %v7669
    %v7782 = vpack.c.b16 %v7674, %v7670
    %v7783 = vpack.c.b16 %v7675, %v7671
    %v7784 = vpack.c.b16 %v7676, %v7672
    %v7785 = vpack.c.b16 %v7681, %v7677
    %v7786 = vpack.c.b16 %v7682, %v7678
    %v7787 = vpack.c.b16 %v7683, %v7679
    %v7788 = vpack.c.b16 %v7684, %v7680
    %v7789 = vpack.c.b16 %v7689, %v7685
    %v7790 = vpack.c.b16 %v7690, %v7686
    %v7791 = vpack.c.b16 %v7691, %v7687
    %v7792 = vpack.c.b16 %v7692, %v7688
    %v7793 = vpack.c.b16 %v7697, %v7693
    %v7794 = vpack.c.b16 %v7698, %v7694
    %v7795 = vpack.c.b16 %v7699, %v7695
    %v7796 = vpack.c.b16 %v7700, %v7696
    %v7797 = vpack.c.b16 %v7705, %v7701
    %v7798 = vpack.c.b16 %v7706, %v7702
    %v7799 = vpack.c.b16 %v7707, %v7703
    %v7800 = vpack.c.b16 %v7708, %v7704
    %v7801 = vpack.c.b16 %v7713, %v7709
    %v7802 = vpack.c.b16 %v7714, %v7710
    %v7803 = vpack.c.b16 %v7715, %v7711
    %v7804 = vpack.c.b16 %v7716, %v7712
    %v7805 = vpack.c.b16 %v7721, %v7717
    %v7806 = vpack.c.b16 %v7722, %v7718
    %v7807 = vpack.c.b16 %v7723, %v7719
    %v7808 = vpack.c.b16 %v7724, %v7720
    %v7809 = vpack.c.b16 %v7729, %v7725
    %v7810 = vpack.c.b16 %v7730, %v7726
    %v7811 = vpack.c.b16 %v7731, %v7727
    %v7812 = vpack.c.b16 %v7732, %v7728
    %v7813 = vpack.c.b16 %v7737, %v7733
    %v7814 = vpack.c.b16 %v7738, %v7734
    %v7815 = vpack.c.b16 %v7739, %v7735
    %v7816 = vpack.c.b16 %v7740, %v7736
    %v7817 = vpack.c.b16 %v7745, %v7741
    %v7818 = vpack.c.b16 %v7746, %v7742
    %v7819 = vpack.c.b16 %v7747, %v7743
    %v7820 = vpack.c.b16 %v7748, %v7744
    %v7821 = vpack.c.b16 %v7753, %v7749
    %v7822 = vpack.c.b16 %v7754, %v7750
    %v7823 = vpack.c.b16 %v7755, %v7751
    %v7824 = vpack.c.b16 %v7756, %v7752
    %v7825 = vpack.c.b16 %v7761, %v7757
    %v7826 = vpack.c.b16 %v7762, %v7758
    %v7827 = vpack.c.b16 %v7763, %v7759
    %v7828 = vpack.c.b16 %v7764, %v7760
    %7893 = vmatprep.subr.bf16.mxu0 %v7766
    %7894 = vmatpush1.bf16.msra.mxu0 %v7765
    %7895 = vmatprep.subr.bf16.mxu0 %v7770
    %7896 = vmatpush1.bf16.msra.mxu0 %v7769
    %7897 = vmatprep.subr.bf16.mxu0 %v7774
    %7898 = vmatpush1.bf16.msra.mxu0 %v7773
    %7899 = vmatprep.subr.bf16.mxu0 %v7778
    %7900 = vmatpush1.bf16.msra.mxu0 %v7777
    %7901 = vmatprep.subr.bf16.mxu0 %v7782
    %7902 = vmatpush1.bf16.msra.mxu0 %v7781
    %7903 = vmatprep.subr.bf16.mxu0 %v7786
    %7904 = vmatpush1.bf16.msra.mxu0 %v7785
    %7905 = vmatprep.subr.bf16.mxu0 %v7790
    %7906 = vmatpush1.bf16.msra.mxu0 %v7789
    %7907 = vmatprep.subr.bf16.mxu0 %v7794
    %7908 = vmatpush1.bf16.msra.mxu0 %v7793
    %7909 = vmatprep.subr.bf16.mxu0 %v7798
    %7910 = vmatpush1.bf16.msra.mxu0 %v7797
    %7911 = vmatprep.subr.bf16.mxu0 %v7802
    %7912 = vmatpush1.bf16.msra.mxu0 %v7801
    %7913 = vmatprep.subr.bf16.mxu0 %v7806
    %7914 = vmatpush1.bf16.msra.mxu0 %v7805
    %7915 = vmatprep.subr.bf16.mxu0 %v7810
    %7916 = vmatpush1.bf16.msra.mxu0 %v7809
    %7917 = vmatprep.subr.bf16.mxu0 %v7814
    %7918 = vmatpush1.bf16.msra.mxu0 %v7813
    %7919 = vmatprep.subr.bf16.mxu0 %v7818
    %7920 = vmatpush1.bf16.msra.mxu0 %v7817
    %7921 = vmatprep.subr.bf16.mxu0 %v7822
    %7922 = vmatpush1.bf16.msra.mxu0 %v7821
    %7923 = vmatprep.subr.bf16.mxu0 %v7826
    %7924 = vmatpush1.bf16.msra.mxu0 %v7825
    %7925 = vmatprep.mubr.bf16.mxu0 %v7508
    %7926 = vmatmul.mubr.bf16.gmra.mrb[0].mxu0 %v7507
    %v7927 = vpop.f32.mrb[0].mxu0
    %v7928 = vadd.f32 0.0, %v7927
    %v7929 = vpop.f32.mrb[0].mxu0
    %v7930 = vadd.f32 0.0, %v7929
    %v7931 = vpop.f32.mrb[0].mxu0
    %v7932 = vpop.f32.mrb[0].mxu0
    %7933 = vdwg.mxu0
    %7934 = vmatprep.subr.bf16.mxu0 %v7768
    %7935 = vmatpush1.bf16.msra.mxu0 %v7767
    %7936 = vmatprep.subr.bf16.mxu0 %v7772
    %7937 = vmatpush1.bf16.msra.mxu0 %v7771
    %7938 = vmatprep.subr.bf16.mxu0 %v7776
    %7939 = vmatpush1.bf16.msra.mxu0 %v7775
    %7940 = vmatprep.subr.bf16.mxu0 %v7780
    %7941 = vmatpush1.bf16.msra.mxu0 %v7779
    %7942 = vmatprep.subr.bf16.mxu0 %v7784
    %7943 = vmatpush1.bf16.msra.mxu0 %v7783
    %7944 = vmatprep.subr.bf16.mxu0 %v7788
    %7945 = vmatpush1.bf16.msra.mxu0 %v7787
    %7946 = vmatprep.subr.bf16.mxu0 %v7792
    %7947 = vmatpush1.bf16.msra.mxu0 %v7791
    %7948 = vmatprep.subr.bf16.mxu0 %v7796
    %7949 = vmatpush1.bf16.msra.mxu0 %v7795
    %7950 = vmatprep.subr.bf16.mxu0 %v7800
    %7951 = vmatpush1.bf16.msra.mxu0 %v7799
    %7952 = vmatprep.subr.bf16.mxu0 %v7804
    %7953 = vmatpush1.bf16.msra.mxu0 %v7803
    %7954 = vmatprep.subr.bf16.mxu0 %v7808
    %7955 = vmatpush1.bf16.msra.mxu0 %v7807
    %7956 = vmatprep.subr.bf16.mxu0 %v7812
    %7957 = vmatpush1.bf16.msra.mxu0 %v7811
    %7958 = vmatprep.subr.bf16.mxu0 %v7816
    %7959 = vmatpush1.bf16.msra.mxu0 %v7815
    %7960 = vmatprep.subr.bf16.mxu0 %v7820
    %7961 = vmatpush1.bf16.msra.mxu0 %v7819
    %7962 = vmatprep.subr.bf16.mxu0 %v7824
    %7963 = vmatpush1.bf16.msra.mxu0 %v7823
    %7964 = vmatprep.subr.bf16.mxu0 %v7828
    %7965 = vmatpush1.bf16.msra.mxu0 %v7827
    %7966 = vmatprep.mubr.bf16.mxu0 %v7508
    %7967 = vmatmul.mubr.bf16.gmra.mrb[0].mxu0 %v7507
    %v7968 = vpop.f32.mrb[0].mxu0
    %v7969 = vadd.f32 0.0, %v7968
    %v7970 = vpop.f32.mrb[0].mxu0
    %v7971 = vadd.f32 0.0, %v7970
    %v7972 = vpop.f32.mrb[0].mxu0
    %v7973 = vpop.f32.mrb[0].mxu0
    %7974 = vdwg.mxu0
    %v7975 = vadd.f32 %v7928, %v1455
    %v7976 = vadd.f32 %v7930, %v1459
    %v7977 = vadd.f32 %v7969, %v1463
    %v7978 = vadd.f32 %v7971, %v1467
    %v7979 = vxor.u32 %v7975, 2147483648
    %v7980 = vmul.f32 %v7979, 1.442695
    %v7981 = vpow.pop %v7980
    %v7982 = vadd.f32 %v7981, 1.0
    %v7983 = vrcp.pop %v7982
    %v7984 = vmul.f32 1.0, %v7983
    %v7985 = vxor.u32 %v7976, 2147483648
    %v7986 = vmul.f32 %v7985, 1.442695
    %v7987 = vpow.pop %v7986
    %v7988 = vadd.f32 %v7987, 1.0
    %v7989 = vrcp.pop %v7988
    %v7990 = vmul.f32 1.0, %v7989
    %v7991 = vtanh.pop %v7977
    %v7992 = vxor.u32 %v7978, 2147483648
    %v7993 = vmul.f32 %v7992, 1.442695
    %v7994 = vpow.pop %v7993
    %v7995 = vadd.f32 %v7994, 1.0
    %v7996 = vrcp.pop %v7995
    %v7997 = vmul.f32 1.0, %v7996
    %v7998 = vmul.f32 %v7990, %v7502
    %v7999 = vmul.f32 %v7984, %v7991
    %v8000 = vadd.f32 %v7998, %v7999
    %v8001 = vtanh.pop %v8000
    %v8002 = vmul.f32 %v7997, %v8001
    %s8003 = scalar_lea.vmem [#allocation2], 56
    %8004 = vst [vmem:[%s8003] sm:$0xff] %v8002
    %v8005 = vld [vmem:[#allocation2] sm:$0xff]
    %v8006 = vld [vmem:[#allocation2 + $0x8] sm:$0xff]
    %v8007 = vld [vmem:[#allocation2 + $0x10] sm:$0xff]
    %v8008 = vld [vmem:[#allocation2 + $0x18] sm:$0xff]
    %v8009 = vld [vmem:[#allocation2 + $0x20] sm:$0xff]
    %v8010 = vld [vmem:[#allocation2 + $0x28] sm:$0xff]
    %v8011 = vld [vmem:[#allocation2 + $0x30] sm:$0xff]
    %v8012 = vld [vmem:[#allocation2 + $0x38] sm:$0xff]
    %v8013 = vpack.c.bf16 %v8006, %v8005
    %v8014 = vpack.c.bf16 %v8008, %v8007
    %v8015 = vpack.c.bf16 %v8010, %v8009
    %v8016 = vpack.c.bf16 %v8012, %v8011
    %v8017 = vld [vmem:[#allocation17] sm:$0xff]
    %v8018 = vld [vmem:[#allocation17 + $0x8] sm:$0xff]
    %v8019 = vld [vmem:[#allocation17 + $0x10] sm:$0xff]
    %v8020 = vld [vmem:[#allocation17 + $0x18] sm:$0xff]
    %v8021 = vld [vmem:[#allocation17 + $0x20] sm:$0xff]
    %v8022 = vld [vmem:[#allocation17 + $0x28] sm:$0xff]
    %v8023 = vld [vmem:[#allocation17 + $0x30] sm:$0xff]
    %v8024 = vld [vmem:[#allocation17 + $0x38] sm:$0xff]
    %v8025 = vld [vmem:[#allocation17 + $0x40] sm:$0xff]
    %v8026 = vld [vmem:[#allocation17 + $0x48] sm:$0xff]
    %v8027 = vld [vmem:[#allocation17 + $0x50] sm:$0xff]
    %v8028 = vld [vmem:[#allocation17 + $0x58] sm:$0xff]
    %v8029 = vld [vmem:[#allocation17 + $0x60] sm:$0xff]
    %v8030 = vld [vmem:[#allocation17 + $0x68] sm:$0xff]
    %v8031 = vld [vmem:[#allocation17 + $0x70] sm:$0xff]
    %v8032 = vld [vmem:[#allocation17 + $0x78] sm:$0xff]
    %v8033 = vld [vmem:[#allocation19] sm:$0x3]
    %v8035 = vlaneseq
    %v8036 = vshrl.u32 %v8035, 7
    %v8037 = vsub.s32 0, %v8036
    %v8038 = vrot.slane %v8033, %v8037
    %v8039 = vlaneseq
    %v8040 = vshrl.u32 %v8039, 7
    %v8041 = vsub.s32 1, %v8040
    %v8042 = vrot.slane %v8033, %v8041
    %v8061 = vunpack.c.l.b16 %v8017
    %v8062 = vunpack.c.h.b16 %v8017
    %v8063 = vunpack.c.l.b16 %v8018
    %v8064 = vunpack.c.h.b16 %v8018
    %v8065 = vunpack.c.l.b16 %v8019
    %v8066 = vunpack.c.h.b16 %v8019
    %v8067 = vunpack.c.l.b16 %v8020
    %v8068 = vunpack.c.h.b16 %v8020
    %v8069 = vunpack.c.l.b16 %v8021
    %v8070 = vunpack.c.h.b16 %v8021
    %v8071 = vunpack.c.l.b16 %v8022
    %v8072 = vunpack.c.h.b16 %v8022
    %v8073 = vunpack.c.l.b16 %v8023
    %v8074 = vunpack.c.h.b16 %v8023
    %v8075 = vunpack.c.l.b16 %v8024
    %v8076 = vunpack.c.h.b16 %v8024
    %v8077 = vunpack.c.l.b16 %v8025
    %v8078 = vunpack.c.h.b16 %v8025
    %v8079 = vunpack.c.l.b16 %v8026
    %v8080 = vunpack.c.h.b16 %v8026
    %v8081 = vunpack.c.l.b16 %v8027
    %v8082 = vunpack.c.h.b16 %v8027
    %v8083 = vunpack.c.l.b16 %v8028
    %v8084 = vunpack.c.h.b16 %v8028
    %v8085 = vunpack.c.l.b16 %v8029
    %v8086 = vunpack.c.h.b16 %v8029
    %v8087 = vunpack.c.l.b16 %v8030
    %v8088 = vunpack.c.h.b16 %v8030
    %v8089 = vunpack.c.l.b16 %v8031
    %v8090 = vunpack.c.h.b16 %v8031
    %v8091 = vunpack.c.l.b16 %v8032
    %v8092 = vunpack.c.h.b16 %v8032
    %v8093 = vpack.c.b16 %v8063, %v8061
    %v8094 = vpack.c.b16 %v8064, %v8062
    %v8095 = vpack.c.b16 %v8067, %v8065
    %v8096 = vpack.c.b16 %v8068, %v8066
    %v8097 = vpack.c.b16 %v8071, %v8069
    %v8098 = vpack.c.b16 %v8072, %v8070
    %v8099 = vpack.c.b16 %v8075, %v8073
    %v8100 = vpack.c.b16 %v8076, %v8074
    %v8101 = vpack.c.b16 %v8079, %v8077
    %v8102 = vpack.c.b16 %v8080, %v8078
    %v8103 = vpack.c.b16 %v8083, %v8081
    %v8104 = vpack.c.b16 %v8084, %v8082
    %v8105 = vpack.c.b16 %v8087, %v8085
    %v8106 = vpack.c.b16 %v8088, %v8086
    %v8107 = vpack.c.b16 %v8091, %v8089
    %v8108 = vpack.c.b16 %v8092, %v8090
    %8125 = vmatprep.subr.bf16.mxu0 %v8094
    %8126 = vmatpush1.bf16.msra.mxu0 %v8093
    %8127 = vmatprep.subr.bf16.mxu0 %v8096
    %8128 = vmatpush1.bf16.msra.mxu0 %v8095
    %8129 = vmatprep.subr.bf16.mxu0 %v8098
    %8130 = vmatpush1.bf16.msra.mxu0 %v8097
    %8131 = vmatprep.subr.bf16.mxu0 %v8100
    %8132 = vmatpush1.bf16.msra.mxu0 %v8099
    %8133 = vmatprep.subr.bf16.mxu0 %v8102
    %8134 = vmatpush1.bf16.msra.mxu0 %v8101
    %8135 = vmatprep.subr.bf16.mxu0 %v8104
    %8136 = vmatpush1.bf16.msra.mxu0 %v8103
    %8137 = vmatprep.subr.bf16.mxu0 %v8106
    %8138 = vmatpush1.bf16.msra.mxu0 %v8105
    %8139 = vmatprep.subr.bf16.mxu0 %v8108
    %8140 = vmatpush1.bf16.msra.mxu0 %v8107
    %8141 = vmatprep.subr.bf16.mxu0 0
    %8142 = vmatpush1.bf16.msra.mxu0 0
    %8143 = vmatprep.subr.bf16.mxu0 0
    %8144 = vmatpush1.bf16.msra.mxu0 0
    %8145 = vmatprep.subr.bf16.mxu0 0
    %8146 = vmatpush1.bf16.msra.mxu0 0
    %8147 = vmatprep.subr.bf16.mxu0 0
    %8148 = vmatpush1.bf16.msra.mxu0 0
    %8149 = vmatprep.subr.bf16.mxu0 0
    %8150 = vmatpush1.bf16.msra.mxu0 0
    %8151 = vmatprep.subr.bf16.mxu0 0
    %8152 = vmatpush1.bf16.msra.mxu0 0
    %8153 = vmatprep.subr.bf16.mxu0 0
    %8154 = vmatpush1.bf16.msra.mxu0 0
    %8155 = vmatprep.subr.bf16.mxu0 0
    %8156 = vmatpush1.bf16.msra.mxu0 0
    %8157 = vmatprep.mubr.bf16.mxu0 0
    %8158 = vmatmul.mubr.bf16.gmra.mrb[0].mxu0 %v8013
    %v8159 = vpop.f32.mrb[0].mxu0
    %v8160 = vadd.f32 %v8038, %v8159
    %v8161 = vpop.f32.mrb[0].mxu0
    %v8162 = vadd.f32 %v8042, %v8161
    %v8163 = vpop.f32.mrb[0].mxu0
    %v8164 = vadd.f32 %v8038, %v8163
    %v8165 = vpop.f32.mrb[0].mxu0
    %v8166 = vadd.f32 %v8042, %v8165
    %8167 = vmatprep.mubr.bf16.mxu0 0
    %8168 = vmatmul.mubr.bf16.gmra.mrb[0].mxu0 %v8014
    %v8169 = vpop.f32.mrb[0].mxu0
    %v8170 = vadd.f32 %v8038, %v8169
    %v8171 = vpop.f32.mrb[0].mxu0
    %v8172 = vadd.f32 %v8042, %v8171
    %v8173 = vpop.f32.mrb[0].mxu0
    %v8174 = vadd.f32 %v8038, %v8173
    %v8175 = vpop.f32.mrb[0].mxu0
    %v8176 = vadd.f32 %v8042, %v8175
    %8177 = vmatprep.mubr.bf16.mxu0 0
    %8178 = vmatmul.mubr.bf16.gmra.mrb[0].mxu0 %v8015
    %v8179 = vpop.f32.mrb[0].mxu0
    %v8180 = vadd.f32 %v8038, %v8179
    %v8181 = vpop.f32.mrb[0].mxu0
    %v8182 = vadd.f32 %v8042, %v8181
    %v8183 = vpop.f32.mrb[0].mxu0
    %v8184 = vadd.f32 %v8038, %v8183
    %v8185 = vpop.f32.mrb[0].mxu0
    %v8186 = vadd.f32 %v8042, %v8185
    %8187 = vmatprep.mubr.bf16.mxu0 0
    %8188 = vmatmul.mubr.bf16.gmra.mrb[0].mxu0 %v8016
    %v8189 = vpop.f32.mrb[0].mxu0
    %v8190 = vadd.f32 %v8038, %v8189
    %v8191 = vpop.f32.mrb[0].mxu0
    %v8192 = vadd.f32 %v8042, %v8191
    %v8193 = vpop.f32.mrb[0].mxu0
    %v8194 = vadd.f32 %v8038, %v8193
    %v8195 = vpop.f32.mrb[0].mxu0
    %v8196 = vadd.f32 %v8042, %v8195
    %8197 = vdwg.mxu0
    %v8198 = vpack.c.bf16 %v8002, %v8002
    %v8199 = vld [vmem:[#allocation14] sm:$0xf]
    %v8200 = vld [vmem:[#allocation14 + $0x4] sm:$0xf]
    %v8201 = vld [vmem:[#allocation14 + $0x8] sm:$0xf]
    %v8202 = vld [vmem:[#allocation14 + $0xc] sm:$0xf]
    %v8203 = vld [vmem:[#allocation14 + $0x10] sm:$0xf]
    %v8204 = vld [vmem:[#allocation14 + $0x14] sm:$0xf]
    %v8205 = vld [vmem:[#allocation14 + $0x18] sm:$0xf]
    %v8206 = vld [vmem:[#allocation14 + $0x1c] sm:$0xf]
    %v8207 = vld [vmem:[#allocation14 + $0x20] sm:$0xf]
    %v8208 = vld [vmem:[#allocation14 + $0x24] sm:$0xf]
    %v8209 = vld [vmem:[#allocation14 + $0x28] sm:$0xf]
    %v8210 = vld [vmem:[#allocation14 + $0x2c] sm:$0xf]
    %v8211 = vld [vmem:[#allocation14 + $0x30] sm:$0xf]
    %v8212 = vld [vmem:[#allocation14 + $0x34] sm:$0xf]
    %v8213 = vld [vmem:[#allocation14 + $0x38] sm:$0xf]
    %v8214 = vld [vmem:[#allocation14 + $0x3c] sm:$0xf]
    %v8215 = vld [vmem:[#allocation16] sm:$0x1]
    %v8217 = vlaneseq
    %v8218 = vshrl.u32 %v8217, 7
    %v8219 = vsub.s32 0, %v8218
    %v8220 = vrot.slane %v8215, %v8219
    %v8238 = vunpack.c.l.b16 %v8199
    %v8239 = vunpack.c.l.b16 %v8200
    %v8240 = vunpack.c.l.b16 %v8201
    %v8241 = vunpack.c.l.b16 %v8202
    %v8242 = vunpack.c.l.b16 %v8203
    %v8243 = vunpack.c.l.b16 %v8204
    %v8244 = vunpack.c.l.b16 %v8205
    %v8245 = vunpack.c.l.b16 %v8206
    %v8246 = vunpack.c.l.b16 %v8207
    %v8247 = vunpack.c.l.b16 %v8208
    %v8248 = vunpack.c.l.b16 %v8209
    %v8249 = vunpack.c.l.b16 %v8210
    %v8250 = vunpack.c.l.b16 %v8211
    %v8251 = vunpack.c.l.b16 %v8212
    %v8252 = vunpack.c.l.b16 %v8213
    %v8253 = vunpack.c.l.b16 %v8214
    %v8254 = vpack.c.b16 %v8239, %v8238
    %v8255 = vpack.c.b16 %v8241, %v8240
    %v8256 = vpack.c.b16 %v8243, %v8242
    %v8257 = vpack.c.b16 %v8245, %v8244
    %v8258 = vpack.c.b16 %v8247, %v8246
    %v8259 = vpack.c.b16 %v8249, %v8248
    %v8260 = vpack.c.b16 %v8251, %v8250
    %v8261 = vpack.c.b16 %v8253, %v8252
    %8270 = vmatprep.subr.bf16.mxu0 0
    %8271 = vmatpush1.bf16.msra.mxu0 %v8254
    %8272 = vmatprep.subr.bf16.mxu0 0
    %8273 = vmatpush1.bf16.msra.mxu0 %v8255
    %8274 = vmatprep.subr.bf16.mxu0 0
    %8275 = vmatpush1.bf16.msra.mxu0 %v8256
    %8276 = vmatprep.subr.bf16.mxu0 0
    %8277 = vmatpush1.bf16.msra.mxu0 %v8257
    %8278 = vmatprep.subr.bf16.mxu0 0
    %8279 = vmatpush1.bf16.msra.mxu0 %v8258
    %8280 = vmatprep.subr.bf16.mxu0 0
    %8281 = vmatpush1.bf16.msra.mxu0 %v8259
    %8282 = vmatprep.subr.bf16.mxu0 0
    %8283 = vmatpush1.bf16.msra.mxu0 %v8260
    %8284 = vmatprep.subr.bf16.mxu0 0
    %8285 = vmatpush1.bf16.msra.mxu0 %v8261
    %8286 = vmatprep.subr.bf16.mxu0 0
    %8287 = vmatpush1.bf16.msra.mxu0 0
    %8288 = vmatprep.subr.bf16.mxu0 0
    %8289 = vmatpush1.bf16.msra.mxu0 0
    %8290 = vmatprep.subr.bf16.mxu0 0
    %8291 = vmatpush1.bf16.msra.mxu0 0
    %8292 = vmatprep.subr.bf16.mxu0 0
    %8293 = vmatpush1.bf16.msra.mxu0 0
    %8294 = vmatprep.subr.bf16.mxu0 0
    %8295 = vmatpush1.bf16.msra.mxu0 0
    %8296 = vmatprep.subr.bf16.mxu0 0
    %8297 = vmatpush1.bf16.msra.mxu0 0
    %8298 = vmatprep.subr.bf16.mxu0 0
    %8299 = vmatpush1.bf16.msra.mxu0 0
    %8300 = vmatprep.subr.bf16.mxu0 0
    %8301 = vmatpush1.bf16.msra.mxu0 0
    %8302 = vmatprep.mubr.bf16.mxu0 0
    %8303 = vmatmul.mubr.bf16.gmra.mrb[0].mxu0 %v8198
    %v8304 = vpop.f32.mrb[0].mxu0
    %v8305 = vadd.f32 %v8220, %v8304
    %v8306 = vpop.f32.mrb[0].mxu0
    %v8307 = vpop.f32.mrb[0].mxu0
    %v8308 = vpop.f32.mrb[0].mxu0
    %8309 = vdwg.mxu0
    %v8310 = vmul.f32 %v8305, %v8160
    %v8311 = vmul.f32 %v8305, %v8164
    %v8312 = vmul.f32 %v8305, %v8170
    %v8313 = vmul.f32 %v8305, %v8174
    %v8314 = vmul.f32 %v8305, %v8180
    %v8315 = vmul.f32 %v8305, %v8184
    %v8316 = vmul.f32 %v8305, %v8190
    %v8317 = vmul.f32 %v8305, %v8194
    %v8318 = vld [vmem:[#allocation25] sm:$0xff]
    %v8319 = vld [vmem:[#allocation25 + $0x8] sm:$0xff]
    %v8320 = vld [vmem:[#allocation25 + $0x10] sm:$0xff]
    %v8321 = vld [vmem:[#allocation25 + $0x18] sm:$0xff]
    %v8322 = vld [vmem:[#allocation25 + $0x20] sm:$0xff]
    %v8323 = vld [vmem:[#allocation25 + $0x28] sm:$0xff]
    %v8324 = vld [vmem:[#allocation25 + $0x30] sm:$0xff]
    %v8325 = vld [vmem:[#allocation25 + $0x38] sm:$0xff]
    %v8326 = vld [vmem:[#allocation25 + $0x40] sm:$0xff]
    %v8327 = vld [vmem:[#allocation25 + $0x48] sm:$0xff]
    %v8328 = vld [vmem:[#allocation25 + $0x50] sm:$0xff]
    %v8329 = vld [vmem:[#allocation25 + $0x58] sm:$0xff]
    %v8330 = vld [vmem:[#allocation25 + $0x60] sm:$0xff]
    %v8331 = vld [vmem:[#allocation25 + $0x68] sm:$0xff]
    %v8332 = vld [vmem:[#allocation25 + $0x70] sm:$0xff]
    %v8333 = vld [vmem:[#allocation25 + $0x78] sm:$0xff]
    %8334 = vmatprep.subr.mxu0 0.0
    %8335 = vmatpush1.msra.mxu0 %v8318
    %8336 = vmatprep.subr.mxu0 0.0
    %8337 = vmatpush1.msra.mxu0 %v8319
    %8338 = vmatprep.subr.mxu0 0.0
    %8339 = vmatpush1.msra.mxu0 %v8320
    %8340 = vmatprep.subr.mxu0 0.0
    %8341 = vmatpush1.msra.mxu0 %v8321
    %8342 = vmatprep.subr.mxu0 0.0
    %8343 = vmatpush1.msra.mxu0 %v8322
    %8344 = vmatprep.subr.mxu0 0.0
    %8345 = vmatpush1.msra.mxu0 %v8323
    %8346 = vmatprep.subr.mxu0 0.0
    %8347 = vmatpush1.msra.mxu0 %v8324
    %8348 = vmatprep.subr.mxu0 0.0
    %8349 = vmatpush1.msra.mxu0 %v8325
    %8350 = vmatprep.subr.mxu0 0.0
    %8351 = vmatpush1.msra.mxu0 %v8326
    %8352 = vmatprep.subr.mxu0 0.0
    %8353 = vmatpush1.msra.mxu0 %v8327
    %8354 = vmatprep.subr.mxu0 0.0
    %8355 = vmatpush1.msra.mxu0 %v8328
    %8356 = vmatprep.subr.mxu0 0.0
    %8357 = vmatpush1.msra.mxu0 %v8329
    %8358 = vmatprep.subr.mxu0 0.0
    %8359 = vmatpush1.msra.mxu0 %v8330
    %8360 = vmatprep.subr.mxu0 0.0
    %8361 = vmatpush1.msra.mxu0 %v8331
    %8362 = vmatprep.subr.mxu0 0.0
    %8363 = vmatpush1.msra.mxu0 %v8332
    %8364 = vmatprep.subr.mxu0 0.0
    %8365 = vmatpush1.msra.mxu0 %v8333
    %8366 = vmatprep.subr.mxu0 0.0
    %8367 = vmatpush1.msra.mxu0 0.0
    %8368 = vmatprep.subr.mxu0 0.0
    %8369 = vmatpush1.msra.mxu0 0.0
    %8370 = vmatprep.subr.mxu0 0.0
    %8371 = vmatpush1.msra.mxu0 0.0
    %8372 = vmatprep.subr.mxu0 0.0
    %8373 = vmatpush1.msra.mxu0 0.0
    %8374 = vmatprep.subr.mxu0 0.0
    %8375 = vmatpush1.msra.mxu0 0.0
    %8376 = vmatprep.subr.mxu0 0.0
    %8377 = vmatpush1.msra.mxu0 0.0
    %8378 = vmatprep.subr.mxu0 0.0
    %8379 = vmatpush1.msra.mxu0 0.0
    %8380 = vmatprep.subr.mxu0 0.0
    %8381 = vmatpush1.msra.mxu0 0.0
    %8382 = vmatprep.subr.mxu0 0.0
    %8383 = vmatpush1.msra.mxu0 0.0
    %8384 = vmatprep.subr.mxu0 0.0
    %8385 = vmatpush1.msra.mxu0 0.0
    %8386 = vmatprep.subr.mxu0 0.0
    %8387 = vmatpush1.msra.mxu0 0.0
    %8388 = vmatprep.subr.mxu0 0.0
    %8389 = vmatpush1.msra.mxu0 0.0
    %8390 = vmatprep.subr.mxu0 0.0
    %8391 = vmatpush1.msra.mxu0 0.0
    %8392 = vmatprep.subr.mxu0 0.0
    %8393 = vmatpush1.msra.mxu0 0.0
    %8394 = vmatprep.subr.mxu0 0.0
    %8395 = vmatpush1.msra.mxu0 0.0
    %8396 = vmatprep.subr.mxu0 0.0
    %8397 = vmatpush1.msra.mxu0 0.0
    %8398 = vmatprep.mubr.f32.mxu0 0.0
    %8399 = vmatmul.mubr.f32.gmra.mrb[0].mxu0 %v8310
    %v8400 = vpop.f32.mrb[0].mxu0
    %v8401 = vadd.f32 0.0, %v8400
    %v8402 = vpop.f32.mrb[0].mxu0
    %8403 = vmatprep.mubr.f32.mxu0 0.0
    %8404 = vmatmul.mubr.f32.gmra.mrb[0].mxu0 %v8311
    %v8405 = vpop.f32.mrb[0].mxu0
    %v8406 = vadd.f32 0.0, %v8405
    %v8407 = vpop.f32.mrb[0].mxu0
    %8408 = vmatprep.mubr.f32.mxu0 0.0
    %8409 = vmatmul.mubr.f32.gmra.mrb[0].mxu0 %v8312
    %v8410 = vpop.f32.mrb[0].mxu0
    %v8411 = vadd.f32 0.0, %v8410
    %v8412 = vpop.f32.mrb[0].mxu0
    %8413 = vmatprep.mubr.f32.mxu0 0.0
    %8414 = vmatmul.mubr.f32.gmra.mrb[0].mxu0 %v8313
    %v8415 = vpop.f32.mrb[0].mxu0
    %v8416 = vadd.f32 0.0, %v8415
    %v8417 = vpop.f32.mrb[0].mxu0
    %8418 = vmatprep.mubr.f32.mxu0 0.0
    %8419 = vmatmul.mubr.f32.gmra.mrb[0].mxu0 %v8314
    %v8420 = vpop.f32.mrb[0].mxu0
    %v8421 = vadd.f32 0.0, %v8420
    %v8422 = vpop.f32.mrb[0].mxu0
    %8423 = vmatprep.mubr.f32.mxu0 0.0
    %8424 = vmatmul.mubr.f32.gmra.mrb[0].mxu0 %v8315
    %v8425 = vpop.f32.mrb[0].mxu0
    %v8426 = vadd.f32 0.0, %v8425
    %v8427 = vpop.f32.mrb[0].mxu0
    %8428 = vmatprep.mubr.f32.mxu0 0.0
    %8429 = vmatmul.mubr.f32.gmra.mrb[0].mxu0 %v8316
    %v8430 = vpop.f32.mrb[0].mxu0
    %v8431 = vadd.f32 0.0, %v8430
    %v8432 = vpop.f32.mrb[0].mxu0
    %8433 = vmatprep.mubr.f32.mxu0 0.0
    %8434 = vmatmul.mubr.f32.gmra.mrb[0].mxu0 %v8317
    %v8435 = vpop.f32.mrb[0].mxu0
    %v8436 = vadd.f32 0.0, %v8435
    %v8437 = vpop.f32.mrb[0].mxu0
    %8438 = vdwg.mxu0
    %v8439 = vmul.f32 %v8401, 0.25
    %v8440 = vmul.f32 %v8406, 0.25
    %v8441 = vmul.f32 %v8411, 0.25
    %v8442 = vmul.f32 %v8416, 0.25
    %v8443 = vmul.f32 %v8421, 0.25
    %v8444 = vmul.f32 %v8426, 0.25
    %v8445 = vmul.f32 %v8431, 0.25
    %v8446 = vmul.f32 %v8436, 0.25
    %vm8447 = vcmask 64512
    %v8448 = vsel %vm8447, %v8439, -inf
    %v8449 = vsel %vm8447, %v8440, -inf
    %v8450 = vsel %vm8447, %v8441, -inf
    %v8451 = vsel %vm8447, %v8442, -inf
    %v8452 = vsel %vm8447, %v8443, -inf
    %v8453 = vmax.f32 %v8448, %v8452
    %v8454 = vsel %vm8447, %v8444, -inf
    %v8455 = vmax.f32 %v8449, %v8454
    %v8456 = vsel %vm8447, %v8445, -inf
    %v8457 = vmax.f32 %v8450, %v8456
    %v8458 = vsel %vm8447, %v8446, -inf
    %v8459 = vmax.f32 %v8451, %v8458
    %v8460 = vmax.f32 %v8453, %v8455
    %v8461 = vmax.f32 %v8457, %v8459
    %v8462 = vmax.f32 %v8460, %v8461
    %v8463 = vsub.f32 %v8439, %v8462
    %v8464 = vsub.f32 %v8440, %v8462
    %v8465 = vsub.f32 %v8441, %v8462
    %v8466 = vsub.f32 %v8442, %v8462
    %v8467 = vsub.f32 %v8443, %v8462
    %v8468 = vsub.f32 %v8444, %v8462
    %v8469 = vsub.f32 %v8445, %v8462
    %v8470 = vsub.f32 %v8446, %v8462
    %v8471 = vmul.f32 %v8463, 1.442695
    %v8472 = vpow.pop %v8471
    %v8473 = vmul.f32 %v8464, 1.442695
    %v8474 = vpow.pop %v8473
    %v8475 = vmul.f32 %v8465, 1.442695
    %v8476 = vpow.pop %v8475
    %v8477 = vmul.f32 %v8466, 1.442695
    %v8478 = vpow.pop %v8477
    %v8479 = vmul.f32 %v8467, 1.442695
    %v8480 = vpow.pop %v8479
    %v8481 = vmul.f32 %v8468, 1.442695
    %v8482 = vpow.pop %v8481
    %v8483 = vmul.f32 %v8469, 1.442695
    %v8484 = vpow.pop %v8483
    %v8485 = vmul.f32 %v8470, 1.442695
    %v8486 = vpow.pop %v8485
    %v8487 = vsel %vm8447, %v8472, 0.0
    %v8488 = vsel %vm8447, %v8474, 0.0
    %v8489 = vadd.f32 %v8487, %v8488
    %v8490 = vsel %vm8447, %v8476, 0.0
    %v8491 = vadd.f32 %v8489, %v8490
    %v8492 = vsel %vm8447, %v8478, 0.0
    %v8493 = vadd.f32 %v8491, %v8492
    %v8494 = vsel %vm8447, %v8480, 0.0
    %v8495 = vadd.f32 %v8493, %v8494
    %v8496 = vsel %vm8447, %v8482, 0.0
    %v8497 = vadd.f32 %v8495, %v8496
    %v8498 = vsel %vm8447, %v8484, 0.0
    %v8499 = vadd.f32 %v8497, %v8498
    %v8500 = vsel %vm8447, %v8486, 0.0
    %v8501 = vadd.f32 %v8499, %v8500
    %v8502 = vrcp.pop %v8501
    %v8503 = vmul.f32 %v8472, %v8502
    %v8504 = vmul.f32 %v8474, %v8502
    %v8505 = vmul.f32 %v8476, %v8502
    %v8506 = vmul.f32 %v8478, %v8502
    %v8507 = vmul.f32 %v8480, %v8502
    %v8508 = vmul.f32 %v8482, %v8502
    %v8509 = vmul.f32 %v8484, %v8502
    %v8510 = vmul.f32 %v8486, %v8502
    %v8511 = vld [vmem:[#allocation26] sm:$0xff]
    %v8513 = vsel %vm8447, %v8503, 0
    %v8516 = vsel %vm8447, %v8504, 0
    %v8519 = vsel %vm8447, %v8505, 0
    %v8522 = vsel %vm8447, %v8506, 0
    %v8525 = vsel %vm8447, %v8507, 0
    %v8528 = vsel %vm8447, %v8508, 0
    %v8531 = vsel %vm8447, %v8509, 0
    %v8534 = vsel %vm8447, %v8510, 0
    %8536 = vmatprep.subr.mxu0 0.0
    %8537 = vmatpush1.msra.mxu0 %v8511
    %8538 = vmatprep.subr.mxu0 0.0
    %8539 = vmatpush1.msra.mxu0 0.0
    %8540 = vmatprep.subr.mxu0 0.0
    %8541 = vmatpush1.msra.mxu0 0.0
    %8542 = vmatprep.subr.mxu0 0.0
    %8543 = vmatpush1.msra.mxu0 0.0
    %8544 = vmatprep.subr.mxu0 0.0
    %8545 = vmatpush1.msra.mxu0 0.0
    %8546 = vmatprep.subr.mxu0 0.0
    %8547 = vmatpush1.msra.mxu0 0.0
    %8548 = vmatprep.subr.mxu0 0.0
    %8549 = vmatpush1.msra.mxu0 0.0
    %8550 = vmatprep.subr.mxu0 0.0
    %8551 = vmatpush1.msra.mxu0 0.0
    %8552 = vmatprep.subr.mxu0 0.0
    %8553 = vmatpush1.msra.mxu0 0.0
    %8554 = vmatprep.subr.mxu0 0.0
    %8555 = vmatpush1.msra.mxu0 0.0
    %8556 = vmatprep.subr.mxu0 0.0
    %8557 = vmatpush1.msra.mxu0 0.0
    %8558 = vmatprep.subr.mxu0 0.0
    %8559 = vmatpush1.msra.mxu0 0.0
    %8560 = vmatprep.subr.mxu0 0.0
    %8561 = vmatpush1.msra.mxu0 0.0
    %8562 = vmatprep.subr.mxu0 0.0
    %8563 = vmatpush1.msra.mxu0 0.0
    %8564 = vmatprep.subr.mxu0 0.0
    %8565 = vmatpush1.msra.mxu0 0.0
    %8566 = vmatprep.subr.mxu0 0.0
    %8567 = vmatpush1.msra.mxu0 0.0
    %8568 = vmatprep.subr.mxu0 0.0
    %8569 = vmatpush1.msra.mxu0 0.0
    %8570 = vmatprep.subr.mxu0 0.0
    %8571 = vmatpush1.msra.mxu0 0.0
    %8572 = vmatprep.subr.mxu0 0.0
    %8573 = vmatpush1.msra.mxu0 0.0
    %8574 = vmatprep.subr.mxu0 0.0
    %8575 = vmatpush1.msra.mxu0 0.0
    %8576 = vmatprep.subr.mxu0 0.0
    %8577 = vmatpush1.msra.mxu0 0.0
    %8578 = vmatprep.subr.mxu0 0.0
    %8579 = vmatpush1.msra.mxu0 0.0
    %8580 = vmatprep.subr.mxu0 0.0
    %8581 = vmatpush1.msra.mxu0 0.0
    %8582 = vmatprep.subr.mxu0 0.0
    %8583 = vmatpush1.msra.mxu0 0.0
    %8584 = vmatprep.subr.mxu0 0.0
    %8585 = vmatpush1.msra.mxu0 0.0
    %8586 = vmatprep.subr.mxu0 0.0
    %8587 = vmatpush1.msra.mxu0 0.0
    %8588 = vmatprep.subr.mxu0 0.0
    %8589 = vmatpush1.msra.mxu0 0.0
    %8590 = vmatprep.subr.mxu0 0.0
    %8591 = vmatpush1.msra.mxu0 0.0
    %8592 = vmatprep.subr.mxu0 0.0
    %8593 = vmatpush1.msra.mxu0 0.0
    %8594 = vmatprep.subr.mxu0 0.0
    %8595 = vmatpush1.msra.mxu0 0.0
    %8596 = vmatprep.subr.mxu0 0.0
    %8597 = vmatpush1.msra.mxu0 0.0
    %8598 = vmatprep.subr.mxu0 0.0
    %8599 = vmatpush1.msra.mxu0 0.0
    %8600 = vmatprep.mubr.f32.mxu0 0.0
    %8601 = vmatmul.mubr.f32.gmra.mrb[0].mxu0 %v8513
    %v8602 = vpop.f32.mrb[0].mxu0
    %v8603 = vadd.f32 0.0, %v8602
    %v8604 = vpop.f32.mrb[0].mxu0
    %8605 = vmatprep.mubr.f32.mxu0 0.0
    %8606 = vmatmul.mubr.f32.gmra.mrb[0].mxu0 %v8516
    %v8607 = vpop.f32.mrb[0].mxu0
    %v8608 = vadd.f32 0.0, %v8607
    %v8609 = vpop.f32.mrb[0].mxu0
    %8610 = vmatprep.mubr.f32.mxu0 0.0
    %8611 = vmatmul.mubr.f32.gmra.mrb[0].mxu0 %v8519
    %v8612 = vpop.f32.mrb[0].mxu0
    %v8613 = vadd.f32 0.0, %v8612
    %v8614 = vpop.f32.mrb[0].mxu0
    %8615 = vmatprep.mubr.f32.mxu0 0.0
    %8616 = vmatmul.mubr.f32.gmra.mrb[0].mxu0 %v8522
    %v8617 = vpop.f32.mrb[0].mxu0
    %v8618 = vadd.f32 0.0, %v8617
    %v8619 = vpop.f32.mrb[0].mxu0
    %8620 = vmatprep.mubr.f32.mxu0 0.0
    %8621 = vmatmul.mubr.f32.gmra.mrb[0].mxu0 %v8525
    %v8622 = vpop.f32.mrb[0].mxu0
    %v8623 = vadd.f32 0.0, %v8622
    %v8624 = vpop.f32.mrb[0].mxu0
    %8625 = vmatprep.mubr.f32.mxu0 0.0
    %8626 = vmatmul.mubr.f32.gmra.mrb[0].mxu0 %v8528
    %v8627 = vpop.f32.mrb[0].mxu0
    %v8628 = vadd.f32 0.0, %v8627
    %v8629 = vpop.f32.mrb[0].mxu0
    %8630 = vmatprep.mubr.f32.mxu0 0.0
    %8631 = vmatmul.mubr.f32.gmra.mrb[0].mxu0 %v8531
    %v8632 = vpop.f32.mrb[0].mxu0
    %v8633 = vadd.f32 0.0, %v8632
    %v8634 = vpop.f32.mrb[0].mxu0
    %8635 = vmatprep.mubr.f32.mxu0 0.0
    %8636 = vmatmul.mubr.f32.gmra.mrb[0].mxu0 %v8534
    %v8637 = vpop.f32.mrb[0].mxu0
    %v8638 = vadd.f32 0.0, %v8637
    %v8639 = vpop.f32.mrb[0].mxu0
    %8640 = vdwg.mxu0
    %v8641 = vmul.f32 %v8603, %v8162
    %v8642 = vmul.f32 %v8608, %v8166
    %v8643 = vmul.f32 %v8613, %v8172
    %v8644 = vmul.f32 %v8618, %v8176
    %v8645 = vmul.f32 %v8623, %v8182
    %v8646 = vmul.f32 %v8628, %v8186
    %v8647 = vmul.f32 %v8633, %v8192
    %v8648 = vmul.f32 %v8638, %v8196
    %v8649 = vadd.f32 %v8641, %v8642
    %v8650 = vadd.f32 %v8649, %v8643
    %v8651 = vadd.f32 %v8650, %v8644
    %v8652 = vadd.f32 %v8651, %v8645
    %v8653 = vadd.f32 %v8652, %v8646
    %v8654 = vadd.f32 %v8653, %v8647
    %v8655 = vadd.f32 %v8654, %v8648
    %v8656 = vpack.c.bf16 %v8655, %v8655
    %v8657 = vld [vmem:[#allocation20] sm:$0xf]
    %v8658 = vld [vmem:[#allocation20 + $0x4] sm:$0xf]
    %v8659 = vld [vmem:[#allocation20 + $0x8] sm:$0xf]
    %v8660 = vld [vmem:[#allocation20 + $0xc] sm:$0xf]
    %v8661 = vld [vmem:[#allocation20 + $0x10] sm:$0xf]
    %v8662 = vld [vmem:[#allocation20 + $0x14] sm:$0xf]
    %v8663 = vld [vmem:[#allocation20 + $0x18] sm:$0xf]
    %v8664 = vld [vmem:[#allocation20 + $0x1c] sm:$0xf]
    %v8665 = vld [vmem:[#allocation20 + $0x20] sm:$0xf]
    %v8666 = vld [vmem:[#allocation20 + $0x24] sm:$0xf]
    %v8667 = vld [vmem:[#allocation20 + $0x28] sm:$0xf]
    %v8668 = vld [vmem:[#allocation20 + $0x2c] sm:$0xf]
    %v8669 = vld [vmem:[#allocation20 + $0x30] sm:$0xf]
    %v8670 = vld [vmem:[#allocation20 + $0x34] sm:$0xf]
    %v8671 = vld [vmem:[#allocation20 + $0x38] sm:$0xf]
    %v8672 = vld [vmem:[#allocation20 + $0x3c] sm:$0xf]
    %v8673 = vld [vmem:[#allocation22] sm:$0x1]
    %v8675 = vlaneseq
    %v8676 = vshrl.u32 %v8675, 7
    %v8677 = vsub.s32 0, %v8676
    %v8678 = vrot.slane %v8673, %v8677
    %v8696 = vunpack.c.l.b16 %v8657
    %v8697 = vunpack.c.l.b16 %v8658
    %v8698 = vunpack.c.l.b16 %v8659
    %v8699 = vunpack.c.l.b16 %v8660
    %v8700 = vunpack.c.l.b16 %v8661
    %v8701 = vunpack.c.l.b16 %v8662
    %v8702 = vunpack.c.l.b16 %v8663
    %v8703 = vunpack.c.l.b16 %v8664
    %v8704 = vunpack.c.l.b16 %v8665
    %v8705 = vunpack.c.l.b16 %v8666
    %v8706 = vunpack.c.l.b16 %v8667
    %v8707 = vunpack.c.l.b16 %v8668
    %v8708 = vunpack.c.l.b16 %v8669
    %v8709 = vunpack.c.l.b16 %v8670
    %v8710 = vunpack.c.l.b16 %v8671
    %v8711 = vunpack.c.l.b16 %v8672
    %v8712 = vpack.c.b16 %v8697, %v8696
    %v8713 = vpack.c.b16 %v8699, %v8698
    %v8714 = vpack.c.b16 %v8701, %v8700
    %v8715 = vpack.c.b16 %v8703, %v8702
    %v8716 = vpack.c.b16 %v8705, %v8704
    %v8717 = vpack.c.b16 %v8707, %v8706
    %v8718 = vpack.c.b16 %v8709, %v8708
    %v8719 = vpack.c.b16 %v8711, %v8710
    %8728 = vmatprep.subr.bf16.mxu0 0
    %8729 = vmatpush1.bf16.msra.mxu0 %v8712
    %8730 = vmatprep.subr.bf16.mxu0 0
    %8731 = vmatpush1.bf16.msra.mxu0 %v8713
    %8732 = vmatprep.subr.bf16.mxu0 0
    %8733 = vmatpush1.bf16.msra.mxu0 %v8714
    %8734 = vmatprep.subr.bf16.mxu0 0
    %8735 = vmatpush1.bf16.msra.mxu0 %v8715
    %8736 = vmatprep.subr.bf16.mxu0 0
    %8737 = vmatpush1.bf16.msra.mxu0 %v8716
    %8738 = vmatprep.subr.bf16.mxu0 0
    %8739 = vmatpush1.bf16.msra.mxu0 %v8717
    %8740 = vmatprep.subr.bf16.mxu0 0
    %8741 = vmatpush1.bf16.msra.mxu0 %v8718
    %8742 = vmatprep.subr.bf16.mxu0 0
    %8743 = vmatpush1.bf16.msra.mxu0 %v8719
    %8744 = vmatprep.subr.bf16.mxu0 0
    %8745 = vmatpush1.bf16.msra.mxu0 0
    %8746 = vmatprep.subr.bf16.mxu0 0
    %8747 = vmatpush1.bf16.msra.mxu0 0
    %8748 = vmatprep.subr.bf16.mxu0 0
    %8749 = vmatpush1.bf16.msra.mxu0 0
    %8750 = vmatprep.subr.bf16.mxu0 0
    %8751 = vmatpush1.bf16.msra.mxu0 0
    %8752 = vmatprep.subr.bf16.mxu0 0
    %8753 = vmatpush1.bf16.msra.mxu0 0
    %8754 = vmatprep.subr.bf16.mxu0 0
    %8755 = vmatpush1.bf16.msra.mxu0 0
    %8756 = vmatprep.subr.bf16.mxu0 0
    %8757 = vmatpush1.bf16.msra.mxu0 0
    %8758 = vmatprep.subr.bf16.mxu0 0
    %8759 = vmatpush1.bf16.msra.mxu0 0
    %8760 = vmatprep.mubr.bf16.mxu0 0
    %8761 = vmatmul.mubr.bf16.gmra.mrb[0].mxu0 %v8656
    %v8762 = vpop.f32.mrb[0].mxu0
    %v8763 = vadd.f32 %v8678, %v8762
    %v8764 = vpop.f32.mrb[0].mxu0
    %v8765 = vpop.f32.mrb[0].mxu0
    %v8766 = vpop.f32.mrb[0].mxu0
    %8767 = vdwg.mxu0
    %v8768 = vld [vmem:[#allocation23] sm:$0x1]
    %v8770 = vlaneseq
    %v8771 = vshrl.u32 %v8770, 7
    %v8772 = vsub.s32 0, %v8771
    %v8773 = vrot.slane %v8768, %v8772
    %v8775 = vmul.f32 %v8763, %v8773
    %8776 = vadd.xlane.f32.xlu0 %v8775
    %v8777 = vpop.xlane.xlu0 %8776
    %v8778 = vld [vmem:[#allocation4] sm:$0x1]
    %v8780 = vlaneseq
    %v8781 = vshrl.u32 %v8780, 7
    %v8782 = vsub.s32 0, %v8781
    %v8783 = vrot.slane %v8778, %v8782
    %v8785 = vadd.f32 %v8777, %v8783
    %vm8786 = vcmask 7168
    %8787 = vst.msk [vmem:[#allocation28] sm:$0xff] %vm8786, %v8785
    // Predicated region
    $region118: #{lstm_price_predictor_forward.1} parent=1 // pred_check
      _
    $region119: #{lstm_price_predictor_forward.1} parent=1 // pred_check_branch
      %8789 = sbr.rel (0) target = $region121
    $region120: #{lstm_price_predictor_forward.1} parent=1 // pred_region
      %s8791 = ssub.s32 128, 128
      %8792 = vsyncadd [#allocation7], %s8791
      %s8794 = sshll.u32 [#allocation28], 4
      %s8795 = int_to_ptr.vmem [resolvable:$true] %s8794
      %8797 = dma.vmem_to_hbm [thread:$0]  %s8795, 128, %s15, [#allocation7]
    $region121: #{lstm_price_predictor_forward.1} parent=1 // pred_fallthru
      _
    // Predicated region
    $region122: #{lstm_price_predictor_forward.1} parent=1 // pred_check
      _
    $region123: #{lstm_price_predictor_forward.1} parent=1 // pred_check_branch
      %8799 = sbr.rel (0) target = $region125
    $region124: #{lstm_price_predictor_forward.1} parent=1 // pred_region
      %8800 = dma.done [#allocation7], 128
    $region125: #{lstm_price_predictor_forward.1} parent=1 // pred_fallthru
      _
    %8801 = vsyncpa [#allocation6], 1
    %8802 = vsyncpa [#allocation9], 1
    %8803 = vsyncpa [#allocation12], 1
    %8804 = vsyncpa [#allocation15], 1
    %8805 = vsyncpa [#allocation18], 1
    %8806 = vsyncpa [#allocation21], 1
    %8807 = vsyncpa [#allocation24], 1
    %8808 = vsyncpa [#allocation27], 1
    %8809 = vsyncpa [#allocation7], 1

</llo_original>
